<compile_context>
chip_gen: v5e
topology: v5e:2x2
jax: 0.10.0
libtpu: 0.0.40
codegen_flags: <defaults>
</compile_context>

<pallas_src>
import functools

import jax
import jax.numpy as jnp
from jax.experimental import pallas as pl
from jax.experimental.pallas import tpu as pltpu

LEAKY_SLOPE = 0.2     # standard GAT LeakyReLU negative slope
NEG_INF = -9e15       # standard GAT finite masking value for non-edges
CHUNK = 128           # in-kernel column sub-chunk (lane width)


def _round_up(x, m):
    return ((x + m - 1) // m) * m


# ---------------------------------------------------------------------------
# Kernel 1: fused projection
#   acc = x_aug @ W_big  (one MXU matmul)
#   columns [0 : H*(Fout+1)]          -> per-head [Wh_h | valid]   (stored as wh_dtype)
#   columns [H*(Fout+1) : +2H]        -> f1 = <Wh,a_src>, f2 = <Wh,a_dst>  (stored f32)
# ---------------------------------------------------------------------------
def _project_kernel(x_ref, w_ref, wh_ref, f_ref, *, hfa):
    acc = jnp.dot(x_ref[...], w_ref[...], preferred_element_type=jnp.float32)
    wh_ref[...] = acc[:, :hfa].astype(wh_ref.dtype)
    f_ref[...] = acc[:, hfa:].astype(f_ref.dtype)


def _project(x_aug, w_big, *, hfa, tile_n, wh_dtype):
    n_pad, fin1 = x_aug.shape
    wtot = w_big.shape[1]
    nf = wtot - hfa
    xb = x_aug.dtype.itemsize
    whb = jnp.dtype(wh_dtype).itemsize

    est = (2 * tile_n * fin1 * xb          # x rows (double-buffered)
           + 2 * fin1 * wtot * xb          # W_big (resident, budget x2)
           + 2 * tile_n * hfa * whb        # wh output block
           + 2 * tile_n * nf * 4           # f1/f2 output block
           + tile_n * wtot * 4             # f32 accumulator value
           + (4 << 20))
    vmem_limit = int(min(48 << 20, max(est, 16 << 20)))

    return pl.pallas_call(
        functools.partial(_project_kernel, hfa=hfa),
        out_shape=(jax.ShapeDtypeStruct((n_pad, hfa), wh_dtype),
                   jax.ShapeDtypeStruct((n_pad, nf), jnp.float32)),
        grid_spec=pltpu.PrefetchScalarGridSpec(
            num_scalar_prefetch=0,
            grid=(n_pad // tile_n,),
            in_specs=[
                pl.BlockSpec((tile_n, fin1), lambda i: (i, 0)),   # x_aug rows
                pl.BlockSpec((fin1, wtot), lambda i: (0, 0)),     # W_big (resident)
            ],
            out_specs=[
                pl.BlockSpec((tile_n, hfa), lambda i: (i, 0)),
                pl.BlockSpec((tile_n, nf), lambda i: (i, 0)),
            ],
        ),
        compiler_params=pltpu.CompilerParams(
            dimension_semantics=("parallel",),
            vmem_limit_bytes=vmem_limit,
        ),
    )(x_aug, w_big)


# ---------------------------------------------------------------------------
# Kernel 2: tiled attention with online softmax.
#   grid = (row_tiles, col_tiles); adjacency streamed as int8 (tile_r, tile_c) tiles.
#   Inside: heads outer (static), 128-wide column chunks inner (static) -> small
#   live working set, no (N,N) tensor ever materialized.
#   Per-head fused accumulator block [sum_j p_ij Wh_j | sum_j p_ij] (ones column of
#   the augmented Wh folds the denominator into the same MXU matmul).
# ---------------------------------------------------------------------------
def _attention_kernel(f1_ref, whk_ref, f2_ref, adj_ref, out_ref, m_s, acc_s,
                      *, num_heads, fout, n_chunks, chunk, tile_c,
                      whk_resident, post):
    j = pl.program_id(1)
    nj = pl.num_programs(1)
    f32 = jnp.float32
    fo1 = fout + 1

    # ---- init running max / fused accumulator once per row tile ----
    @pl.when(j == 0)
    def _init():
        m_s[...] = jnp.full(m_s.shape, NEG_INF, f32)
        acc_s[...] = jnp.zeros(acc_s.shape, f32)

    for h in range(num_heads):                     # static unroll, H is small
        blk = slice(h * fo1, (h + 1) * fo1)
        f1_h = f1_ref[:, h:h + 1].astype(f32)      # (tile_r, 1)  <Wh_i, a_src_h>
        m_loc = m_s[:, h:h + 1]                    # running max (vreg-resident)
        acc_loc = acc_s[:, blk]                    # fused acc [values | denom]

        for c in range(n_chunks):                  # 128-wide column sub-chunks
            c0 = c * chunk
            if whk_resident:
                row0 = pl.multiple_of(j * tile_c + c0, chunk)
                whk_c = whk_ref[pl.ds(row0, chunk), blk]          # (chunk, fout+1)
            else:
                whk_c = whk_ref[c0:c0 + chunk, blk]
            f2_c = f2_ref[h:h + 1, c0:c0 + chunk].astype(f32)     # (1, chunk)
            edge = adj_ref[:, c0:c0 + chunk] != 0                 # (tile_r, chunk)

            s = f1_h + f2_c                                       # broadcast logits
            s = jnp.where(edge, s, NEG_INF)                       # mask first ...
            e = jnp.where(s > 0, s, LEAKY_SLOPE * s)              # ... then LeakyReLU

            # online (flash-style) softmax update; normalization deferred
            m_new = jnp.maximum(m_loc, jnp.max(e, axis=1, keepdims=True))
            alpha = jnp.exp(m_loc - m_new)
            p = jnp.exp(e - m_new)                                # unnormalized probs
            acc_loc = alpha * acc_loc + jnp.dot(
                p.astype(whk_c.dtype), whk_c, preferred_element_type=f32)
            m_loc = m_new

        m_s[:, h:h + 1] = m_loc
        acc_s[:, blk] = acc_loc

    # ---- finalize on the last column tile: exact 1/denom + fused post-op,
    #      assembled full-width so the output store is a single wide store ----
    @pl.when(j == nj - 1)
    def _finalize():
        parts = []
        for h in range(num_heads):
            a = acc_s[:, h * fo1:(h + 1) * fo1]
            parts.append(a[:, :fout] / a[:, fout:fo1])            # exact division
        z = parts[0] if num_heads == 1 else jnp.concatenate(parts, axis=1)
        if post == "log_softmax":
            z = z - jnp.max(z, axis=1, keepdims=True)
            z = z - jnp.log(jnp.sum(jnp.exp(z), axis=1, keepdims=True))
        else:  # "elu"
            z = jnp.where(z > 0, z, jnp.exp(jnp.minimum(z, 0.0)) - 1.0)
        out_ref[...] = z.astype(out_ref.dtype)


def gat_layer(x_pad, valid, adj_pad_i8, w, a_src, a_dst, *, post,
              tile_r, tile_c, wh_dtype, out_dtype):
    """One GraphAttentionLayer over already-padded inputs.

    x_pad      : (Np, Fin)        node features (rows >= N zero / ignored)
    valid      : (Np, 1) f32      1.0 for real rows, 0.0 for padding
    adj_pad_i8 : (Np, Np) int8    adjacency mask (0/1), zero-padded
    w          : (Fin, H*Fout)    per-head weights concatenated along columns
    a_src/a_dst: (H, Fout)        source/dest halves of the attention vector a
    returns    : (Np, H*Fout)     heads concatenated along features
    """
    n_pad, fin = x_pad.shape
    num_heads, fout = a_src.shape
    hf = num_heads * fout
    fo1 = fout + 1
    hfa = num_heads * fo1
    f32 = jnp.float32
    assert w.shape == (fin, hf)
    assert n_pad % tile_r == 0 and n_pad % tile_c == 0 and tile_c % CHUNK == 0
    if post == "log_softmax":
        assert num_heads == 1, "final GAT layer must be single-head"

    # ---- parameter prep (tiny, parameter-only): W_big = [W_aug | W_f1 | W_f2] ----
    #   W_aug per head block: [W_h | e_ones]  -> projection emits [Wh_h | valid]
    #   W_f1[:,h] = W_h @ a_src_h, W_f2[:,h] = W_h @ a_dst_h -> projection emits f1,f2
    w3 = w.astype(f32).reshape(fin, num_heads, fout)
    top = jnp.concatenate([w3, jnp.zeros((fin, num_heads, 1), f32)],
                          axis=2).reshape(fin, hfa)
    ones_row = jnp.concatenate([jnp.zeros((1, num_heads, fout), f32),
                                jnp.ones((1, num_heads, 1), f32)],
                               axis=2).reshape(1, hfa)
    w_aug = jnp.concatenate([top, ones_row], axis=0)                    # (Fin+1, hfa)
    wf1 = jnp.einsum('fhd,hd->fh', w3, a_src.astype(f32))               # (Fin, H)
    wf2 = jnp.einsum('fhd,hd->fh', w3, a_dst.astype(f32))
    wf = jnp.concatenate([jnp.concatenate([wf1, wf2], axis=1),
                          jnp.zeros((1, 2 * num_heads), f32)], axis=0)  # (Fin+1, 2H)
    w_big = jnp.concatenate([w_aug, wf], axis=1).astype(wh_dtype)       # (Fin+1, hfa+2H)

    vcol = valid.astype(wh_dtype)
    x_aug = jnp.concatenate([x_pad.astype(wh_dtype) * vcol, vcol], axis=1)

    # (1) fused projection: all heads + logit terms in one lane-dense matmul
    tile_n = min(512, n_pad)
    wh_aug, f12 = _project(x_aug, w_big, hfa=hfa, tile_n=tile_n, wh_dtype=wh_dtype)
    f1_all = f12[:, :num_heads]                     # (Np, H)  f32
    f2t = jnp.transpose(f12[:, num_heads:])         # (H, Np)  f32 (layout plumbing)

    # (2) tiled attention with online softmax
    whb = jnp.dtype(wh_dtype).itemsize
    whk_resident = (2 * n_pad * hfa * whb) <= (16 << 20)  # keep keys resident if small
    n_chunks = tile_c // CHUNK

    if whk_resident:
        whk_spec = pl.BlockSpec((n_pad, hfa), lambda i, j: (0, 0))
        whk_bytes = 2 * n_pad * hfa * whb
    else:
        whk_spec = pl.BlockSpec((tile_c, hfa), lambda i, j: (j, 0))
        whk_bytes = 2 * tile_c * hfa * whb

    est = (whk_bytes
           + 2 * tile_r * tile_c                       # adj int8 (double-buffered)
           + 2 * tile_r * num_heads * 4                # f1 block
           + 2 * num_heads * tile_c * 4                # f2^T block
           + 2 * tile_r * hf * jnp.dtype(out_dtype).itemsize
           + tile_r * (num_heads + hfa) * 4            # scratch
           + (8 << 20))                                # chunk temporaries headroom
    vmem_limit = int(min(48 << 20, max(est, 16 << 20)))

    kernel = functools.partial(
        _attention_kernel, num_heads=num_heads, fout=fout,
        n_chunks=n_chunks, chunk=CHUNK, tile_c=tile_c,
        whk_resident=whk_resident, post=post)

    out = pl.pallas_call(
        kernel,
        out_shape=jax.ShapeDtypeStruct((n_pad, hf), out_dtype),
        grid_spec=pltpu.PrefetchScalarGridSpec(
            num_scalar_prefetch=0,
            grid=(n_pad // tile_r, n_pad // tile_c),
            in_specs=[
                pl.BlockSpec((tile_r, num_heads), lambda i, j: (i, 0)),   # f1 (query)
                whk_spec,                                                  # [Wh | valid] keys
                pl.BlockSpec((num_heads, tile_c), lambda i, j: (0, j)),    # f2^T (keys)
                pl.BlockSpec((tile_r, tile_c), lambda i, j: (i, j)),       # adj int8
            ],
            out_specs=pl.BlockSpec((tile_r, hf), lambda i, j: (i, 0)),
            scratch_shapes=[
                pltpu.VMEM((tile_r, num_heads), jnp.float32),   # running max
                pltpu.VMEM((tile_r, hfa), jnp.float32),         # fused acc [values|denom]
            ],
        ),
        compiler_params=pltpu.CompilerParams(
            dimension_semantics=("parallel", "arbitrary"),
            vmem_limit_bytes=vmem_limit,
        ),
    )(f1_all, wh_aug, f2t, adj_pad_i8)
    return out


def gat_forward(x, adj, params, *, tile_r=128, tile_c=512, wh_dtype=jnp.bfloat16):
    """GAT.forward (eval): elu(gat1(x,adj)) -> dropout(identity) -> gat2 -> log_softmax.

    wh_dtype controls the projected-feature dtype (bf16 default: bf16 MXU matmuls with
    f32 accumulation; logits / softmax / log_softmax stay f32).  Use jnp.float32 for
    full-precision numerics.
    """
    n = x.shape[0]
    # shrink tiles for small graphs; lane tile stays a multiple of 128
    tile_c = min(tile_c, _round_up(n, 128))
    tile_r = min(tile_r, tile_c)
    assert tile_r % 8 == 0 and tile_c % 128 == 0
    n_pad = _round_up(n, tile_c)
    assert n_pad % tile_r == 0 and n_pad % tile_c == 0

    # adjacency is only a mask: ship it as int8 (4x less DMA/VMEM than f32)
    adj_i8 = adj if adj.dtype == jnp.int8 else (adj != 0).astype(jnp.int8)
    adj_pad = jnp.zeros((n_pad, n_pad), jnp.int8).at[:n, :n].set(adj_i8)
    valid = (jnp.arange(n_pad) < n).astype(jnp.float32)[:, None]   # (Np, 1)
    x_pad = jnp.zeros((n_pad, x.shape[1]), jnp.float32).at[:n, :].set(
        x.astype(jnp.float32))

    h = gat_layer(x_pad, valid, adj_pad,
                  params["w1"], params["a1_src"], params["a1_dst"],
                  post="elu", tile_r=tile_r, tile_c=tile_c,
                  wh_dtype=wh_dtype, out_dtype=wh_dtype)
    # TODO(synk): F.dropout with training=True not implemented; eval mode => identity.
    out = gat_layer(h, valid, adj_pad,
                    params["w2"], params["a2_src"], params["a2_dst"],
                    post="log_softmax", tile_r=tile_r, tile_c=tile_c,
                    wh_dtype=wh_dtype, out_dtype=jnp.float32)
    return out[:n]


# ---------------------------------------------------------------------------
# Pure-JAX reference (dense, for correctness checking only)
# ---------------------------------------------------------------------------
def _gat_reference(x, adj, params):
    hp = jax.lax.Precision.HIGHEST

    def layer(h, w, a_src, a_dst):
        nn_, (nh, fout) = h.shape[0], a_src.shape
        w3 = w.reshape(w.shape[0], nh, fout)
        wh = jnp.einsum('nf,fhd->nhd', h, w3, precision=hp)
        f1 = jnp.einsum('nhd,hd->nh', wh, a_src, precision=hp)
        f2 = jnp.einsum('nhd,hd->nh', wh, a_dst, precision=hp)
        e = f1[:, None, :] + f2[None, :, :]                 # e[i, j, h]
        e = jnp.where(e > 0, e, LEAKY_SLOPE * e)
        e = jnp.where((adj != 0)[:, :, None], e, NEG_INF)
        attn = jax.nn.softmax(e, axis=1)
        out = jnp.einsum('njh,jhd->nhd', attn, wh, precision=hp)
        return out.reshape(nn_, nh * fout)

    h1 = jax.nn.elu(layer(x, params["w1"], params["a1_src"], params["a1_dst"]))
    h2 = layer(h1, params["w2"], params["a2_src"], params["a2_dst"])
    return jax.nn.log_softmax(h2, axis=1)


def _xavier_uniform(key, shape, fan_in, fan_out, gain=1.414):
    limit = gain * (6.0 / (fan_in + fan_out)) ** 0.5
    return jax.random.uniform(key, shape, jnp.float32, -limit, limit)


if __name__ == "__main__":
    # Small deterministic problem: N=16 nodes, nfeat=32, nhid=16, nhead=4, nclass=8
    N, nfeat, nhid, nhead, nclass = 16, 32, 16, 4, 8

    key = jax.random.PRNGKey(0)
    keys = jax.random.split(key, 8)

    x = jax.random.normal(keys[0], (N, nfeat), dtype=jnp.float32)

    # random symmetric adjacency with self-loops, stored directly as an int8 mask
    adj_rand = jax.random.uniform(keys[1], (N, N)) < 0.3
    adj_bool = jnp.logical_or(adj_rand, adj_rand.T)
    adj_bool = jnp.logical_or(adj_bool, jnp.eye(N, dtype=bool))
    adj = adj_bool.astype(jnp.int8)

    params = {
        # layer 1: nfeat -> nhid, nhead heads (weights concatenated per head along columns)
        "w1": _xavier_uniform(keys[2], (nfeat, nhead * nhid), nfeat, nhid),
        "a1_src": _xavier_uniform(keys[3], (nhead, nhid), 2 * nhid, 1),
        "a1_dst": _xavier_uniform(keys[4], (nhead, nhid), 2 * nhid, 1),
        # layer 2: nhid*nhead -> nclass, single head (final layer)
        "w2": _xavier_uniform(keys[5], (nhead * nhid, nclass), nhid * nhead, nclass),
        "a2_src": _xavier_uniform(keys[6], (1, nclass), 2 * nclass, 1),
        "a2_dst": _xavier_uniform(keys[7], (1, nclass), 2 * nclass, 1),
    }

    fwd = jax.jit(gat_forward, static_argnames=("tile_r", "tile_c", "wh_dtype"))

    out = jax.block_until_ready(fwd(x, adj, params))                     # bf16 Wh (default)
    out_f32 = jax.block_until_ready(fwd(x, adj, params, wh_dtype=jnp.float32))
    ref = _gat_reference(x, adj, params)

    assert out.shape == (N, nclass), out.shape
    assert bool(jnp.all(jnp.isfinite(out)))
    # log_softmax rows must sum to ~1 in prob space
    assert jnp.allclose(jnp.sum(jnp.exp(out), axis=1), 1.0, atol=1e-4)
    # f32 path should track the dense reference closely; bf16 path loosely
    err_f32 = float(jnp.max(jnp.abs(out_f32 - ref)))
    err_bf16 = float(jnp.max(jnp.abs(out - ref)))
    assert err_f32 < 3e-2, err_f32
    assert err_bf16 < 5e-1, err_bf16

    print("KERNEL_OK")
</pallas_src>

<mosaic_0001>
module attributes {stable_mosaic.version = 11 : i64} {
  func.func @_project_kernel(%arg0: i32, %arg1: memref<128x33xbf16, #tpu.memory_space<vmem>>, %arg2: memref<33x76xbf16, #tpu.memory_space<vmem>>, %arg3: memref<128x68xbf16, #tpu.memory_space<vmem>>, %arg4: memref<128x8xf32, #tpu.memory_space<vmem>>) attributes {dimension_semantics = [#tpu.dimension_semantics<parallel>], iteration_bounds = array<i64: 1>, scalar_prefetch = 0 : i64, scratch_operands = 0 : i64, tpu.core_type = #tpu.core_type<tc>, window_params = [{transform_indices = @transform_0, window_bounds = array<i64: 128, 33>}, {pipeline_mode = #tpu.pipeline_mode<synchronous>, transform_indices = @transform_1, window_bounds = array<i64: 33, 76>}, {transform_indices = @transform_2, window_bounds = array<i64: 128, 68>}, {transform_indices = @transform_3, window_bounds = array<i64: 128, 8>}]} {
    %c0 = arith.constant 0 : index
    %c0_0 = arith.constant 0 : index
    %0 = vector.load %arg1[%c0, %c0_0] : memref<128x33xbf16, #tpu.memory_space<vmem>>, vector<128x33xbf16>
    %c0_1 = arith.constant 0 : index
    %c0_2 = arith.constant 0 : index
    %1 = vector.load %arg2[%c0_1, %c0_2] : memref<33x76xbf16, #tpu.memory_space<vmem>>, vector<33x76xbf16>
    %cst = arith.constant dense<0.000000e+00> : vector<128x76xf32>
    %2 = tpu.matmul %0, %1, %cst {dimension_numbers = #tpu.dot_dimension_numbers<[1], [0], [0], [1], [0, 0, 1, 1], [], []>} : vector<128x33xbf16>, vector<33x76xbf16>, vector<128x76xf32> -> vector<128x76xf32>
    %3 = vector.extract_strided_slice %2 {offsets = [0, 0], sizes = [128, 68], strides = [1, 1]} : vector<128x76xf32> to vector<128x68xf32>
    %4 = arith.truncf %3 : vector<128x68xf32> to vector<128x68xbf16>
    %c0_3 = arith.constant 0 : index
    %c0_4 = arith.constant 0 : index
    %5 = vector.load %arg3[%c0_3, %c0_4] : memref<128x68xbf16, #tpu.memory_space<vmem>>, vector<128x68xbf16>
    tpu.vector_store %arg3[%c0_3, %c0_4], %4 {strides = array<i32>} : memref<128x68xbf16, #tpu.memory_space<vmem>>, vector<128x68xbf16>,
    %6 = vector.extract_strided_slice %2 {offsets = [0, 68], sizes = [128, 8], strides = [1, 1]} : vector<128x76xf32> to vector<128x8xf32>
    %c0_5 = arith.constant 0 : index
    %c0_6 = arith.constant 0 : index
    %7 = vector.load %arg4[%c0_5, %c0_6] : memref<128x8xf32, #tpu.memory_space<vmem>>, vector<128x8xf32>
    tpu.vector_store %arg4[%c0_5, %c0_6], %6 {strides = array<i32>} : memref<128x8xf32, #tpu.memory_space<vmem>>, vector<128x8xf32>,
    return
  }
  func.func @transform_0(%arg0: i32) -> (i32, i32) {
    %c0_i32 = arith.constant 0 : i32
    %c0_i32_0 = arith.constant 0 : i32
    return %arg0, %c0_i32 : i32, i32
  }
  func.func @transform_1(%arg0: i32) -> (i32, i32) {
    %c0_i32 = arith.constant 0 : i32
    %c0_i32_0 = arith.constant 0 : i32
    %c0_i32_1 = arith.constant 0 : i32
    return %c0_i32, %c0_i32_0 : i32, i32
  }
  func.func @transform_2(%arg0: i32) -> (i32, i32) {
    %c0_i32 = arith.constant 0 : i32
    %c0_i32_0 = arith.constant 0 : i32
    return %arg0, %c0_i32 : i32, i32
  }
  func.func @transform_3(%arg0: i32) -> (i32, i32) {
    %c0_i32 = arith.constant 0 : i32
    %c0_i32_0 = arith.constant 0 : i32
    return %arg0, %c0_i32 : i32, i32
  }
}

module attributes {stable_mosaic.version = 11 : i64} {
  func.func @_project_kernel(%arg0: i32, %arg1: memref<128x65xbf16, #tpu.memory_space<vmem>>, %arg2: memref<65x11xbf16, #tpu.memory_space<vmem>>, %arg3: memref<128x9xbf16, #tpu.memory_space<vmem>>, %arg4: memref<128x2xf32, #tpu.memory_space<vmem>>) attributes {dimension_semantics = [#tpu.dimension_semantics<parallel>], iteration_bounds = array<i64: 1>, scalar_prefetch = 0 : i64, scratch_operands = 0 : i64, tpu.core_type = #tpu.core_type<tc>, window_params = [{transform_indices = @transform_0, window_bounds = array<i64: 128, 65>}, {pipeline_mode = #tpu.pipeline_mode<synchronous>, transform_indices = @transform_1, window_bounds = array<i64: 65, 11>}, {transform_indices = @transform_2, window_bounds = array<i64: 128, 9>}, {transform_indices = @transform_3, window_bounds = array<i64: 128, 2>}]} {
    %c0 = arith.constant 0 : index
    %c0_0 = arith.constant 0 : index
    %0 = vector.load %arg1[%c0, %c0_0] : memref<128x65xbf16, #tpu.memory_space<vmem>>, vector<128x65xbf16>
    %c0_1 = arith.constant 0 : index
    %c0_2 = arith.constant 0 : index
    %1 = vector.load %arg2[%c0_1, %c0_2] : memref<65x11xbf16, #tpu.memory_space<vmem>>, vector<65x11xbf16>
    %cst = arith.constant dense<0.000000e+00> : vector<128x11xf32>
    %2 = tpu.matmul %0, %1, %cst {dimension_numbers = #tpu.dot_dimension_numbers<[1], [0], [0], [1], [0, 0, 1, 1], [], []>} : vector<128x65xbf16>, vector<65x11xbf16>, vector<128x11xf32> -> vector<128x11xf32>
    %3 = vector.extract_strided_slice %2 {offsets = [0, 0], sizes = [128, 9], strides = [1, 1]} : vector<128x11xf32> to vector<128x9xf32>
    %4 = arith.truncf %3 : vector<128x9xf32> to vector<128x9xbf16>
    %c0_3 = arith.constant 0 : index
    %c0_4 = arith.constant 0 : index
    %5 = vector.load %arg3[%c0_3, %c0_4] : memref<128x9xbf16, #tpu.memory_space<vmem>>, vector<128x9xbf16>
    tpu.vector_store %arg3[%c0_3, %c0_4], %4 {strides = array<i32>} : memref<128x9xbf16, #tpu.memory_space<vmem>>, vector<128x9xbf16>,
    %6 = vector.extract_strided_slice %2 {offsets = [0, 9], sizes = [128, 2], strides = [1, 1]} : vector<128x11xf32> to vector<128x2xf32>
    %c0_5 = arith.constant 0 : index
    %c0_6 = arith.constant 0 : index
    %7 = vector.load %arg4[%c0_5, %c0_6] : memref<128x2xf32, #tpu.memory_space<vmem>>, vector<128x2xf32>
    tpu.vector_store %arg4[%c0_5, %c0_6], %6 {strides = array<i32>} : memref<128x2xf32, #tpu.memory_space<vmem>>, vector<128x2xf32>,
    return
  }
  func.func @transform_0(%arg0: i32) -> (i32, i32) {
    %c0_i32 = arith.constant 0 : i32
    %c0_i32_0 = arith.constant 0 : i32
    return %arg0, %c0_i32 : i32, i32
  }
  func.func @transform_1(%arg0: i32) -> (i32, i32) {
    %c0_i32 = arith.constant 0 : i32
    %c0_i32_0 = arith.constant 0 : i32
    %c0_i32_1 = arith.constant 0 : i32
    return %c0_i32, %c0_i32_0 : i32, i32
  }
  func.func @transform_2(%arg0: i32) -> (i32, i32) {
    %c0_i32 = arith.constant 0 : i32
    %c0_i32_0 = arith.constant 0 : i32
    return %arg0, %c0_i32 : i32, i32
  }
  func.func @transform_3(%arg0: i32) -> (i32, i32) {
    %c0_i32 = arith.constant 0 : i32
    %c0_i32_0 = arith.constant 0 : i32
    return %arg0, %c0_i32 : i32, i32
  }
}

module attributes {stable_mosaic.version = 11 : i64} {
  func.func @_attention_kernel(%arg0: i32, %arg1: i32, %arg2: memref<128x4xf32, #tpu.memory_space<vmem>>, %arg3: memref<128x68xbf16, #tpu.memory_space<vmem>>, %arg4: memref<4x128xf32, #tpu.memory_space<vmem>>, %arg5: memref<128x128xi8, #tpu.memory_space<vmem>>, %arg6: memref<128x64xbf16, #tpu.memory_space<vmem>>, %arg7: memref<128x4xf32, #tpu.memory_space<vmem>>, %arg8: memref<128x68xf32, #tpu.memory_space<vmem>>) attributes {dimension_semantics = [#tpu.dimension_semantics<parallel>, #tpu.dimension_semantics<arbitrary>], iteration_bounds = array<i64: 1, 1>, scalar_prefetch = 0 : i64, scratch_operands = 2 : i64, tpu.core_type = #tpu.core_type<tc>, window_params = [{transform_indices = @transform_0, window_bounds = array<i64: 128, 4>}, {pipeline_mode = #tpu.pipeline_mode<synchronous>, transform_indices = @transform_1, window_bounds = array<i64: 128, 68>}, {transform_indices = @transform_2, window_bounds = array<i64: 4, 128>}, {transform_indices = @transform_3, window_bounds = array<i64: 128, 128>}, {transform_indices = @transform_4, window_bounds = array<i64: 128, 64>}]} {
    %c0_i32 = arith.constant 0 : i32
    %0 = arith.cmpi eq, %arg1, %c0_i32 : i32
    %1 = arith.extui %0 : i1 to i32
    %c0_i32_0 = arith.constant 0 : i32
    %2 = arith.cmpi ne, %1, %c0_i32_0 : i32
    scf.if %2 {
      %cst_85 = arith.constant -9.000000e+15 : f32
      %154 = vector.broadcast %cst_85 : f32 to vector<128x4xf32>
      %c0_86 = arith.constant 0 : index
      %c0_87 = arith.constant 0 : index
      %155 = vector.load %arg7[%c0_86, %c0_87] : memref<128x4xf32, #tpu.memory_space<vmem>>, vector<128x4xf32>
      tpu.vector_store %arg7[%c0_86, %c0_87], %154 {strides = array<i32>} : memref<128x4xf32, #tpu.memory_space<vmem>>, vector<128x4xf32>,
      %cst_88 = arith.constant 0.000000e+00 : f32
      %156 = vector.broadcast %cst_88 : f32 to vector<128x68xf32>
      %c0_89 = arith.constant 0 : index
      %c0_90 = arith.constant 0 : index
      %157 = vector.load %arg8[%c0_89, %c0_90] : memref<128x68xf32, #tpu.memory_space<vmem>>, vector<128x68xf32>
      tpu.vector_store %arg8[%c0_89, %c0_90], %156 {strides = array<i32>} : memref<128x68xf32, #tpu.memory_space<vmem>>, vector<128x68xf32>,
    } else {
    }
    %c0 = arith.constant 0 : index
    %c0_1 = arith.constant 0 : index
    %3 = vector.load %arg2[%c0, %c0_1] : memref<128x4xf32, #tpu.memory_space<vmem>>, vector<128x1xf32>
    %c0_2 = arith.constant 0 : index
    %c0_3 = arith.constant 0 : index
    %4 = vector.load %arg7[%c0_2, %c0_3] : memref<128x4xf32, #tpu.memory_space<vmem>>, vector<128x1xf32>
    %c0_4 = arith.constant 0 : index
    %c0_5 = arith.constant 0 : index
    %5 = vector.load %arg8[%c0_4, %c0_5] : memref<128x68xf32, #tpu.memory_space<vmem>>, vector<128x17xf32>
    %c128_i32 = arith.constant 128 : i32
    %6 = arith.muli %arg1, %c128_i32 : i32
    %c0_i32_6 = arith.constant 0 : i32
    %7 = arith.addi %6, %c0_i32_6 : i32
    %8 = tpu.assume_multiple %7, 128 : i32
    %9 = arith.index_cast %8 : i32 to index
    %c0_7 = arith.constant 0 : index
    %10 = vector.load %arg3[%9, %c0_7] : memref<128x68xbf16, #tpu.memory_space<vmem>>, vector<128x17xbf16>
    %c0_8 = arith.constant 0 : index
    %c0_9 = arith.constant 0 : index
    %11 = vector.load %arg4[%c0_8, %c0_9] : memref<4x128xf32, #tpu.memory_space<vmem>>, vector<1x128xf32>
    %c0_10 = arith.constant 0 : index
    %c0_11 = arith.constant 0 : index
    %12 = vector.load %arg5[%c0_10, %c0_11] : memref<128x128xi8, #tpu.memory_space<vmem>>, vector<128x128xi8>
    %c0_i8 = arith.constant 0 : i8
    %13 = vector.broadcast %c0_i8 : i8 to vector<128x128xi8>
    %14 = arith.cmpi ne, %12, %13 : vector<128x128xi8>
    %15 = vector.broadcast %3 : vector<128x1xf32> to vector<128x128xf32>
    %16 = vector.broadcast %11 : vector<1x128xf32> to vector<128x128xf32>
    %17 = arith.addf %15, %16 : vector<128x128xf32>
    %cst = arith.constant -9.000000e+15 : f32
    %18 = vector.broadcast %cst : f32 to vector<128x128xf32>
    %19 = arith.select %14, %17, %18 : vector<128x128xi1>, vector<128x128xf32>
    %cst_12 = arith.constant 0.000000e+00 : f32
    %20 = vector.broadcast %cst_12 : f32 to vector<128x128xf32>
    %21 = arith.cmpf ogt, %19, %20 : vector<128x128xf32>
    %cst_13 = arith.constant 2.000000e-01 : f32
    %22 = vector.broadcast %cst_13 : f32 to vector<128x128xf32>
    %23 = arith.mulf %22, %19 : vector<128x128xf32>
    %24 = arith.select %21, %19, %23 : vector<128x128xi1>, vector<128x128xf32>
    %cst_14 = arith.constant dense<0xFF800000> : vector<128xf32>
    %25 = vector.multi_reduction <maximumf>, %24, %cst_14 [1] : vector<128x128xf32> to vector<128xf32>
    %26 = vector.shape_cast %25 : vector<128xf32> to vector<128x1xf32>
    %27 = arith.maximumf %4, %26 : vector<128x1xf32>
    %28 = arith.subf %4, %27 : vector<128x1xf32>
    %29 = math.exp %28 : vector<128x1xf32>
    %30 = vector.broadcast %27 : vector<128x1xf32> to vector<128x128xf32>
    %31 = arith.subf %24, %30 : vector<128x128xf32>
    %32 = math.exp %31 : vector<128x128xf32>
    %33 = vector.broadcast %29 : vector<128x1xf32> to vector<128x17xf32>
    %34 = arith.mulf %33, %5 : vector<128x17xf32>
    %35 = arith.truncf %32 : vector<128x128xf32> to vector<128x128xbf16>
    %cst_15 = arith.constant dense<0.000000e+00> : vector<128x17xf32>
    %36 = tpu.matmul %35, %10, %cst_15 {dimension_numbers = #tpu.dot_dimension_numbers<[1], [0], [0], [1], [0, 0, 1, 1], [], []>} : vector<128x128xbf16>, vector<128x17xbf16>, vector<128x17xf32> -> vector<128x17xf32>
    %37 = arith.addf %34, %36 : vector<128x17xf32>
    %c0_16 = arith.constant 0 : index
    %c0_17 = arith.constant 0 : index
    %38 = vector.load %arg7[%c0_16, %c0_17] : memref<128x4xf32, #tpu.memory_space<vmem>>, vector<128x1xf32>
    tpu.vector_store %arg7[%c0_16, %c0_17], %27 {strides = array<i32>} : memref<128x4xf32, #tpu.memory_space<vmem>>, vector<128x1xf32>,
    %c0_18 = arith.constant 0 : index
    %c0_19 = arith.constant 0 : index
    %39 = vector.load %arg8[%c0_18, %c0_19] : memref<128x68xf32, #tpu.memory_space<vmem>>, vector<128x17xf32>
    tpu.vector_store %arg8[%c0_18, %c0_19], %37 {strides = array<i32>} : memref<128x68xf32, #tpu.memory_space<vmem>>, vector<128x17xf32>,
    %c0_20 = arith.constant 0 : index
    %c1 = arith.constant 1 : index
    %40 = vector.load %arg2[%c0_20, %c1] : memref<128x4xf32, #tpu.memory_space<vmem>>, vector<128x1xf32>
    %c0_21 = arith.constant 0 : index
    %c1_22 = arith.constant 1 : index
    %41 = vector.load %arg7[%c0_21, %c1_22] : memref<128x4xf32, #tpu.memory_space<vmem>>, vector<128x1xf32>
    %c0_23 = arith.constant 0 : index
    %c17 = arith.constant 17 : index
    %42 = vector.load %arg8[%c0_23, %c17] : memref<128x68xf32, #tpu.memory_space<vmem>>, vector<128x17xf32>
    %c128_i32_24 = arith.constant 128 : i32
    %43 = arith.muli %arg1, %c128_i32_24 : i32
    %c0_i32_25 = arith.constant 0 : i32
    %44 = arith.addi %43, %c0_i32_25 : i32
    %45 = tpu.assume_multiple %44, 128 : i32
    %46 = arith.index_cast %45 : i32 to index
    %c17_26 = arith.constant 17 : index
    %47 = vector.load %arg3[%46, %c17_26] : memref<128x68xbf16, #tpu.memory_space<vmem>>, vector<128x17xbf16>
    %c1_27 = arith.constant 1 : index
    %c0_28 = arith.constant 0 : index
    %48 = vector.load %arg4[%c1_27, %c0_28] : memref<4x128xf32, #tpu.memory_space<vmem>>, vector<1x128xf32>
    %c0_29 = arith.constant 0 : index
    %c0_30 = arith.constant 0 : index
    %49 = vector.load %arg5[%c0_29, %c0_30] : memref<128x128xi8, #tpu.memory_space<vmem>>, vector<128x128xi8>
    %c0_i8_31 = arith.constant 0 : i8
    %50 = vector.broadcast %c0_i8_31 : i8 to vector<128x128xi8>
    %51 = arith.cmpi ne, %49, %50 : vector<128x128xi8>
    %52 = vector.broadcast %40 : vector<128x1xf32> to vector<128x128xf32>
    %53 = vector.broadcast %48 : vector<1x128xf32> to vector<128x128xf32>
    %54 = arith.addf %52, %53 : vector<128x128xf32>
    %cst_32 = arith.constant -9.000000e+15 : f32
    %55 = vector.broadcast %cst_32 : f32 to vector<128x128xf32>
    %56 = arith.select %51, %54, %55 : vector<128x128xi1>, vector<128x128xf32>
    %cst_33 = arith.constant 0.000000e+00 : f32
    %57 = vector.broadcast %cst_33 : f32 to vector<128x128xf32>
    %58 = arith.cmpf ogt, %56, %57 : vector<128x128xf32>
    %cst_34 = arith.constant 2.000000e-01 : f32
    %59 = vector.broadcast %cst_34 : f32 to vector<128x128xf32>
    %60 = arith.mulf %59, %56 : vector<128x128xf32>
    %61 = arith.select %58, %56, %60 : vector<128x128xi1>, vector<128x128xf32>
    %cst_35 = arith.constant dense<0xFF800000> : vector<128xf32>
    %62 = vector.multi_reduction <maximumf>, %61, %cst_35 [1] : vector<128x128xf32> to vector<128xf32>
    %63 = vector.shape_cast %62 : vector<128xf32> to vector<128x1xf32>
    %64 = arith.maximumf %41, %63 : vector<128x1xf32>
    %65 = arith.subf %41, %64 : vector<128x1xf32>
    %66 = math.exp %65 : vector<128x1xf32>
    %67 = vector.broadcast %64 : vector<128x1xf32> to vector<128x128xf32>
    %68 = arith.subf %61, %67 : vector<128x128xf32>
    %69 = math.exp %68 : vector<128x128xf32>
    %70 = vector.broadcast %66 : vector<128x1xf32> to vector<128x17xf32>
    %71 = arith.mulf %70, %42 : vector<128x17xf32>
    %72 = arith.truncf %69 : vector<128x128xf32> to vector<128x128xbf16>
    %cst_36 = arith.constant dense<0.000000e+00> : vector<128x17xf32>
    %73 = tpu.matmul %72, %47, %cst_36 {dimension_numbers = #tpu.dot_dimension_numbers<[1], [0], [0], [1], [0, 0, 1, 1], [], []>} : vector<128x128xbf16>, vector<128x17xbf16>, vector<128x17xf32> -> vector<128x17xf32>
    %74 = arith.addf %71, %73 : vector<128x17xf32>
    %c0_37 = arith.constant 0 : index
    %c1_38 = arith.constant 1 : index
    %75 = vector.load %arg7[%c0_37, %c1_38] : memref<128x4xf32, #tpu.memory_space<vmem>>, vector<128x1xf32>
    tpu.vector_store %arg7[%c0_37, %c1_38], %64 {strides = array<i32>} : memref<128x4xf32, #tpu.memory_space<vmem>>, vector<128x1xf32>,
    %c0_39 = arith.constant 0 : index
    %c17_40 = arith.constant 17 : index
    %76 = vector.load %arg8[%c0_39, %c17_40] : memref<128x68xf32, #tpu.memory_space<vmem>>, vector<128x17xf32>
    tpu.vector_store %arg8[%c0_39, %c17_40], %74 {strides = array<i32>} : memref<128x68xf32, #tpu.memory_space<vmem>>, vector<128x17xf32>,
    %c0_41 = arith.constant 0 : index
    %c2 = arith.constant 2 : index
    %77 = vector.load %arg2[%c0_41, %c2] : memref<128x4xf32, #tpu.memory_space<vmem>>, vector<128x1xf32>
    %c0_42 = arith.constant 0 : index
    %c2_43 = arith.constant 2 : index
    %78 = vector.load %arg7[%c0_42, %c2_43] : memref<128x4xf32, #tpu.memory_space<vmem>>, vector<128x1xf32>
    %c0_44 = arith.constant 0 : index
    %c34 = arith.constant 34 : index
    %79 = vector.load %arg8[%c0_44, %c34] : memref<128x68xf32, #tpu.memory_space<vmem>>, vector<128x17xf32>
    %c128_i32_45 = arith.constant 128 : i32
    %80 = arith.muli %arg1, %c128_i32_45 : i32
    %c0_i32_46 = arith.constant 0 : i32
    %81 = arith.addi %80, %c0_i32_46 : i32
    %82 = tpu.assume_multiple %81, 128 : i32
    %83 = arith.index_cast %82 : i32 to index
    %c34_47 = arith.constant 34 : index
    %84 = vector.load %arg3[%83, %c34_47] : memref<128x68xbf16, #tpu.memory_space<vmem>>, vector<128x17xbf16>
    %c2_48 = arith.constant 2 : index
    %c0_49 = arith.constant 0 : index
    %85 = vector.load %arg4[%c2_48, %c0_49] : memref<4x128xf32, #tpu.memory_space<vmem>>, vector<1x128xf32>
    %c0_50 = arith.constant 0 : index
    %c0_51 = arith.constant 0 : index
    %86 = vector.load %arg5[%c0_50, %c0_51] : memref<128x128xi8, #tpu.memory_space<vmem>>, vector<128x128xi8>
    %c0_i8_52 = arith.constant 0 : i8
    %87 = vector.broadcast %c0_i8_52 : i8 to vector<128x128xi8>
    %88 = arith.cmpi ne, %86, %87 : vector<128x128xi8>
    %89 = vector.broadcast %77 : vector<128x1xf32> to vector<128x128xf32>
    %90 = vector.broadcast %85 : vector<1x128xf32> to vector<128x128xf32>
    %91 = arith.addf %89, %90 : vector<128x128xf32>
    %cst_53 = arith.constant -9.000000e+15 : f32
    %92 = vector.broadcast %cst_53 : f32 to vector<128x128xf32>
    %93 = arith.select %88, %91, %92 : vector<128x128xi1>, vector<128x128xf32>
    %cst_54 = arith.constant 0.000000e+00 : f32
    %94 = vector.broadcast %cst_54 : f32 to vector<128x128xf32>
    %95 = arith.cmpf ogt, %93, %94 : vector<128x128xf32>
    %cst_55 = arith.constant 2.000000e-01 : f32
    %96 = vector.broadcast %cst_55 : f32 to vector<128x128xf32>
    %97 = arith.mulf %96, %93 : vector<128x128xf32>
    %98 = arith.select %95, %93, %97 : vector<128x128xi1>, vector<128x128xf32>
    %cst_56 = arith.constant dense<0xFF800000> : vector<128xf32>
    %99 = vector.multi_reduction <maximumf>, %98, %cst_56 [1] : vector<128x128xf32> to vector<128xf32>
    %100 = vector.shape_cast %99 : vector<128xf32> to vector<128x1xf32>
    %101 = arith.maximumf %78, %100 : vector<128x1xf32>
    %102 = arith.subf %78, %101 : vector<128x1xf32>
    %103 = math.exp %102 : vector<128x1xf32>
    %104 = vector.broadcast %101 : vector<128x1xf32> to vector<128x128xf32>
    %105 = arith.subf %98, %104 : vector<128x128xf32>
    %106 = math.exp %105 : vector<128x128xf32>
    %107 = vector.broadcast %103 : vector<128x1xf32> to vector<128x17xf32>
    %108 = arith.mulf %107, %79 : vector<128x17xf32>
    %109 = arith.truncf %106 : vector<128x128xf32> to vector<128x128xbf16>
    %cst_57 = arith.constant dense<0.000000e+00> : vector<128x17xf32>
    %110 = tpu.matmul %109, %84, %cst_57 {dimension_numbers = #tpu.dot_dimension_numbers<[1], [0], [0], [1], [0, 0, 1, 1], [], []>} : vector<128x128xbf16>, vector<128x17xbf16>, vector<128x17xf32> -> vector<128x17xf32>
    %111 = arith.addf %108, %110 : vector<128x17xf32>
    %c0_58 = arith.constant 0 : index
    %c2_59 = arith.constant 2 : index
    %112 = vector.load %arg7[%c0_58, %c2_59] : memref<128x4xf32, #tpu.memory_space<vmem>>, vector<128x1xf32>
    tpu.vector_store %arg7[%c0_58, %c2_59], %101 {strides = array<i32>} : memref<128x4xf32, #tpu.memory_space<vmem>>, vector<128x1xf32>,
    %c0_60 = arith.constant 0 : index
    %c34_61 = arith.constant 34 : index
    %113 = vector.load %arg8[%c0_60, %c34_61] : memref<128x68xf32, #tpu.memory_space<vmem>>, vector<128x17xf32>
    tpu.vector_store %arg8[%c0_60, %c34_61], %111 {strides = array<i32>} : memref<128x68xf32, #tpu.memory_space<vmem>>, vector<128x17xf32>,
    %c0_62 = arith.constant 0 : index
    %c3 = arith.constant 3 : index
    %114 = vector.load %arg2[%c0_62, %c3] : memref<128x4xf32, #tpu.memory_space<vmem>>, vector<128x1xf32>
    %c0_63 = arith.constant 0 : index
    %c3_64 = arith.constant 3 : index
    %115 = vector.load %arg7[%c0_63, %c3_64] : memref<128x4xf32, #tpu.memory_space<vmem>>, vector<128x1xf32>
    %c0_65 = arith.constant 0 : index
    %c51 = arith.constant 51 : index
    %116 = vector.load %arg8[%c0_65, %c51] : memref<128x68xf32, #tpu.memory_space<vmem>>, vector<128x17xf32>
    %c128_i32_66 = arith.constant 128 : i32
    %117 = arith.muli %arg1, %c128_i32_66 : i32
    %c0_i32_67 = arith.constant 0 : i32
    %118 = arith.addi %117, %c0_i32_67 : i32
    %119 = tpu.assume_multiple %118, 128 : i32
    %120 = arith.index_cast %119 : i32 to index
    %c51_68 = arith.constant 51 : index
    %121 = vector.load %arg3[%120, %c51_68] : memref<128x68xbf16, #tpu.memory_space<vmem>>, vector<128x17xbf16>
    %c3_69 = arith.constant 3 : index
    %c0_70 = arith.constant 0 : index
    %122 = vector.load %arg4[%c3_69, %c0_70] : memref<4x128xf32, #tpu.memory_space<vmem>>, vector<1x128xf32>
    %c0_71 = arith.constant 0 : index
    %c0_72 = arith.constant 0 : index
    %123 = vector.load %arg5[%c0_71, %c0_72] : memref<128x128xi8, #tpu.memory_space<vmem>>, vector<128x128xi8>
    %c0_i8_73 = arith.constant 0 : i8
    %124 = vector.broadcast %c0_i8_73 : i8 to vector<128x128xi8>
    %125 = arith.cmpi ne, %123, %124 : vector<128x128xi8>
    %126 = vector.broadcast %114 : vector<128x1xf32> to vector<128x128xf32>
    %127 = vector.broadcast %122 : vector<1x128xf32> to vector<128x128xf32>
    %128 = arith.addf %126, %127 : vector<128x128xf32>
    %cst_74 = arith.constant -9.000000e+15 : f32
    %129 = vector.broadcast %cst_74 : f32 to vector<128x128xf32>
    %130 = arith.select %125, %128, %129 : vector<128x128xi1>, vector<128x128xf32>
    %cst_75 = arith.constant 0.000000e+00 : f32
    %131 = vector.broadcast %cst_75 : f32 to vector<128x128xf32>
    %132 = arith.cmpf ogt, %130, %131 : vector<128x128xf32>
    %cst_76 = arith.constant 2.000000e-01 : f32
    %133 = vector.broadcast %cst_76 : f32 to vector<128x128xf32>
    %134 = arith.mulf %133, %130 : vector<128x128xf32>
    %135 = arith.select %132, %130, %134 : vector<128x128xi1>, vector<128x128xf32>
    %cst_77 = arith.constant dense<0xFF800000> : vector<128xf32>
    %136 = vector.multi_reduction <maximumf>, %135, %cst_77 [1] : vector<128x128xf32> to vector<128xf32>
    %137 = vector.shape_cast %136 : vector<128xf32> to vector<128x1xf32>
    %138 = arith.maximumf %115, %137 : vector<128x1xf32>
    %139 = arith.subf %115, %138 : vector<128x1xf32>
    %140 = math.exp %139 : vector<128x1xf32>
    %141 = vector.broadcast %138 : vector<128x1xf32> to vector<128x128xf32>
    %142 = arith.subf %135, %141 : vector<128x128xf32>
    %143 = math.exp %142 : vector<128x128xf32>
    %144 = vector.broadcast %140 : vector<128x1xf32> to vector<128x17xf32>
    %145 = arith.mulf %144, %116 : vector<128x17xf32>
    %146 = arith.truncf %143 : vector<128x128xf32> to vector<128x128xbf16>
    %cst_78 = arith.constant dense<0.000000e+00> : vector<128x17xf32>
    %147 = tpu.matmul %146, %121, %cst_78 {dimension_numbers = #tpu.dot_dimension_numbers<[1], [0], [0], [1], [0, 0, 1, 1], [], []>} : vector<128x128xbf16>, vector<128x17xbf16>, vector<128x17xf32> -> vector<128x17xf32>
    %148 = arith.addf %145, %147 : vector<128x17xf32>
    %c0_79 = arith.constant 0 : index
    %c3_80 = arith.constant 3 : index
    %149 = vector.load %arg7[%c0_79, %c3_80] : memref<128x4xf32, #tpu.memory_space<vmem>>, vector<128x1xf32>
    tpu.vector_store %arg7[%c0_79, %c3_80], %138 {strides = array<i32>} : memref<128x4xf32, #tpu.memory_space<vmem>>, vector<128x1xf32>,
    %c0_81 = arith.constant 0 : index
    %c51_82 = arith.constant 51 : index
    %150 = vector.load %arg8[%c0_81, %c51_82] : memref<128x68xf32, #tpu.memory_space<vmem>>, vector<128x17xf32>
    tpu.vector_store %arg8[%c0_81, %c51_82], %148 {strides = array<i32>} : memref<128x68xf32, #tpu.memory_space<vmem>>, vector<128x17xf32>,
    %c0_i32_83 = arith.constant 0 : i32
    %151 = arith.cmpi eq, %arg1, %c0_i32_83 : i32
    %152 = arith.extui %151 : i1 to i32
    %c0_i32_84 = arith.constant 0 : i32
    %153 = arith.cmpi ne, %152, %c0_i32_84 : i32
    scf.if %153 {
      %c0_85 = arith.constant 0 : index
      %c0_86 = arith.constant 0 : index
      %154 = vector.load %arg8[%c0_85, %c0_86] : memref<128x68xf32, #tpu.memory_space<vmem>>, vector<128x17xf32>
      %155 = vector.extract_strided_slice %154 {offsets = [0, 0], sizes = [128, 16], strides = [1, 1]} : vector<128x17xf32> to vector<128x16xf32>
      %156 = vector.extract_strided_slice %154 {offsets = [0, 16], sizes = [128, 1], strides = [1, 1]} : vector<128x17xf32> to vector<128x1xf32>
      %157 = vector.broadcast %156 : vector<128x1xf32> to vector<128x16xf32>
      %158 = arith.divf %155, %157 : vector<128x16xf32>
      %c0_87 = arith.constant 0 : index
      %c17_88 = arith.constant 17 : index
      %159 = vector.load %arg8[%c0_87, %c17_88] : memref<128x68xf32, #tpu.memory_space<vmem>>, vector<128x17xf32>
      %160 = vector.extract_strided_slice %159 {offsets = [0, 0], sizes = [128, 16], strides = [1, 1]} : vector<128x17xf32> to vector<128x16xf32>
      %161 = vector.extract_strided_slice %159 {offsets = [0, 16], sizes = [128, 1], strides = [1, 1]} : vector<128x17xf32> to vector<128x1xf32>
      %162 = vector.broadcast %161 : vector<128x1xf32> to vector<128x16xf32>
      %163 = arith.divf %160, %162 : vector<128x16xf32>
      %c0_89 = arith.constant 0 : index
      %c34_90 = arith.constant 34 : index
      %164 = vector.load %arg8[%c0_89, %c34_90] : memref<128x68xf32, #tpu.memory_space<vmem>>, vector<128x17xf32>
      %165 = vector.extract_strided_slice %164 {offsets = [0, 0], sizes = [128, 16], strides = [1, 1]} : vector<128x17xf32> to vector<128x16xf32>
      %166 = vector.extract_strided_slice %164 {offsets = [0, 16], sizes = [128, 1], strides = [1, 1]} : vector<128x17xf32> to vector<128x1xf32>
      %167 = vector.broadcast %166 : vector<128x1xf32> to vector<128x16xf32>
      %168 = arith.divf %165, %167 : vector<128x16xf32>
      %c0_91 = arith.constant 0 : index
      %c51_92 = arith.constant 51 : index
      %169 = vector.load %arg8[%c0_91, %c51_92] : memref<128x68xf32, #tpu.memory_space<vmem>>, vector<128x17xf32>
      %170 = vector.extract_strided_slice %169 {offsets = [0, 0], sizes = [128, 16], strides = [1, 1]} : vector<128x17xf32> to vector<128x16xf32>
      %171 = vector.extract_strided_slice %169 {offsets = [0, 16], sizes = [128, 1], strides = [1, 1]} : vector<128x17xf32> to vector<128x1xf32>
      %172 = vector.broadcast %171 : vector<128x1xf32> to vector<128x16xf32>
      %173 = arith.divf %170, %172 : vector<128x16xf32>
      %174 = tpu.concatenate %158, %163, %168, %173 in 1 : vector<128x16xf32>, vector<128x16xf32>, vector<128x16xf32>, vector<128x16xf32> -> vector<128x64xf32>
      %cst_93 = arith.constant 0.000000e+00 : f32
      %175 = vector.broadcast %cst_93 : f32 to vector<128x64xf32>
      %176 = arith.cmpf ogt, %174, %175 : vector<128x64xf32>
      %cst_94 = arith.constant 0.000000e+00 : f32
      %177 = vector.broadcast %cst_94 : f32 to vector<128x64xf32>
      %178 = arith.minimumf %174, %177 : vector<128x64xf32>
      %179 = math.exp %178 : vector<128x64xf32>
      %cst_95 = arith.constant 1.000000e+00 : f32
      %180 = vector.broadcast %cst_95 : f32 to vector<128x64xf32>
      %181 = arith.subf %179, %180 : vector<128x64xf32>
      %182 = arith.select %176, %174, %181 : vector<128x64xi1>, vector<128x64xf32>
      %183 = arith.truncf %182 : vector<128x64xf32> to vector<128x64xbf16>
      %c0_96 = arith.constant 0 : index
      %c0_97 = arith.constant 0 : index
      %184 = vector.load %arg6[%c0_96, %c0_97] : memref<128x64xbf16, #tpu.memory_space<vmem>>, vector<128x64xbf16>
      tpu.vector_store %arg6[%c0_96, %c0_97], %183 {strides = array<i32>} : memref<128x64xbf16, #tpu.memory_space<vmem>>, vector<128x64xbf16>,
    } else {
    }
    return
  }
  func.func @transform_0(%arg0: i32, %arg1: i32) -> (i32, i32) {
    %c0_i32 = arith.constant 0 : i32
    %c0_i32_0 = arith.constant 0 : i32
    return %arg0, %c0_i32 : i32, i32
  }
  func.func @transform_1(%arg0: i32, %arg1: i32) -> (i32, i32) {
    %c0_i32 = arith.constant 0 : i32
    %c0_i32_0 = arith.constant 0 : i32
    %c0_i32_1 = arith.constant 0 : i32
    return %c0_i32, %c0_i32_0 : i32, i32
  }
  func.func @transform_2(%arg0: i32, %arg1: i32) -> (i32, i32) {
    %c0_i32 = arith.constant 0 : i32
    %c0_i32_0 = arith.constant 0 : i32
    return %c0_i32, %arg1 : i32, i32
  }
  func.func @transform_3(%arg0: i32, %arg1: i32) -> (i32, i32) {
    %c0_i32 = arith.constant 0 : i32
    return %arg0, %arg1 : i32, i32
  }
  func.func @transform_4(%arg0: i32, %arg1: i32) -> (i32, i32) {
    %c0_i32 = arith.constant 0 : i32
    %c0_i32_0 = arith.constant 0 : i32
    return %arg0, %c0_i32 : i32, i32
  }
}

module attributes {stable_mosaic.version = 11 : i64} {
  func.func @_attention_kernel(%arg0: i32, %arg1: i32, %arg2: memref<128x1xf32, #tpu.memory_space<vmem>>, %arg3: memref<128x9xbf16, #tpu.memory_space<vmem>>, %arg4: memref<1x128xf32, #tpu.memory_space<vmem>>, %arg5: memref<128x128xi8, #tpu.memory_space<vmem>>, %arg6: memref<128x8xf32, #tpu.memory_space<vmem>>, %arg7: memref<128x1xf32, #tpu.memory_space<vmem>>, %arg8: memref<128x9xf32, #tpu.memory_space<vmem>>) attributes {dimension_semantics = [#tpu.dimension_semantics<parallel>, #tpu.dimension_semantics<arbitrary>], iteration_bounds = array<i64: 1, 1>, scalar_prefetch = 0 : i64, scratch_operands = 2 : i64, tpu.core_type = #tpu.core_type<tc>, window_params = [{transform_indices = @transform_0, window_bounds = array<i64: 128, 1>}, {pipeline_mode = #tpu.pipeline_mode<synchronous>, transform_indices = @transform_1, window_bounds = array<i64: 128, 9>}, {transform_indices = @transform_2, window_bounds = array<i64: 1, 128>}, {transform_indices = @transform_3, window_bounds = array<i64: 128, 128>}, {transform_indices = @transform_4, window_bounds = array<i64: 128, 8>}]} {
    %c0_i32 = arith.constant 0 : i32
    %0 = arith.cmpi eq, %arg1, %c0_i32 : i32
    %1 = arith.extui %0 : i1 to i32
    %c0_i32_0 = arith.constant 0 : i32
    %2 = arith.cmpi ne, %1, %c0_i32_0 : i32
    scf.if %2 {
      %cst_22 = arith.constant -9.000000e+15 : f32
      %43 = vector.broadcast %cst_22 : f32 to vector<128x1xf32>
      %c0_23 = arith.constant 0 : index
      %c0_24 = arith.constant 0 : index
      %44 = vector.load %arg7[%c0_23, %c0_24] : memref<128x1xf32, #tpu.memory_space<vmem>>, vector<128x1xf32>
      tpu.vector_store %arg7[%c0_23, %c0_24], %43 {strides = array<i32>} : memref<128x1xf32, #tpu.memory_space<vmem>>, vector<128x1xf32>,
      %cst_25 = arith.constant 0.000000e+00 : f32
      %45 = vector.broadcast %cst_25 : f32 to vector<128x9xf32>
      %c0_26 = arith.constant 0 : index
      %c0_27 = arith.constant 0 : index
      %46 = vector.load %arg8[%c0_26, %c0_27] : memref<128x9xf32, #tpu.memory_space<vmem>>, vector<128x9xf32>
      tpu.vector_store %arg8[%c0_26, %c0_27], %45 {strides = array<i32>} : memref<128x9xf32, #tpu.memory_space<vmem>>, vector<128x9xf32>,
    } else {
    }
    %c0 = arith.constant 0 : index
    %c0_1 = arith.constant 0 : index
    %3 = vector.load %arg2[%c0, %c0_1] : memref<128x1xf32, #tpu.memory_space<vmem>>, vector<128x1xf32>
    %c0_2 = arith.constant 0 : index
    %c0_3 = arith.constant 0 : index
    %4 = vector.load %arg7[%c0_2, %c0_3] : memref<128x1xf32, #tpu.memory_space<vmem>>, vector<128x1xf32>
    %c0_4 = arith.constant 0 : index
    %c0_5 = arith.constant 0 : index
    %5 = vector.load %arg8[%c0_4, %c0_5] : memref<128x9xf32, #tpu.memory_space<vmem>>, vector<128x9xf32>
    %c128_i32 = arith.constant 128 : i32
    %6 = arith.muli %arg1, %c128_i32 : i32
    %c0_i32_6 = arith.constant 0 : i32
    %7 = arith.addi %6, %c0_i32_6 : i32
    %8 = tpu.assume_multiple %7, 128 : i32
    %9 = arith.index_cast %8 : i32 to index
    %c0_7 = arith.constant 0 : index
    %10 = vector.load %arg3[%9, %c0_7] : memref<128x9xbf16, #tpu.memory_space<vmem>>, vector<128x9xbf16>
    %c0_8 = arith.constant 0 : index
    %c0_9 = arith.constant 0 : index
    %11 = vector.load %arg4[%c0_8, %c0_9] : memref<1x128xf32, #tpu.memory_space<vmem>>, vector<1x128xf32>
    %c0_10 = arith.constant 0 : index
    %c0_11 = arith.constant 0 : index
    %12 = vector.load %arg5[%c0_10, %c0_11] : memref<128x128xi8, #tpu.memory_space<vmem>>, vector<128x128xi8>
    %c0_i8 = arith.constant 0 : i8
    %13 = vector.broadcast %c0_i8 : i8 to vector<128x128xi8>
    %14 = arith.cmpi ne, %12, %13 : vector<128x128xi8>
    %15 = vector.broadcast %3 : vector<128x1xf32> to vector<128x128xf32>
    %16 = vector.broadcast %11 : vector<1x128xf32> to vector<128x128xf32>
    %17 = arith.addf %15, %16 : vector<128x128xf32>
    %cst = arith.constant -9.000000e+15 : f32
    %18 = vector.broadcast %cst : f32 to vector<128x128xf32>
    %19 = arith.select %14, %17, %18 : vector<128x128xi1>, vector<128x128xf32>
    %cst_12 = arith.constant 0.000000e+00 : f32
    %20 = vector.broadcast %cst_12 : f32 to vector<128x128xf32>
    %21 = arith.cmpf ogt, %19, %20 : vector<128x128xf32>
    %cst_13 = arith.constant 2.000000e-01 : f32
    %22 = vector.broadcast %cst_13 : f32 to vector<128x128xf32>
    %23 = arith.mulf %22, %19 : vector<128x128xf32>
    %24 = arith.select %21, %19, %23 : vector<128x128xi1>, vector<128x128xf32>
    %cst_14 = arith.constant dense<0xFF800000> : vector<128xf32>
    %25 = vector.multi_reduction <maximumf>, %24, %cst_14 [1] : vector<128x128xf32> to vector<128xf32>
    %26 = vector.shape_cast %25 : vector<128xf32> to vector<128x1xf32>
    %27 = arith.maximumf %4, %26 : vector<128x1xf32>
    %28 = arith.subf %4, %27 : vector<128x1xf32>
    %29 = math.exp %28 : vector<128x1xf32>
    %30 = vector.broadcast %27 : vector<128x1xf32> to vector<128x128xf32>
    %31 = arith.subf %24, %30 : vector<128x128xf32>
    %32 = math.exp %31 : vector<128x128xf32>
    %33 = vector.broadcast %29 : vector<128x1xf32> to vector<128x9xf32>
    %34 = arith.mulf %33, %5 : vector<128x9xf32>
    %35 = arith.truncf %32 : vector<128x128xf32> to vector<128x128xbf16>
    %cst_15 = arith.constant dense<0.000000e+00> : vector<128x9xf32>
    %36 = tpu.matmul %35, %10, %cst_15 {dimension_numbers = #tpu.dot_dimension_numbers<[1], [0], [0], [1], [0, 0, 1, 1], [], []>} : vector<128x128xbf16>, vector<128x9xbf16>, vector<128x9xf32> -> vector<128x9xf32>
    %37 = arith.addf %34, %36 : vector<128x9xf32>
    %c0_16 = arith.constant 0 : index
    %c0_17 = arith.constant 0 : index
    %38 = vector.load %arg7[%c0_16, %c0_17] : memref<128x1xf32, #tpu.memory_space<vmem>>, vector<128x1xf32>
    tpu.vector_store %arg7[%c0_16, %c0_17], %27 {strides = array<i32>} : memref<128x1xf32, #tpu.memory_space<vmem>>, vector<128x1xf32>,
    %c0_18 = arith.constant 0 : index
    %c0_19 = arith.constant 0 : index
    %39 = vector.load %arg8[%c0_18, %c0_19] : memref<128x9xf32, #tpu.memory_space<vmem>>, vector<128x9xf32>
    tpu.vector_store %arg8[%c0_18, %c0_19], %37 {strides = array<i32>} : memref<128x9xf32, #tpu.memory_space<vmem>>, vector<128x9xf32>,
    %c0_i32_20 = arith.constant 0 : i32
    %40 = arith.cmpi eq, %arg1, %c0_i32_20 : i32
    %41 = arith.extui %40 : i1 to i32
    %c0_i32_21 = arith.constant 0 : i32
    %42 = arith.cmpi ne, %41, %c0_i32_21 : i32
    scf.if %42 {
      %c0_22 = arith.constant 0 : index
      %c0_23 = arith.constant 0 : index
      %43 = vector.load %arg8[%c0_22, %c0_23] : memref<128x9xf32, #tpu.memory_space<vmem>>, vector<128x9xf32>
      %44 = vector.extract_strided_slice %43 {offsets = [0, 0], sizes = [128, 8], strides = [1, 1]} : vector<128x9xf32> to vector<128x8xf32>
      %45 = vector.extract_strided_slice %43 {offsets = [0, 8], sizes = [128, 1], strides = [1, 1]} : vector<128x9xf32> to vector<128x1xf32>
      %46 = vector.broadcast %45 : vector<128x1xf32> to vector<128x8xf32>
      %47 = arith.divf %44, %46 : vector<128x8xf32>
      %cst_24 = arith.constant dense<0xFF800000> : vector<128xf32>
      %48 = vector.multi_reduction <maximumf>, %47, %cst_24 [1] : vector<128x8xf32> to vector<128xf32>
      %49 = vector.shape_cast %48 : vector<128xf32> to vector<128x1xf32>
      %50 = vector.broadcast %49 : vector<128x1xf32> to vector<128x8xf32>
      %51 = arith.subf %47, %50 : vector<128x8xf32>
      %52 = math.exp %51 : vector<128x8xf32>
      %cst_25 = arith.constant dense<0.000000e+00> : vector<128xf32>
      %53 = vector.multi_reduction <add>, %52, %cst_25 [1] : vector<128x8xf32> to vector<128xf32>
      %54 = vector.shape_cast %53 : vector<128xf32> to vector<128x1xf32>
      %55 = math.log %54 : vector<128x1xf32>
      %56 = vector.broadcast %55 : vector<128x1xf32> to vector<128x8xf32>
      %57 = arith.subf %51, %56 : vector<128x8xf32>
      %c0_26 = arith.constant 0 : index
      %c0_27 = arith.constant 0 : index
      %58 = vector.load %arg6[%c0_26, %c0_27] : memref<128x8xf32, #tpu.memory_space<vmem>>, vector<128x8xf32>
      tpu.vector_store %arg6[%c0_26, %c0_27], %57 {strides = array<i32>} : memref<128x8xf32, #tpu.memory_space<vmem>>, vector<128x8xf32>,
    } else {
    }
    return
  }
  func.func @transform_0(%arg0: i32, %arg1: i32) -> (i32, i32) {
    %c0_i32 = arith.constant 0 : i32
    %c0_i32_0 = arith.constant 0 : i32
    return %arg0, %c0_i32 : i32, i32
  }
  func.func @transform_1(%arg0: i32, %arg1: i32) -> (i32, i32) {
    %c0_i32 = arith.constant 0 : i32
    %c0_i32_0 = arith.constant 0 : i32
    %c0_i32_1 = arith.constant 0 : i32
    return %c0_i32, %c0_i32_0 : i32, i32
  }
  func.func @transform_2(%arg0: i32, %arg1: i32) -> (i32, i32) {
    %c0_i32 = arith.constant 0 : i32
    %c0_i32_0 = arith.constant 0 : i32
    return %c0_i32, %arg1 : i32, i32
  }
  func.func @transform_3(%arg0: i32, %arg1: i32) -> (i32, i32) {
    %c0_i32 = arith.constant 0 : i32
    return %arg0, %arg1 : i32, i32
  }
  func.func @transform_4(%arg0: i32, %arg1: i32) -> (i32, i32) {
    %c0_i32 = arith.constant 0 : i32
    %c0_i32_0 = arith.constant 0 : i32
    return %arg0, %c0_i32 : i32, i32
  }
}

</mosaic_0001>

<llo_original>
// kernel: gat_forward.6
$region0: #{gat_forward.6}
  #allocation0 [shape = 'u32[]', space=smem, size = 0x4, offset = 0x4, fixed_abs, tag = 'smem constant byte address 0x4 - core index']
  #allocation1 [shape = 'u32[72,128]{1,0:T(1,128)}', space=vmem, size = 0x9000, scoped, tag = 'internal scratch']
  %s0 = inlined_call_operand.vmem [shape: bf16[128,65], index: 0, kind: input, shape index: {}]
  %s1 = inlined_call_operand.vmem [shape: bf16[65,11], index: 1, kind: input, shape index: {}]
  %s2 = inlined_call_operand.vmem [shape: bf16[128,9], index: 2, kind: output, shape index: {0}]
  %s3 = inlined_call_operand.vmem [shape: f32[128,2], index: 3, kind: output, shape index: {1}]
  %4 = xla_tuple %s2, %s3
  %s5 = sld [smem:[#allocation0]]
  $region26: #{gat_forward.6} parent=0
    _
  %s7 = ssub.s32 1, %s5
  %s8 = scalar_select 0, %s7, %s5
  // Predicated region
  $region2: #{gat_forward.6} parent=0 // pred_check
    _
  $region3: #{gat_forward.6} parent=0 // pred_check_branch
    %10 = sbr.rel (0) target = $region5
  $region4: #{gat_forward.6} parent=0 // pred_region
    _
  $region5: #{gat_forward.6} parent=0 // pred_fallthru
    _
  // Predicated region
  $region6: #{gat_forward.6} parent=0 // pred_check
    _
  $region7: #{gat_forward.6} parent=0 // pred_check_branch
    %12 = sbr.rel (0) target = $region9
  $region8: #{gat_forward.6} parent=0 // pred_region
    _
  $region9: #{gat_forward.6} parent=0 // pred_fallthru
    _
  %v14 = vld [vmem:[%s0] sm:$0xf]
  %v15 = vld [vmem:[%s0 + $0x4] sm:$0xf]
  %v16 = vld [vmem:[%s0 + $0x8] sm:$0xf]
  %v17 = vld [vmem:[%s0 + $0xc] sm:$0xf]
  %v18 = vld [vmem:[%s0 + $0x10] sm:$0xf]
  %v19 = vld [vmem:[%s0 + $0x14] sm:$0xf]
  %v20 = vld [vmem:[%s0 + $0x18] sm:$0xf]
  %v21 = vld [vmem:[%s0 + $0x1c] sm:$0xf]
  %v22 = vld [vmem:[%s0 + $0x20] sm:$0xf]
  %v23 = vld [vmem:[%s0 + $0x24] sm:$0xf]
  %v24 = vld [vmem:[%s0 + $0x28] sm:$0xf]
  %v25 = vld [vmem:[%s0 + $0x2c] sm:$0xf]
  %v26 = vld [vmem:[%s0 + $0x30] sm:$0xf]
  %v27 = vld [vmem:[%s0 + $0x34] sm:$0xf]
  %v28 = vld [vmem:[%s0 + $0x38] sm:$0xf]
  %v29 = vld [vmem:[%s0 + $0x3c] sm:$0xf]
  %v30 = vld [vmem:[%s1] sm:$0xf]
  %v31 = vld [vmem:[%s1 + $0x4] sm:$0xf]
  %v32 = vld [vmem:[%s1 + $0x8] sm:$0xf]
  %v33 = vld [vmem:[%s1 + $0xc] sm:$0xf]
  %v34 = vld [vmem:[%s1 + $0x10] sm:$0xf]
  %v35 = vld [vmem:[%s1 + $0x14] sm:$0xf]
  %v36 = vld [vmem:[%s1 + $0x18] sm:$0xf]
  %v37 = vld [vmem:[%s1 + $0x1c] sm:$0xf]
  %v38 = vld [vmem:[%s1 + $0x20] sm:$0x1]
  %v55 = vunpack.c.l.b16 %v14
  %v56 = vunpack.c.l.b16 %v15
  %v57 = vunpack.c.l.b16 %v16
  %v58 = vunpack.c.l.b16 %v17
  %v59 = vunpack.c.l.b16 %v18
  %v60 = vunpack.c.l.b16 %v19
  %v61 = vunpack.c.l.b16 %v20
  %v62 = vunpack.c.l.b16 %v21
  %v63 = vunpack.c.l.b16 %v22
  %v64 = vunpack.c.l.b16 %v23
  %v65 = vunpack.c.l.b16 %v24
  %v66 = vunpack.c.l.b16 %v25
  %v67 = vunpack.c.l.b16 %v26
  %v68 = vunpack.c.l.b16 %v27
  %v69 = vunpack.c.l.b16 %v28
  %v70 = vunpack.c.l.b16 %v29
  %v71 = vpack.c.b16 %v56, %v55
  %v72 = vpack.c.b16 %v58, %v57
  %v73 = vpack.c.b16 %v60, %v59
  %v74 = vpack.c.b16 %v62, %v61
  %v75 = vpack.c.b16 %v64, %v63
  %v76 = vpack.c.b16 %v66, %v65
  %v77 = vpack.c.b16 %v68, %v67
  %v78 = vpack.c.b16 %v70, %v69
  %v88 = vunpack.c.l.b16 %v30
  %v89 = vunpack.c.l.b16 %v31
  %v90 = vunpack.c.l.b16 %v32
  %v91 = vunpack.c.l.b16 %v33
  %v92 = vunpack.c.l.b16 %v34
  %v93 = vunpack.c.l.b16 %v35
  %v94 = vunpack.c.l.b16 %v36
  %v95 = vunpack.c.l.b16 %v37
  %v96 = vunpack.c.l.b16 %v38
  %v97 = vpack.c.b16 %v89, %v88
  %v98 = vpack.c.b16 %v91, %v90
  %v99 = vpack.c.b16 %v93, %v92
  %v100 = vpack.c.b16 %v95, %v94
  %v101 = vpack.c.b16 %v96, %v96
  %vm106 = vcmask 531456
  %v108 = vsel %vm106, %v71, 0
  %v111 = vsel %vm106, %v72, 0
  %v114 = vsel %vm106, %v73, 0
  %v117 = vsel %vm106, %v74, 0
  %v120 = vsel %vm106, %v75, 0
  %v123 = vsel %vm106, %v76, 0
  %v126 = vsel %vm106, %v77, 0
  %v129 = vsel %vm106, %v78, 0
  %vm131 = vcmask 1040384
  %v132 = vsel 0, 4294967295, 65535
  %v133 = vsel %vm131, %v132, 0
  %v135 = vand.u32 %v101, %v133
  %137 = vmatpush.bf16.msra.mxu0 0
  %138 = vmatpush.bf16.msra.mxu0 0
  %139 = vmatpush.bf16.msra.mxu0 0
  %140 = vmatpush.bf16.msra.mxu0 %v135
  %141 = vmatpush.bf16.msra.mxu0 %v100
  %142 = vmatpush.bf16.msra.mxu0 %v99
  %143 = vmatpush.bf16.msra.mxu0 %v98
  %144 = vmatpush.bf16.msra.mxu0 %v97
  %145 = vmatmul.bf16.gmra.mxu0 %v108
  %v146 = vpop.f32.mrf.mxu0
  %v147 = vadd.f32 0.0, %v146
  %v148 = vpop.f32.mrf.mxu0
  %v149 = vadd.f32 0.0, %v148
  %150 = vmatmul.bf16.gmra.mxu0 %v111
  %v151 = vpop.f32.mrf.mxu0
  %v152 = vadd.f32 0.0, %v151
  %v153 = vpop.f32.mrf.mxu0
  %v154 = vadd.f32 0.0, %v153
  %155 = vmatmul.bf16.gmra.mxu0 %v114
  %v156 = vpop.f32.mrf.mxu0
  %v157 = vadd.f32 0.0, %v156
  %v158 = vpop.f32.mrf.mxu0
  %v159 = vadd.f32 0.0, %v158
  %160 = vmatmul.bf16.gmra.mxu0 %v117
  %v161 = vpop.f32.mrf.mxu0
  %v162 = vadd.f32 0.0, %v161
  %v163 = vpop.f32.mrf.mxu0
  %v164 = vadd.f32 0.0, %v163
  %165 = vmatmul.bf16.gmra.mxu0 %v120
  %v166 = vpop.f32.mrf.mxu0
  %v167 = vadd.f32 0.0, %v166
  %v168 = vpop.f32.mrf.mxu0
  %v169 = vadd.f32 0.0, %v168
  %170 = vmatmul.bf16.gmra.mxu0 %v123
  %v171 = vpop.f32.mrf.mxu0
  %v172 = vadd.f32 0.0, %v171
  %v173 = vpop.f32.mrf.mxu0
  %v174 = vadd.f32 0.0, %v173
  %175 = vmatmul.bf16.gmra.mxu0 %v126
  %v176 = vpop.f32.mrf.mxu0
  %v177 = vadd.f32 0.0, %v176
  %v178 = vpop.f32.mrf.mxu0
  %v179 = vadd.f32 0.0, %v178
  %180 = vmatmul.bf16.gmra.mxu0 %v129
  %v181 = vpop.f32.mrf.mxu0
  %v182 = vadd.f32 0.0, %v181
  %v183 = vpop.f32.mrf.mxu0
  %v184 = vadd.f32 0.0, %v183
  %185 = vdwg.mxu0
  %v186 = vpack.c.bf16 %v147, %v147
  %v187 = vpack.c.bf16 %v149, %v149
  %v188 = vpack.c.bf16 %v152, %v152
  %v189 = vpack.c.bf16 %v154, %v154
  %v190 = vpack.c.bf16 %v157, %v157
  %v191 = vpack.c.bf16 %v159, %v159
  %v192 = vpack.c.bf16 %v162, %v162
  %v193 = vpack.c.bf16 %v164, %v164
  %v194 = vpack.c.bf16 %v167, %v167
  %v195 = vpack.c.bf16 %v169, %v169
  %v196 = vpack.c.bf16 %v172, %v172
  %v197 = vpack.c.bf16 %v174, %v174
  %v198 = vpack.c.bf16 %v177, %v177
  %v199 = vpack.c.bf16 %v179, %v179
  %v200 = vpack.c.bf16 %v182, %v182
  %v201 = vpack.c.bf16 %v184, %v184
  %vm202 = vcmask 68608
  %203 = vst.msk [vmem:[%s2] sm:$0xf] %vm202, %v186
  %204 = vst.msk [vmem:[%s2 + $0x4] sm:$0xf] %vm202, %v187
  %205 = vst.msk [vmem:[%s2 + $0x8] sm:$0xf] %vm202, %v188
  %206 = vst.msk [vmem:[%s2 + $0xc] sm:$0xf] %vm202, %v189
  %207 = vst.msk [vmem:[%s2 + $0x10] sm:$0xf] %vm202, %v190
  %208 = vst.msk [vmem:[%s2 + $0x14] sm:$0xf] %vm202, %v191
  %209 = vst.msk [vmem:[%s2 + $0x18] sm:$0xf] %vm202, %v192
  %210 = vst.msk [vmem:[%s2 + $0x1c] sm:$0xf] %vm202, %v193
  %211 = vst.msk [vmem:[%s2 + $0x20] sm:$0xf] %vm202, %v194
  %212 = vst.msk [vmem:[%s2 + $0x24] sm:$0xf] %vm202, %v195
  %213 = vst.msk [vmem:[%s2 + $0x28] sm:$0xf] %vm202, %v196
  %214 = vst.msk [vmem:[%s2 + $0x2c] sm:$0xf] %vm202, %v197
  %215 = vst.msk [vmem:[%s2 + $0x30] sm:$0xf] %vm202, %v198
  %216 = vst.msk [vmem:[%s2 + $0x34] sm:$0xf] %vm202, %v199
  %217 = vst.msk [vmem:[%s2 + $0x38] sm:$0xf] %vm202, %v200
  %218 = vst.msk [vmem:[%s2 + $0x3c] sm:$0xf] %vm202, %v201
  %235 = vrot.lane.b32.xlu0 %v147, 119
  %v236 = vpop.permute.xlu0 %235
  %237 = vrot.lane.b32.xlu0 %v149, 119
  %v238 = vpop.permute.xlu0 %237
  %239 = vrot.lane.b32.xlu0 %v152, 119
  %v240 = vpop.permute.xlu0 %239
  %241 = vrot.lane.b32.xlu0 %v154, 119
  %v242 = vpop.permute.xlu0 %241
  %243 = vrot.lane.b32.xlu0 %v157, 119
  %v244 = vpop.permute.xlu0 %243
  %245 = vrot.lane.b32.xlu0 %v159, 119
  %v246 = vpop.permute.xlu0 %245
  %247 = vrot.lane.b32.xlu0 %v162, 119
  %v248 = vpop.permute.xlu0 %247
  %249 = vrot.lane.b32.xlu0 %v164, 119
  %v250 = vpop.permute.xlu0 %249
  %251 = vrot.lane.b32.xlu0 %v167, 119
  %v252 = vpop.permute.xlu0 %251
  %253 = vrot.lane.b32.xlu0 %v169, 119
  %v254 = vpop.permute.xlu0 %253
  %255 = vrot.lane.b32.xlu0 %v172, 119
  %v256 = vpop.permute.xlu0 %255
  %257 = vrot.lane.b32.xlu0 %v174, 119
  %v258 = vpop.permute.xlu0 %257
  %259 = vrot.lane.b32.xlu0 %v177, 119
  %v260 = vpop.permute.xlu0 %259
  %261 = vrot.lane.b32.xlu0 %v179, 119
  %v262 = vpop.permute.xlu0 %261
  %263 = vrot.lane.b32.xlu0 %v182, 119
  %v264 = vpop.permute.xlu0 %263
  %265 = vrot.lane.b32.xlu0 %v184, 119
  %v266 = vpop.permute.xlu0 %265
  %vm283 = vcmask 15360
  %284 = vst.msk [vmem:[%s3] sm:$0xff] %vm283, %v236
  %285 = vst.msk [vmem:[%s3 + $0x8] sm:$0xff] %vm283, %v238
  %286 = vst.msk [vmem:[%s3 + $0x10] sm:$0xff] %vm283, %v240
  %287 = vst.msk [vmem:[%s3 + $0x18] sm:$0xff] %vm283, %v242
  %288 = vst.msk [vmem:[%s3 + $0x20] sm:$0xff] %vm283, %v244
  %289 = vst.msk [vmem:[%s3 + $0x28] sm:$0xff] %vm283, %v246
  %290 = vst.msk [vmem:[%s3 + $0x30] sm:$0xff] %vm283, %v248
  %291 = vst.msk [vmem:[%s3 + $0x38] sm:$0xff] %vm283, %v250
  %292 = vst.msk [vmem:[%s3 + $0x40] sm:$0xff] %vm283, %v252
  %293 = vst.msk [vmem:[%s3 + $0x48] sm:$0xff] %vm283, %v254
  %294 = vst.msk [vmem:[%s3 + $0x50] sm:$0xff] %vm283, %v256
  %295 = vst.msk [vmem:[%s3 + $0x58] sm:$0xff] %vm283, %v258
  %296 = vst.msk [vmem:[%s3 + $0x60] sm:$0xff] %vm283, %v260
  %297 = vst.msk [vmem:[%s3 + $0x68] sm:$0xff] %vm283, %v262
  %298 = vst.msk [vmem:[%s3 + $0x70] sm:$0xff] %vm283, %v264
  %299 = vst.msk [vmem:[%s3 + $0x78] sm:$0xff] %vm283, %v266
  // Predicated region
  $region10: #{gat_forward.6} parent=0 // pred_check
    _
  $region11: #{gat_forward.6} parent=0 // pred_check_branch
    %301 = sbr.rel (0) target = $region13
  $region12: #{gat_forward.6} parent=0 // pred_region
    _
  $region13: #{gat_forward.6} parent=0 // pred_fallthru
    _
  // Predicated region
  $region14: #{gat_forward.6} parent=0 // pred_check
    _
  $region15: #{gat_forward.6} parent=0 // pred_check_branch
    %303 = sbr.rel (0) target = $region17
  $region16: #{gat_forward.6} parent=0 // pred_region
    _
  $region17: #{gat_forward.6} parent=0 // pred_fallthru
    _
  // Predicated region
  $region18: #{gat_forward.6} parent=0 // pred_check
    _
  $region19: #{gat_forward.6} parent=0 // pred_check_branch
    %305 = sbr.rel (0) target = $region21
  $region20: #{gat_forward.6} parent=0 // pred_region
    _
  $region21: #{gat_forward.6} parent=0 // pred_fallthru
    _
  // Predicated region
  $region22: #{gat_forward.6} parent=0 // pred_check
    _
  $region23: #{gat_forward.6} parent=0 // pred_check_branch
    %307 = sbr.rel (0) target = $region25
  $region24: #{gat_forward.6} parent=0 // pred_region
    _
  $region25: #{gat_forward.6} parent=0 // pred_fallthru
    _

// kernel: gat_forward.4
$region0: #{gat_forward.4}
  #allocation0 [shape = 'u32[]', space=smem, size = 0x4, offset = 0x4, fixed_abs, tag = 'smem constant byte address 0x4 - core index']
  #allocation1 [shape = 'u32[72,128]{1,0:T(1,128)}', space=vmem, size = 0x9000, scoped, tag = 'internal scratch']
  %s0 = inlined_call_operand.vmem [shape: bf16[128,33], index: 0, kind: input, shape index: {}]
  %s1 = inlined_call_operand.vmem [shape: bf16[33,76], index: 1, kind: input, shape index: {}]
  %s2 = inlined_call_operand.vmem [shape: bf16[128,68], index: 2, kind: output, shape index: {0}]
  %s3 = inlined_call_operand.vmem [shape: f32[128,8], index: 3, kind: output, shape index: {1}]
  %4 = xla_tuple %s2, %s3
  %s5 = sld [smem:[#allocation0]]
  $region26: #{gat_forward.4} parent=0
    _
  %s7 = ssub.s32 1, %s5
  %s8 = scalar_select 0, %s7, %s5
  // Predicated region
  $region2: #{gat_forward.4} parent=0 // pred_check
    _
  $region3: #{gat_forward.4} parent=0 // pred_check_branch
    %10 = sbr.rel (0) target = $region5
  $region4: #{gat_forward.4} parent=0 // pred_region
    _
  $region5: #{gat_forward.4} parent=0 // pred_fallthru
    _
  // Predicated region
  $region6: #{gat_forward.4} parent=0 // pred_check
    _
  $region7: #{gat_forward.4} parent=0 // pred_check_branch
    %12 = sbr.rel (0) target = $region9
  $region8: #{gat_forward.4} parent=0 // pred_region
    _
  $region9: #{gat_forward.4} parent=0 // pred_fallthru
    _
  %v14 = vld [vmem:[%s0] sm:$0xf]
  %v15 = vld [vmem:[%s0 + $0x4] sm:$0xf]
  %v16 = vld [vmem:[%s0 + $0x8] sm:$0xf]
  %v17 = vld [vmem:[%s0 + $0xc] sm:$0xf]
  %v18 = vld [vmem:[%s0 + $0x10] sm:$0xf]
  %v19 = vld [vmem:[%s0 + $0x14] sm:$0xf]
  %v20 = vld [vmem:[%s0 + $0x18] sm:$0xf]
  %v21 = vld [vmem:[%s0 + $0x1c] sm:$0xf]
  %v22 = vld [vmem:[%s0 + $0x20] sm:$0xf]
  %v23 = vld [vmem:[%s0 + $0x24] sm:$0xf]
  %v24 = vld [vmem:[%s0 + $0x28] sm:$0xf]
  %v25 = vld [vmem:[%s0 + $0x2c] sm:$0xf]
  %v26 = vld [vmem:[%s0 + $0x30] sm:$0xf]
  %v27 = vld [vmem:[%s0 + $0x34] sm:$0xf]
  %v28 = vld [vmem:[%s0 + $0x38] sm:$0xf]
  %v29 = vld [vmem:[%s0 + $0x3c] sm:$0xf]
  %v30 = vld [vmem:[%s1] sm:$0xf]
  %v31 = vld [vmem:[%s1 + $0x4] sm:$0xf]
  %v32 = vld [vmem:[%s1 + $0x8] sm:$0xf]
  %v33 = vld [vmem:[%s1 + $0xc] sm:$0xf]
  %v34 = vld [vmem:[%s1 + $0x10] sm:$0x1]
  %v51 = vunpack.c.l.b16 %v14
  %v52 = vunpack.c.l.b16 %v15
  %v53 = vunpack.c.l.b16 %v16
  %v54 = vunpack.c.l.b16 %v17
  %v55 = vunpack.c.l.b16 %v18
  %v56 = vunpack.c.l.b16 %v19
  %v57 = vunpack.c.l.b16 %v20
  %v58 = vunpack.c.l.b16 %v21
  %v59 = vunpack.c.l.b16 %v22
  %v60 = vunpack.c.l.b16 %v23
  %v61 = vunpack.c.l.b16 %v24
  %v62 = vunpack.c.l.b16 %v25
  %v63 = vunpack.c.l.b16 %v26
  %v64 = vunpack.c.l.b16 %v27
  %v65 = vunpack.c.l.b16 %v28
  %v66 = vunpack.c.l.b16 %v29
  %v67 = vpack.c.b16 %v52, %v51
  %v68 = vpack.c.b16 %v54, %v53
  %v69 = vpack.c.b16 %v56, %v55
  %v70 = vpack.c.b16 %v58, %v57
  %v71 = vpack.c.b16 %v60, %v59
  %v72 = vpack.c.b16 %v62, %v61
  %v73 = vpack.c.b16 %v64, %v63
  %v74 = vpack.c.b16 %v66, %v65
  %v80 = vunpack.c.l.b16 %v30
  %v81 = vunpack.c.l.b16 %v31
  %v82 = vunpack.c.l.b16 %v32
  %v83 = vunpack.c.l.b16 %v33
  %v84 = vunpack.c.l.b16 %v34
  %v85 = vpack.c.b16 %v81, %v80
  %v86 = vpack.c.b16 %v83, %v82
  %v87 = vpack.c.b16 %v84, %v84
  %vm90 = vcmask 269312
  %v92 = vsel %vm90, %v67, 0
  %v95 = vsel %vm90, %v68, 0
  %v98 = vsel %vm90, %v69, 0
  %v101 = vsel %vm90, %v70, 0
  %v104 = vsel %vm90, %v71, 0
  %v107 = vsel %vm90, %v72, 0
  %v110 = vsel %vm90, %v73, 0
  %v113 = vsel %vm90, %v74, 0
  %vm115 = vcmask 1040384
  %v116 = vsel 0, 4294967295, 65535
  %v117 = vsel %vm115, %v116, 0
  %v119 = vand.u32 %v87, %v117
  %121 = vmatpush.bf16.msra.mxu0 0
  %122 = vmatpush.bf16.msra.mxu0 0
  %123 = vmatpush.bf16.msra.mxu0 0
  %124 = vmatpush.bf16.msra.mxu0 0
  %125 = vmatpush.bf16.msra.mxu0 0
  %126 = vmatpush.bf16.msra.mxu0 %v119
  %127 = vmatpush.bf16.msra.mxu0 %v86
  %128 = vmatpush.bf16.msra.mxu0 %v85
  %129 = vmatmul.bf16.gmra.mxu0 %v92
  %v130 = vpop.f32.mrf.mxu0
  %v131 = vadd.f32 0.0, %v130
  %v132 = vpop.f32.mrf.mxu0
  %v133 = vadd.f32 0.0, %v132
  %134 = vmatmul.bf16.gmra.mxu0 %v95
  %v135 = vpop.f32.mrf.mxu0
  %v136 = vadd.f32 0.0, %v135
  %v137 = vpop.f32.mrf.mxu0
  %v138 = vadd.f32 0.0, %v137
  %139 = vmatmul.bf16.gmra.mxu0 %v98
  %v140 = vpop.f32.mrf.mxu0
  %v141 = vadd.f32 0.0, %v140
  %v142 = vpop.f32.mrf.mxu0
  %v143 = vadd.f32 0.0, %v142
  %144 = vmatmul.bf16.gmra.mxu0 %v101
  %v145 = vpop.f32.mrf.mxu0
  %v146 = vadd.f32 0.0, %v145
  %v147 = vpop.f32.mrf.mxu0
  %v148 = vadd.f32 0.0, %v147
  %149 = vmatmul.bf16.gmra.mxu0 %v104
  %v150 = vpop.f32.mrf.mxu0
  %v151 = vadd.f32 0.0, %v150
  %v152 = vpop.f32.mrf.mxu0
  %v153 = vadd.f32 0.0, %v152
  %154 = vmatmul.bf16.gmra.mxu0 %v107
  %v155 = vpop.f32.mrf.mxu0
  %v156 = vadd.f32 0.0, %v155
  %v157 = vpop.f32.mrf.mxu0
  %v158 = vadd.f32 0.0, %v157
  %159 = vmatmul.bf16.gmra.mxu0 %v110
  %v160 = vpop.f32.mrf.mxu0
  %v161 = vadd.f32 0.0, %v160
  %v162 = vpop.f32.mrf.mxu0
  %v163 = vadd.f32 0.0, %v162
  %164 = vmatmul.bf16.gmra.mxu0 %v113
  %v165 = vpop.f32.mrf.mxu0
  %v166 = vadd.f32 0.0, %v165
  %v167 = vpop.f32.mrf.mxu0
  %v168 = vadd.f32 0.0, %v167
  %169 = vdwg.mxu0
  %v170 = vpack.c.bf16 %v131, %v131
  %v171 = vpack.c.bf16 %v133, %v133
  %v172 = vpack.c.bf16 %v136, %v136
  %v173 = vpack.c.bf16 %v138, %v138
  %v174 = vpack.c.bf16 %v141, %v141
  %v175 = vpack.c.bf16 %v143, %v143
  %v176 = vpack.c.bf16 %v146, %v146
  %v177 = vpack.c.bf16 %v148, %v148
  %v178 = vpack.c.bf16 %v151, %v151
  %v179 = vpack.c.bf16 %v153, %v153
  %v180 = vpack.c.bf16 %v156, %v156
  %v181 = vpack.c.bf16 %v158, %v158
  %v182 = vpack.c.bf16 %v161, %v161
  %v183 = vpack.c.bf16 %v163, %v163
  %v184 = vpack.c.bf16 %v166, %v166
  %v185 = vpack.c.bf16 %v168, %v168
  %vm186 = vcmask 551936
  %187 = vst.msk [vmem:[%s2] sm:$0xf] %vm186, %v170
  %188 = vst.msk [vmem:[%s2 + $0x4] sm:$0xf] %vm186, %v171
  %189 = vst.msk [vmem:[%s2 + $0x8] sm:$0xf] %vm186, %v172
  %190 = vst.msk [vmem:[%s2 + $0xc] sm:$0xf] %vm186, %v173
  %191 = vst.msk [vmem:[%s2 + $0x10] sm:$0xf] %vm186, %v174
  %192 = vst.msk [vmem:[%s2 + $0x14] sm:$0xf] %vm186, %v175
  %193 = vst.msk [vmem:[%s2 + $0x18] sm:$0xf] %vm186, %v176
  %194 = vst.msk [vmem:[%s2 + $0x1c] sm:$0xf] %vm186, %v177
  %195 = vst.msk [vmem:[%s2 + $0x20] sm:$0xf] %vm186, %v178
  %196 = vst.msk [vmem:[%s2 + $0x24] sm:$0xf] %vm186, %v179
  %197 = vst.msk [vmem:[%s2 + $0x28] sm:$0xf] %vm186, %v180
  %198 = vst.msk [vmem:[%s2 + $0x2c] sm:$0xf] %vm186, %v181
  %199 = vst.msk [vmem:[%s2 + $0x30] sm:$0xf] %vm186, %v182
  %200 = vst.msk [vmem:[%s2 + $0x34] sm:$0xf] %vm186, %v183
  %201 = vst.msk [vmem:[%s2 + $0x38] sm:$0xf] %vm186, %v184
  %202 = vst.msk [vmem:[%s2 + $0x3c] sm:$0xf] %vm186, %v185
  %219 = vrot.lane.b32.xlu0 %v131, 60
  %v220 = vpop.permute.xlu0 %219
  %221 = vrot.lane.b32.xlu0 %v133, 60
  %v222 = vpop.permute.xlu0 %221
  %223 = vrot.lane.b32.xlu0 %v136, 60
  %v224 = vpop.permute.xlu0 %223
  %225 = vrot.lane.b32.xlu0 %v138, 60
  %v226 = vpop.permute.xlu0 %225
  %227 = vrot.lane.b32.xlu0 %v141, 60
  %v228 = vpop.permute.xlu0 %227
  %229 = vrot.lane.b32.xlu0 %v143, 60
  %v230 = vpop.permute.xlu0 %229
  %231 = vrot.lane.b32.xlu0 %v146, 60
  %v232 = vpop.permute.xlu0 %231
  %233 = vrot.lane.b32.xlu0 %v148, 60
  %v234 = vpop.permute.xlu0 %233
  %235 = vrot.lane.b32.xlu0 %v151, 60
  %v236 = vpop.permute.xlu0 %235
  %237 = vrot.lane.b32.xlu0 %v153, 60
  %v238 = vpop.permute.xlu0 %237
  %239 = vrot.lane.b32.xlu0 %v156, 60
  %v240 = vpop.permute.xlu0 %239
  %241 = vrot.lane.b32.xlu0 %v158, 60
  %v242 = vpop.permute.xlu0 %241
  %243 = vrot.lane.b32.xlu0 %v161, 60
  %v244 = vpop.permute.xlu0 %243
  %245 = vrot.lane.b32.xlu0 %v163, 60
  %v246 = vpop.permute.xlu0 %245
  %247 = vrot.lane.b32.xlu0 %v166, 60
  %v248 = vpop.permute.xlu0 %247
  %249 = vrot.lane.b32.xlu0 %v168, 60
  %v250 = vpop.permute.xlu0 %249
  %vm267 = vcmask 64512
  %268 = vst.msk [vmem:[%s3] sm:$0xff] %vm267, %v220
  %269 = vst.msk [vmem:[%s3 + $0x8] sm:$0xff] %vm267, %v222
  %270 = vst.msk [vmem:[%s3 + $0x10] sm:$0xff] %vm267, %v224
  %271 = vst.msk [vmem:[%s3 + $0x18] sm:$0xff] %vm267, %v226
  %272 = vst.msk [vmem:[%s3 + $0x20] sm:$0xff] %vm267, %v228
  %273 = vst.msk [vmem:[%s3 + $0x28] sm:$0xff] %vm267, %v230
  %274 = vst.msk [vmem:[%s3 + $0x30] sm:$0xff] %vm267, %v232
  %275 = vst.msk [vmem:[%s3 + $0x38] sm:$0xff] %vm267, %v234
  %276 = vst.msk [vmem:[%s3 + $0x40] sm:$0xff] %vm267, %v236
  %277 = vst.msk [vmem:[%s3 + $0x48] sm:$0xff] %vm267, %v238
  %278 = vst.msk [vmem:[%s3 + $0x50] sm:$0xff] %vm267, %v240
  %279 = vst.msk [vmem:[%s3 + $0x58] sm:$0xff] %vm267, %v242
  %280 = vst.msk [vmem:[%s3 + $0x60] sm:$0xff] %vm267, %v244
  %281 = vst.msk [vmem:[%s3 + $0x68] sm:$0xff] %vm267, %v246
  %282 = vst.msk [vmem:[%s3 + $0x70] sm:$0xff] %vm267, %v248
  %283 = vst.msk [vmem:[%s3 + $0x78] sm:$0xff] %vm267, %v250
  // Predicated region
  $region10: #{gat_forward.4} parent=0 // pred_check
    _
  $region11: #{gat_forward.4} parent=0 // pred_check_branch
    %285 = sbr.rel (0) target = $region13
  $region12: #{gat_forward.4} parent=0 // pred_region
    _
  $region13: #{gat_forward.4} parent=0 // pred_fallthru
    _
  // Predicated region
  $region14: #{gat_forward.4} parent=0 // pred_check
    _
  $region15: #{gat_forward.4} parent=0 // pred_check_branch
    %287 = sbr.rel (0) target = $region17
  $region16: #{gat_forward.4} parent=0 // pred_region
    _
  $region17: #{gat_forward.4} parent=0 // pred_fallthru
    _
  // Predicated region
  $region18: #{gat_forward.4} parent=0 // pred_check
    _
  $region19: #{gat_forward.4} parent=0 // pred_check_branch
    %289 = sbr.rel (0) target = $region21
  $region20: #{gat_forward.4} parent=0 // pred_region
    _
  $region21: #{gat_forward.4} parent=0 // pred_fallthru
    _
  // Predicated region
  $region22: #{gat_forward.4} parent=0 // pred_check
    _
  $region23: #{gat_forward.4} parent=0 // pred_check_branch
    %291 = sbr.rel (0) target = $region25
  $region24: #{gat_forward.4} parent=0 // pred_region
    _
  $region25: #{gat_forward.4} parent=0 // pred_fallthru
    _

// kernel: gat_forward.7
$region0: #{gat_forward.7}
  #allocation0 [shape = 'u32[]', space=smem, size = 0x4, offset = 0x4, fixed_abs, tag = 'smem constant byte address 0x4 - core index']
  #allocation1 [shape = 'u32[72,128]{1,0:T(1,128)}', space=vmem, size = 0x9000, scoped, tag = 'internal scratch']
  #allocation2 [shape = 'f32[128,1]{1,0:T(8,128)}', space=vmem, size = 0x10000, scoped, tag = 'scratch operand']
  #allocation3 [shape = 'f32[128,9]{1,0:T(8,128)}', space=vmem, size = 0x10000, scoped, tag = 'scratch operand']
  %s0 = inlined_call_operand.vmem [shape: f32[128,1], index: 0, kind: input, shape index: {}]
  %s1 = inlined_call_operand.vmem [shape: bf16[128,9], index: 1, kind: input, shape index: {}]
  %s2 = inlined_call_operand.vmem [shape: f32[1,128], index: 2, kind: input, shape index: {}]
  %s3 = inlined_call_operand.vmem [shape: s8[128,128], index: 3, kind: input, shape index: {}]
  %s4 = inlined_call_operand.vmem [shape: f32[128,8], index: 4, kind: output, shape index: {}]
  %s5 = sld [smem:[#allocation0]]
  $region34: #{gat_forward.7} parent=0
    _
  %s7 = ssub.s32 1, %s5
  %s8 = scalar_select 0, %s7, %s5
  // Predicated region
  $region2: #{gat_forward.7} parent=0 // pred_check
    _
  $region3: #{gat_forward.7} parent=0 // pred_check_branch
    %10 = sbr.rel (0) target = $region5
  $region4: #{gat_forward.7} parent=0 // pred_region
    _
  $region5: #{gat_forward.7} parent=0 // pred_fallthru
    _
  // Predicated region
  $region6: #{gat_forward.7} parent=0 // pred_check
    _
  $region7: #{gat_forward.7} parent=0 // pred_check_branch
    %12 = sbr.rel (0) target = $region9
  $region8: #{gat_forward.7} parent=0 // pred_region
    _
  $region9: #{gat_forward.7} parent=0 // pred_fallthru
    _
  // Predicated region
  $region10: #{gat_forward.7} parent=0 // pred_check
    _
  $region11: #{gat_forward.7} parent=0 // pred_check_branch
    %14 = sbr.rel (0) target = $region13
  $region12: #{gat_forward.7} parent=0 // pred_region
    _
  $region13: #{gat_forward.7} parent=0 // pred_fallthru
    _
  // Predicated region
  $region14: #{gat_forward.7} parent=0 // pred_check
    _
  $region15: #{gat_forward.7} parent=0 // pred_check_branch
    %16 = sbr.rel (0) target = $region17
  $region16: #{gat_forward.7} parent=0 // pred_region
    _
  $region17: #{gat_forward.7} parent=0 // pred_fallthru
    _
  %p19 = scmp.eq.s32.totalorder 0, 0
  // Predicated region
  $region18: #{gat_forward.7} parent=0 // pred_check
    %p20 = pneg %p19
  $region19: #{gat_forward.7} parent=0 // pred_check_branch
    %22 = sbr.rel (%p20) target = $region21
  $region20: #{gat_forward.7} parent=0 // pred_region
    %vm23 = vcmask 7168
    %24 = vst.msk [vmem:[#allocation2] sm:$0xff] %vm23, -9e+15
    %25 = vst.msk [vmem:[#allocation2 + $0x8] sm:$0xff] %vm23, -9e+15
    %26 = vst.msk [vmem:[#allocation2 + $0x10] sm:$0xff] %vm23, -9e+15
    %27 = vst.msk [vmem:[#allocation2 + $0x18] sm:$0xff] %vm23, -9e+15
    %28 = vst.msk [vmem:[#allocation2 + $0x20] sm:$0xff] %vm23, -9e+15
    %29 = vst.msk [vmem:[#allocation2 + $0x28] sm:$0xff] %vm23, -9e+15
    %30 = vst.msk [vmem:[#allocation2 + $0x30] sm:$0xff] %vm23, -9e+15
    %31 = vst.msk [vmem:[#allocation2 + $0x38] sm:$0xff] %vm23, -9e+15
    %32 = vst.msk [vmem:[#allocation2 + $0x40] sm:$0xff] %vm23, -9e+15
    %33 = vst.msk [vmem:[#allocation2 + $0x48] sm:$0xff] %vm23, -9e+15
    %34 = vst.msk [vmem:[#allocation2 + $0x50] sm:$0xff] %vm23, -9e+15
    %35 = vst.msk [vmem:[#allocation2 + $0x58] sm:$0xff] %vm23, -9e+15
    %36 = vst.msk [vmem:[#allocation2 + $0x60] sm:$0xff] %vm23, -9e+15
    %37 = vst.msk [vmem:[#allocation2 + $0x68] sm:$0xff] %vm23, -9e+15
    %38 = vst.msk [vmem:[#allocation2 + $0x70] sm:$0xff] %vm23, -9e+15
    %39 = vst.msk [vmem:[#allocation2 + $0x78] sm:$0xff] %vm23, -9e+15
    %vm40 = vcmask 72704
    %41 = vst.msk [vmem:[#allocation3] sm:$0xff] %vm40, 0.0
    %42 = vst.msk [vmem:[#allocation3 + $0x8] sm:$0xff] %vm40, 0.0
    %43 = vst.msk [vmem:[#allocation3 + $0x10] sm:$0xff] %vm40, 0.0
    %44 = vst.msk [vmem:[#allocation3 + $0x18] sm:$0xff] %vm40, 0.0
    %45 = vst.msk [vmem:[#allocation3 + $0x20] sm:$0xff] %vm40, 0.0
    %46 = vst.msk [vmem:[#allocation3 + $0x28] sm:$0xff] %vm40, 0.0
    %47 = vst.msk [vmem:[#allocation3 + $0x30] sm:$0xff] %vm40, 0.0
    %48 = vst.msk [vmem:[#allocation3 + $0x38] sm:$0xff] %vm40, 0.0
    %49 = vst.msk [vmem:[#allocation3 + $0x40] sm:$0xff] %vm40, 0.0
    %50 = vst.msk [vmem:[#allocation3 + $0x48] sm:$0xff] %vm40, 0.0
    %51 = vst.msk [vmem:[#allocation3 + $0x50] sm:$0xff] %vm40, 0.0
    %52 = vst.msk [vmem:[#allocation3 + $0x58] sm:$0xff] %vm40, 0.0
    %53 = vst.msk [vmem:[#allocation3 + $0x60] sm:$0xff] %vm40, 0.0
    %54 = vst.msk [vmem:[#allocation3 + $0x68] sm:$0xff] %vm40, 0.0
    %55 = vst.msk [vmem:[#allocation3 + $0x70] sm:$0xff] %vm40, 0.0
    %56 = vst.msk [vmem:[#allocation3 + $0x78] sm:$0xff] %vm40, 0.0
  $region21: #{gat_forward.7} parent=0 // pred_fallthru
    _
  %v57 = vld [vmem:[%s0] sm:$0xff]
  %v58 = vld [vmem:[%s0 + $0x8] sm:$0xff]
  %v59 = vld [vmem:[%s0 + $0x10] sm:$0xff]
  %v60 = vld [vmem:[%s0 + $0x18] sm:$0xff]
  %v61 = vld [vmem:[%s0 + $0x20] sm:$0xff]
  %v62 = vld [vmem:[%s0 + $0x28] sm:$0xff]
  %v63 = vld [vmem:[%s0 + $0x30] sm:$0xff]
  %v64 = vld [vmem:[%s0 + $0x38] sm:$0xff]
  %v65 = vld [vmem:[%s0 + $0x40] sm:$0xff]
  %v66 = vld [vmem:[%s0 + $0x48] sm:$0xff]
  %v67 = vld [vmem:[%s0 + $0x50] sm:$0xff]
  %v68 = vld [vmem:[%s0 + $0x58] sm:$0xff]
  %v69 = vld [vmem:[%s0 + $0x60] sm:$0xff]
  %v70 = vld [vmem:[%s0 + $0x68] sm:$0xff]
  %v71 = vld [vmem:[%s0 + $0x70] sm:$0xff]
  %v72 = vld [vmem:[%s0 + $0x78] sm:$0xff]
  %v73 = vld [vmem:[#allocation2] sm:$0xff]
  %v74 = vld [vmem:[#allocation2 + $0x8] sm:$0xff]
  %v75 = vld [vmem:[#allocation2 + $0x10] sm:$0xff]
  %v76 = vld [vmem:[#allocation2 + $0x18] sm:$0xff]
  %v77 = vld [vmem:[#allocation2 + $0x20] sm:$0xff]
  %v78 = vld [vmem:[#allocation2 + $0x28] sm:$0xff]
  %v79 = vld [vmem:[#allocation2 + $0x30] sm:$0xff]
  %v80 = vld [vmem:[#allocation2 + $0x38] sm:$0xff]
  %v81 = vld [vmem:[#allocation2 + $0x40] sm:$0xff]
  %v82 = vld [vmem:[#allocation2 + $0x48] sm:$0xff]
  %v83 = vld [vmem:[#allocation2 + $0x50] sm:$0xff]
  %v84 = vld [vmem:[#allocation2 + $0x58] sm:$0xff]
  %v85 = vld [vmem:[#allocation2 + $0x60] sm:$0xff]
  %v86 = vld [vmem:[#allocation2 + $0x68] sm:$0xff]
  %v87 = vld [vmem:[#allocation2 + $0x70] sm:$0xff]
  %v88 = vld [vmem:[#allocation2 + $0x78] sm:$0xff]
  %v89 = vld [vmem:[#allocation3] sm:$0xff]
  %v90 = vld [vmem:[#allocation3 + $0x8] sm:$0xff]
  %v91 = vld [vmem:[#allocation3 + $0x10] sm:$0xff]
  %v92 = vld [vmem:[#allocation3 + $0x18] sm:$0xff]
  %v93 = vld [vmem:[#allocation3 + $0x20] sm:$0xff]
  %v94 = vld [vmem:[#allocation3 + $0x28] sm:$0xff]
  %v95 = vld [vmem:[#allocation3 + $0x30] sm:$0xff]
  %v96 = vld [vmem:[#allocation3 + $0x38] sm:$0xff]
  %v97 = vld [vmem:[#allocation3 + $0x40] sm:$0xff]
  %v98 = vld [vmem:[#allocation3 + $0x48] sm:$0xff]
  %v99 = vld [vmem:[#allocation3 + $0x50] sm:$0xff]
  %v100 = vld [vmem:[#allocation3 + $0x58] sm:$0xff]
  %v101 = vld [vmem:[#allocation3 + $0x60] sm:$0xff]
  %v102 = vld [vmem:[#allocation3 + $0x68] sm:$0xff]
  %v103 = vld [vmem:[#allocation3 + $0x70] sm:$0xff]
  %v104 = vld [vmem:[#allocation3 + $0x78] sm:$0xff]
  %s105 = smul.u32 0, 128
  %s106 = sshra.s32 %s105, 3
  %s107 = sand.u32 %s105, 7
  %s108 = smul.addr %s106, 4
  %s109 = scalar_lea.vmem %s1, %s108
  %v110 = vld [vmem:[%s109] sm:$0xf]
  %v111 = vld [vmem:[%s109 + $0x4] sm:$0xf]
  %v112 = vld [vmem:[%s109 + $0x8] sm:$0xf]
  %v113 = vld [vmem:[%s109 + $0xc] sm:$0xf]
  %v114 = vld [vmem:[%s109 + $0x10] sm:$0xf]
  %v115 = vld [vmem:[%s109 + $0x14] sm:$0xf]
  %v116 = vld [vmem:[%s109 + $0x18] sm:$0xf]
  %v117 = vld [vmem:[%s109 + $0x1c] sm:$0xf]
  %v118 = vld [vmem:[%s109 + $0x20] sm:$0xf]
  %v119 = vld [vmem:[%s109 + $0x24] sm:$0xf]
  %v120 = vld [vmem:[%s109 + $0x28] sm:$0xf]
  %v121 = vld [vmem:[%s109 + $0x2c] sm:$0xf]
  %v122 = vld [vmem:[%s109 + $0x30] sm:$0xf]
  %v123 = vld [vmem:[%s109 + $0x34] sm:$0xf]
  %v124 = vld [vmem:[%s109 + $0x38] sm:$0xf]
  %v125 = vld [vmem:[%s109 + $0x3c] sm:$0xf]
  %v126 = vld [vmem:[%s2] sm:$0x1]
  %v127 = vld [vmem:[%s3] sm:$0xff]
  %v128 = vld [vmem:[%s3 + $0x8] sm:$0xff]
  %v129 = vld [vmem:[%s3 + $0x10] sm:$0xff]
  %v130 = vld [vmem:[%s3 + $0x18] sm:$0xff]
  %vm131 = vnez %v127
  %vm132 = vnez %v128
  %vm133 = vnez %v129
  %vm134 = vnez %v130
  %136 = vset.pattern.permute.xlu0 0
  %137 = vperm.xlu0 %136, %v57
  %v138 = vpop.permute.xlu0 %137
  %141 = vset.pattern.permute.xlu0 0
  %142 = vperm.xlu0 %141, %v58
  %v143 = vpop.permute.xlu0 %142
  %146 = vset.pattern.permute.xlu0 0
  %147 = vperm.xlu0 %146, %v59
  %v148 = vpop.permute.xlu0 %147
  %151 = vset.pattern.permute.xlu0 0
  %152 = vperm.xlu0 %151, %v60
  %v153 = vpop.permute.xlu0 %152
  %156 = vset.pattern.permute.xlu0 0
  %157 = vperm.xlu0 %156, %v61
  %v158 = vpop.permute.xlu0 %157
  %161 = vset.pattern.permute.xlu0 0
  %162 = vperm.xlu0 %161, %v62
  %v163 = vpop.permute.xlu0 %162
  %166 = vset.pattern.permute.xlu0 0
  %167 = vperm.xlu0 %166, %v63
  %v168 = vpop.permute.xlu0 %167
  %171 = vset.pattern.permute.xlu0 0
  %172 = vperm.xlu0 %171, %v64
  %v173 = vpop.permute.xlu0 %172
  %176 = vset.pattern.permute.xlu0 0
  %177 = vperm.xlu0 %176, %v65
  %v178 = vpop.permute.xlu0 %177
  %181 = vset.pattern.permute.xlu0 0
  %182 = vperm.xlu0 %181, %v66
  %v183 = vpop.permute.xlu0 %182
  %186 = vset.pattern.permute.xlu0 0
  %187 = vperm.xlu0 %186, %v67
  %v188 = vpop.permute.xlu0 %187
  %191 = vset.pattern.permute.xlu0 0
  %192 = vperm.xlu0 %191, %v68
  %v193 = vpop.permute.xlu0 %192
  %196 = vset.pattern.permute.xlu0 0
  %197 = vperm.xlu0 %196, %v69
  %v198 = vpop.permute.xlu0 %197
  %201 = vset.pattern.permute.xlu0 0
  %202 = vperm.xlu0 %201, %v70
  %v203 = vpop.permute.xlu0 %202
  %206 = vset.pattern.permute.xlu0 0
  %207 = vperm.xlu0 %206, %v71
  %v208 = vpop.permute.xlu0 %207
  %211 = vset.pattern.permute.xlu0 0
  %212 = vperm.xlu0 %211, %v72
  %v213 = vpop.permute.xlu0 %212
  %v216 = vperm.slane %v126, 0
  %v218 = vadd.f32 %v138, %v216
  %v219 = vadd.f32 %v143, %v216
  %v220 = vadd.f32 %v148, %v216
  %v221 = vadd.f32 %v153, %v216
  %v222 = vadd.f32 %v158, %v216
  %v223 = vadd.f32 %v163, %v216
  %v224 = vadd.f32 %v168, %v216
  %v225 = vadd.f32 %v173, %v216
  %v226 = vadd.f32 %v178, %v216
  %v227 = vadd.f32 %v183, %v216
  %v228 = vadd.f32 %v188, %v216
  %v229 = vadd.f32 %v193, %v216
  %v230 = vadd.f32 %v198, %v216
  %v231 = vadd.f32 %v203, %v216
  %v232 = vadd.f32 %v208, %v216
  %v233 = vadd.f32 %v213, %v216
  %v234 = vsel %vm131, 16843009, 0
  %v235 = vsel %vm132, 16843009, 0
  %v236 = vsel %vm133, 16843009, 0
  %v237 = vsel %vm134, 16843009, 0
  %v238 = vunpack.c.0.s8 %v234
  %v239 = vunpack.c.1.s8 %v234
  %v240 = vunpack.c.2.s8 %v234
  %v241 = vunpack.c.3.s8 %v234
  %v242 = vunpack.c.0.s8 %v235
  %v243 = vunpack.c.1.s8 %v235
  %v244 = vunpack.c.2.s8 %v235
  %v245 = vunpack.c.3.s8 %v235
  %v246 = vunpack.c.0.s8 %v236
  %v247 = vunpack.c.1.s8 %v236
  %v248 = vunpack.c.2.s8 %v236
  %v249 = vunpack.c.3.s8 %v236
  %v250 = vunpack.c.0.s8 %v237
  %v251 = vunpack.c.1.s8 %v237
  %v252 = vunpack.c.2.s8 %v237
  %v253 = vunpack.c.3.s8 %v237
  %v254 = vpack.c.b16 %v238, %v238
  %v255 = vpack.c.b8 %v254, %v254
  %v256 = vpack.c.b16 %v239, %v239
  %v257 = vpack.c.b8 %v256, %v256
  %v258 = vpack.c.b16 %v240, %v240
  %v259 = vpack.c.b8 %v258, %v258
  %v260 = vpack.c.b16 %v241, %v241
  %v261 = vpack.c.b8 %v260, %v260
  %v262 = vpack.c.b16 %v242, %v242
  %v263 = vpack.c.b8 %v262, %v262
  %v264 = vpack.c.b16 %v243, %v243
  %v265 = vpack.c.b8 %v264, %v264
  %v266 = vpack.c.b16 %v244, %v244
  %v267 = vpack.c.b8 %v266, %v266
  %v268 = vpack.c.b16 %v245, %v245
  %v269 = vpack.c.b8 %v268, %v268
  %v270 = vpack.c.b16 %v246, %v246
  %v271 = vpack.c.b8 %v270, %v270
  %v272 = vpack.c.b16 %v247, %v247
  %v273 = vpack.c.b8 %v272, %v272
  %v274 = vpack.c.b16 %v248, %v248
  %v275 = vpack.c.b8 %v274, %v274
  %v276 = vpack.c.b16 %v249, %v249
  %v277 = vpack.c.b8 %v276, %v276
  %v278 = vpack.c.b16 %v250, %v250
  %v279 = vpack.c.b8 %v278, %v278
  %v280 = vpack.c.b16 %v251, %v251
  %v281 = vpack.c.b8 %v280, %v280
  %v282 = vpack.c.b16 %v252, %v252
  %v283 = vpack.c.b8 %v282, %v282
  %v284 = vpack.c.b16 %v253, %v253
  %v285 = vpack.c.b8 %v284, %v284
  %vm286 = vnez %v255
  %vm287 = vnez %v257
  %vm288 = vnez %v259
  %vm289 = vnez %v261
  %vm290 = vnez %v263
  %vm291 = vnez %v265
  %vm292 = vnez %v267
  %vm293 = vnez %v269
  %vm294 = vnez %v271
  %vm295 = vnez %v273
  %vm296 = vnez %v275
  %vm297 = vnez %v277
  %vm298 = vnez %v279
  %vm299 = vnez %v281
  %vm300 = vnez %v283
  %vm301 = vnez %v285
  %v302 = vsel %vm286, 16843009, 0
  %v303 = vsel %vm287, 16843009, 0
  %v304 = vsel %vm288, 16843009, 0
  %v305 = vsel %vm289, 16843009, 0
  %v306 = vsel %vm290, 16843009, 0
  %v307 = vsel %vm291, 16843009, 0
  %v308 = vsel %vm292, 16843009, 0
  %v309 = vsel %vm293, 16843009, 0
  %v310 = vsel %vm294, 16843009, 0
  %v311 = vsel %vm295, 16843009, 0
  %v312 = vsel %vm296, 16843009, 0
  %v313 = vsel %vm297, 16843009, 0
  %v314 = vsel %vm298, 16843009, 0
  %v315 = vsel %vm299, 16843009, 0
  %v316 = vsel %vm300, 16843009, 0
  %v317 = vsel %vm301, 16843009, 0
  %v318 = vunpack.c.0.s8 %v302
  %v319 = vunpack.c.0.s8 %v303
  %v320 = vunpack.c.0.s8 %v304
  %v321 = vunpack.c.0.s8 %v305
  %v322 = vunpack.c.0.s8 %v306
  %v323 = vunpack.c.0.s8 %v307
  %v324 = vunpack.c.0.s8 %v308
  %v325 = vunpack.c.0.s8 %v309
  %v326 = vunpack.c.0.s8 %v310
  %v327 = vunpack.c.0.s8 %v311
  %v328 = vunpack.c.0.s8 %v312
  %v329 = vunpack.c.0.s8 %v313
  %v330 = vunpack.c.0.s8 %v314
  %v331 = vunpack.c.0.s8 %v315
  %v332 = vunpack.c.0.s8 %v316
  %v333 = vunpack.c.0.s8 %v317
  %vm334 = vcmp.ne.s32.totalorder %v318, 0
  %vm335 = vcmp.ne.s32.totalorder %v319, 0
  %vm336 = vcmp.ne.s32.totalorder %v320, 0
  %vm337 = vcmp.ne.s32.totalorder %v321, 0
  %vm338 = vcmp.ne.s32.totalorder %v322, 0
  %vm339 = vcmp.ne.s32.totalorder %v323, 0
  %vm340 = vcmp.ne.s32.totalorder %v324, 0
  %vm341 = vcmp.ne.s32.totalorder %v325, 0
  %vm342 = vcmp.ne.s32.totalorder %v326, 0
  %vm343 = vcmp.ne.s32.totalorder %v327, 0
  %vm344 = vcmp.ne.s32.totalorder %v328, 0
  %vm345 = vcmp.ne.s32.totalorder %v329, 0
  %vm346 = vcmp.ne.s32.totalorder %v330, 0
  %vm347 = vcmp.ne.s32.totalorder %v331, 0
  %vm348 = vcmp.ne.s32.totalorder %v332, 0
  %vm349 = vcmp.ne.s32.totalorder %v333, 0
  %v350 = vsel %vm334, %v218, -9e+15
  %v351 = vsel %vm335, %v219, -9e+15
  %v352 = vsel %vm336, %v220, -9e+15
  %v353 = vsel %vm337, %v221, -9e+15
  %v354 = vsel %vm338, %v222, -9e+15
  %v355 = vsel %vm339, %v223, -9e+15
  %v356 = vsel %vm340, %v224, -9e+15
  %v357 = vsel %vm341, %v225, -9e+15
  %v358 = vsel %vm342, %v226, -9e+15
  %v359 = vsel %vm343, %v227, -9e+15
  %v360 = vsel %vm344, %v228, -9e+15
  %v361 = vsel %vm345, %v229, -9e+15
  %v362 = vsel %vm346, %v230, -9e+15
  %v363 = vsel %vm347, %v231, -9e+15
  %v364 = vsel %vm348, %v232, -9e+15
  %v365 = vsel %vm349, %v233, -9e+15
  %vm366 = vcmp.gt.f32.partialorder %v350, 0.0
  %vm367 = vcmp.gt.f32.partialorder %v351, 0.0
  %vm368 = vcmp.gt.f32.partialorder %v352, 0.0
  %vm369 = vcmp.gt.f32.partialorder %v353, 0.0
  %vm370 = vcmp.gt.f32.partialorder %v354, 0.0
  %vm371 = vcmp.gt.f32.partialorder %v355, 0.0
  %vm372 = vcmp.gt.f32.partialorder %v356, 0.0
  %vm373 = vcmp.gt.f32.partialorder %v357, 0.0
  %vm374 = vcmp.gt.f32.partialorder %v358, 0.0
  %vm375 = vcmp.gt.f32.partialorder %v359, 0.0
  %vm376 = vcmp.gt.f32.partialorder %v360, 0.0
  %vm377 = vcmp.gt.f32.partialorder %v361, 0.0
  %vm378 = vcmp.gt.f32.partialorder %v362, 0.0
  %vm379 = vcmp.gt.f32.partialorder %v363, 0.0
  %vm380 = vcmp.gt.f32.partialorder %v364, 0.0
  %vm381 = vcmp.gt.f32.partialorder %v365, 0.0
  %v382 = vmul.f32 %v350, 0.2
  %v383 = vmul.f32 %v351, 0.2
  %v384 = vmul.f32 %v352, 0.2
  %v385 = vmul.f32 %v353, 0.2
  %v386 = vmul.f32 %v354, 0.2
  %v387 = vmul.f32 %v355, 0.2
  %v388 = vmul.f32 %v356, 0.2
  %v389 = vmul.f32 %v357, 0.2
  %v390 = vmul.f32 %v358, 0.2
  %v391 = vmul.f32 %v359, 0.2
  %v392 = vmul.f32 %v360, 0.2
  %v393 = vmul.f32 %v361, 0.2
  %v394 = vmul.f32 %v362, 0.2
  %v395 = vmul.f32 %v363, 0.2
  %v396 = vmul.f32 %v364, 0.2
  %v397 = vmul.f32 %v365, 0.2
  %v398 = vsel %vm366, %v350, %v382
  %v399 = vsel %vm367, %v351, %v383
  %v400 = vsel %vm368, %v352, %v384
  %v401 = vsel %vm369, %v353, %v385
  %v402 = vsel %vm370, %v354, %v386
  %v403 = vsel %vm371, %v355, %v387
  %v404 = vsel %vm372, %v356, %v388
  %v405 = vsel %vm373, %v357, %v389
  %v406 = vsel %vm374, %v358, %v390
  %v407 = vsel %vm375, %v359, %v391
  %v408 = vsel %vm376, %v360, %v392
  %v409 = vsel %vm377, %v361, %v393
  %v410 = vsel %vm378, %v362, %v394
  %v411 = vsel %vm379, %v363, %v395
  %v412 = vsel %vm380, %v364, %v396
  %v413 = vsel %vm381, %v365, %v397
  %414 = vmax.xlane.f32.xlu0 %v398
  %v415 = vpop.xlane.xlu0 %414
  %416 = vmax.xlane.f32.xlu0 %v399
  %v417 = vpop.xlane.xlu0 %416
  %418 = vmax.xlane.f32.xlu0 %v400
  %v419 = vpop.xlane.xlu0 %418
  %420 = vmax.xlane.f32.xlu0 %v401
  %v421 = vpop.xlane.xlu0 %420
  %422 = vmax.xlane.f32.xlu0 %v402
  %v423 = vpop.xlane.xlu0 %422
  %424 = vmax.xlane.f32.xlu0 %v403
  %v425 = vpop.xlane.xlu0 %424
  %426 = vmax.xlane.f32.xlu0 %v404
  %v427 = vpop.xlane.xlu0 %426
  %428 = vmax.xlane.f32.xlu0 %v405
  %v429 = vpop.xlane.xlu0 %428
  %430 = vmax.xlane.f32.xlu0 %v406
  %v431 = vpop.xlane.xlu0 %430
  %432 = vmax.xlane.f32.xlu0 %v407
  %v433 = vpop.xlane.xlu0 %432
  %434 = vmax.xlane.f32.xlu0 %v408
  %v435 = vpop.xlane.xlu0 %434
  %436 = vmax.xlane.f32.xlu0 %v409
  %v437 = vpop.xlane.xlu0 %436
  %438 = vmax.xlane.f32.xlu0 %v410
  %v439 = vpop.xlane.xlu0 %438
  %440 = vmax.xlane.f32.xlu0 %v411
  %v441 = vpop.xlane.xlu0 %440
  %442 = vmax.xlane.f32.xlu0 %v412
  %v443 = vpop.xlane.xlu0 %442
  %444 = vmax.xlane.f32.xlu0 %v413
  %v445 = vpop.xlane.xlu0 %444
  %v446 = vmax.f32 %v73, %v415
  %v447 = vmax.f32 %v74, %v417
  %v448 = vmax.f32 %v75, %v419
  %v449 = vmax.f32 %v76, %v421
  %v450 = vmax.f32 %v77, %v423
  %v451 = vmax.f32 %v78, %v425
  %v452 = vmax.f32 %v79, %v427
  %v453 = vmax.f32 %v80, %v429
  %v454 = vmax.f32 %v81, %v431
  %v455 = vmax.f32 %v82, %v433
  %v456 = vmax.f32 %v83, %v435
  %v457 = vmax.f32 %v84, %v437
  %v458 = vmax.f32 %v85, %v439
  %v459 = vmax.f32 %v86, %v441
  %v460 = vmax.f32 %v87, %v443
  %v461 = vmax.f32 %v88, %v445
  %v462 = vsub.f32 %v73, %v446
  %v463 = vsub.f32 %v74, %v447
  %v464 = vsub.f32 %v75, %v448
  %v465 = vsub.f32 %v76, %v449
  %v466 = vsub.f32 %v77, %v450
  %v467 = vsub.f32 %v78, %v451
  %v468 = vsub.f32 %v79, %v452
  %v469 = vsub.f32 %v80, %v453
  %v470 = vsub.f32 %v81, %v454
  %v471 = vsub.f32 %v82, %v455
  %v472 = vsub.f32 %v83, %v456
  %v473 = vsub.f32 %v84, %v457
  %v474 = vsub.f32 %v85, %v458
  %v475 = vsub.f32 %v86, %v459
  %v476 = vsub.f32 %v87, %v460
  %v477 = vsub.f32 %v88, %v461
  %v478 = vmul.f32 %v462, 1.442695
  %v479 = vpow.pop %v478
  %v480 = vmul.f32 %v463, 1.442695
  %v481 = vpow.pop %v480
  %v482 = vmul.f32 %v464, 1.442695
  %v483 = vpow.pop %v482
  %v484 = vmul.f32 %v465, 1.442695
  %v485 = vpow.pop %v484
  %v486 = vmul.f32 %v466, 1.442695
  %v487 = vpow.pop %v486
  %v488 = vmul.f32 %v467, 1.442695
  %v489 = vpow.pop %v488
  %v490 = vmul.f32 %v468, 1.442695
  %v491 = vpow.pop %v490
  %v492 = vmul.f32 %v469, 1.442695
  %v493 = vpow.pop %v492
  %v494 = vmul.f32 %v470, 1.442695
  %v495 = vpow.pop %v494
  %v496 = vmul.f32 %v471, 1.442695
  %v497 = vpow.pop %v496
  %v498 = vmul.f32 %v472, 1.442695
  %v499 = vpow.pop %v498
  %v500 = vmul.f32 %v473, 1.442695
  %v501 = vpow.pop %v500
  %v502 = vmul.f32 %v474, 1.442695
  %v503 = vpow.pop %v502
  %v504 = vmul.f32 %v475, 1.442695
  %v505 = vpow.pop %v504
  %v506 = vmul.f32 %v476, 1.442695
  %v507 = vpow.pop %v506
  %v508 = vmul.f32 %v477, 1.442695
  %v509 = vpow.pop %v508
  %511 = vset.pattern.permute.xlu0 0
  %512 = vperm.xlu0 %511, %v446
  %v513 = vpop.permute.xlu0 %512
  %516 = vset.pattern.permute.xlu0 0
  %517 = vperm.xlu0 %516, %v447
  %v518 = vpop.permute.xlu0 %517
  %521 = vset.pattern.permute.xlu0 0
  %522 = vperm.xlu0 %521, %v448
  %v523 = vpop.permute.xlu0 %522
  %526 = vset.pattern.permute.xlu0 0
  %527 = vperm.xlu0 %526, %v449
  %v528 = vpop.permute.xlu0 %527
  %531 = vset.pattern.permute.xlu0 0
  %532 = vperm.xlu0 %531, %v450
  %v533 = vpop.permute.xlu0 %532
  %536 = vset.pattern.permute.xlu0 0
  %537 = vperm.xlu0 %536, %v451
  %v538 = vpop.permute.xlu0 %537
  %541 = vset.pattern.permute.xlu0 0
  %542 = vperm.xlu0 %541, %v452
  %v543 = vpop.permute.xlu0 %542
  %546 = vset.pattern.permute.xlu0 0
  %547 = vperm.xlu0 %546, %v453
  %v548 = vpop.permute.xlu0 %547
  %551 = vset.pattern.permute.xlu0 0
  %552 = vperm.xlu0 %551, %v454
  %v553 = vpop.permute.xlu0 %552
  %556 = vset.pattern.permute.xlu0 0
  %557 = vperm.xlu0 %556, %v455
  %v558 = vpop.permute.xlu0 %557
  %561 = vset.pattern.permute.xlu0 0
  %562 = vperm.xlu0 %561, %v456
  %v563 = vpop.permute.xlu0 %562
  %566 = vset.pattern.permute.xlu0 0
  %567 = vperm.xlu0 %566, %v457
  %v568 = vpop.permute.xlu0 %567
  %571 = vset.pattern.permute.xlu0 0
  %572 = vperm.xlu0 %571, %v458
  %v573 = vpop.permute.xlu0 %572
  %576 = vset.pattern.permute.xlu0 0
  %577 = vperm.xlu0 %576, %v459
  %v578 = vpop.permute.xlu0 %577
  %581 = vset.pattern.permute.xlu0 0
  %582 = vperm.xlu0 %581, %v460
  %v583 = vpop.permute.xlu0 %582
  %586 = vset.pattern.permute.xlu0 0
  %587 = vperm.xlu0 %586, %v461
  %v588 = vpop.permute.xlu0 %587
  %v590 = vsub.f32 %v398, %v513
  %v591 = vsub.f32 %v399, %v518
  %v592 = vsub.f32 %v400, %v523
  %v593 = vsub.f32 %v401, %v528
  %v594 = vsub.f32 %v402, %v533
  %v595 = vsub.f32 %v403, %v538
  %v596 = vsub.f32 %v404, %v543
  %v597 = vsub.f32 %v405, %v548
  %v598 = vsub.f32 %v406, %v553
  %v599 = vsub.f32 %v407, %v558
  %v600 = vsub.f32 %v408, %v563
  %v601 = vsub.f32 %v409, %v568
  %v602 = vsub.f32 %v410, %v573
  %v603 = vsub.f32 %v411, %v578
  %v604 = vsub.f32 %v412, %v583
  %v605 = vsub.f32 %v413, %v588
  %v606 = vmul.f32 %v590, 1.442695
  %v607 = vpow.pop %v606
  %v608 = vmul.f32 %v591, 1.442695
  %v609 = vpow.pop %v608
  %v610 = vmul.f32 %v592, 1.442695
  %v611 = vpow.pop %v610
  %v612 = vmul.f32 %v593, 1.442695
  %v613 = vpow.pop %v612
  %v614 = vmul.f32 %v594, 1.442695
  %v615 = vpow.pop %v614
  %v616 = vmul.f32 %v595, 1.442695
  %v617 = vpow.pop %v616
  %v618 = vmul.f32 %v596, 1.442695
  %v619 = vpow.pop %v618
  %v620 = vmul.f32 %v597, 1.442695
  %v621 = vpow.pop %v620
  %v622 = vmul.f32 %v598, 1.442695
  %v623 = vpow.pop %v622
  %v624 = vmul.f32 %v599, 1.442695
  %v625 = vpow.pop %v624
  %v626 = vmul.f32 %v600, 1.442695
  %v627 = vpow.pop %v626
  %v628 = vmul.f32 %v601, 1.442695
  %v629 = vpow.pop %v628
  %v630 = vmul.f32 %v602, 1.442695
  %v631 = vpow.pop %v630
  %v632 = vmul.f32 %v603, 1.442695
  %v633 = vpow.pop %v632
  %v634 = vmul.f32 %v604, 1.442695
  %v635 = vpow.pop %v634
  %v636 = vmul.f32 %v605, 1.442695
  %v637 = vpow.pop %v636
  %639 = vset.pattern.permute.xlu0 0
  %640 = vperm.xlu0 %639, %v479
  %v641 = vpop.permute.xlu0 %640
  %644 = vset.pattern.permute.xlu0 0
  %645 = vperm.xlu0 %644, %v481
  %v646 = vpop.permute.xlu0 %645
  %649 = vset.pattern.permute.xlu0 0
  %650 = vperm.xlu0 %649, %v483
  %v651 = vpop.permute.xlu0 %650
  %654 = vset.pattern.permute.xlu0 0
  %655 = vperm.xlu0 %654, %v485
  %v656 = vpop.permute.xlu0 %655
  %659 = vset.pattern.permute.xlu0 0
  %660 = vperm.xlu0 %659, %v487
  %v661 = vpop.permute.xlu0 %660
  %664 = vset.pattern.permute.xlu0 0
  %665 = vperm.xlu0 %664, %v489
  %v666 = vpop.permute.xlu0 %665
  %669 = vset.pattern.permute.xlu0 0
  %670 = vperm.xlu0 %669, %v491
  %v671 = vpop.permute.xlu0 %670
  %674 = vset.pattern.permute.xlu0 0
  %675 = vperm.xlu0 %674, %v493
  %v676 = vpop.permute.xlu0 %675
  %679 = vset.pattern.permute.xlu0 0
  %680 = vperm.xlu0 %679, %v495
  %v681 = vpop.permute.xlu0 %680
  %684 = vset.pattern.permute.xlu0 0
  %685 = vperm.xlu0 %684, %v497
  %v686 = vpop.permute.xlu0 %685
  %689 = vset.pattern.permute.xlu0 0
  %690 = vperm.xlu0 %689, %v499
  %v691 = vpop.permute.xlu0 %690
  %694 = vset.pattern.permute.xlu0 0
  %695 = vperm.xlu0 %694, %v501
  %v696 = vpop.permute.xlu0 %695
  %699 = vset.pattern.permute.xlu0 0
  %700 = vperm.xlu0 %699, %v503
  %v701 = vpop.permute.xlu0 %700
  %704 = vset.pattern.permute.xlu0 0
  %705 = vperm.xlu0 %704, %v505
  %v706 = vpop.permute.xlu0 %705
  %709 = vset.pattern.permute.xlu0 0
  %710 = vperm.xlu0 %709, %v507
  %v711 = vpop.permute.xlu0 %710
  %714 = vset.pattern.permute.xlu0 0
  %715 = vperm.xlu0 %714, %v509
  %v716 = vpop.permute.xlu0 %715
  %v718 = vmul.f32 %v641, %v89
  %v719 = vmul.f32 %v646, %v90
  %v720 = vmul.f32 %v651, %v91
  %v721 = vmul.f32 %v656, %v92
  %v722 = vmul.f32 %v661, %v93
  %v723 = vmul.f32 %v666, %v94
  %v724 = vmul.f32 %v671, %v95
  %v725 = vmul.f32 %v676, %v96
  %v726 = vmul.f32 %v681, %v97
  %v727 = vmul.f32 %v686, %v98
  %v728 = vmul.f32 %v691, %v99
  %v729 = vmul.f32 %v696, %v100
  %v730 = vmul.f32 %v701, %v101
  %v731 = vmul.f32 %v706, %v102
  %v732 = vmul.f32 %v711, %v103
  %v733 = vmul.f32 %v716, %v104
  %v734 = vpack.c.bf16 %v609, %v607
  %v735 = vpack.c.bf16 %v613, %v611
  %v736 = vpack.c.bf16 %v617, %v615
  %v737 = vpack.c.bf16 %v621, %v619
  %v738 = vpack.c.bf16 %v625, %v623
  %v739 = vpack.c.bf16 %v629, %v627
  %v740 = vpack.c.bf16 %v633, %v631
  %v741 = vpack.c.bf16 %v637, %v635
  %v758 = vunpack.c.l.b16 %v110
  %v759 = vunpack.c.l.b16 %v111
  %v760 = vunpack.c.l.b16 %v112
  %v761 = vunpack.c.l.b16 %v113
  %v762 = vunpack.c.l.b16 %v114
  %v763 = vunpack.c.l.b16 %v115
  %v764 = vunpack.c.l.b16 %v116
  %v765 = vunpack.c.l.b16 %v117
  %v766 = vunpack.c.l.b16 %v118
  %v767 = vunpack.c.l.b16 %v119
  %v768 = vunpack.c.l.b16 %v120
  %v769 = vunpack.c.l.b16 %v121
  %v770 = vunpack.c.l.b16 %v122
  %v771 = vunpack.c.l.b16 %v123
  %v772 = vunpack.c.l.b16 %v124
  %v773 = vunpack.c.l.b16 %v125
  %v774 = vpack.c.b16 %v759, %v758
  %v775 = vpack.c.b16 %v761, %v760
  %v776 = vpack.c.b16 %v763, %v762
  %v777 = vpack.c.b16 %v765, %v764
  %v778 = vpack.c.b16 %v767, %v766
  %v779 = vpack.c.b16 %v769, %v768
  %v780 = vpack.c.b16 %v771, %v770
  %v781 = vpack.c.b16 %v773, %v772
  %790 = vmatpush.bf16.msra.mxu0 %v781
  %791 = vmatpush.bf16.msra.mxu0 %v780
  %792 = vmatpush.bf16.msra.mxu0 %v779
  %793 = vmatpush.bf16.msra.mxu0 %v778
  %794 = vmatpush.bf16.msra.mxu0 %v777
  %795 = vmatpush.bf16.msra.mxu0 %v776
  %796 = vmatpush.bf16.msra.mxu0 %v775
  %797 = vmatpush.bf16.msra.mxu0 %v774
  %798 = vmatmul.bf16.gmra.mxu0 %v734
  %v799 = vpop.f32.mrf.mxu0
  %v800 = vadd.f32 0.0, %v799
  %v801 = vpop.f32.mrf.mxu0
  %v802 = vadd.f32 0.0, %v801
  %803 = vmatmul.bf16.gmra.mxu0 %v735
  %v804 = vpop.f32.mrf.mxu0
  %v805 = vadd.f32 0.0, %v804
  %v806 = vpop.f32.mrf.mxu0
  %v807 = vadd.f32 0.0, %v806
  %808 = vmatmul.bf16.gmra.mxu0 %v736
  %v809 = vpop.f32.mrf.mxu0
  %v810 = vadd.f32 0.0, %v809
  %v811 = vpop.f32.mrf.mxu0
  %v812 = vadd.f32 0.0, %v811
  %813 = vmatmul.bf16.gmra.mxu0 %v737
  %v814 = vpop.f32.mrf.mxu0
  %v815 = vadd.f32 0.0, %v814
  %v816 = vpop.f32.mrf.mxu0
  %v817 = vadd.f32 0.0, %v816
  %818 = vmatmul.bf16.gmra.mxu0 %v738
  %v819 = vpop.f32.mrf.mxu0
  %v820 = vadd.f32 0.0, %v819
  %v821 = vpop.f32.mrf.mxu0
  %v822 = vadd.f32 0.0, %v821
  %823 = vmatmul.bf16.gmra.mxu0 %v739
  %v824 = vpop.f32.mrf.mxu0
  %v825 = vadd.f32 0.0, %v824
  %v826 = vpop.f32.mrf.mxu0
  %v827 = vadd.f32 0.0, %v826
  %828 = vmatmul.bf16.gmra.mxu0 %v740
  %v829 = vpop.f32.mrf.mxu0
  %v830 = vadd.f32 0.0, %v829
  %v831 = vpop.f32.mrf.mxu0
  %v832 = vadd.f32 0.0, %v831
  %833 = vmatmul.bf16.gmra.mxu0 %v741
  %v834 = vpop.f32.mrf.mxu0
  %v835 = vadd.f32 0.0, %v834
  %v836 = vpop.f32.mrf.mxu0
  %v837 = vadd.f32 0.0, %v836
  %838 = vdwg.mxu0
  %v839 = vadd.f32 %v718, %v800
  %v840 = vadd.f32 %v719, %v802
  %v841 = vadd.f32 %v720, %v805
  %v842 = vadd.f32 %v721, %v807
  %v843 = vadd.f32 %v722, %v810
  %v844 = vadd.f32 %v723, %v812
  %v845 = vadd.f32 %v724, %v815
  %v846 = vadd.f32 %v725, %v817
  %v847 = vadd.f32 %v726, %v820
  %v848 = vadd.f32 %v727, %v822
  %v849 = vadd.f32 %v728, %v825
  %v850 = vadd.f32 %v729, %v827
  %v851 = vadd.f32 %v730, %v830
  %v852 = vadd.f32 %v731, %v832
  %v853 = vadd.f32 %v732, %v835
  %v854 = vadd.f32 %v733, %v837
  %vm855 = vcmask 7168
  %856 = vst.msk [vmem:[#allocation2] sm:$0xff] %vm855, %v446
  %857 = vst.msk [vmem:[#allocation2 + $0x8] sm:$0xff] %vm855, %v447
  %858 = vst.msk [vmem:[#allocation2 + $0x10] sm:$0xff] %vm855, %v448
  %859 = vst.msk [vmem:[#allocation2 + $0x18] sm:$0xff] %vm855, %v449
  %860 = vst.msk [vmem:[#allocation2 + $0x20] sm:$0xff] %vm855, %v450
  %861 = vst.msk [vmem:[#allocation2 + $0x28] sm:$0xff] %vm855, %v451
  %862 = vst.msk [vmem:[#allocation2 + $0x30] sm:$0xff] %vm855, %v452
  %863 = vst.msk [vmem:[#allocation2 + $0x38] sm:$0xff] %vm855, %v453
  %864 = vst.msk [vmem:[#allocation2 + $0x40] sm:$0xff] %vm855, %v454
  %865 = vst.msk [vmem:[#allocation2 + $0x48] sm:$0xff] %vm855, %v455
  %866 = vst.msk [vmem:[#allocation2 + $0x50] sm:$0xff] %vm855, %v456
  %867 = vst.msk [vmem:[#allocation2 + $0x58] sm:$0xff] %vm855, %v457
  %868 = vst.msk [vmem:[#allocation2 + $0x60] sm:$0xff] %vm855, %v458
  %869 = vst.msk [vmem:[#allocation2 + $0x68] sm:$0xff] %vm855, %v459
  %870 = vst.msk [vmem:[#allocation2 + $0x70] sm:$0xff] %vm855, %v460
  %871 = vst.msk [vmem:[#allocation2 + $0x78] sm:$0xff] %vm855, %v461
  %vm872 = vcmask 72704
  %873 = vst.msk [vmem:[#allocation3] sm:$0xff] %vm872, %v839
  %874 = vst.msk [vmem:[#allocation3 + $0x8] sm:$0xff] %vm872, %v840
  %875 = vst.msk [vmem:[#allocation3 + $0x10] sm:$0xff] %vm872, %v841
  %876 = vst.msk [vmem:[#allocation3 + $0x18] sm:$0xff] %vm872, %v842
  %877 = vst.msk [vmem:[#allocation3 + $0x20] sm:$0xff] %vm872, %v843
  %878 = vst.msk [vmem:[#allocation3 + $0x28] sm:$0xff] %vm872, %v844
  %879 = vst.msk [vmem:[#allocation3 + $0x30] sm:$0xff] %vm872, %v845
  %880 = vst.msk [vmem:[#allocation3 + $0x38] sm:$0xff] %vm872, %v846
  %881 = vst.msk [vmem:[#allocation3 + $0x40] sm:$0xff] %vm872, %v847
  %882 = vst.msk [vmem:[#allocation3 + $0x48] sm:$0xff] %vm872, %v848
  %883 = vst.msk [vmem:[#allocation3 + $0x50] sm:$0xff] %vm872, %v849
  %884 = vst.msk [vmem:[#allocation3 + $0x58] sm:$0xff] %vm872, %v850
  %885 = vst.msk [vmem:[#allocation3 + $0x60] sm:$0xff] %vm872, %v851
  %886 = vst.msk [vmem:[#allocation3 + $0x68] sm:$0xff] %vm872, %v852
  %887 = vst.msk [vmem:[#allocation3 + $0x70] sm:$0xff] %vm872, %v853
  %888 = vst.msk [vmem:[#allocation3 + $0x78] sm:$0xff] %vm872, %v854
  // Predicated region
  $region22: #{gat_forward.7} parent=0 // pred_check
    %p889 = pneg %p19
  $region23: #{gat_forward.7} parent=0 // pred_check_branch
    %891 = sbr.rel (%p889) target = $region25
  $region24: #{gat_forward.7} parent=0 // pred_region
    %v892 = vld [vmem:[#allocation3] sm:$0xff]
    %v893 = vld [vmem:[#allocation3 + $0x8] sm:$0xff]
    %v894 = vld [vmem:[#allocation3 + $0x10] sm:$0xff]
    %v895 = vld [vmem:[#allocation3 + $0x18] sm:$0xff]
    %v896 = vld [vmem:[#allocation3 + $0x20] sm:$0xff]
    %v897 = vld [vmem:[#allocation3 + $0x28] sm:$0xff]
    %v898 = vld [vmem:[#allocation3 + $0x30] sm:$0xff]
    %v899 = vld [vmem:[#allocation3 + $0x38] sm:$0xff]
    %v900 = vld [vmem:[#allocation3 + $0x40] sm:$0xff]
    %v901 = vld [vmem:[#allocation3 + $0x48] sm:$0xff]
    %v902 = vld [vmem:[#allocation3 + $0x50] sm:$0xff]
    %v903 = vld [vmem:[#allocation3 + $0x58] sm:$0xff]
    %v904 = vld [vmem:[#allocation3 + $0x60] sm:$0xff]
    %v905 = vld [vmem:[#allocation3 + $0x68] sm:$0xff]
    %v906 = vld [vmem:[#allocation3 + $0x70] sm:$0xff]
    %v907 = vld [vmem:[#allocation3 + $0x78] sm:$0xff]
    %909 = vset.pattern.permute.xlu0 8
    %910 = vperm.xlu0 %909, %v892
    %v911 = vpop.permute.xlu0 %910
    %914 = vset.pattern.permute.xlu0 8
    %915 = vperm.xlu0 %914, %v893
    %v916 = vpop.permute.xlu0 %915
    %919 = vset.pattern.permute.xlu0 8
    %920 = vperm.xlu0 %919, %v894
    %v921 = vpop.permute.xlu0 %920
    %924 = vset.pattern.permute.xlu0 8
    %925 = vperm.xlu0 %924, %v895
    %v926 = vpop.permute.xlu0 %925
    %929 = vset.pattern.permute.xlu0 8
    %930 = vperm.xlu0 %929, %v896
    %v931 = vpop.permute.xlu0 %930
    %934 = vset.pattern.permute.xlu0 8
    %935 = vperm.xlu0 %934, %v897
    %v936 = vpop.permute.xlu0 %935
    %939 = vset.pattern.permute.xlu0 8
    %940 = vperm.xlu0 %939, %v898
    %v941 = vpop.permute.xlu0 %940
    %944 = vset.pattern.permute.xlu0 8
    %945 = vperm.xlu0 %944, %v899
    %v946 = vpop.permute.xlu0 %945
    %949 = vset.pattern.permute.xlu0 8
    %950 = vperm.xlu0 %949, %v900
    %v951 = vpop.permute.xlu0 %950
    %954 = vset.pattern.permute.xlu0 8
    %955 = vperm.xlu0 %954, %v901
    %v956 = vpop.permute.xlu0 %955
    %959 = vset.pattern.permute.xlu0 8
    %960 = vperm.xlu0 %959, %v902
    %v961 = vpop.permute.xlu0 %960
    %964 = vset.pattern.permute.xlu0 8
    %965 = vperm.xlu0 %964, %v903
    %v966 = vpop.permute.xlu0 %965
    %969 = vset.pattern.permute.xlu0 8
    %970 = vperm.xlu0 %969, %v904
    %v971 = vpop.permute.xlu0 %970
    %974 = vset.pattern.permute.xlu0 8
    %975 = vperm.xlu0 %974, %v905
    %v976 = vpop.permute.xlu0 %975
    %979 = vset.pattern.permute.xlu0 8
    %980 = vperm.xlu0 %979, %v906
    %v981 = vpop.permute.xlu0 %980
    %984 = vset.pattern.permute.xlu0 8
    %985 = vperm.xlu0 %984, %v907
    %v986 = vpop.permute.xlu0 %985
    %v988 = vrcp.pop %v911
    %v989 = vmul.f32 %v911, %v988
    %v990 = vsub.f32 1.0, %v989
    %v991 = vmul.f32 %v988, %v990
    %v992 = vadd.f32 %v988, %v991
    %vm993 = vweird.f32 %v911
    %vm994 = vweird.f32 %v988
    %vm995 = vmor %vm993, %vm994
    %v996 = vsel %vm995, %v988, %v992
    %v997 = vand.u32 2147483647, %v911
    %vm998 = vcmp.eq.f32.partialorder %v997, 8.507059e+37
    %v999 = vand.u32 %v911, 2147483648
    %v1000 = vor.u32 1.1754944e-38, %v999
    %v1001 = vsel %vm998, %v1000, %v996
    %v1002 = vmul.f32 %v892, %v1001
    %v1003 = vrcp.pop %v916
    %v1004 = vmul.f32 %v916, %v1003
    %v1005 = vsub.f32 1.0, %v1004
    %v1006 = vmul.f32 %v1003, %v1005
    %v1007 = vadd.f32 %v1003, %v1006
    %vm1008 = vweird.f32 %v916
    %vm1009 = vweird.f32 %v1003
    %vm1010 = vmor %vm1008, %vm1009
    %v1011 = vsel %vm1010, %v1003, %v1007
    %v1012 = vand.u32 2147483647, %v916
    %vm1013 = vcmp.eq.f32.partialorder %v1012, 8.507059e+37
    %v1014 = vand.u32 %v916, 2147483648
    %v1015 = vor.u32 1.1754944e-38, %v1014
    %v1016 = vsel %vm1013, %v1015, %v1011
    %v1017 = vmul.f32 %v893, %v1016
    %v1018 = vrcp.pop %v921
    %v1019 = vmul.f32 %v921, %v1018
    %v1020 = vsub.f32 1.0, %v1019
    %v1021 = vmul.f32 %v1018, %v1020
    %v1022 = vadd.f32 %v1018, %v1021
    %vm1023 = vweird.f32 %v921
    %vm1024 = vweird.f32 %v1018
    %vm1025 = vmor %vm1023, %vm1024
    %v1026 = vsel %vm1025, %v1018, %v1022
    %v1027 = vand.u32 2147483647, %v921
    %vm1028 = vcmp.eq.f32.partialorder %v1027, 8.507059e+37
    %v1029 = vand.u32 %v921, 2147483648
    %v1030 = vor.u32 1.1754944e-38, %v1029
    %v1031 = vsel %vm1028, %v1030, %v1026
    %v1032 = vmul.f32 %v894, %v1031
    %v1033 = vrcp.pop %v926
    %v1034 = vmul.f32 %v926, %v1033
    %v1035 = vsub.f32 1.0, %v1034
    %v1036 = vmul.f32 %v1033, %v1035
    %v1037 = vadd.f32 %v1033, %v1036
    %vm1038 = vweird.f32 %v926
    %vm1039 = vweird.f32 %v1033
    %vm1040 = vmor %vm1038, %vm1039
    %v1041 = vsel %vm1040, %v1033, %v1037
    %v1042 = vand.u32 2147483647, %v926
    %vm1043 = vcmp.eq.f32.partialorder %v1042, 8.507059e+37
    %v1044 = vand.u32 %v926, 2147483648
    %v1045 = vor.u32 1.1754944e-38, %v1044
    %v1046 = vsel %vm1043, %v1045, %v1041
    %v1047 = vmul.f32 %v895, %v1046
    %v1048 = vrcp.pop %v931
    %v1049 = vmul.f32 %v931, %v1048
    %v1050 = vsub.f32 1.0, %v1049
    %v1051 = vmul.f32 %v1048, %v1050
    %v1052 = vadd.f32 %v1048, %v1051
    %vm1053 = vweird.f32 %v931
    %vm1054 = vweird.f32 %v1048
    %vm1055 = vmor %vm1053, %vm1054
    %v1056 = vsel %vm1055, %v1048, %v1052
    %v1057 = vand.u32 2147483647, %v931
    %vm1058 = vcmp.eq.f32.partialorder %v1057, 8.507059e+37
    %v1059 = vand.u32 %v931, 2147483648
    %v1060 = vor.u32 1.1754944e-38, %v1059
    %v1061 = vsel %vm1058, %v1060, %v1056
    %v1062 = vmul.f32 %v896, %v1061
    %v1063 = vrcp.pop %v936
    %v1064 = vmul.f32 %v936, %v1063
    %v1065 = vsub.f32 1.0, %v1064
    %v1066 = vmul.f32 %v1063, %v1065
    %v1067 = vadd.f32 %v1063, %v1066
    %vm1068 = vweird.f32 %v936
    %vm1069 = vweird.f32 %v1063
    %vm1070 = vmor %vm1068, %vm1069
    %v1071 = vsel %vm1070, %v1063, %v1067
    %v1072 = vand.u32 2147483647, %v936
    %vm1073 = vcmp.eq.f32.partialorder %v1072, 8.507059e+37
    %v1074 = vand.u32 %v936, 2147483648
    %v1075 = vor.u32 1.1754944e-38, %v1074
    %v1076 = vsel %vm1073, %v1075, %v1071
    %v1077 = vmul.f32 %v897, %v1076
    %v1078 = vrcp.pop %v941
    %v1079 = vmul.f32 %v941, %v1078
    %v1080 = vsub.f32 1.0, %v1079
    %v1081 = vmul.f32 %v1078, %v1080
    %v1082 = vadd.f32 %v1078, %v1081
    %vm1083 = vweird.f32 %v941
    %vm1084 = vweird.f32 %v1078
    %vm1085 = vmor %vm1083, %vm1084
    %v1086 = vsel %vm1085, %v1078, %v1082
    %v1087 = vand.u32 2147483647, %v941
    %vm1088 = vcmp.eq.f32.partialorder %v1087, 8.507059e+37
    %v1089 = vand.u32 %v941, 2147483648
    %v1090 = vor.u32 1.1754944e-38, %v1089
    %v1091 = vsel %vm1088, %v1090, %v1086
    %v1092 = vmul.f32 %v898, %v1091
    %v1093 = vrcp.pop %v946
    %v1094 = vmul.f32 %v946, %v1093
    %v1095 = vsub.f32 1.0, %v1094
    %v1096 = vmul.f32 %v1093, %v1095
    %v1097 = vadd.f32 %v1093, %v1096
    %vm1098 = vweird.f32 %v946
    %vm1099 = vweird.f32 %v1093
    %vm1100 = vmor %vm1098, %vm1099
    %v1101 = vsel %vm1100, %v1093, %v1097
    %v1102 = vand.u32 2147483647, %v946
    %vm1103 = vcmp.eq.f32.partialorder %v1102, 8.507059e+37
    %v1104 = vand.u32 %v946, 2147483648
    %v1105 = vor.u32 1.1754944e-38, %v1104
    %v1106 = vsel %vm1103, %v1105, %v1101
    %v1107 = vmul.f32 %v899, %v1106
    %v1108 = vrcp.pop %v951
    %v1109 = vmul.f32 %v951, %v1108
    %v1110 = vsub.f32 1.0, %v1109
    %v1111 = vmul.f32 %v1108, %v1110
    %v1112 = vadd.f32 %v1108, %v1111
    %vm1113 = vweird.f32 %v951
    %vm1114 = vweird.f32 %v1108
    %vm1115 = vmor %vm1113, %vm1114
    %v1116 = vsel %vm1115, %v1108, %v1112
    %v1117 = vand.u32 2147483647, %v951
    %vm1118 = vcmp.eq.f32.partialorder %v1117, 8.507059e+37
    %v1119 = vand.u32 %v951, 2147483648
    %v1120 = vor.u32 1.1754944e-38, %v1119
    %v1121 = vsel %vm1118, %v1120, %v1116
    %v1122 = vmul.f32 %v900, %v1121
    %v1123 = vrcp.pop %v956
    %v1124 = vmul.f32 %v956, %v1123
    %v1125 = vsub.f32 1.0, %v1124
    %v1126 = vmul.f32 %v1123, %v1125
    %v1127 = vadd.f32 %v1123, %v1126
    %vm1128 = vweird.f32 %v956
    %vm1129 = vweird.f32 %v1123
    %vm1130 = vmor %vm1128, %vm1129
    %v1131 = vsel %vm1130, %v1123, %v1127
    %v1132 = vand.u32 2147483647, %v956
    %vm1133 = vcmp.eq.f32.partialorder %v1132, 8.507059e+37
    %v1134 = vand.u32 %v956, 2147483648
    %v1135 = vor.u32 1.1754944e-38, %v1134
    %v1136 = vsel %vm1133, %v1135, %v1131
    %v1137 = vmul.f32 %v901, %v1136
    %v1138 = vrcp.pop %v961
    %v1139 = vmul.f32 %v961, %v1138
    %v1140 = vsub.f32 1.0, %v1139
    %v1141 = vmul.f32 %v1138, %v1140
    %v1142 = vadd.f32 %v1138, %v1141
    %vm1143 = vweird.f32 %v961
    %vm1144 = vweird.f32 %v1138
    %vm1145 = vmor %vm1143, %vm1144
    %v1146 = vsel %vm1145, %v1138, %v1142
    %v1147 = vand.u32 2147483647, %v961
    %vm1148 = vcmp.eq.f32.partialorder %v1147, 8.507059e+37
    %v1149 = vand.u32 %v961, 2147483648
    %v1150 = vor.u32 1.1754944e-38, %v1149
    %v1151 = vsel %vm1148, %v1150, %v1146
    %v1152 = vmul.f32 %v902, %v1151
    %v1153 = vrcp.pop %v966
    %v1154 = vmul.f32 %v966, %v1153
    %v1155 = vsub.f32 1.0, %v1154
    %v1156 = vmul.f32 %v1153, %v1155
    %v1157 = vadd.f32 %v1153, %v1156
    %vm1158 = vweird.f32 %v966
    %vm1159 = vweird.f32 %v1153
    %vm1160 = vmor %vm1158, %vm1159
    %v1161 = vsel %vm1160, %v1153, %v1157
    %v1162 = vand.u32 2147483647, %v966
    %vm1163 = vcmp.eq.f32.partialorder %v1162, 8.507059e+37
    %v1164 = vand.u32 %v966, 2147483648
    %v1165 = vor.u32 1.1754944e-38, %v1164
    %v1166 = vsel %vm1163, %v1165, %v1161
    %v1167 = vmul.f32 %v903, %v1166
    %v1168 = vrcp.pop %v971
    %v1169 = vmul.f32 %v971, %v1168
    %v1170 = vsub.f32 1.0, %v1169
    %v1171 = vmul.f32 %v1168, %v1170
    %v1172 = vadd.f32 %v1168, %v1171
    %vm1173 = vweird.f32 %v971
    %vm1174 = vweird.f32 %v1168
    %vm1175 = vmor %vm1173, %vm1174
    %v1176 = vsel %vm1175, %v1168, %v1172
    %v1177 = vand.u32 2147483647, %v971
    %vm1178 = vcmp.eq.f32.partialorder %v1177, 8.507059e+37
    %v1179 = vand.u32 %v971, 2147483648
    %v1180 = vor.u32 1.1754944e-38, %v1179
    %v1181 = vsel %vm1178, %v1180, %v1176
    %v1182 = vmul.f32 %v904, %v1181
    %v1183 = vrcp.pop %v976
    %v1184 = vmul.f32 %v976, %v1183
    %v1185 = vsub.f32 1.0, %v1184
    %v1186 = vmul.f32 %v1183, %v1185
    %v1187 = vadd.f32 %v1183, %v1186
    %vm1188 = vweird.f32 %v976
    %vm1189 = vweird.f32 %v1183
    %vm1190 = vmor %vm1188, %vm1189
    %v1191 = vsel %vm1190, %v1183, %v1187
    %v1192 = vand.u32 2147483647, %v976
    %vm1193 = vcmp.eq.f32.partialorder %v1192, 8.507059e+37
    %v1194 = vand.u32 %v976, 2147483648
    %v1195 = vor.u32 1.1754944e-38, %v1194
    %v1196 = vsel %vm1193, %v1195, %v1191
    %v1197 = vmul.f32 %v905, %v1196
    %v1198 = vrcp.pop %v981
    %v1199 = vmul.f32 %v981, %v1198
    %v1200 = vsub.f32 1.0, %v1199
    %v1201 = vmul.f32 %v1198, %v1200
    %v1202 = vadd.f32 %v1198, %v1201
    %vm1203 = vweird.f32 %v981
    %vm1204 = vweird.f32 %v1198
    %vm1205 = vmor %vm1203, %vm1204
    %v1206 = vsel %vm1205, %v1198, %v1202
    %v1207 = vand.u32 2147483647, %v981
    %vm1208 = vcmp.eq.f32.partialorder %v1207, 8.507059e+37
    %v1209 = vand.u32 %v981, 2147483648
    %v1210 = vor.u32 1.1754944e-38, %v1209
    %v1211 = vsel %vm1208, %v1210, %v1206
    %v1212 = vmul.f32 %v906, %v1211
    %v1213 = vrcp.pop %v986
    %v1214 = vmul.f32 %v986, %v1213
    %v1215 = vsub.f32 1.0, %v1214
    %v1216 = vmul.f32 %v1213, %v1215
    %v1217 = vadd.f32 %v1213, %v1216
    %vm1218 = vweird.f32 %v986
    %vm1219 = vweird.f32 %v1213
    %vm1220 = vmor %vm1218, %vm1219
    %v1221 = vsel %vm1220, %v1213, %v1217
    %v1222 = vand.u32 2147483647, %v986
    %vm1223 = vcmp.eq.f32.partialorder %v1222, 8.507059e+37
    %v1224 = vand.u32 %v986, 2147483648
    %v1225 = vor.u32 1.1754944e-38, %v1224
    %v1226 = vsel %vm1223, %v1225, %v1221
    %v1227 = vmul.f32 %v907, %v1226
    %vm1228 = vcmask 64512
    %v1229 = vsel %vm1228, %v1002, -inf
    %1230 = vmax.xlane.f32.xlu0 %v1229
    %v1231 = vpop.xlane.xlu0 %1230
    %v1232 = vsel %vm1228, %v1017, -inf
    %1233 = vmax.xlane.f32.xlu0 %v1232
    %v1234 = vpop.xlane.xlu0 %1233
    %v1235 = vsel %vm1228, %v1032, -inf
    %1236 = vmax.xlane.f32.xlu0 %v1235
    %v1237 = vpop.xlane.xlu0 %1236
    %v1238 = vsel %vm1228, %v1047, -inf
    %1239 = vmax.xlane.f32.xlu0 %v1238
    %v1240 = vpop.xlane.xlu0 %1239
    %v1241 = vsel %vm1228, %v1062, -inf
    %1242 = vmax.xlane.f32.xlu0 %v1241
    %v1243 = vpop.xlane.xlu0 %1242
    %v1244 = vsel %vm1228, %v1077, -inf
    %1245 = vmax.xlane.f32.xlu0 %v1244
    %v1246 = vpop.xlane.xlu0 %1245
    %v1247 = vsel %vm1228, %v1092, -inf
    %1248 = vmax.xlane.f32.xlu0 %v1247
    %v1249 = vpop.xlane.xlu0 %1248
    %v1250 = vsel %vm1228, %v1107, -inf
    %1251 = vmax.xlane.f32.xlu0 %v1250
    %v1252 = vpop.xlane.xlu0 %1251
    %v1253 = vsel %vm1228, %v1122, -inf
    %1254 = vmax.xlane.f32.xlu0 %v1253
    %v1255 = vpop.xlane.xlu0 %1254
    %v1256 = vsel %vm1228, %v1137, -inf
    %1257 = vmax.xlane.f32.xlu0 %v1256
    %v1258 = vpop.xlane.xlu0 %1257
    %v1259 = vsel %vm1228, %v1152, -inf
    %1260 = vmax.xlane.f32.xlu0 %v1259
    %v1261 = vpop.xlane.xlu0 %1260
    %v1262 = vsel %vm1228, %v1167, -inf
    %1263 = vmax.xlane.f32.xlu0 %v1262
    %v1264 = vpop.xlane.xlu0 %1263
    %v1265 = vsel %vm1228, %v1182, -inf
    %1266 = vmax.xlane.f32.xlu0 %v1265
    %v1267 = vpop.xlane.xlu0 %1266
    %v1268 = vsel %vm1228, %v1197, -inf
    %1269 = vmax.xlane.f32.xlu0 %v1268
    %v1270 = vpop.xlane.xlu0 %1269
    %v1271 = vsel %vm1228, %v1212, -inf
    %1272 = vmax.xlane.f32.xlu0 %v1271
    %v1273 = vpop.xlane.xlu0 %1272
    %v1274 = vsel %vm1228, %v1227, -inf
    %1275 = vmax.xlane.f32.xlu0 %v1274
    %v1276 = vpop.xlane.xlu0 %1275
    %v1277 = vsub.f32 %v1002, %v1231
    %v1278 = vsub.f32 %v1017, %v1234
    %v1279 = vsub.f32 %v1032, %v1237
    %v1280 = vsub.f32 %v1047, %v1240
    %v1281 = vsub.f32 %v1062, %v1243
    %v1282 = vsub.f32 %v1077, %v1246
    %v1283 = vsub.f32 %v1092, %v1249
    %v1284 = vsub.f32 %v1107, %v1252
    %v1285 = vsub.f32 %v1122, %v1255
    %v1286 = vsub.f32 %v1137, %v1258
    %v1287 = vsub.f32 %v1152, %v1261
    %v1288 = vsub.f32 %v1167, %v1264
    %v1289 = vsub.f32 %v1182, %v1267
    %v1290 = vsub.f32 %v1197, %v1270
    %v1291 = vsub.f32 %v1212, %v1273
    %v1292 = vsub.f32 %v1227, %v1276
    %v1293 = vmul.f32 %v1277, 1.442695
    %v1294 = vpow.pop %v1293
    %v1295 = vmul.f32 %v1278, 1.442695
    %v1296 = vpow.pop %v1295
    %v1297 = vmul.f32 %v1279, 1.442695
    %v1298 = vpow.pop %v1297
    %v1299 = vmul.f32 %v1280, 1.442695
    %v1300 = vpow.pop %v1299
    %v1301 = vmul.f32 %v1281, 1.442695
    %v1302 = vpow.pop %v1301
    %v1303 = vmul.f32 %v1282, 1.442695
    %v1304 = vpow.pop %v1303
    %v1305 = vmul.f32 %v1283, 1.442695
    %v1306 = vpow.pop %v1305
    %v1307 = vmul.f32 %v1284, 1.442695
    %v1308 = vpow.pop %v1307
    %v1309 = vmul.f32 %v1285, 1.442695
    %v1310 = vpow.pop %v1309
    %v1311 = vmul.f32 %v1286, 1.442695
    %v1312 = vpow.pop %v1311
    %v1313 = vmul.f32 %v1287, 1.442695
    %v1314 = vpow.pop %v1313
    %v1315 = vmul.f32 %v1288, 1.442695
    %v1316 = vpow.pop %v1315
    %v1317 = vmul.f32 %v1289, 1.442695
    %v1318 = vpow.pop %v1317
    %v1319 = vmul.f32 %v1290, 1.442695
    %v1320 = vpow.pop %v1319
    %v1321 = vmul.f32 %v1291, 1.442695
    %v1322 = vpow.pop %v1321
    %v1323 = vmul.f32 %v1292, 1.442695
    %v1324 = vpow.pop %v1323
    %v1325 = vsel %vm1228, %v1294, 0.0
    %1326 = vadd.xlane.f32.xlu0 %v1325
    %v1327 = vpop.xlane.xlu0 %1326
    %v1328 = vsel %vm1228, %v1296, 0.0
    %1329 = vadd.xlane.f32.xlu0 %v1328
    %v1330 = vpop.xlane.xlu0 %1329
    %v1331 = vsel %vm1228, %v1298, 0.0
    %1332 = vadd.xlane.f32.xlu0 %v1331
    %v1333 = vpop.xlane.xlu0 %1332
    %v1334 = vsel %vm1228, %v1300, 0.0
    %1335 = vadd.xlane.f32.xlu0 %v1334
    %v1336 = vpop.xlane.xlu0 %1335
    %v1337 = vsel %vm1228, %v1302, 0.0
    %1338 = vadd.xlane.f32.xlu0 %v1337
    %v1339 = vpop.xlane.xlu0 %1338
    %v1340 = vsel %vm1228, %v1304, 0.0
    %1341 = vadd.xlane.f32.xlu0 %v1340
    %v1342 = vpop.xlane.xlu0 %1341
    %v1343 = vsel %vm1228, %v1306, 0.0
    %1344 = vadd.xlane.f32.xlu0 %v1343
    %v1345 = vpop.xlane.xlu0 %1344
    %v1346 = vsel %vm1228, %v1308, 0.0
    %1347 = vadd.xlane.f32.xlu0 %v1346
    %v1348 = vpop.xlane.xlu0 %1347
    %v1349 = vsel %vm1228, %v1310, 0.0
    %1350 = vadd.xlane.f32.xlu0 %v1349
    %v1351 = vpop.xlane.xlu0 %1350
    %v1352 = vsel %vm1228, %v1312, 0.0
    %1353 = vadd.xlane.f32.xlu0 %v1352
    %v1354 = vpop.xlane.xlu0 %1353
    %v1355 = vsel %vm1228, %v1314, 0.0
    %1356 = vadd.xlane.f32.xlu0 %v1355
    %v1357 = vpop.xlane.xlu0 %1356
    %v1358 = vsel %vm1228, %v1316, 0.0
    %1359 = vadd.xlane.f32.xlu0 %v1358
    %v1360 = vpop.xlane.xlu0 %1359
    %v1361 = vsel %vm1228, %v1318, 0.0
    %1362 = vadd.xlane.f32.xlu0 %v1361
    %v1363 = vpop.xlane.xlu0 %1362
    %v1364 = vsel %vm1228, %v1320, 0.0
    %1365 = vadd.xlane.f32.xlu0 %v1364
    %v1366 = vpop.xlane.xlu0 %1365
    %v1367 = vsel %vm1228, %v1322, 0.0
    %1368 = vadd.xlane.f32.xlu0 %v1367
    %v1369 = vpop.xlane.xlu0 %1368
    %v1370 = vsel %vm1228, %v1324, 0.0
    %1371 = vadd.xlane.f32.xlu0 %v1370
    %v1372 = vpop.xlane.xlu0 %1371
    %v1373 = vlog2.pop %v1327
    %v1374 = vmul.f32 %v1373, 0.6931472
    %v1375 = vlog2.pop %v1330
    %v1376 = vmul.f32 %v1375, 0.6931472
    %v1377 = vlog2.pop %v1333
    %v1378 = vmul.f32 %v1377, 0.6931472
    %v1379 = vlog2.pop %v1336
    %v1380 = vmul.f32 %v1379, 0.6931472
    %v1381 = vlog2.pop %v1339
    %v1382 = vmul.f32 %v1381, 0.6931472
    %v1383 = vlog2.pop %v1342
    %v1384 = vmul.f32 %v1383, 0.6931472
    %v1385 = vlog2.pop %v1345
    %v1386 = vmul.f32 %v1385, 0.6931472
    %v1387 = vlog2.pop %v1348
    %v1388 = vmul.f32 %v1387, 0.6931472
    %v1389 = vlog2.pop %v1351
    %v1390 = vmul.f32 %v1389, 0.6931472
    %v1391 = vlog2.pop %v1354
    %v1392 = vmul.f32 %v1391, 0.6931472
    %v1393 = vlog2.pop %v1357
    %v1394 = vmul.f32 %v1393, 0.6931472
    %v1395 = vlog2.pop %v1360
    %v1396 = vmul.f32 %v1395, 0.6931472
    %v1397 = vlog2.pop %v1363
    %v1398 = vmul.f32 %v1397, 0.6931472
    %v1399 = vlog2.pop %v1366
    %v1400 = vmul.f32 %v1399, 0.6931472
    %v1401 = vlog2.pop %v1369
    %v1402 = vmul.f32 %v1401, 0.6931472
    %v1403 = vlog2.pop %v1372
    %v1404 = vmul.f32 %v1403, 0.6931472
    %v1405 = vsub.f32 %v1277, %v1374
    %v1406 = vsub.f32 %v1278, %v1376
    %v1407 = vsub.f32 %v1279, %v1378
    %v1408 = vsub.f32 %v1280, %v1380
    %v1409 = vsub.f32 %v1281, %v1382
    %v1410 = vsub.f32 %v1282, %v1384
    %v1411 = vsub.f32 %v1283, %v1386
    %v1412 = vsub.f32 %v1284, %v1388
    %v1413 = vsub.f32 %v1285, %v1390
    %v1414 = vsub.f32 %v1286, %v1392
    %v1415 = vsub.f32 %v1287, %v1394
    %v1416 = vsub.f32 %v1288, %v1396
    %v1417 = vsub.f32 %v1289, %v1398
    %v1418 = vsub.f32 %v1290, %v1400
    %v1419 = vsub.f32 %v1291, %v1402
    %v1420 = vsub.f32 %v1292, %v1404
    %1421 = vst.msk [vmem:[%s4] sm:$0xff] %vm1228, %v1405
    %1422 = vst.msk [vmem:[%s4 + $0x8] sm:$0xff] %vm1228, %v1406
    %1423 = vst.msk [vmem:[%s4 + $0x10] sm:$0xff] %vm1228, %v1407
    %1424 = vst.msk [vmem:[%s4 + $0x18] sm:$0xff] %vm1228, %v1408
    %1425 = vst.msk [vmem:[%s4 + $0x20] sm:$0xff] %vm1228, %v1409
    %1426 = vst.msk [vmem:[%s4 + $0x28] sm:$0xff] %vm1228, %v1410
    %1427 = vst.msk [vmem:[%s4 + $0x30] sm:$0xff] %vm1228, %v1411
    %1428 = vst.msk [vmem:[%s4 + $0x38] sm:$0xff] %vm1228, %v1412
    %1429 = vst.msk [vmem:[%s4 + $0x40] sm:$0xff] %vm1228, %v1413
    %1430 = vst.msk [vmem:[%s4 + $0x48] sm:$0xff] %vm1228, %v1414
    %1431 = vst.msk [vmem:[%s4 + $0x50] sm:$0xff] %vm1228, %v1415
    %1432 = vst.msk [vmem:[%s4 + $0x58] sm:$0xff] %vm1228, %v1416
    %1433 = vst.msk [vmem:[%s4 + $0x60] sm:$0xff] %vm1228, %v1417
    %1434 = vst.msk [vmem:[%s4 + $0x68] sm:$0xff] %vm1228, %v1418
    %1435 = vst.msk [vmem:[%s4 + $0x70] sm:$0xff] %vm1228, %v1419
    %1436 = vst.msk [vmem:[%s4 + $0x78] sm:$0xff] %vm1228, %v1420
  $region25: #{gat_forward.7} parent=0 // pred_fallthru
    _
  // Predicated region
  $region26: #{gat_forward.7} parent=0 // pred_check
    _
  $region27: #{gat_forward.7} parent=0 // pred_check_branch
    %1438 = sbr.rel (0) target = $region29
  $region28: #{gat_forward.7} parent=0 // pred_region
    _
  $region29: #{gat_forward.7} parent=0 // pred_fallthru
    _
  // Predicated region
  $region30: #{gat_forward.7} parent=0 // pred_check
    _
  $region31: #{gat_forward.7} parent=0 // pred_check_branch
    %1440 = sbr.rel (0) target = $region33
  $region32: #{gat_forward.7} parent=0 // pred_region
    _
  $region33: #{gat_forward.7} parent=0 // pred_fallthru
    _

// kernel: gat_forward.5
$region0: #{gat_forward.5}
  #allocation0 [shape = 'u32[]', space=smem, size = 0x4, offset = 0x4, fixed_abs, tag = 'smem constant byte address 0x4 - core index']
  #allocation1 [shape = 'u32[72,128]{1,0:T(1,128)}', space=vmem, size = 0x9000, scoped, tag = 'internal scratch']
  #allocation2 [shape = 'f32[128,4]{1,0:T(8,128)}', space=vmem, size = 0x10000, scoped, tag = 'scratch operand']
  #allocation3 [shape = 'f32[128,68]{1,0:T(8,128)}', space=vmem, size = 0x10000, scoped, tag = 'scratch operand']
  %s0 = inlined_call_operand.vmem [shape: f32[128,4], index: 0, kind: input, shape index: {}]
  %s1 = inlined_call_operand.vmem [shape: bf16[128,68], index: 1, kind: input, shape index: {}]
  %s2 = inlined_call_operand.vmem [shape: f32[4,128], index: 2, kind: input, shape index: {}]
  %s3 = inlined_call_operand.vmem [shape: s8[128,128], index: 3, kind: input, shape index: {}]
  %s4 = inlined_call_operand.vmem [shape: bf16[128,64], index: 4, kind: output, shape index: {}]
  %s5 = sld [smem:[#allocation0]]
  $region34: #{gat_forward.5} parent=0
    _
  %s7 = ssub.s32 1, %s5
  %s8 = scalar_select 0, %s7, %s5
  // Predicated region
  $region2: #{gat_forward.5} parent=0 // pred_check
    _
  $region3: #{gat_forward.5} parent=0 // pred_check_branch
    %10 = sbr.rel (0) target = $region5
  $region4: #{gat_forward.5} parent=0 // pred_region
    _
  $region5: #{gat_forward.5} parent=0 // pred_fallthru
    _
  // Predicated region
  $region6: #{gat_forward.5} parent=0 // pred_check
    _
  $region7: #{gat_forward.5} parent=0 // pred_check_branch
    %12 = sbr.rel (0) target = $region9
  $region8: #{gat_forward.5} parent=0 // pred_region
    _
  $region9: #{gat_forward.5} parent=0 // pred_fallthru
    _
  // Predicated region
  $region10: #{gat_forward.5} parent=0 // pred_check
    _
  $region11: #{gat_forward.5} parent=0 // pred_check_branch
    %14 = sbr.rel (0) target = $region13
  $region12: #{gat_forward.5} parent=0 // pred_region
    _
  $region13: #{gat_forward.5} parent=0 // pred_fallthru
    _
  // Predicated region
  $region14: #{gat_forward.5} parent=0 // pred_check
    _
  $region15: #{gat_forward.5} parent=0 // pred_check_branch
    %16 = sbr.rel (0) target = $region17
  $region16: #{gat_forward.5} parent=0 // pred_region
    _
  $region17: #{gat_forward.5} parent=0 // pred_fallthru
    _
  %p19 = scmp.eq.s32.totalorder 0, 0
  // Predicated region
  $region18: #{gat_forward.5} parent=0 // pred_check
    %p20 = pneg %p19
  $region19: #{gat_forward.5} parent=0 // pred_check_branch
    %22 = sbr.rel (%p20) target = $region21
  $region20: #{gat_forward.5} parent=0 // pred_region
    %vm23 = vcmask 31744
    %24 = vst.msk [vmem:[#allocation2] sm:$0xff] %vm23, -9e+15
    %25 = vst.msk [vmem:[#allocation2 + $0x8] sm:$0xff] %vm23, -9e+15
    %26 = vst.msk [vmem:[#allocation2 + $0x10] sm:$0xff] %vm23, -9e+15
    %27 = vst.msk [vmem:[#allocation2 + $0x18] sm:$0xff] %vm23, -9e+15
    %28 = vst.msk [vmem:[#allocation2 + $0x20] sm:$0xff] %vm23, -9e+15
    %29 = vst.msk [vmem:[#allocation2 + $0x28] sm:$0xff] %vm23, -9e+15
    %30 = vst.msk [vmem:[#allocation2 + $0x30] sm:$0xff] %vm23, -9e+15
    %31 = vst.msk [vmem:[#allocation2 + $0x38] sm:$0xff] %vm23, -9e+15
    %32 = vst.msk [vmem:[#allocation2 + $0x40] sm:$0xff] %vm23, -9e+15
    %33 = vst.msk [vmem:[#allocation2 + $0x48] sm:$0xff] %vm23, -9e+15
    %34 = vst.msk [vmem:[#allocation2 + $0x50] sm:$0xff] %vm23, -9e+15
    %35 = vst.msk [vmem:[#allocation2 + $0x58] sm:$0xff] %vm23, -9e+15
    %36 = vst.msk [vmem:[#allocation2 + $0x60] sm:$0xff] %vm23, -9e+15
    %37 = vst.msk [vmem:[#allocation2 + $0x68] sm:$0xff] %vm23, -9e+15
    %38 = vst.msk [vmem:[#allocation2 + $0x70] sm:$0xff] %vm23, -9e+15
    %39 = vst.msk [vmem:[#allocation2 + $0x78] sm:$0xff] %vm23, -9e+15
    %vm40 = vcmask 556032
    %41 = vst.msk [vmem:[#allocation3] sm:$0xff] %vm40, 0.0
    %42 = vst.msk [vmem:[#allocation3 + $0x8] sm:$0xff] %vm40, 0.0
    %43 = vst.msk [vmem:[#allocation3 + $0x10] sm:$0xff] %vm40, 0.0
    %44 = vst.msk [vmem:[#allocation3 + $0x18] sm:$0xff] %vm40, 0.0
    %45 = vst.msk [vmem:[#allocation3 + $0x20] sm:$0xff] %vm40, 0.0
    %46 = vst.msk [vmem:[#allocation3 + $0x28] sm:$0xff] %vm40, 0.0
    %47 = vst.msk [vmem:[#allocation3 + $0x30] sm:$0xff] %vm40, 0.0
    %48 = vst.msk [vmem:[#allocation3 + $0x38] sm:$0xff] %vm40, 0.0
    %49 = vst.msk [vmem:[#allocation3 + $0x40] sm:$0xff] %vm40, 0.0
    %50 = vst.msk [vmem:[#allocation3 + $0x48] sm:$0xff] %vm40, 0.0
    %51 = vst.msk [vmem:[#allocation3 + $0x50] sm:$0xff] %vm40, 0.0
    %52 = vst.msk [vmem:[#allocation3 + $0x58] sm:$0xff] %vm40, 0.0
    %53 = vst.msk [vmem:[#allocation3 + $0x60] sm:$0xff] %vm40, 0.0
    %54 = vst.msk [vmem:[#allocation3 + $0x68] sm:$0xff] %vm40, 0.0
    %55 = vst.msk [vmem:[#allocation3 + $0x70] sm:$0xff] %vm40, 0.0
    %56 = vst.msk [vmem:[#allocation3 + $0x78] sm:$0xff] %vm40, 0.0
  $region21: #{gat_forward.5} parent=0 // pred_fallthru
    _
  %v57 = vld [vmem:[%s0] sm:$0xff]
  %v58 = vld [vmem:[%s0 + $0x8] sm:$0xff]
  %v59 = vld [vmem:[%s0 + $0x10] sm:$0xff]
  %v60 = vld [vmem:[%s0 + $0x18] sm:$0xff]
  %v61 = vld [vmem:[%s0 + $0x20] sm:$0xff]
  %v62 = vld [vmem:[%s0 + $0x28] sm:$0xff]
  %v63 = vld [vmem:[%s0 + $0x30] sm:$0xff]
  %v64 = vld [vmem:[%s0 + $0x38] sm:$0xff]
  %v65 = vld [vmem:[%s0 + $0x40] sm:$0xff]
  %v66 = vld [vmem:[%s0 + $0x48] sm:$0xff]
  %v67 = vld [vmem:[%s0 + $0x50] sm:$0xff]
  %v68 = vld [vmem:[%s0 + $0x58] sm:$0xff]
  %v69 = vld [vmem:[%s0 + $0x60] sm:$0xff]
  %v70 = vld [vmem:[%s0 + $0x68] sm:$0xff]
  %v71 = vld [vmem:[%s0 + $0x70] sm:$0xff]
  %v72 = vld [vmem:[%s0 + $0x78] sm:$0xff]
  %v73 = vld [vmem:[#allocation2] sm:$0xff]
  %v74 = vld [vmem:[#allocation2 + $0x8] sm:$0xff]
  %v75 = vld [vmem:[#allocation2 + $0x10] sm:$0xff]
  %v76 = vld [vmem:[#allocation2 + $0x18] sm:$0xff]
  %v77 = vld [vmem:[#allocation2 + $0x20] sm:$0xff]
  %v78 = vld [vmem:[#allocation2 + $0x28] sm:$0xff]
  %v79 = vld [vmem:[#allocation2 + $0x30] sm:$0xff]
  %v80 = vld [vmem:[#allocation2 + $0x38] sm:$0xff]
  %v81 = vld [vmem:[#allocation2 + $0x40] sm:$0xff]
  %v82 = vld [vmem:[#allocation2 + $0x48] sm:$0xff]
  %v83 = vld [vmem:[#allocation2 + $0x50] sm:$0xff]
  %v84 = vld [vmem:[#allocation2 + $0x58] sm:$0xff]
  %v85 = vld [vmem:[#allocation2 + $0x60] sm:$0xff]
  %v86 = vld [vmem:[#allocation2 + $0x68] sm:$0xff]
  %v87 = vld [vmem:[#allocation2 + $0x70] sm:$0xff]
  %v88 = vld [vmem:[#allocation2 + $0x78] sm:$0xff]
  %v89 = vld [vmem:[#allocation3] sm:$0xff]
  %v90 = vld [vmem:[#allocation3 + $0x8] sm:$0xff]
  %v91 = vld [vmem:[#allocation3 + $0x10] sm:$0xff]
  %v92 = vld [vmem:[#allocation3 + $0x18] sm:$0xff]
  %v93 = vld [vmem:[#allocation3 + $0x20] sm:$0xff]
  %v94 = vld [vmem:[#allocation3 + $0x28] sm:$0xff]
  %v95 = vld [vmem:[#allocation3 + $0x30] sm:$0xff]
  %v96 = vld [vmem:[#allocation3 + $0x38] sm:$0xff]
  %v97 = vld [vmem:[#allocation3 + $0x40] sm:$0xff]
  %v98 = vld [vmem:[#allocation3 + $0x48] sm:$0xff]
  %v99 = vld [vmem:[#allocation3 + $0x50] sm:$0xff]
  %v100 = vld [vmem:[#allocation3 + $0x58] sm:$0xff]
  %v101 = vld [vmem:[#allocation3 + $0x60] sm:$0xff]
  %v102 = vld [vmem:[#allocation3 + $0x68] sm:$0xff]
  %v103 = vld [vmem:[#allocation3 + $0x70] sm:$0xff]
  %v104 = vld [vmem:[#allocation3 + $0x78] sm:$0xff]
  %s105 = smul.u32 0, 128
  %s106 = sshra.s32 %s105, 3
  %s107 = sand.u32 %s105, 7
  %s108 = smul.addr %s106, 4
  %s109 = scalar_lea.vmem %s1, %s108
  %v110 = vld [vmem:[%s109] sm:$0xf]
  %v111 = vld [vmem:[%s109 + $0x4] sm:$0xf]
  %v112 = vld [vmem:[%s109 + $0x8] sm:$0xf]
  %v113 = vld [vmem:[%s109 + $0xc] sm:$0xf]
  %v114 = vld [vmem:[%s109 + $0x10] sm:$0xf]
  %v115 = vld [vmem:[%s109 + $0x14] sm:$0xf]
  %v116 = vld [vmem:[%s109 + $0x18] sm:$0xf]
  %v117 = vld [vmem:[%s109 + $0x1c] sm:$0xf]
  %v118 = vld [vmem:[%s109 + $0x20] sm:$0xf]
  %v119 = vld [vmem:[%s109 + $0x24] sm:$0xf]
  %v120 = vld [vmem:[%s109 + $0x28] sm:$0xf]
  %v121 = vld [vmem:[%s109 + $0x2c] sm:$0xf]
  %v122 = vld [vmem:[%s109 + $0x30] sm:$0xf]
  %v123 = vld [vmem:[%s109 + $0x34] sm:$0xf]
  %v124 = vld [vmem:[%s109 + $0x38] sm:$0xf]
  %v125 = vld [vmem:[%s109 + $0x3c] sm:$0xf]
  %v126 = vld [vmem:[%s2] sm:$0x1]
  %v127 = vld [vmem:[%s3] sm:$0xff]
  %v128 = vld [vmem:[%s3 + $0x8] sm:$0xff]
  %v129 = vld [vmem:[%s3 + $0x10] sm:$0xff]
  %v130 = vld [vmem:[%s3 + $0x18] sm:$0xff]
  %vm131 = vnez %v127
  %vm132 = vnez %v128
  %vm133 = vnez %v129
  %vm134 = vnez %v130
  %136 = vset.pattern.permute.xlu0 0
  %137 = vperm.xlu0 %136, %v57
  %v138 = vpop.permute.xlu0 %137
  %141 = vset.pattern.permute.xlu0 0
  %142 = vperm.xlu0 %141, %v58
  %v143 = vpop.permute.xlu0 %142
  %146 = vset.pattern.permute.xlu0 0
  %147 = vperm.xlu0 %146, %v59
  %v148 = vpop.permute.xlu0 %147
  %151 = vset.pattern.permute.xlu0 0
  %152 = vperm.xlu0 %151, %v60
  %v153 = vpop.permute.xlu0 %152
  %156 = vset.pattern.permute.xlu0 0
  %157 = vperm.xlu0 %156, %v61
  %v158 = vpop.permute.xlu0 %157
  %161 = vset.pattern.permute.xlu0 0
  %162 = vperm.xlu0 %161, %v62
  %v163 = vpop.permute.xlu0 %162
  %166 = vset.pattern.permute.xlu0 0
  %167 = vperm.xlu0 %166, %v63
  %v168 = vpop.permute.xlu0 %167
  %171 = vset.pattern.permute.xlu0 0
  %172 = vperm.xlu0 %171, %v64
  %v173 = vpop.permute.xlu0 %172
  %176 = vset.pattern.permute.xlu0 0
  %177 = vperm.xlu0 %176, %v65
  %v178 = vpop.permute.xlu0 %177
  %181 = vset.pattern.permute.xlu0 0
  %182 = vperm.xlu0 %181, %v66
  %v183 = vpop.permute.xlu0 %182
  %186 = vset.pattern.permute.xlu0 0
  %187 = vperm.xlu0 %186, %v67
  %v188 = vpop.permute.xlu0 %187
  %191 = vset.pattern.permute.xlu0 0
  %192 = vperm.xlu0 %191, %v68
  %v193 = vpop.permute.xlu0 %192
  %196 = vset.pattern.permute.xlu0 0
  %197 = vperm.xlu0 %196, %v69
  %v198 = vpop.permute.xlu0 %197
  %201 = vset.pattern.permute.xlu0 0
  %202 = vperm.xlu0 %201, %v70
  %v203 = vpop.permute.xlu0 %202
  %206 = vset.pattern.permute.xlu0 0
  %207 = vperm.xlu0 %206, %v71
  %v208 = vpop.permute.xlu0 %207
  %211 = vset.pattern.permute.xlu0 0
  %212 = vperm.xlu0 %211, %v72
  %v213 = vpop.permute.xlu0 %212
  %v215 = vperm.slane %v126, 0
  %v216 = vadd.f32 %v138, %v215
  %v217 = vadd.f32 %v143, %v215
  %v218 = vadd.f32 %v148, %v215
  %v219 = vadd.f32 %v153, %v215
  %v220 = vadd.f32 %v158, %v215
  %v221 = vadd.f32 %v163, %v215
  %v222 = vadd.f32 %v168, %v215
  %v223 = vadd.f32 %v173, %v215
  %v224 = vadd.f32 %v178, %v215
  %v225 = vadd.f32 %v183, %v215
  %v226 = vadd.f32 %v188, %v215
  %v227 = vadd.f32 %v193, %v215
  %v228 = vadd.f32 %v198, %v215
  %v229 = vadd.f32 %v203, %v215
  %v230 = vadd.f32 %v208, %v215
  %v231 = vadd.f32 %v213, %v215
  %v232 = vsel %vm131, 16843009, 0
  %v233 = vsel %vm132, 16843009, 0
  %v234 = vsel %vm133, 16843009, 0
  %v235 = vsel %vm134, 16843009, 0
  %v236 = vunpack.c.0.s8 %v232
  %v237 = vunpack.c.1.s8 %v232
  %v238 = vunpack.c.2.s8 %v232
  %v239 = vunpack.c.3.s8 %v232
  %v240 = vunpack.c.0.s8 %v233
  %v241 = vunpack.c.1.s8 %v233
  %v242 = vunpack.c.2.s8 %v233
  %v243 = vunpack.c.3.s8 %v233
  %v244 = vunpack.c.0.s8 %v234
  %v245 = vunpack.c.1.s8 %v234
  %v246 = vunpack.c.2.s8 %v234
  %v247 = vunpack.c.3.s8 %v234
  %v248 = vunpack.c.0.s8 %v235
  %v249 = vunpack.c.1.s8 %v235
  %v250 = vunpack.c.2.s8 %v235
  %v251 = vunpack.c.3.s8 %v235
  %v252 = vpack.c.b16 %v236, %v236
  %v253 = vpack.c.b8 %v252, %v252
  %v254 = vpack.c.b16 %v237, %v237
  %v255 = vpack.c.b8 %v254, %v254
  %v256 = vpack.c.b16 %v238, %v238
  %v257 = vpack.c.b8 %v256, %v256
  %v258 = vpack.c.b16 %v239, %v239
  %v259 = vpack.c.b8 %v258, %v258
  %v260 = vpack.c.b16 %v240, %v240
  %v261 = vpack.c.b8 %v260, %v260
  %v262 = vpack.c.b16 %v241, %v241
  %v263 = vpack.c.b8 %v262, %v262
  %v264 = vpack.c.b16 %v242, %v242
  %v265 = vpack.c.b8 %v264, %v264
  %v266 = vpack.c.b16 %v243, %v243
  %v267 = vpack.c.b8 %v266, %v266
  %v268 = vpack.c.b16 %v244, %v244
  %v269 = vpack.c.b8 %v268, %v268
  %v270 = vpack.c.b16 %v245, %v245
  %v271 = vpack.c.b8 %v270, %v270
  %v272 = vpack.c.b16 %v246, %v246
  %v273 = vpack.c.b8 %v272, %v272
  %v274 = vpack.c.b16 %v247, %v247
  %v275 = vpack.c.b8 %v274, %v274
  %v276 = vpack.c.b16 %v248, %v248
  %v277 = vpack.c.b8 %v276, %v276
  %v278 = vpack.c.b16 %v249, %v249
  %v279 = vpack.c.b8 %v278, %v278
  %v280 = vpack.c.b16 %v250, %v250
  %v281 = vpack.c.b8 %v280, %v280
  %v282 = vpack.c.b16 %v251, %v251
  %v283 = vpack.c.b8 %v282, %v282
  %vm284 = vnez %v253
  %vm285 = vnez %v255
  %vm286 = vnez %v257
  %vm287 = vnez %v259
  %vm288 = vnez %v261
  %vm289 = vnez %v263
  %vm290 = vnez %v265
  %vm291 = vnez %v267
  %vm292 = vnez %v269
  %vm293 = vnez %v271
  %vm294 = vnez %v273
  %vm295 = vnez %v275
  %vm296 = vnez %v277
  %vm297 = vnez %v279
  %vm298 = vnez %v281
  %vm299 = vnez %v283
  %v300 = vsel %vm284, 16843009, 0
  %v301 = vsel %vm285, 16843009, 0
  %v302 = vsel %vm286, 16843009, 0
  %v303 = vsel %vm287, 16843009, 0
  %v304 = vsel %vm288, 16843009, 0
  %v305 = vsel %vm289, 16843009, 0
  %v306 = vsel %vm290, 16843009, 0
  %v307 = vsel %vm291, 16843009, 0
  %v308 = vsel %vm292, 16843009, 0
  %v309 = vsel %vm293, 16843009, 0
  %v310 = vsel %vm294, 16843009, 0
  %v311 = vsel %vm295, 16843009, 0
  %v312 = vsel %vm296, 16843009, 0
  %v313 = vsel %vm297, 16843009, 0
  %v314 = vsel %vm298, 16843009, 0
  %v315 = vsel %vm299, 16843009, 0
  %v316 = vunpack.c.0.s8 %v300
  %v317 = vunpack.c.0.s8 %v301
  %v318 = vunpack.c.0.s8 %v302
  %v319 = vunpack.c.0.s8 %v303
  %v320 = vunpack.c.0.s8 %v304
  %v321 = vunpack.c.0.s8 %v305
  %v322 = vunpack.c.0.s8 %v306
  %v323 = vunpack.c.0.s8 %v307
  %v324 = vunpack.c.0.s8 %v308
  %v325 = vunpack.c.0.s8 %v309
  %v326 = vunpack.c.0.s8 %v310
  %v327 = vunpack.c.0.s8 %v311
  %v328 = vunpack.c.0.s8 %v312
  %v329 = vunpack.c.0.s8 %v313
  %v330 = vunpack.c.0.s8 %v314
  %v331 = vunpack.c.0.s8 %v315
  %vm332 = vcmp.ne.s32.totalorder %v316, 0
  %vm333 = vcmp.ne.s32.totalorder %v317, 0
  %vm334 = vcmp.ne.s32.totalorder %v318, 0
  %vm335 = vcmp.ne.s32.totalorder %v319, 0
  %vm336 = vcmp.ne.s32.totalorder %v320, 0
  %vm337 = vcmp.ne.s32.totalorder %v321, 0
  %vm338 = vcmp.ne.s32.totalorder %v322, 0
  %vm339 = vcmp.ne.s32.totalorder %v323, 0
  %vm340 = vcmp.ne.s32.totalorder %v324, 0
  %vm341 = vcmp.ne.s32.totalorder %v325, 0
  %vm342 = vcmp.ne.s32.totalorder %v326, 0
  %vm343 = vcmp.ne.s32.totalorder %v327, 0
  %vm344 = vcmp.ne.s32.totalorder %v328, 0
  %vm345 = vcmp.ne.s32.totalorder %v329, 0
  %vm346 = vcmp.ne.s32.totalorder %v330, 0
  %vm347 = vcmp.ne.s32.totalorder %v331, 0
  %v348 = vsel %vm332, %v216, -9e+15
  %v349 = vsel %vm333, %v217, -9e+15
  %v350 = vsel %vm334, %v218, -9e+15
  %v351 = vsel %vm335, %v219, -9e+15
  %v352 = vsel %vm336, %v220, -9e+15
  %v353 = vsel %vm337, %v221, -9e+15
  %v354 = vsel %vm338, %v222, -9e+15
  %v355 = vsel %vm339, %v223, -9e+15
  %v356 = vsel %vm340, %v224, -9e+15
  %v357 = vsel %vm341, %v225, -9e+15
  %v358 = vsel %vm342, %v226, -9e+15
  %v359 = vsel %vm343, %v227, -9e+15
  %v360 = vsel %vm344, %v228, -9e+15
  %v361 = vsel %vm345, %v229, -9e+15
  %v362 = vsel %vm346, %v230, -9e+15
  %v363 = vsel %vm347, %v231, -9e+15
  %vm364 = vcmp.gt.f32.partialorder %v348, 0.0
  %vm365 = vcmp.gt.f32.partialorder %v349, 0.0
  %vm366 = vcmp.gt.f32.partialorder %v350, 0.0
  %vm367 = vcmp.gt.f32.partialorder %v351, 0.0
  %vm368 = vcmp.gt.f32.partialorder %v352, 0.0
  %vm369 = vcmp.gt.f32.partialorder %v353, 0.0
  %vm370 = vcmp.gt.f32.partialorder %v354, 0.0
  %vm371 = vcmp.gt.f32.partialorder %v355, 0.0
  %vm372 = vcmp.gt.f32.partialorder %v356, 0.0
  %vm373 = vcmp.gt.f32.partialorder %v357, 0.0
  %vm374 = vcmp.gt.f32.partialorder %v358, 0.0
  %vm375 = vcmp.gt.f32.partialorder %v359, 0.0
  %vm376 = vcmp.gt.f32.partialorder %v360, 0.0
  %vm377 = vcmp.gt.f32.partialorder %v361, 0.0
  %vm378 = vcmp.gt.f32.partialorder %v362, 0.0
  %vm379 = vcmp.gt.f32.partialorder %v363, 0.0
  %v380 = vmul.f32 %v348, 0.2
  %v381 = vmul.f32 %v349, 0.2
  %v382 = vmul.f32 %v350, 0.2
  %v383 = vmul.f32 %v351, 0.2
  %v384 = vmul.f32 %v352, 0.2
  %v385 = vmul.f32 %v353, 0.2
  %v386 = vmul.f32 %v354, 0.2
  %v387 = vmul.f32 %v355, 0.2
  %v388 = vmul.f32 %v356, 0.2
  %v389 = vmul.f32 %v357, 0.2
  %v390 = vmul.f32 %v358, 0.2
  %v391 = vmul.f32 %v359, 0.2
  %v392 = vmul.f32 %v360, 0.2
  %v393 = vmul.f32 %v361, 0.2
  %v394 = vmul.f32 %v362, 0.2
  %v395 = vmul.f32 %v363, 0.2
  %v396 = vsel %vm364, %v348, %v380
  %v397 = vsel %vm365, %v349, %v381
  %v398 = vsel %vm366, %v350, %v382
  %v399 = vsel %vm367, %v351, %v383
  %v400 = vsel %vm368, %v352, %v384
  %v401 = vsel %vm369, %v353, %v385
  %v402 = vsel %vm370, %v354, %v386
  %v403 = vsel %vm371, %v355, %v387
  %v404 = vsel %vm372, %v356, %v388
  %v405 = vsel %vm373, %v357, %v389
  %v406 = vsel %vm374, %v358, %v390
  %v407 = vsel %vm375, %v359, %v391
  %v408 = vsel %vm376, %v360, %v392
  %v409 = vsel %vm377, %v361, %v393
  %v410 = vsel %vm378, %v362, %v394
  %v411 = vsel %vm379, %v363, %v395
  %412 = vmax.xlane.f32.xlu0 %v396
  %v413 = vpop.xlane.xlu0 %412
  %414 = vmax.xlane.f32.xlu0 %v397
  %v415 = vpop.xlane.xlu0 %414
  %416 = vmax.xlane.f32.xlu0 %v398
  %v417 = vpop.xlane.xlu0 %416
  %418 = vmax.xlane.f32.xlu0 %v399
  %v419 = vpop.xlane.xlu0 %418
  %420 = vmax.xlane.f32.xlu0 %v400
  %v421 = vpop.xlane.xlu0 %420
  %422 = vmax.xlane.f32.xlu0 %v401
  %v423 = vpop.xlane.xlu0 %422
  %424 = vmax.xlane.f32.xlu0 %v402
  %v425 = vpop.xlane.xlu0 %424
  %426 = vmax.xlane.f32.xlu0 %v403
  %v427 = vpop.xlane.xlu0 %426
  %428 = vmax.xlane.f32.xlu0 %v404
  %v429 = vpop.xlane.xlu0 %428
  %430 = vmax.xlane.f32.xlu0 %v405
  %v431 = vpop.xlane.xlu0 %430
  %432 = vmax.xlane.f32.xlu0 %v406
  %v433 = vpop.xlane.xlu0 %432
  %434 = vmax.xlane.f32.xlu0 %v407
  %v435 = vpop.xlane.xlu0 %434
  %436 = vmax.xlane.f32.xlu0 %v408
  %v437 = vpop.xlane.xlu0 %436
  %438 = vmax.xlane.f32.xlu0 %v409
  %v439 = vpop.xlane.xlu0 %438
  %440 = vmax.xlane.f32.xlu0 %v410
  %v441 = vpop.xlane.xlu0 %440
  %442 = vmax.xlane.f32.xlu0 %v411
  %v443 = vpop.xlane.xlu0 %442
  %v444 = vmax.f32 %v73, %v413
  %v445 = vmax.f32 %v74, %v415
  %v446 = vmax.f32 %v75, %v417
  %v447 = vmax.f32 %v76, %v419
  %v448 = vmax.f32 %v77, %v421
  %v449 = vmax.f32 %v78, %v423
  %v450 = vmax.f32 %v79, %v425
  %v451 = vmax.f32 %v80, %v427
  %v452 = vmax.f32 %v81, %v429
  %v453 = vmax.f32 %v82, %v431
  %v454 = vmax.f32 %v83, %v433
  %v455 = vmax.f32 %v84, %v435
  %v456 = vmax.f32 %v85, %v437
  %v457 = vmax.f32 %v86, %v439
  %v458 = vmax.f32 %v87, %v441
  %v459 = vmax.f32 %v88, %v443
  %v460 = vsub.f32 %v73, %v444
  %v461 = vsub.f32 %v74, %v445
  %v462 = vsub.f32 %v75, %v446
  %v463 = vsub.f32 %v76, %v447
  %v464 = vsub.f32 %v77, %v448
  %v465 = vsub.f32 %v78, %v449
  %v466 = vsub.f32 %v79, %v450
  %v467 = vsub.f32 %v80, %v451
  %v468 = vsub.f32 %v81, %v452
  %v469 = vsub.f32 %v82, %v453
  %v470 = vsub.f32 %v83, %v454
  %v471 = vsub.f32 %v84, %v455
  %v472 = vsub.f32 %v85, %v456
  %v473 = vsub.f32 %v86, %v457
  %v474 = vsub.f32 %v87, %v458
  %v475 = vsub.f32 %v88, %v459
  %v476 = vmul.f32 %v460, 1.442695
  %v477 = vpow.pop %v476
  %v478 = vmul.f32 %v461, 1.442695
  %v479 = vpow.pop %v478
  %v480 = vmul.f32 %v462, 1.442695
  %v481 = vpow.pop %v480
  %v482 = vmul.f32 %v463, 1.442695
  %v483 = vpow.pop %v482
  %v484 = vmul.f32 %v464, 1.442695
  %v485 = vpow.pop %v484
  %v486 = vmul.f32 %v465, 1.442695
  %v487 = vpow.pop %v486
  %v488 = vmul.f32 %v466, 1.442695
  %v489 = vpow.pop %v488
  %v490 = vmul.f32 %v467, 1.442695
  %v491 = vpow.pop %v490
  %v492 = vmul.f32 %v468, 1.442695
  %v493 = vpow.pop %v492
  %v494 = vmul.f32 %v469, 1.442695
  %v495 = vpow.pop %v494
  %v496 = vmul.f32 %v470, 1.442695
  %v497 = vpow.pop %v496
  %v498 = vmul.f32 %v471, 1.442695
  %v499 = vpow.pop %v498
  %v500 = vmul.f32 %v472, 1.442695
  %v501 = vpow.pop %v500
  %v502 = vmul.f32 %v473, 1.442695
  %v503 = vpow.pop %v502
  %v504 = vmul.f32 %v474, 1.442695
  %v505 = vpow.pop %v504
  %v506 = vmul.f32 %v475, 1.442695
  %v507 = vpow.pop %v506
  %509 = vset.pattern.permute.xlu0 0
  %510 = vperm.xlu0 %509, %v444
  %v511 = vpop.permute.xlu0 %510
  %514 = vset.pattern.permute.xlu0 0
  %515 = vperm.xlu0 %514, %v445
  %v516 = vpop.permute.xlu0 %515
  %519 = vset.pattern.permute.xlu0 0
  %520 = vperm.xlu0 %519, %v446
  %v521 = vpop.permute.xlu0 %520
  %524 = vset.pattern.permute.xlu0 0
  %525 = vperm.xlu0 %524, %v447
  %v526 = vpop.permute.xlu0 %525
  %529 = vset.pattern.permute.xlu0 0
  %530 = vperm.xlu0 %529, %v448
  %v531 = vpop.permute.xlu0 %530
  %534 = vset.pattern.permute.xlu0 0
  %535 = vperm.xlu0 %534, %v449
  %v536 = vpop.permute.xlu0 %535
  %539 = vset.pattern.permute.xlu0 0
  %540 = vperm.xlu0 %539, %v450
  %v541 = vpop.permute.xlu0 %540
  %544 = vset.pattern.permute.xlu0 0
  %545 = vperm.xlu0 %544, %v451
  %v546 = vpop.permute.xlu0 %545
  %549 = vset.pattern.permute.xlu0 0
  %550 = vperm.xlu0 %549, %v452
  %v551 = vpop.permute.xlu0 %550
  %554 = vset.pattern.permute.xlu0 0
  %555 = vperm.xlu0 %554, %v453
  %v556 = vpop.permute.xlu0 %555
  %559 = vset.pattern.permute.xlu0 0
  %560 = vperm.xlu0 %559, %v454
  %v561 = vpop.permute.xlu0 %560
  %564 = vset.pattern.permute.xlu0 0
  %565 = vperm.xlu0 %564, %v455
  %v566 = vpop.permute.xlu0 %565
  %569 = vset.pattern.permute.xlu0 0
  %570 = vperm.xlu0 %569, %v456
  %v571 = vpop.permute.xlu0 %570
  %574 = vset.pattern.permute.xlu0 0
  %575 = vperm.xlu0 %574, %v457
  %v576 = vpop.permute.xlu0 %575
  %579 = vset.pattern.permute.xlu0 0
  %580 = vperm.xlu0 %579, %v458
  %v581 = vpop.permute.xlu0 %580
  %584 = vset.pattern.permute.xlu0 0
  %585 = vperm.xlu0 %584, %v459
  %v586 = vpop.permute.xlu0 %585
  %v588 = vsub.f32 %v396, %v511
  %v589 = vsub.f32 %v397, %v516
  %v590 = vsub.f32 %v398, %v521
  %v591 = vsub.f32 %v399, %v526
  %v592 = vsub.f32 %v400, %v531
  %v593 = vsub.f32 %v401, %v536
  %v594 = vsub.f32 %v402, %v541
  %v595 = vsub.f32 %v403, %v546
  %v596 = vsub.f32 %v404, %v551
  %v597 = vsub.f32 %v405, %v556
  %v598 = vsub.f32 %v406, %v561
  %v599 = vsub.f32 %v407, %v566
  %v600 = vsub.f32 %v408, %v571
  %v601 = vsub.f32 %v409, %v576
  %v602 = vsub.f32 %v410, %v581
  %v603 = vsub.f32 %v411, %v586
  %v604 = vmul.f32 %v588, 1.442695
  %v605 = vpow.pop %v604
  %v606 = vmul.f32 %v589, 1.442695
  %v607 = vpow.pop %v606
  %v608 = vmul.f32 %v590, 1.442695
  %v609 = vpow.pop %v608
  %v610 = vmul.f32 %v591, 1.442695
  %v611 = vpow.pop %v610
  %v612 = vmul.f32 %v592, 1.442695
  %v613 = vpow.pop %v612
  %v614 = vmul.f32 %v593, 1.442695
  %v615 = vpow.pop %v614
  %v616 = vmul.f32 %v594, 1.442695
  %v617 = vpow.pop %v616
  %v618 = vmul.f32 %v595, 1.442695
  %v619 = vpow.pop %v618
  %v620 = vmul.f32 %v596, 1.442695
  %v621 = vpow.pop %v620
  %v622 = vmul.f32 %v597, 1.442695
  %v623 = vpow.pop %v622
  %v624 = vmul.f32 %v598, 1.442695
  %v625 = vpow.pop %v624
  %v626 = vmul.f32 %v599, 1.442695
  %v627 = vpow.pop %v626
  %v628 = vmul.f32 %v600, 1.442695
  %v629 = vpow.pop %v628
  %v630 = vmul.f32 %v601, 1.442695
  %v631 = vpow.pop %v630
  %v632 = vmul.f32 %v602, 1.442695
  %v633 = vpow.pop %v632
  %v634 = vmul.f32 %v603, 1.442695
  %v635 = vpow.pop %v634
  %637 = vset.pattern.permute.xlu0 0
  %638 = vperm.xlu0 %637, %v477
  %v639 = vpop.permute.xlu0 %638
  %642 = vset.pattern.permute.xlu0 0
  %643 = vperm.xlu0 %642, %v479
  %v644 = vpop.permute.xlu0 %643
  %647 = vset.pattern.permute.xlu0 0
  %648 = vperm.xlu0 %647, %v481
  %v649 = vpop.permute.xlu0 %648
  %652 = vset.pattern.permute.xlu0 0
  %653 = vperm.xlu0 %652, %v483
  %v654 = vpop.permute.xlu0 %653
  %657 = vset.pattern.permute.xlu0 0
  %658 = vperm.xlu0 %657, %v485
  %v659 = vpop.permute.xlu0 %658
  %662 = vset.pattern.permute.xlu0 0
  %663 = vperm.xlu0 %662, %v487
  %v664 = vpop.permute.xlu0 %663
  %667 = vset.pattern.permute.xlu0 0
  %668 = vperm.xlu0 %667, %v489
  %v669 = vpop.permute.xlu0 %668
  %672 = vset.pattern.permute.xlu0 0
  %673 = vperm.xlu0 %672, %v491
  %v674 = vpop.permute.xlu0 %673
  %677 = vset.pattern.permute.xlu0 0
  %678 = vperm.xlu0 %677, %v493
  %v679 = vpop.permute.xlu0 %678
  %682 = vset.pattern.permute.xlu0 0
  %683 = vperm.xlu0 %682, %v495
  %v684 = vpop.permute.xlu0 %683
  %687 = vset.pattern.permute.xlu0 0
  %688 = vperm.xlu0 %687, %v497
  %v689 = vpop.permute.xlu0 %688
  %692 = vset.pattern.permute.xlu0 0
  %693 = vperm.xlu0 %692, %v499
  %v694 = vpop.permute.xlu0 %693
  %697 = vset.pattern.permute.xlu0 0
  %698 = vperm.xlu0 %697, %v501
  %v699 = vpop.permute.xlu0 %698
  %702 = vset.pattern.permute.xlu0 0
  %703 = vperm.xlu0 %702, %v503
  %v704 = vpop.permute.xlu0 %703
  %707 = vset.pattern.permute.xlu0 0
  %708 = vperm.xlu0 %707, %v505
  %v709 = vpop.permute.xlu0 %708
  %712 = vset.pattern.permute.xlu0 0
  %713 = vperm.xlu0 %712, %v507
  %v714 = vpop.permute.xlu0 %713
  %v716 = vmul.f32 %v639, %v89
  %v717 = vmul.f32 %v644, %v90
  %v718 = vmul.f32 %v649, %v91
  %v719 = vmul.f32 %v654, %v92
  %v720 = vmul.f32 %v659, %v93
  %v721 = vmul.f32 %v664, %v94
  %v722 = vmul.f32 %v669, %v95
  %v723 = vmul.f32 %v674, %v96
  %v724 = vmul.f32 %v679, %v97
  %v725 = vmul.f32 %v684, %v98
  %v726 = vmul.f32 %v689, %v99
  %v727 = vmul.f32 %v694, %v100
  %v728 = vmul.f32 %v699, %v101
  %v729 = vmul.f32 %v704, %v102
  %v730 = vmul.f32 %v709, %v103
  %v731 = vmul.f32 %v714, %v104
  %v732 = vpack.c.bf16 %v607, %v605
  %v733 = vpack.c.bf16 %v611, %v609
  %v734 = vpack.c.bf16 %v615, %v613
  %v735 = vpack.c.bf16 %v619, %v617
  %v736 = vpack.c.bf16 %v623, %v621
  %v737 = vpack.c.bf16 %v627, %v625
  %v738 = vpack.c.bf16 %v631, %v629
  %v739 = vpack.c.bf16 %v635, %v633
  %v756 = vunpack.c.l.b16 %v110
  %v757 = vunpack.c.l.b16 %v111
  %v758 = vunpack.c.l.b16 %v112
  %v759 = vunpack.c.l.b16 %v113
  %v760 = vunpack.c.l.b16 %v114
  %v761 = vunpack.c.l.b16 %v115
  %v762 = vunpack.c.l.b16 %v116
  %v763 = vunpack.c.l.b16 %v117
  %v764 = vunpack.c.l.b16 %v118
  %v765 = vunpack.c.l.b16 %v119
  %v766 = vunpack.c.l.b16 %v120
  %v767 = vunpack.c.l.b16 %v121
  %v768 = vunpack.c.l.b16 %v122
  %v769 = vunpack.c.l.b16 %v123
  %v770 = vunpack.c.l.b16 %v124
  %v771 = vunpack.c.l.b16 %v125
  %v772 = vpack.c.b16 %v757, %v756
  %v773 = vpack.c.b16 %v759, %v758
  %v774 = vpack.c.b16 %v761, %v760
  %v775 = vpack.c.b16 %v763, %v762
  %v776 = vpack.c.b16 %v765, %v764
  %v777 = vpack.c.b16 %v767, %v766
  %v778 = vpack.c.b16 %v769, %v768
  %v779 = vpack.c.b16 %v771, %v770
  %788 = vmatpush.bf16.msra.mxu0 %v779
  %789 = vmatpush.bf16.msra.mxu0 %v778
  %790 = vmatpush.bf16.msra.mxu0 %v777
  %791 = vmatpush.bf16.msra.mxu0 %v776
  %792 = vmatpush.bf16.msra.mxu0 %v775
  %793 = vmatpush.bf16.msra.mxu0 %v774
  %794 = vmatpush.bf16.msra.mxu0 %v773
  %795 = vmatpush.bf16.msra.mxu0 %v772
  %796 = vmatmul.bf16.gmra.mxu0 %v732
  %v797 = vpop.f32.mrf.mxu0
  %v798 = vadd.f32 0.0, %v797
  %v799 = vpop.f32.mrf.mxu0
  %v800 = vadd.f32 0.0, %v799
  %801 = vmatmul.bf16.gmra.mxu0 %v733
  %v802 = vpop.f32.mrf.mxu0
  %v803 = vadd.f32 0.0, %v802
  %v804 = vpop.f32.mrf.mxu0
  %v805 = vadd.f32 0.0, %v804
  %806 = vmatmul.bf16.gmra.mxu0 %v734
  %v807 = vpop.f32.mrf.mxu0
  %v808 = vadd.f32 0.0, %v807
  %v809 = vpop.f32.mrf.mxu0
  %v810 = vadd.f32 0.0, %v809
  %811 = vmatmul.bf16.gmra.mxu0 %v735
  %v812 = vpop.f32.mrf.mxu0
  %v813 = vadd.f32 0.0, %v812
  %v814 = vpop.f32.mrf.mxu0
  %v815 = vadd.f32 0.0, %v814
  %816 = vmatmul.bf16.gmra.mxu0 %v736
  %v817 = vpop.f32.mrf.mxu0
  %v818 = vadd.f32 0.0, %v817
  %v819 = vpop.f32.mrf.mxu0
  %v820 = vadd.f32 0.0, %v819
  %821 = vmatmul.bf16.gmra.mxu0 %v737
  %v822 = vpop.f32.mrf.mxu0
  %v823 = vadd.f32 0.0, %v822
  %v824 = vpop.f32.mrf.mxu0
  %v825 = vadd.f32 0.0, %v824
  %826 = vmatmul.bf16.gmra.mxu0 %v738
  %v827 = vpop.f32.mrf.mxu0
  %v828 = vadd.f32 0.0, %v827
  %v829 = vpop.f32.mrf.mxu0
  %v830 = vadd.f32 0.0, %v829
  %831 = vmatmul.bf16.gmra.mxu0 %v739
  %v832 = vpop.f32.mrf.mxu0
  %v833 = vadd.f32 0.0, %v832
  %v834 = vpop.f32.mrf.mxu0
  %v835 = vadd.f32 0.0, %v834
  %836 = vdwg.mxu0
  %v837 = vadd.f32 %v716, %v798
  %v838 = vadd.f32 %v717, %v800
  %v839 = vadd.f32 %v718, %v803
  %v840 = vadd.f32 %v719, %v805
  %v841 = vadd.f32 %v720, %v808
  %v842 = vadd.f32 %v721, %v810
  %v843 = vadd.f32 %v722, %v813
  %v844 = vadd.f32 %v723, %v815
  %v845 = vadd.f32 %v724, %v818
  %v846 = vadd.f32 %v725, %v820
  %v847 = vadd.f32 %v726, %v823
  %v848 = vadd.f32 %v727, %v825
  %v849 = vadd.f32 %v728, %v828
  %v850 = vadd.f32 %v729, %v830
  %v851 = vadd.f32 %v730, %v833
  %v852 = vadd.f32 %v731, %v835
  %vm853 = vcmask 7168
  %854 = vst.msk [vmem:[#allocation2] sm:$0xff] %vm853, %v444
  %855 = vst.msk [vmem:[#allocation2 + $0x8] sm:$0xff] %vm853, %v445
  %856 = vst.msk [vmem:[#allocation2 + $0x10] sm:$0xff] %vm853, %v446
  %857 = vst.msk [vmem:[#allocation2 + $0x18] sm:$0xff] %vm853, %v447
  %858 = vst.msk [vmem:[#allocation2 + $0x20] sm:$0xff] %vm853, %v448
  %859 = vst.msk [vmem:[#allocation2 + $0x28] sm:$0xff] %vm853, %v449
  %860 = vst.msk [vmem:[#allocation2 + $0x30] sm:$0xff] %vm853, %v450
  %861 = vst.msk [vmem:[#allocation2 + $0x38] sm:$0xff] %vm853, %v451
  %862 = vst.msk [vmem:[#allocation2 + $0x40] sm:$0xff] %vm853, %v452
  %863 = vst.msk [vmem:[#allocation2 + $0x48] sm:$0xff] %vm853, %v453
  %864 = vst.msk [vmem:[#allocation2 + $0x50] sm:$0xff] %vm853, %v454
  %865 = vst.msk [vmem:[#allocation2 + $0x58] sm:$0xff] %vm853, %v455
  %866 = vst.msk [vmem:[#allocation2 + $0x60] sm:$0xff] %vm853, %v456
  %867 = vst.msk [vmem:[#allocation2 + $0x68] sm:$0xff] %vm853, %v457
  %868 = vst.msk [vmem:[#allocation2 + $0x70] sm:$0xff] %vm853, %v458
  %869 = vst.msk [vmem:[#allocation2 + $0x78] sm:$0xff] %vm853, %v459
  %vm870 = vcmask 138240
  %871 = vst.msk [vmem:[#allocation3] sm:$0xff] %vm870, %v837
  %872 = vst.msk [vmem:[#allocation3 + $0x8] sm:$0xff] %vm870, %v838
  %873 = vst.msk [vmem:[#allocation3 + $0x10] sm:$0xff] %vm870, %v839
  %874 = vst.msk [vmem:[#allocation3 + $0x18] sm:$0xff] %vm870, %v840
  %875 = vst.msk [vmem:[#allocation3 + $0x20] sm:$0xff] %vm870, %v841
  %876 = vst.msk [vmem:[#allocation3 + $0x28] sm:$0xff] %vm870, %v842
  %877 = vst.msk [vmem:[#allocation3 + $0x30] sm:$0xff] %vm870, %v843
  %878 = vst.msk [vmem:[#allocation3 + $0x38] sm:$0xff] %vm870, %v844
  %879 = vst.msk [vmem:[#allocation3 + $0x40] sm:$0xff] %vm870, %v845
  %880 = vst.msk [vmem:[#allocation3 + $0x48] sm:$0xff] %vm870, %v846
  %881 = vst.msk [vmem:[#allocation3 + $0x50] sm:$0xff] %vm870, %v847
  %882 = vst.msk [vmem:[#allocation3 + $0x58] sm:$0xff] %vm870, %v848
  %883 = vst.msk [vmem:[#allocation3 + $0x60] sm:$0xff] %vm870, %v849
  %884 = vst.msk [vmem:[#allocation3 + $0x68] sm:$0xff] %vm870, %v850
  %885 = vst.msk [vmem:[#allocation3 + $0x70] sm:$0xff] %vm870, %v851
  %886 = vst.msk [vmem:[#allocation3 + $0x78] sm:$0xff] %vm870, %v852
  %v887 = vld [vmem:[%s0] sm:$0xff]
  %v888 = vld [vmem:[%s0 + $0x8] sm:$0xff]
  %v889 = vld [vmem:[%s0 + $0x10] sm:$0xff]
  %v890 = vld [vmem:[%s0 + $0x18] sm:$0xff]
  %v891 = vld [vmem:[%s0 + $0x20] sm:$0xff]
  %v892 = vld [vmem:[%s0 + $0x28] sm:$0xff]
  %v893 = vld [vmem:[%s0 + $0x30] sm:$0xff]
  %v894 = vld [vmem:[%s0 + $0x38] sm:$0xff]
  %v895 = vld [vmem:[%s0 + $0x40] sm:$0xff]
  %v896 = vld [vmem:[%s0 + $0x48] sm:$0xff]
  %v897 = vld [vmem:[%s0 + $0x50] sm:$0xff]
  %v898 = vld [vmem:[%s0 + $0x58] sm:$0xff]
  %v899 = vld [vmem:[%s0 + $0x60] sm:$0xff]
  %v900 = vld [vmem:[%s0 + $0x68] sm:$0xff]
  %v901 = vld [vmem:[%s0 + $0x70] sm:$0xff]
  %v902 = vld [vmem:[%s0 + $0x78] sm:$0xff]
  %v903 = vld [vmem:[#allocation2] sm:$0xff]
  %v904 = vld [vmem:[#allocation2 + $0x8] sm:$0xff]
  %v905 = vld [vmem:[#allocation2 + $0x10] sm:$0xff]
  %v906 = vld [vmem:[#allocation2 + $0x18] sm:$0xff]
  %v907 = vld [vmem:[#allocation2 + $0x20] sm:$0xff]
  %v908 = vld [vmem:[#allocation2 + $0x28] sm:$0xff]
  %v909 = vld [vmem:[#allocation2 + $0x30] sm:$0xff]
  %v910 = vld [vmem:[#allocation2 + $0x38] sm:$0xff]
  %v911 = vld [vmem:[#allocation2 + $0x40] sm:$0xff]
  %v912 = vld [vmem:[#allocation2 + $0x48] sm:$0xff]
  %v913 = vld [vmem:[#allocation2 + $0x50] sm:$0xff]
  %v914 = vld [vmem:[#allocation2 + $0x58] sm:$0xff]
  %v915 = vld [vmem:[#allocation2 + $0x60] sm:$0xff]
  %v916 = vld [vmem:[#allocation2 + $0x68] sm:$0xff]
  %v917 = vld [vmem:[#allocation2 + $0x70] sm:$0xff]
  %v918 = vld [vmem:[#allocation2 + $0x78] sm:$0xff]
  %v919 = vld [vmem:[#allocation3] sm:$0xff]
  %v920 = vld [vmem:[#allocation3 + $0x8] sm:$0xff]
  %v921 = vld [vmem:[#allocation3 + $0x10] sm:$0xff]
  %v922 = vld [vmem:[#allocation3 + $0x18] sm:$0xff]
  %v923 = vld [vmem:[#allocation3 + $0x20] sm:$0xff]
  %v924 = vld [vmem:[#allocation3 + $0x28] sm:$0xff]
  %v925 = vld [vmem:[#allocation3 + $0x30] sm:$0xff]
  %v926 = vld [vmem:[#allocation3 + $0x38] sm:$0xff]
  %v927 = vld [vmem:[#allocation3 + $0x40] sm:$0xff]
  %v928 = vld [vmem:[#allocation3 + $0x48] sm:$0xff]
  %v929 = vld [vmem:[#allocation3 + $0x50] sm:$0xff]
  %v930 = vld [vmem:[#allocation3 + $0x58] sm:$0xff]
  %v931 = vld [vmem:[#allocation3 + $0x60] sm:$0xff]
  %v932 = vld [vmem:[#allocation3 + $0x68] sm:$0xff]
  %v933 = vld [vmem:[#allocation3 + $0x70] sm:$0xff]
  %v934 = vld [vmem:[#allocation3 + $0x78] sm:$0xff]
  %v935 = vld [vmem:[%s109] sm:$0xf]
  %v936 = vld [vmem:[%s109 + $0x4] sm:$0xf]
  %v937 = vld [vmem:[%s109 + $0x8] sm:$0xf]
  %v938 = vld [vmem:[%s109 + $0xc] sm:$0xf]
  %v939 = vld [vmem:[%s109 + $0x10] sm:$0xf]
  %v940 = vld [vmem:[%s109 + $0x14] sm:$0xf]
  %v941 = vld [vmem:[%s109 + $0x18] sm:$0xf]
  %v942 = vld [vmem:[%s109 + $0x1c] sm:$0xf]
  %v943 = vld [vmem:[%s109 + $0x20] sm:$0xf]
  %v944 = vld [vmem:[%s109 + $0x24] sm:$0xf]
  %v945 = vld [vmem:[%s109 + $0x28] sm:$0xf]
  %v946 = vld [vmem:[%s109 + $0x2c] sm:$0xf]
  %v947 = vld [vmem:[%s109 + $0x30] sm:$0xf]
  %v948 = vld [vmem:[%s109 + $0x34] sm:$0xf]
  %v949 = vld [vmem:[%s109 + $0x38] sm:$0xf]
  %v950 = vld [vmem:[%s109 + $0x3c] sm:$0xf]
  %v951 = vld [vmem:[%s2 + $0x1] sm:$0x1]
  %v952 = vld [vmem:[%s3] sm:$0xff]
  %v953 = vld [vmem:[%s3 + $0x8] sm:$0xff]
  %v954 = vld [vmem:[%s3 + $0x10] sm:$0xff]
  %v955 = vld [vmem:[%s3 + $0x18] sm:$0xff]
  %vm956 = vnez %v952
  %vm957 = vnez %v953
  %vm958 = vnez %v954
  %vm959 = vnez %v955
  %961 = vset.pattern.permute.xlu0 1
  %962 = vperm.xlu0 %961, %v887
  %v963 = vpop.permute.xlu0 %962
  %966 = vset.pattern.permute.xlu0 1
  %967 = vperm.xlu0 %966, %v888
  %v968 = vpop.permute.xlu0 %967
  %971 = vset.pattern.permute.xlu0 1
  %972 = vperm.xlu0 %971, %v889
  %v973 = vpop.permute.xlu0 %972
  %976 = vset.pattern.permute.xlu0 1
  %977 = vperm.xlu0 %976, %v890
  %v978 = vpop.permute.xlu0 %977
  %981 = vset.pattern.permute.xlu0 1
  %982 = vperm.xlu0 %981, %v891
  %v983 = vpop.permute.xlu0 %982
  %986 = vset.pattern.permute.xlu0 1
  %987 = vperm.xlu0 %986, %v892
  %v988 = vpop.permute.xlu0 %987
  %991 = vset.pattern.permute.xlu0 1
  %992 = vperm.xlu0 %991, %v893
  %v993 = vpop.permute.xlu0 %992
  %996 = vset.pattern.permute.xlu0 1
  %997 = vperm.xlu0 %996, %v894
  %v998 = vpop.permute.xlu0 %997
  %1001 = vset.pattern.permute.xlu0 1
  %1002 = vperm.xlu0 %1001, %v895
  %v1003 = vpop.permute.xlu0 %1002
  %1006 = vset.pattern.permute.xlu0 1
  %1007 = vperm.xlu0 %1006, %v896
  %v1008 = vpop.permute.xlu0 %1007
  %1011 = vset.pattern.permute.xlu0 1
  %1012 = vperm.xlu0 %1011, %v897
  %v1013 = vpop.permute.xlu0 %1012
  %1016 = vset.pattern.permute.xlu0 1
  %1017 = vperm.xlu0 %1016, %v898
  %v1018 = vpop.permute.xlu0 %1017
  %1021 = vset.pattern.permute.xlu0 1
  %1022 = vperm.xlu0 %1021, %v899
  %v1023 = vpop.permute.xlu0 %1022
  %1026 = vset.pattern.permute.xlu0 1
  %1027 = vperm.xlu0 %1026, %v900
  %v1028 = vpop.permute.xlu0 %1027
  %1031 = vset.pattern.permute.xlu0 1
  %1032 = vperm.xlu0 %1031, %v901
  %v1033 = vpop.permute.xlu0 %1032
  %1036 = vset.pattern.permute.xlu0 1
  %1037 = vperm.xlu0 %1036, %v902
  %v1038 = vpop.permute.xlu0 %1037
  %v1040 = vperm.slane %v951, 0
  %v1041 = vadd.f32 %v963, %v1040
  %v1042 = vadd.f32 %v968, %v1040
  %v1043 = vadd.f32 %v973, %v1040
  %v1044 = vadd.f32 %v978, %v1040
  %v1045 = vadd.f32 %v983, %v1040
  %v1046 = vadd.f32 %v988, %v1040
  %v1047 = vadd.f32 %v993, %v1040
  %v1048 = vadd.f32 %v998, %v1040
  %v1049 = vadd.f32 %v1003, %v1040
  %v1050 = vadd.f32 %v1008, %v1040
  %v1051 = vadd.f32 %v1013, %v1040
  %v1052 = vadd.f32 %v1018, %v1040
  %v1053 = vadd.f32 %v1023, %v1040
  %v1054 = vadd.f32 %v1028, %v1040
  %v1055 = vadd.f32 %v1033, %v1040
  %v1056 = vadd.f32 %v1038, %v1040
  %v1057 = vsel %vm956, 16843009, 0
  %v1058 = vsel %vm957, 16843009, 0
  %v1059 = vsel %vm958, 16843009, 0
  %v1060 = vsel %vm959, 16843009, 0
  %v1061 = vunpack.c.0.s8 %v1057
  %v1062 = vunpack.c.1.s8 %v1057
  %v1063 = vunpack.c.2.s8 %v1057
  %v1064 = vunpack.c.3.s8 %v1057
  %v1065 = vunpack.c.0.s8 %v1058
  %v1066 = vunpack.c.1.s8 %v1058
  %v1067 = vunpack.c.2.s8 %v1058
  %v1068 = vunpack.c.3.s8 %v1058
  %v1069 = vunpack.c.0.s8 %v1059
  %v1070 = vunpack.c.1.s8 %v1059
  %v1071 = vunpack.c.2.s8 %v1059
  %v1072 = vunpack.c.3.s8 %v1059
  %v1073 = vunpack.c.0.s8 %v1060
  %v1074 = vunpack.c.1.s8 %v1060
  %v1075 = vunpack.c.2.s8 %v1060
  %v1076 = vunpack.c.3.s8 %v1060
  %v1077 = vpack.c.b16 %v1061, %v1061
  %v1078 = vpack.c.b8 %v1077, %v1077
  %v1079 = vpack.c.b16 %v1062, %v1062
  %v1080 = vpack.c.b8 %v1079, %v1079
  %v1081 = vpack.c.b16 %v1063, %v1063
  %v1082 = vpack.c.b8 %v1081, %v1081
  %v1083 = vpack.c.b16 %v1064, %v1064
  %v1084 = vpack.c.b8 %v1083, %v1083
  %v1085 = vpack.c.b16 %v1065, %v1065
  %v1086 = vpack.c.b8 %v1085, %v1085
  %v1087 = vpack.c.b16 %v1066, %v1066
  %v1088 = vpack.c.b8 %v1087, %v1087
  %v1089 = vpack.c.b16 %v1067, %v1067
  %v1090 = vpack.c.b8 %v1089, %v1089
  %v1091 = vpack.c.b16 %v1068, %v1068
  %v1092 = vpack.c.b8 %v1091, %v1091
  %v1093 = vpack.c.b16 %v1069, %v1069
  %v1094 = vpack.c.b8 %v1093, %v1093
  %v1095 = vpack.c.b16 %v1070, %v1070
  %v1096 = vpack.c.b8 %v1095, %v1095
  %v1097 = vpack.c.b16 %v1071, %v1071
  %v1098 = vpack.c.b8 %v1097, %v1097
  %v1099 = vpack.c.b16 %v1072, %v1072
  %v1100 = vpack.c.b8 %v1099, %v1099
  %v1101 = vpack.c.b16 %v1073, %v1073
  %v1102 = vpack.c.b8 %v1101, %v1101
  %v1103 = vpack.c.b16 %v1074, %v1074
  %v1104 = vpack.c.b8 %v1103, %v1103
  %v1105 = vpack.c.b16 %v1075, %v1075
  %v1106 = vpack.c.b8 %v1105, %v1105
  %v1107 = vpack.c.b16 %v1076, %v1076
  %v1108 = vpack.c.b8 %v1107, %v1107
  %vm1109 = vnez %v1078
  %vm1110 = vnez %v1080
  %vm1111 = vnez %v1082
  %vm1112 = vnez %v1084
  %vm1113 = vnez %v1086
  %vm1114 = vnez %v1088
  %vm1115 = vnez %v1090
  %vm1116 = vnez %v1092
  %vm1117 = vnez %v1094
  %vm1118 = vnez %v1096
  %vm1119 = vnez %v1098
  %vm1120 = vnez %v1100
  %vm1121 = vnez %v1102
  %vm1122 = vnez %v1104
  %vm1123 = vnez %v1106
  %vm1124 = vnez %v1108
  %v1125 = vsel %vm1109, 16843009, 0
  %v1126 = vsel %vm1110, 16843009, 0
  %v1127 = vsel %vm1111, 16843009, 0
  %v1128 = vsel %vm1112, 16843009, 0
  %v1129 = vsel %vm1113, 16843009, 0
  %v1130 = vsel %vm1114, 16843009, 0
  %v1131 = vsel %vm1115, 16843009, 0
  %v1132 = vsel %vm1116, 16843009, 0
  %v1133 = vsel %vm1117, 16843009, 0
  %v1134 = vsel %vm1118, 16843009, 0
  %v1135 = vsel %vm1119, 16843009, 0
  %v1136 = vsel %vm1120, 16843009, 0
  %v1137 = vsel %vm1121, 16843009, 0
  %v1138 = vsel %vm1122, 16843009, 0
  %v1139 = vsel %vm1123, 16843009, 0
  %v1140 = vsel %vm1124, 16843009, 0
  %v1141 = vunpack.c.0.s8 %v1125
  %v1142 = vunpack.c.0.s8 %v1126
  %v1143 = vunpack.c.0.s8 %v1127
  %v1144 = vunpack.c.0.s8 %v1128
  %v1145 = vunpack.c.0.s8 %v1129
  %v1146 = vunpack.c.0.s8 %v1130
  %v1147 = vunpack.c.0.s8 %v1131
  %v1148 = vunpack.c.0.s8 %v1132
  %v1149 = vunpack.c.0.s8 %v1133
  %v1150 = vunpack.c.0.s8 %v1134
  %v1151 = vunpack.c.0.s8 %v1135
  %v1152 = vunpack.c.0.s8 %v1136
  %v1153 = vunpack.c.0.s8 %v1137
  %v1154 = vunpack.c.0.s8 %v1138
  %v1155 = vunpack.c.0.s8 %v1139
  %v1156 = vunpack.c.0.s8 %v1140
  %vm1157 = vcmp.ne.s32.totalorder %v1141, 0
  %vm1158 = vcmp.ne.s32.totalorder %v1142, 0
  %vm1159 = vcmp.ne.s32.totalorder %v1143, 0
  %vm1160 = vcmp.ne.s32.totalorder %v1144, 0
  %vm1161 = vcmp.ne.s32.totalorder %v1145, 0
  %vm1162 = vcmp.ne.s32.totalorder %v1146, 0
  %vm1163 = vcmp.ne.s32.totalorder %v1147, 0
  %vm1164 = vcmp.ne.s32.totalorder %v1148, 0
  %vm1165 = vcmp.ne.s32.totalorder %v1149, 0
  %vm1166 = vcmp.ne.s32.totalorder %v1150, 0
  %vm1167 = vcmp.ne.s32.totalorder %v1151, 0
  %vm1168 = vcmp.ne.s32.totalorder %v1152, 0
  %vm1169 = vcmp.ne.s32.totalorder %v1153, 0
  %vm1170 = vcmp.ne.s32.totalorder %v1154, 0
  %vm1171 = vcmp.ne.s32.totalorder %v1155, 0
  %vm1172 = vcmp.ne.s32.totalorder %v1156, 0
  %v1173 = vsel %vm1157, %v1041, -9e+15
  %v1174 = vsel %vm1158, %v1042, -9e+15
  %v1175 = vsel %vm1159, %v1043, -9e+15
  %v1176 = vsel %vm1160, %v1044, -9e+15
  %v1177 = vsel %vm1161, %v1045, -9e+15
  %v1178 = vsel %vm1162, %v1046, -9e+15
  %v1179 = vsel %vm1163, %v1047, -9e+15
  %v1180 = vsel %vm1164, %v1048, -9e+15
  %v1181 = vsel %vm1165, %v1049, -9e+15
  %v1182 = vsel %vm1166, %v1050, -9e+15
  %v1183 = vsel %vm1167, %v1051, -9e+15
  %v1184 = vsel %vm1168, %v1052, -9e+15
  %v1185 = vsel %vm1169, %v1053, -9e+15
  %v1186 = vsel %vm1170, %v1054, -9e+15
  %v1187 = vsel %vm1171, %v1055, -9e+15
  %v1188 = vsel %vm1172, %v1056, -9e+15
  %vm1189 = vcmp.gt.f32.partialorder %v1173, 0.0
  %vm1190 = vcmp.gt.f32.partialorder %v1174, 0.0
  %vm1191 = vcmp.gt.f32.partialorder %v1175, 0.0
  %vm1192 = vcmp.gt.f32.partialorder %v1176, 0.0
  %vm1193 = vcmp.gt.f32.partialorder %v1177, 0.0
  %vm1194 = vcmp.gt.f32.partialorder %v1178, 0.0
  %vm1195 = vcmp.gt.f32.partialorder %v1179, 0.0
  %vm1196 = vcmp.gt.f32.partialorder %v1180, 0.0
  %vm1197 = vcmp.gt.f32.partialorder %v1181, 0.0
  %vm1198 = vcmp.gt.f32.partialorder %v1182, 0.0
  %vm1199 = vcmp.gt.f32.partialorder %v1183, 0.0
  %vm1200 = vcmp.gt.f32.partialorder %v1184, 0.0
  %vm1201 = vcmp.gt.f32.partialorder %v1185, 0.0
  %vm1202 = vcmp.gt.f32.partialorder %v1186, 0.0
  %vm1203 = vcmp.gt.f32.partialorder %v1187, 0.0
  %vm1204 = vcmp.gt.f32.partialorder %v1188, 0.0
  %v1205 = vmul.f32 %v1173, 0.2
  %v1206 = vmul.f32 %v1174, 0.2
  %v1207 = vmul.f32 %v1175, 0.2
  %v1208 = vmul.f32 %v1176, 0.2
  %v1209 = vmul.f32 %v1177, 0.2
  %v1210 = vmul.f32 %v1178, 0.2
  %v1211 = vmul.f32 %v1179, 0.2
  %v1212 = vmul.f32 %v1180, 0.2
  %v1213 = vmul.f32 %v1181, 0.2
  %v1214 = vmul.f32 %v1182, 0.2
  %v1215 = vmul.f32 %v1183, 0.2
  %v1216 = vmul.f32 %v1184, 0.2
  %v1217 = vmul.f32 %v1185, 0.2
  %v1218 = vmul.f32 %v1186, 0.2
  %v1219 = vmul.f32 %v1187, 0.2
  %v1220 = vmul.f32 %v1188, 0.2
  %v1221 = vsel %vm1189, %v1173, %v1205
  %v1222 = vsel %vm1190, %v1174, %v1206
  %v1223 = vsel %vm1191, %v1175, %v1207
  %v1224 = vsel %vm1192, %v1176, %v1208
  %v1225 = vsel %vm1193, %v1177, %v1209
  %v1226 = vsel %vm1194, %v1178, %v1210
  %v1227 = vsel %vm1195, %v1179, %v1211
  %v1228 = vsel %vm1196, %v1180, %v1212
  %v1229 = vsel %vm1197, %v1181, %v1213
  %v1230 = vsel %vm1198, %v1182, %v1214
  %v1231 = vsel %vm1199, %v1183, %v1215
  %v1232 = vsel %vm1200, %v1184, %v1216
  %v1233 = vsel %vm1201, %v1185, %v1217
  %v1234 = vsel %vm1202, %v1186, %v1218
  %v1235 = vsel %vm1203, %v1187, %v1219
  %v1236 = vsel %vm1204, %v1188, %v1220
  %1237 = vmax.xlane.f32.xlu0 %v1221
  %v1238 = vpop.xlane.xlu0 %1237
  %1239 = vmax.xlane.f32.xlu0 %v1222
  %v1240 = vpop.xlane.xlu0 %1239
  %1241 = vmax.xlane.f32.xlu0 %v1223
  %v1242 = vpop.xlane.xlu0 %1241
  %1243 = vmax.xlane.f32.xlu0 %v1224
  %v1244 = vpop.xlane.xlu0 %1243
  %1245 = vmax.xlane.f32.xlu0 %v1225
  %v1246 = vpop.xlane.xlu0 %1245
  %1247 = vmax.xlane.f32.xlu0 %v1226
  %v1248 = vpop.xlane.xlu0 %1247
  %1249 = vmax.xlane.f32.xlu0 %v1227
  %v1250 = vpop.xlane.xlu0 %1249
  %1251 = vmax.xlane.f32.xlu0 %v1228
  %v1252 = vpop.xlane.xlu0 %1251
  %1253 = vmax.xlane.f32.xlu0 %v1229
  %v1254 = vpop.xlane.xlu0 %1253
  %1255 = vmax.xlane.f32.xlu0 %v1230
  %v1256 = vpop.xlane.xlu0 %1255
  %1257 = vmax.xlane.f32.xlu0 %v1231
  %v1258 = vpop.xlane.xlu0 %1257
  %1259 = vmax.xlane.f32.xlu0 %v1232
  %v1260 = vpop.xlane.xlu0 %1259
  %1261 = vmax.xlane.f32.xlu0 %v1233
  %v1262 = vpop.xlane.xlu0 %1261
  %1263 = vmax.xlane.f32.xlu0 %v1234
  %v1264 = vpop.xlane.xlu0 %1263
  %1265 = vmax.xlane.f32.xlu0 %v1235
  %v1266 = vpop.xlane.xlu0 %1265
  %1267 = vmax.xlane.f32.xlu0 %v1236
  %v1268 = vpop.xlane.xlu0 %1267
  %v1269 = vmax.f32 %v903, %v1238
  %v1270 = vmax.f32 %v904, %v1240
  %v1271 = vmax.f32 %v905, %v1242
  %v1272 = vmax.f32 %v906, %v1244
  %v1273 = vmax.f32 %v907, %v1246
  %v1274 = vmax.f32 %v908, %v1248
  %v1275 = vmax.f32 %v909, %v1250
  %v1276 = vmax.f32 %v910, %v1252
  %v1277 = vmax.f32 %v911, %v1254
  %v1278 = vmax.f32 %v912, %v1256
  %v1279 = vmax.f32 %v913, %v1258
  %v1280 = vmax.f32 %v914, %v1260
  %v1281 = vmax.f32 %v915, %v1262
  %v1282 = vmax.f32 %v916, %v1264
  %v1283 = vmax.f32 %v917, %v1266
  %v1284 = vmax.f32 %v918, %v1268
  %v1285 = vsub.f32 %v903, %v1269
  %v1286 = vsub.f32 %v904, %v1270
  %v1287 = vsub.f32 %v905, %v1271
  %v1288 = vsub.f32 %v906, %v1272
  %v1289 = vsub.f32 %v907, %v1273
  %v1290 = vsub.f32 %v908, %v1274
  %v1291 = vsub.f32 %v909, %v1275
  %v1292 = vsub.f32 %v910, %v1276
  %v1293 = vsub.f32 %v911, %v1277
  %v1294 = vsub.f32 %v912, %v1278
  %v1295 = vsub.f32 %v913, %v1279
  %v1296 = vsub.f32 %v914, %v1280
  %v1297 = vsub.f32 %v915, %v1281
  %v1298 = vsub.f32 %v916, %v1282
  %v1299 = vsub.f32 %v917, %v1283
  %v1300 = vsub.f32 %v918, %v1284
  %v1301 = vmul.f32 %v1285, 1.442695
  %v1302 = vpow.pop %v1301
  %v1303 = vmul.f32 %v1286, 1.442695
  %v1304 = vpow.pop %v1303
  %v1305 = vmul.f32 %v1287, 1.442695
  %v1306 = vpow.pop %v1305
  %v1307 = vmul.f32 %v1288, 1.442695
  %v1308 = vpow.pop %v1307
  %v1309 = vmul.f32 %v1289, 1.442695
  %v1310 = vpow.pop %v1309
  %v1311 = vmul.f32 %v1290, 1.442695
  %v1312 = vpow.pop %v1311
  %v1313 = vmul.f32 %v1291, 1.442695
  %v1314 = vpow.pop %v1313
  %v1315 = vmul.f32 %v1292, 1.442695
  %v1316 = vpow.pop %v1315
  %v1317 = vmul.f32 %v1293, 1.442695
  %v1318 = vpow.pop %v1317
  %v1319 = vmul.f32 %v1294, 1.442695
  %v1320 = vpow.pop %v1319
  %v1321 = vmul.f32 %v1295, 1.442695
  %v1322 = vpow.pop %v1321
  %v1323 = vmul.f32 %v1296, 1.442695
  %v1324 = vpow.pop %v1323
  %v1325 = vmul.f32 %v1297, 1.442695
  %v1326 = vpow.pop %v1325
  %v1327 = vmul.f32 %v1298, 1.442695
  %v1328 = vpow.pop %v1327
  %v1329 = vmul.f32 %v1299, 1.442695
  %v1330 = vpow.pop %v1329
  %v1331 = vmul.f32 %v1300, 1.442695
  %v1332 = vpow.pop %v1331
  %1334 = vset.pattern.permute.xlu0 1
  %1335 = vperm.xlu0 %1334, %v1269
  %v1336 = vpop.permute.xlu0 %1335
  %1339 = vset.pattern.permute.xlu0 1
  %1340 = vperm.xlu0 %1339, %v1270
  %v1341 = vpop.permute.xlu0 %1340
  %1344 = vset.pattern.permute.xlu0 1
  %1345 = vperm.xlu0 %1344, %v1271
  %v1346 = vpop.permute.xlu0 %1345
  %1349 = vset.pattern.permute.xlu0 1
  %1350 = vperm.xlu0 %1349, %v1272
  %v1351 = vpop.permute.xlu0 %1350
  %1354 = vset.pattern.permute.xlu0 1
  %1355 = vperm.xlu0 %1354, %v1273
  %v1356 = vpop.permute.xlu0 %1355
  %1359 = vset.pattern.permute.xlu0 1
  %1360 = vperm.xlu0 %1359, %v1274
  %v1361 = vpop.permute.xlu0 %1360
  %1364 = vset.pattern.permute.xlu0 1
  %1365 = vperm.xlu0 %1364, %v1275
  %v1366 = vpop.permute.xlu0 %1365
  %1369 = vset.pattern.permute.xlu0 1
  %1370 = vperm.xlu0 %1369, %v1276
  %v1371 = vpop.permute.xlu0 %1370
  %1374 = vset.pattern.permute.xlu0 1
  %1375 = vperm.xlu0 %1374, %v1277
  %v1376 = vpop.permute.xlu0 %1375
  %1379 = vset.pattern.permute.xlu0 1
  %1380 = vperm.xlu0 %1379, %v1278
  %v1381 = vpop.permute.xlu0 %1380
  %1384 = vset.pattern.permute.xlu0 1
  %1385 = vperm.xlu0 %1384, %v1279
  %v1386 = vpop.permute.xlu0 %1385
  %1389 = vset.pattern.permute.xlu0 1
  %1390 = vperm.xlu0 %1389, %v1280
  %v1391 = vpop.permute.xlu0 %1390
  %1394 = vset.pattern.permute.xlu0 1
  %1395 = vperm.xlu0 %1394, %v1281
  %v1396 = vpop.permute.xlu0 %1395
  %1399 = vset.pattern.permute.xlu0 1
  %1400 = vperm.xlu0 %1399, %v1282
  %v1401 = vpop.permute.xlu0 %1400
  %1404 = vset.pattern.permute.xlu0 1
  %1405 = vperm.xlu0 %1404, %v1283
  %v1406 = vpop.permute.xlu0 %1405
  %1409 = vset.pattern.permute.xlu0 1
  %1410 = vperm.xlu0 %1409, %v1284
  %v1411 = vpop.permute.xlu0 %1410
  %v1413 = vsub.f32 %v1221, %v1336
  %v1414 = vsub.f32 %v1222, %v1341
  %v1415 = vsub.f32 %v1223, %v1346
  %v1416 = vsub.f32 %v1224, %v1351
  %v1417 = vsub.f32 %v1225, %v1356
  %v1418 = vsub.f32 %v1226, %v1361
  %v1419 = vsub.f32 %v1227, %v1366
  %v1420 = vsub.f32 %v1228, %v1371
  %v1421 = vsub.f32 %v1229, %v1376
  %v1422 = vsub.f32 %v1230, %v1381
  %v1423 = vsub.f32 %v1231, %v1386
  %v1424 = vsub.f32 %v1232, %v1391
  %v1425 = vsub.f32 %v1233, %v1396
  %v1426 = vsub.f32 %v1234, %v1401
  %v1427 = vsub.f32 %v1235, %v1406
  %v1428 = vsub.f32 %v1236, %v1411
  %v1429 = vmul.f32 %v1413, 1.442695
  %v1430 = vpow.pop %v1429
  %v1431 = vmul.f32 %v1414, 1.442695
  %v1432 = vpow.pop %v1431
  %v1433 = vmul.f32 %v1415, 1.442695
  %v1434 = vpow.pop %v1433
  %v1435 = vmul.f32 %v1416, 1.442695
  %v1436 = vpow.pop %v1435
  %v1437 = vmul.f32 %v1417, 1.442695
  %v1438 = vpow.pop %v1437
  %v1439 = vmul.f32 %v1418, 1.442695
  %v1440 = vpow.pop %v1439
  %v1441 = vmul.f32 %v1419, 1.442695
  %v1442 = vpow.pop %v1441
  %v1443 = vmul.f32 %v1420, 1.442695
  %v1444 = vpow.pop %v1443
  %v1445 = vmul.f32 %v1421, 1.442695
  %v1446 = vpow.pop %v1445
  %v1447 = vmul.f32 %v1422, 1.442695
  %v1448 = vpow.pop %v1447
  %v1449 = vmul.f32 %v1423, 1.442695
  %v1450 = vpow.pop %v1449
  %v1451 = vmul.f32 %v1424, 1.442695
  %v1452 = vpow.pop %v1451
  %v1453 = vmul.f32 %v1425, 1.442695
  %v1454 = vpow.pop %v1453
  %v1455 = vmul.f32 %v1426, 1.442695
  %v1456 = vpow.pop %v1455
  %v1457 = vmul.f32 %v1427, 1.442695
  %v1458 = vpow.pop %v1457
  %v1459 = vmul.f32 %v1428, 1.442695
  %v1460 = vpow.pop %v1459
  %1462 = vset.pattern.permute.xlu0 1
  %1463 = vperm.xlu0 %1462, %v1302
  %v1464 = vpop.permute.xlu0 %1463
  %1467 = vset.pattern.permute.xlu0 1
  %1468 = vperm.xlu0 %1467, %v1304
  %v1469 = vpop.permute.xlu0 %1468
  %1472 = vset.pattern.permute.xlu0 1
  %1473 = vperm.xlu0 %1472, %v1306
  %v1474 = vpop.permute.xlu0 %1473
  %1477 = vset.pattern.permute.xlu0 1
  %1478 = vperm.xlu0 %1477, %v1308
  %v1479 = vpop.permute.xlu0 %1478
  %1482 = vset.pattern.permute.xlu0 1
  %1483 = vperm.xlu0 %1482, %v1310
  %v1484 = vpop.permute.xlu0 %1483
  %1487 = vset.pattern.permute.xlu0 1
  %1488 = vperm.xlu0 %1487, %v1312
  %v1489 = vpop.permute.xlu0 %1488
  %1492 = vset.pattern.permute.xlu0 1
  %1493 = vperm.xlu0 %1492, %v1314
  %v1494 = vpop.permute.xlu0 %1493
  %1497 = vset.pattern.permute.xlu0 1
  %1498 = vperm.xlu0 %1497, %v1316
  %v1499 = vpop.permute.xlu0 %1498
  %1502 = vset.pattern.permute.xlu0 1
  %1503 = vperm.xlu0 %1502, %v1318
  %v1504 = vpop.permute.xlu0 %1503
  %1507 = vset.pattern.permute.xlu0 1
  %1508 = vperm.xlu0 %1507, %v1320
  %v1509 = vpop.permute.xlu0 %1508
  %1512 = vset.pattern.permute.xlu0 1
  %1513 = vperm.xlu0 %1512, %v1322
  %v1514 = vpop.permute.xlu0 %1513
  %1517 = vset.pattern.permute.xlu0 1
  %1518 = vperm.xlu0 %1517, %v1324
  %v1519 = vpop.permute.xlu0 %1518
  %1522 = vset.pattern.permute.xlu0 1
  %1523 = vperm.xlu0 %1522, %v1326
  %v1524 = vpop.permute.xlu0 %1523
  %1527 = vset.pattern.permute.xlu0 1
  %1528 = vperm.xlu0 %1527, %v1328
  %v1529 = vpop.permute.xlu0 %1528
  %1532 = vset.pattern.permute.xlu0 1
  %1533 = vperm.xlu0 %1532, %v1330
  %v1534 = vpop.permute.xlu0 %1533
  %1537 = vset.pattern.permute.xlu0 1
  %1538 = vperm.xlu0 %1537, %v1332
  %v1539 = vpop.permute.xlu0 %1538
  %v1541 = vmul.f32 %v1464, %v919
  %v1542 = vmul.f32 %v1469, %v920
  %v1543 = vmul.f32 %v1474, %v921
  %v1544 = vmul.f32 %v1479, %v922
  %v1545 = vmul.f32 %v1484, %v923
  %v1546 = vmul.f32 %v1489, %v924
  %v1547 = vmul.f32 %v1494, %v925
  %v1548 = vmul.f32 %v1499, %v926
  %v1549 = vmul.f32 %v1504, %v927
  %v1550 = vmul.f32 %v1509, %v928
  %v1551 = vmul.f32 %v1514, %v929
  %v1552 = vmul.f32 %v1519, %v930
  %v1553 = vmul.f32 %v1524, %v931
  %v1554 = vmul.f32 %v1529, %v932
  %v1555 = vmul.f32 %v1534, %v933
  %v1556 = vmul.f32 %v1539, %v934
  %v1557 = vpack.c.bf16 %v1432, %v1430
  %v1558 = vpack.c.bf16 %v1436, %v1434
  %v1559 = vpack.c.bf16 %v1440, %v1438
  %v1560 = vpack.c.bf16 %v1444, %v1442
  %v1561 = vpack.c.bf16 %v1448, %v1446
  %v1562 = vpack.c.bf16 %v1452, %v1450
  %v1563 = vpack.c.bf16 %v1456, %v1454
  %v1564 = vpack.c.bf16 %v1460, %v1458
  %v1581 = vunpack.c.l.b16 %v935
  %v1582 = vunpack.c.l.b16 %v936
  %v1583 = vunpack.c.l.b16 %v937
  %v1584 = vunpack.c.l.b16 %v938
  %v1585 = vunpack.c.l.b16 %v939
  %v1586 = vunpack.c.l.b16 %v940
  %v1587 = vunpack.c.l.b16 %v941
  %v1588 = vunpack.c.l.b16 %v942
  %v1589 = vunpack.c.l.b16 %v943
  %v1590 = vunpack.c.l.b16 %v944
  %v1591 = vunpack.c.l.b16 %v945
  %v1592 = vunpack.c.l.b16 %v946
  %v1593 = vunpack.c.l.b16 %v947
  %v1594 = vunpack.c.l.b16 %v948
  %v1595 = vunpack.c.l.b16 %v949
  %v1596 = vunpack.c.l.b16 %v950
  %v1597 = vpack.c.b16 %v1582, %v1581
  %v1598 = vpack.c.b16 %v1584, %v1583
  %v1599 = vpack.c.b16 %v1586, %v1585
  %v1600 = vpack.c.b16 %v1588, %v1587
  %v1601 = vpack.c.b16 %v1590, %v1589
  %v1602 = vpack.c.b16 %v1592, %v1591
  %v1603 = vpack.c.b16 %v1594, %v1593
  %v1604 = vpack.c.b16 %v1596, %v1595
  %1605 = vrot.lane.b32.xlu0 %v1597, 111
  %v1606 = vpop.permute.xlu0 %1605
  %1607 = vrot.lane.b32.xlu0 %v1598, 111
  %v1608 = vpop.permute.xlu0 %1607
  %1609 = vrot.lane.b32.xlu0 %v1599, 111
  %v1610 = vpop.permute.xlu0 %1609
  %1611 = vrot.lane.b32.xlu0 %v1600, 111
  %v1612 = vpop.permute.xlu0 %1611
  %1613 = vrot.lane.b32.xlu0 %v1601, 111
  %v1614 = vpop.permute.xlu0 %1613
  %1615 = vrot.lane.b32.xlu0 %v1602, 111
  %v1616 = vpop.permute.xlu0 %1615
  %1617 = vrot.lane.b32.xlu0 %v1603, 111
  %v1618 = vpop.permute.xlu0 %1617
  %1619 = vrot.lane.b32.xlu0 %v1604, 111
  %v1620 = vpop.permute.xlu0 %1619
  %1629 = vmatpush.bf16.msra.mxu0 %v1620
  %1630 = vmatpush.bf16.msra.mxu0 %v1618
  %1631 = vmatpush.bf16.msra.mxu0 %v1616
  %1632 = vmatpush.bf16.msra.mxu0 %v1614
  %1633 = vmatpush.bf16.msra.mxu0 %v1612
  %1634 = vmatpush.bf16.msra.mxu0 %v1610
  %1635 = vmatpush.bf16.msra.mxu0 %v1608
  %1636 = vmatpush.bf16.msra.mxu0 %v1606
  %1637 = vmatmul.bf16.gmra.mxu0 %v1557
  %v1638 = vpop.f32.mrf.mxu0
  %v1639 = vadd.f32 0.0, %v1638
  %v1640 = vpop.f32.mrf.mxu0
  %v1641 = vadd.f32 0.0, %v1640
  %1642 = vmatmul.bf16.gmra.mxu0 %v1558
  %v1643 = vpop.f32.mrf.mxu0
  %v1644 = vadd.f32 0.0, %v1643
  %v1645 = vpop.f32.mrf.mxu0
  %v1646 = vadd.f32 0.0, %v1645
  %1647 = vmatmul.bf16.gmra.mxu0 %v1559
  %v1648 = vpop.f32.mrf.mxu0
  %v1649 = vadd.f32 0.0, %v1648
  %v1650 = vpop.f32.mrf.mxu0
  %v1651 = vadd.f32 0.0, %v1650
  %1652 = vmatmul.bf16.gmra.mxu0 %v1560
  %v1653 = vpop.f32.mrf.mxu0
  %v1654 = vadd.f32 0.0, %v1653
  %v1655 = vpop.f32.mrf.mxu0
  %v1656 = vadd.f32 0.0, %v1655
  %1657 = vmatmul.bf16.gmra.mxu0 %v1561
  %v1658 = vpop.f32.mrf.mxu0
  %v1659 = vadd.f32 0.0, %v1658
  %v1660 = vpop.f32.mrf.mxu0
  %v1661 = vadd.f32 0.0, %v1660
  %1662 = vmatmul.bf16.gmra.mxu0 %v1562
  %v1663 = vpop.f32.mrf.mxu0
  %v1664 = vadd.f32 0.0, %v1663
  %v1665 = vpop.f32.mrf.mxu0
  %v1666 = vadd.f32 0.0, %v1665
  %1667 = vmatmul.bf16.gmra.mxu0 %v1563
  %v1668 = vpop.f32.mrf.mxu0
  %v1669 = vadd.f32 0.0, %v1668
  %v1670 = vpop.f32.mrf.mxu0
  %v1671 = vadd.f32 0.0, %v1670
  %1672 = vmatmul.bf16.gmra.mxu0 %v1564
  %v1673 = vpop.f32.mrf.mxu0
  %v1674 = vadd.f32 0.0, %v1673
  %v1675 = vpop.f32.mrf.mxu0
  %v1676 = vadd.f32 0.0, %v1675
  %1677 = vdwg.mxu0
  %1694 = vrot.lane.b32.xlu0 %v1639, 17
  %v1695 = vpop.permute.xlu0 %1694
  %1696 = vrot.lane.b32.xlu0 %v1641, 17
  %v1697 = vpop.permute.xlu0 %1696
  %1698 = vrot.lane.b32.xlu0 %v1644, 17
  %v1699 = vpop.permute.xlu0 %1698
  %1700 = vrot.lane.b32.xlu0 %v1646, 17
  %v1701 = vpop.permute.xlu0 %1700
  %1702 = vrot.lane.b32.xlu0 %v1649, 17
  %v1703 = vpop.permute.xlu0 %1702
  %1704 = vrot.lane.b32.xlu0 %v1651, 17
  %v1705 = vpop.permute.xlu0 %1704
  %1706 = vrot.lane.b32.xlu0 %v1654, 17
  %v1707 = vpop.permute.xlu0 %1706
  %1708 = vrot.lane.b32.xlu0 %v1656, 17
  %v1709 = vpop.permute.xlu0 %1708
  %1710 = vrot.lane.b32.xlu0 %v1659, 17
  %v1711 = vpop.permute.xlu0 %1710
  %1712 = vrot.lane.b32.xlu0 %v1661, 17
  %v1713 = vpop.permute.xlu0 %1712
  %1714 = vrot.lane.b32.xlu0 %v1664, 17
  %v1715 = vpop.permute.xlu0 %1714
  %1716 = vrot.lane.b32.xlu0 %v1666, 17
  %v1717 = vpop.permute.xlu0 %1716
  %1718 = vrot.lane.b32.xlu0 %v1669, 17
  %v1719 = vpop.permute.xlu0 %1718
  %1720 = vrot.lane.b32.xlu0 %v1671, 17
  %v1721 = vpop.permute.xlu0 %1720
  %1722 = vrot.lane.b32.xlu0 %v1674, 17
  %v1723 = vpop.permute.xlu0 %1722
  %1724 = vrot.lane.b32.xlu0 %v1676, 17
  %v1725 = vpop.permute.xlu0 %1724
  %v1742 = vadd.f32 %v1541, %v1695
  %v1743 = vadd.f32 %v1542, %v1697
  %v1744 = vadd.f32 %v1543, %v1699
  %v1745 = vadd.f32 %v1544, %v1701
  %v1746 = vadd.f32 %v1545, %v1703
  %v1747 = vadd.f32 %v1546, %v1705
  %v1748 = vadd.f32 %v1547, %v1707
  %v1749 = vadd.f32 %v1548, %v1709
  %v1750 = vadd.f32 %v1549, %v1711
  %v1751 = vadd.f32 %v1550, %v1713
  %v1752 = vadd.f32 %v1551, %v1715
  %v1753 = vadd.f32 %v1552, %v1717
  %v1754 = vadd.f32 %v1553, %v1719
  %v1755 = vadd.f32 %v1554, %v1721
  %v1756 = vadd.f32 %v1555, %v1723
  %v1757 = vadd.f32 %v1556, %v1725
  %vm1758 = vcmask 15368
  %1759 = vst.msk [vmem:[#allocation2] sm:$0xff] %vm1758, %v1269
  %1760 = vst.msk [vmem:[#allocation2 + $0x8] sm:$0xff] %vm1758, %v1270
  %1761 = vst.msk [vmem:[#allocation2 + $0x10] sm:$0xff] %vm1758, %v1271
  %1762 = vst.msk [vmem:[#allocation2 + $0x18] sm:$0xff] %vm1758, %v1272
  %1763 = vst.msk [vmem:[#allocation2 + $0x20] sm:$0xff] %vm1758, %v1273
  %1764 = vst.msk [vmem:[#allocation2 + $0x28] sm:$0xff] %vm1758, %v1274
  %1765 = vst.msk [vmem:[#allocation2 + $0x30] sm:$0xff] %vm1758, %v1275
  %1766 = vst.msk [vmem:[#allocation2 + $0x38] sm:$0xff] %vm1758, %v1276
  %1767 = vst.msk [vmem:[#allocation2 + $0x40] sm:$0xff] %vm1758, %v1277
  %1768 = vst.msk [vmem:[#allocation2 + $0x48] sm:$0xff] %vm1758, %v1278
  %1769 = vst.msk [vmem:[#allocation2 + $0x50] sm:$0xff] %vm1758, %v1279
  %1770 = vst.msk [vmem:[#allocation2 + $0x58] sm:$0xff] %vm1758, %v1280
  %1771 = vst.msk [vmem:[#allocation2 + $0x60] sm:$0xff] %vm1758, %v1281
  %1772 = vst.msk [vmem:[#allocation2 + $0x68] sm:$0xff] %vm1758, %v1282
  %1773 = vst.msk [vmem:[#allocation2 + $0x70] sm:$0xff] %vm1758, %v1283
  %1774 = vst.msk [vmem:[#allocation2 + $0x78] sm:$0xff] %vm1758, %v1284
  %vm1775 = vcmask 277640
  %1776 = vst.msk [vmem:[#allocation3] sm:$0xff] %vm1775, %v1742
  %1777 = vst.msk [vmem:[#allocation3 + $0x8] sm:$0xff] %vm1775, %v1743
  %1778 = vst.msk [vmem:[#allocation3 + $0x10] sm:$0xff] %vm1775, %v1744
  %1779 = vst.msk [vmem:[#allocation3 + $0x18] sm:$0xff] %vm1775, %v1745
  %1780 = vst.msk [vmem:[#allocation3 + $0x20] sm:$0xff] %vm1775, %v1746
  %1781 = vst.msk [vmem:[#allocation3 + $0x28] sm:$0xff] %vm1775, %v1747
  %1782 = vst.msk [vmem:[#allocation3 + $0x30] sm:$0xff] %vm1775, %v1748
  %1783 = vst.msk [vmem:[#allocation3 + $0x38] sm:$0xff] %vm1775, %v1749
  %1784 = vst.msk [vmem:[#allocation3 + $0x40] sm:$0xff] %vm1775, %v1750
  %1785 = vst.msk [vmem:[#allocation3 + $0x48] sm:$0xff] %vm1775, %v1751
  %1786 = vst.msk [vmem:[#allocation3 + $0x50] sm:$0xff] %vm1775, %v1752
  %1787 = vst.msk [vmem:[#allocation3 + $0x58] sm:$0xff] %vm1775, %v1753
  %1788 = vst.msk [vmem:[#allocation3 + $0x60] sm:$0xff] %vm1775, %v1754
  %1789 = vst.msk [vmem:[#allocation3 + $0x68] sm:$0xff] %vm1775, %v1755
  %1790 = vst.msk [vmem:[#allocation3 + $0x70] sm:$0xff] %vm1775, %v1756
  %1791 = vst.msk [vmem:[#allocation3 + $0x78] sm:$0xff] %vm1775, %v1757
  %v1792 = vld [vmem:[%s0] sm:$0xff]
  %v1793 = vld [vmem:[%s0 + $0x8] sm:$0xff]
  %v1794 = vld [vmem:[%s0 + $0x10] sm:$0xff]
  %v1795 = vld [vmem:[%s0 + $0x18] sm:$0xff]
  %v1796 = vld [vmem:[%s0 + $0x20] sm:$0xff]
  %v1797 = vld [vmem:[%s0 + $0x28] sm:$0xff]
  %v1798 = vld [vmem:[%s0 + $0x30] sm:$0xff]
  %v1799 = vld [vmem:[%s0 + $0x38] sm:$0xff]
  %v1800 = vld [vmem:[%s0 + $0x40] sm:$0xff]
  %v1801 = vld [vmem:[%s0 + $0x48] sm:$0xff]
  %v1802 = vld [vmem:[%s0 + $0x50] sm:$0xff]
  %v1803 = vld [vmem:[%s0 + $0x58] sm:$0xff]
  %v1804 = vld [vmem:[%s0 + $0x60] sm:$0xff]
  %v1805 = vld [vmem:[%s0 + $0x68] sm:$0xff]
  %v1806 = vld [vmem:[%s0 + $0x70] sm:$0xff]
  %v1807 = vld [vmem:[%s0 + $0x78] sm:$0xff]
  %v1808 = vld [vmem:[#allocation2] sm:$0xff]
  %v1809 = vld [vmem:[#allocation2 + $0x8] sm:$0xff]
  %v1810 = vld [vmem:[#allocation2 + $0x10] sm:$0xff]
  %v1811 = vld [vmem:[#allocation2 + $0x18] sm:$0xff]
  %v1812 = vld [vmem:[#allocation2 + $0x20] sm:$0xff]
  %v1813 = vld [vmem:[#allocation2 + $0x28] sm:$0xff]
  %v1814 = vld [vmem:[#allocation2 + $0x30] sm:$0xff]
  %v1815 = vld [vmem:[#allocation2 + $0x38] sm:$0xff]
  %v1816 = vld [vmem:[#allocation2 + $0x40] sm:$0xff]
  %v1817 = vld [vmem:[#allocation2 + $0x48] sm:$0xff]
  %v1818 = vld [vmem:[#allocation2 + $0x50] sm:$0xff]
  %v1819 = vld [vmem:[#allocation2 + $0x58] sm:$0xff]
  %v1820 = vld [vmem:[#allocation2 + $0x60] sm:$0xff]
  %v1821 = vld [vmem:[#allocation2 + $0x68] sm:$0xff]
  %v1822 = vld [vmem:[#allocation2 + $0x70] sm:$0xff]
  %v1823 = vld [vmem:[#allocation2 + $0x78] sm:$0xff]
  %v1824 = vld [vmem:[#allocation3] sm:$0xff]
  %v1825 = vld [vmem:[#allocation3 + $0x8] sm:$0xff]
  %v1826 = vld [vmem:[#allocation3 + $0x10] sm:$0xff]
  %v1827 = vld [vmem:[#allocation3 + $0x18] sm:$0xff]
  %v1828 = vld [vmem:[#allocation3 + $0x20] sm:$0xff]
  %v1829 = vld [vmem:[#allocation3 + $0x28] sm:$0xff]
  %v1830 = vld [vmem:[#allocation3 + $0x30] sm:$0xff]
  %v1831 = vld [vmem:[#allocation3 + $0x38] sm:$0xff]
  %v1832 = vld [vmem:[#allocation3 + $0x40] sm:$0xff]
  %v1833 = vld [vmem:[#allocation3 + $0x48] sm:$0xff]
  %v1834 = vld [vmem:[#allocation3 + $0x50] sm:$0xff]
  %v1835 = vld [vmem:[#allocation3 + $0x58] sm:$0xff]
  %v1836 = vld [vmem:[#allocation3 + $0x60] sm:$0xff]
  %v1837 = vld [vmem:[#allocation3 + $0x68] sm:$0xff]
  %v1838 = vld [vmem:[#allocation3 + $0x70] sm:$0xff]
  %v1839 = vld [vmem:[#allocation3 + $0x78] sm:$0xff]
  %v1840 = vld [vmem:[%s109] sm:$0xf]
  %v1841 = vld [vmem:[%s109 + $0x4] sm:$0xf]
  %v1842 = vld [vmem:[%s109 + $0x8] sm:$0xf]
  %v1843 = vld [vmem:[%s109 + $0xc] sm:$0xf]
  %v1844 = vld [vmem:[%s109 + $0x10] sm:$0xf]
  %v1845 = vld [vmem:[%s109 + $0x14] sm:$0xf]
  %v1846 = vld [vmem:[%s109 + $0x18] sm:$0xf]
  %v1847 = vld [vmem:[%s109 + $0x1c] sm:$0xf]
  %v1848 = vld [vmem:[%s109 + $0x20] sm:$0xf]
  %v1849 = vld [vmem:[%s109 + $0x24] sm:$0xf]
  %v1850 = vld [vmem:[%s109 + $0x28] sm:$0xf]
  %v1851 = vld [vmem:[%s109 + $0x2c] sm:$0xf]
  %v1852 = vld [vmem:[%s109 + $0x30] sm:$0xf]
  %v1853 = vld [vmem:[%s109 + $0x34] sm:$0xf]
  %v1854 = vld [vmem:[%s109 + $0x38] sm:$0xf]
  %v1855 = vld [vmem:[%s109 + $0x3c] sm:$0xf]
  %v1856 = vld [vmem:[%s2 + $0x2] sm:$0x1]
  %v1857 = vld [vmem:[%s3] sm:$0xff]
  %v1858 = vld [vmem:[%s3 + $0x8] sm:$0xff]
  %v1859 = vld [vmem:[%s3 + $0x10] sm:$0xff]
  %v1860 = vld [vmem:[%s3 + $0x18] sm:$0xff]
  %vm1861 = vnez %v1857
  %vm1862 = vnez %v1858
  %vm1863 = vnez %v1859
  %vm1864 = vnez %v1860
  %1866 = vset.pattern.permute.xlu0 2
  %1867 = vperm.xlu0 %1866, %v1792
  %v1868 = vpop.permute.xlu0 %1867
  %1871 = vset.pattern.permute.xlu0 2
  %1872 = vperm.xlu0 %1871, %v1793
  %v1873 = vpop.permute.xlu0 %1872
  %1876 = vset.pattern.permute.xlu0 2
  %1877 = vperm.xlu0 %1876, %v1794
  %v1878 = vpop.permute.xlu0 %1877
  %1881 = vset.pattern.permute.xlu0 2
  %1882 = vperm.xlu0 %1881, %v1795
  %v1883 = vpop.permute.xlu0 %1882
  %1886 = vset.pattern.permute.xlu0 2
  %1887 = vperm.xlu0 %1886, %v1796
  %v1888 = vpop.permute.xlu0 %1887
  %1891 = vset.pattern.permute.xlu0 2
  %1892 = vperm.xlu0 %1891, %v1797
  %v1893 = vpop.permute.xlu0 %1892
  %1896 = vset.pattern.permute.xlu0 2
  %1897 = vperm.xlu0 %1896, %v1798
  %v1898 = vpop.permute.xlu0 %1897
  %1901 = vset.pattern.permute.xlu0 2
  %1902 = vperm.xlu0 %1901, %v1799
  %v1903 = vpop.permute.xlu0 %1902
  %1906 = vset.pattern.permute.xlu0 2
  %1907 = vperm.xlu0 %1906, %v1800
  %v1908 = vpop.permute.xlu0 %1907
  %1911 = vset.pattern.permute.xlu0 2
  %1912 = vperm.xlu0 %1911, %v1801
  %v1913 = vpop.permute.xlu0 %1912
  %1916 = vset.pattern.permute.xlu0 2
  %1917 = vperm.xlu0 %1916, %v1802
  %v1918 = vpop.permute.xlu0 %1917
  %1921 = vset.pattern.permute.xlu0 2
  %1922 = vperm.xlu0 %1921, %v1803
  %v1923 = vpop.permute.xlu0 %1922
  %1926 = vset.pattern.permute.xlu0 2
  %1927 = vperm.xlu0 %1926, %v1804
  %v1928 = vpop.permute.xlu0 %1927
  %1931 = vset.pattern.permute.xlu0 2
  %1932 = vperm.xlu0 %1931, %v1805
  %v1933 = vpop.permute.xlu0 %1932
  %1936 = vset.pattern.permute.xlu0 2
  %1937 = vperm.xlu0 %1936, %v1806
  %v1938 = vpop.permute.xlu0 %1937
  %1941 = vset.pattern.permute.xlu0 2
  %1942 = vperm.xlu0 %1941, %v1807
  %v1943 = vpop.permute.xlu0 %1942
  %v1945 = vperm.slane %v1856, 0
  %v1946 = vadd.f32 %v1868, %v1945
  %v1947 = vadd.f32 %v1873, %v1945
  %v1948 = vadd.f32 %v1878, %v1945
  %v1949 = vadd.f32 %v1883, %v1945
  %v1950 = vadd.f32 %v1888, %v1945
  %v1951 = vadd.f32 %v1893, %v1945
  %v1952 = vadd.f32 %v1898, %v1945
  %v1953 = vadd.f32 %v1903, %v1945
  %v1954 = vadd.f32 %v1908, %v1945
  %v1955 = vadd.f32 %v1913, %v1945
  %v1956 = vadd.f32 %v1918, %v1945
  %v1957 = vadd.f32 %v1923, %v1945
  %v1958 = vadd.f32 %v1928, %v1945
  %v1959 = vadd.f32 %v1933, %v1945
  %v1960 = vadd.f32 %v1938, %v1945
  %v1961 = vadd.f32 %v1943, %v1945
  %v1962 = vsel %vm1861, 16843009, 0
  %v1963 = vsel %vm1862, 16843009, 0
  %v1964 = vsel %vm1863, 16843009, 0
  %v1965 = vsel %vm1864, 16843009, 0
  %v1966 = vunpack.c.0.s8 %v1962
  %v1967 = vunpack.c.1.s8 %v1962
  %v1968 = vunpack.c.2.s8 %v1962
  %v1969 = vunpack.c.3.s8 %v1962
  %v1970 = vunpack.c.0.s8 %v1963
  %v1971 = vunpack.c.1.s8 %v1963
  %v1972 = vunpack.c.2.s8 %v1963
  %v1973 = vunpack.c.3.s8 %v1963
  %v1974 = vunpack.c.0.s8 %v1964
  %v1975 = vunpack.c.1.s8 %v1964
  %v1976 = vunpack.c.2.s8 %v1964
  %v1977 = vunpack.c.3.s8 %v1964
  %v1978 = vunpack.c.0.s8 %v1965
  %v1979 = vunpack.c.1.s8 %v1965
  %v1980 = vunpack.c.2.s8 %v1965
  %v1981 = vunpack.c.3.s8 %v1965
  %v1982 = vpack.c.b16 %v1966, %v1966
  %v1983 = vpack.c.b8 %v1982, %v1982
  %v1984 = vpack.c.b16 %v1967, %v1967
  %v1985 = vpack.c.b8 %v1984, %v1984
  %v1986 = vpack.c.b16 %v1968, %v1968
  %v1987 = vpack.c.b8 %v1986, %v1986
  %v1988 = vpack.c.b16 %v1969, %v1969
  %v1989 = vpack.c.b8 %v1988, %v1988
  %v1990 = vpack.c.b16 %v1970, %v1970
  %v1991 = vpack.c.b8 %v1990, %v1990
  %v1992 = vpack.c.b16 %v1971, %v1971
  %v1993 = vpack.c.b8 %v1992, %v1992
  %v1994 = vpack.c.b16 %v1972, %v1972
  %v1995 = vpack.c.b8 %v1994, %v1994
  %v1996 = vpack.c.b16 %v1973, %v1973
  %v1997 = vpack.c.b8 %v1996, %v1996
  %v1998 = vpack.c.b16 %v1974, %v1974
  %v1999 = vpack.c.b8 %v1998, %v1998
  %v2000 = vpack.c.b16 %v1975, %v1975
  %v2001 = vpack.c.b8 %v2000, %v2000
  %v2002 = vpack.c.b16 %v1976, %v1976
  %v2003 = vpack.c.b8 %v2002, %v2002
  %v2004 = vpack.c.b16 %v1977, %v1977
  %v2005 = vpack.c.b8 %v2004, %v2004
  %v2006 = vpack.c.b16 %v1978, %v1978
  %v2007 = vpack.c.b8 %v2006, %v2006
  %v2008 = vpack.c.b16 %v1979, %v1979
  %v2009 = vpack.c.b8 %v2008, %v2008
  %v2010 = vpack.c.b16 %v1980, %v1980
  %v2011 = vpack.c.b8 %v2010, %v2010
  %v2012 = vpack.c.b16 %v1981, %v1981
  %v2013 = vpack.c.b8 %v2012, %v2012
  %vm2014 = vnez %v1983
  %vm2015 = vnez %v1985
  %vm2016 = vnez %v1987
  %vm2017 = vnez %v1989
  %vm2018 = vnez %v1991
  %vm2019 = vnez %v1993
  %vm2020 = vnez %v1995
  %vm2021 = vnez %v1997
  %vm2022 = vnez %v1999
  %vm2023 = vnez %v2001
  %vm2024 = vnez %v2003
  %vm2025 = vnez %v2005
  %vm2026 = vnez %v2007
  %vm2027 = vnez %v2009
  %vm2028 = vnez %v2011
  %vm2029 = vnez %v2013
  %v2030 = vsel %vm2014, 16843009, 0
  %v2031 = vsel %vm2015, 16843009, 0
  %v2032 = vsel %vm2016, 16843009, 0
  %v2033 = vsel %vm2017, 16843009, 0
  %v2034 = vsel %vm2018, 16843009, 0
  %v2035 = vsel %vm2019, 16843009, 0
  %v2036 = vsel %vm2020, 16843009, 0
  %v2037 = vsel %vm2021, 16843009, 0
  %v2038 = vsel %vm2022, 16843009, 0
  %v2039 = vsel %vm2023, 16843009, 0
  %v2040 = vsel %vm2024, 16843009, 0
  %v2041 = vsel %vm2025, 16843009, 0
  %v2042 = vsel %vm2026, 16843009, 0
  %v2043 = vsel %vm2027, 16843009, 0
  %v2044 = vsel %vm2028, 16843009, 0
  %v2045 = vsel %vm2029, 16843009, 0
  %v2046 = vunpack.c.0.s8 %v2030
  %v2047 = vunpack.c.0.s8 %v2031
  %v2048 = vunpack.c.0.s8 %v2032
  %v2049 = vunpack.c.0.s8 %v2033
  %v2050 = vunpack.c.0.s8 %v2034
  %v2051 = vunpack.c.0.s8 %v2035
  %v2052 = vunpack.c.0.s8 %v2036
  %v2053 = vunpack.c.0.s8 %v2037
  %v2054 = vunpack.c.0.s8 %v2038
  %v2055 = vunpack.c.0.s8 %v2039
  %v2056 = vunpack.c.0.s8 %v2040
  %v2057 = vunpack.c.0.s8 %v2041
  %v2058 = vunpack.c.0.s8 %v2042
  %v2059 = vunpack.c.0.s8 %v2043
  %v2060 = vunpack.c.0.s8 %v2044
  %v2061 = vunpack.c.0.s8 %v2045
  %vm2062 = vcmp.ne.s32.totalorder %v2046, 0
  %vm2063 = vcmp.ne.s32.totalorder %v2047, 0
  %vm2064 = vcmp.ne.s32.totalorder %v2048, 0
  %vm2065 = vcmp.ne.s32.totalorder %v2049, 0
  %vm2066 = vcmp.ne.s32.totalorder %v2050, 0
  %vm2067 = vcmp.ne.s32.totalorder %v2051, 0
  %vm2068 = vcmp.ne.s32.totalorder %v2052, 0
  %vm2069 = vcmp.ne.s32.totalorder %v2053, 0
  %vm2070 = vcmp.ne.s32.totalorder %v2054, 0
  %vm2071 = vcmp.ne.s32.totalorder %v2055, 0
  %vm2072 = vcmp.ne.s32.totalorder %v2056, 0
  %vm2073 = vcmp.ne.s32.totalorder %v2057, 0
  %vm2074 = vcmp.ne.s32.totalorder %v2058, 0
  %vm2075 = vcmp.ne.s32.totalorder %v2059, 0
  %vm2076 = vcmp.ne.s32.totalorder %v2060, 0
  %vm2077 = vcmp.ne.s32.totalorder %v2061, 0
  %v2078 = vsel %vm2062, %v1946, -9e+15
  %v2079 = vsel %vm2063, %v1947, -9e+15
  %v2080 = vsel %vm2064, %v1948, -9e+15
  %v2081 = vsel %vm2065, %v1949, -9e+15
  %v2082 = vsel %vm2066, %v1950, -9e+15
  %v2083 = vsel %vm2067, %v1951, -9e+15
  %v2084 = vsel %vm2068, %v1952, -9e+15
  %v2085 = vsel %vm2069, %v1953, -9e+15
  %v2086 = vsel %vm2070, %v1954, -9e+15
  %v2087 = vsel %vm2071, %v1955, -9e+15
  %v2088 = vsel %vm2072, %v1956, -9e+15
  %v2089 = vsel %vm2073, %v1957, -9e+15
  %v2090 = vsel %vm2074, %v1958, -9e+15
  %v2091 = vsel %vm2075, %v1959, -9e+15
  %v2092 = vsel %vm2076, %v1960, -9e+15
  %v2093 = vsel %vm2077, %v1961, -9e+15
  %vm2094 = vcmp.gt.f32.partialorder %v2078, 0.0
  %vm2095 = vcmp.gt.f32.partialorder %v2079, 0.0
  %vm2096 = vcmp.gt.f32.partialorder %v2080, 0.0
  %vm2097 = vcmp.gt.f32.partialorder %v2081, 0.0
  %vm2098 = vcmp.gt.f32.partialorder %v2082, 0.0
  %vm2099 = vcmp.gt.f32.partialorder %v2083, 0.0
  %vm2100 = vcmp.gt.f32.partialorder %v2084, 0.0
  %vm2101 = vcmp.gt.f32.partialorder %v2085, 0.0
  %vm2102 = vcmp.gt.f32.partialorder %v2086, 0.0
  %vm2103 = vcmp.gt.f32.partialorder %v2087, 0.0
  %vm2104 = vcmp.gt.f32.partialorder %v2088, 0.0
  %vm2105 = vcmp.gt.f32.partialorder %v2089, 0.0
  %vm2106 = vcmp.gt.f32.partialorder %v2090, 0.0
  %vm2107 = vcmp.gt.f32.partialorder %v2091, 0.0
  %vm2108 = vcmp.gt.f32.partialorder %v2092, 0.0
  %vm2109 = vcmp.gt.f32.partialorder %v2093, 0.0
  %v2110 = vmul.f32 %v2078, 0.2
  %v2111 = vmul.f32 %v2079, 0.2
  %v2112 = vmul.f32 %v2080, 0.2
  %v2113 = vmul.f32 %v2081, 0.2
  %v2114 = vmul.f32 %v2082, 0.2
  %v2115 = vmul.f32 %v2083, 0.2
  %v2116 = vmul.f32 %v2084, 0.2
  %v2117 = vmul.f32 %v2085, 0.2
  %v2118 = vmul.f32 %v2086, 0.2
  %v2119 = vmul.f32 %v2087, 0.2
  %v2120 = vmul.f32 %v2088, 0.2
  %v2121 = vmul.f32 %v2089, 0.2
  %v2122 = vmul.f32 %v2090, 0.2
  %v2123 = vmul.f32 %v2091, 0.2
  %v2124 = vmul.f32 %v2092, 0.2
  %v2125 = vmul.f32 %v2093, 0.2
  %v2126 = vsel %vm2094, %v2078, %v2110
  %v2127 = vsel %vm2095, %v2079, %v2111
  %v2128 = vsel %vm2096, %v2080, %v2112
  %v2129 = vsel %vm2097, %v2081, %v2113
  %v2130 = vsel %vm2098, %v2082, %v2114
  %v2131 = vsel %vm2099, %v2083, %v2115
  %v2132 = vsel %vm2100, %v2084, %v2116
  %v2133 = vsel %vm2101, %v2085, %v2117
  %v2134 = vsel %vm2102, %v2086, %v2118
  %v2135 = vsel %vm2103, %v2087, %v2119
  %v2136 = vsel %vm2104, %v2088, %v2120
  %v2137 = vsel %vm2105, %v2089, %v2121
  %v2138 = vsel %vm2106, %v2090, %v2122
  %v2139 = vsel %vm2107, %v2091, %v2123
  %v2140 = vsel %vm2108, %v2092, %v2124
  %v2141 = vsel %vm2109, %v2093, %v2125
  %2142 = vmax.xlane.f32.xlu0 %v2126
  %v2143 = vpop.xlane.xlu0 %2142
  %2144 = vmax.xlane.f32.xlu0 %v2127
  %v2145 = vpop.xlane.xlu0 %2144
  %2146 = vmax.xlane.f32.xlu0 %v2128
  %v2147 = vpop.xlane.xlu0 %2146
  %2148 = vmax.xlane.f32.xlu0 %v2129
  %v2149 = vpop.xlane.xlu0 %2148
  %2150 = vmax.xlane.f32.xlu0 %v2130
  %v2151 = vpop.xlane.xlu0 %2150
  %2152 = vmax.xlane.f32.xlu0 %v2131
  %v2153 = vpop.xlane.xlu0 %2152
  %2154 = vmax.xlane.f32.xlu0 %v2132
  %v2155 = vpop.xlane.xlu0 %2154
  %2156 = vmax.xlane.f32.xlu0 %v2133
  %v2157 = vpop.xlane.xlu0 %2156
  %2158 = vmax.xlane.f32.xlu0 %v2134
  %v2159 = vpop.xlane.xlu0 %2158
  %2160 = vmax.xlane.f32.xlu0 %v2135
  %v2161 = vpop.xlane.xlu0 %2160
  %2162 = vmax.xlane.f32.xlu0 %v2136
  %v2163 = vpop.xlane.xlu0 %2162
  %2164 = vmax.xlane.f32.xlu0 %v2137
  %v2165 = vpop.xlane.xlu0 %2164
  %2166 = vmax.xlane.f32.xlu0 %v2138
  %v2167 = vpop.xlane.xlu0 %2166
  %2168 = vmax.xlane.f32.xlu0 %v2139
  %v2169 = vpop.xlane.xlu0 %2168
  %2170 = vmax.xlane.f32.xlu0 %v2140
  %v2171 = vpop.xlane.xlu0 %2170
  %2172 = vmax.xlane.f32.xlu0 %v2141
  %v2173 = vpop.xlane.xlu0 %2172
  %v2174 = vmax.f32 %v1808, %v2143
  %v2175 = vmax.f32 %v1809, %v2145
  %v2176 = vmax.f32 %v1810, %v2147
  %v2177 = vmax.f32 %v1811, %v2149
  %v2178 = vmax.f32 %v1812, %v2151
  %v2179 = vmax.f32 %v1813, %v2153
  %v2180 = vmax.f32 %v1814, %v2155
  %v2181 = vmax.f32 %v1815, %v2157
  %v2182 = vmax.f32 %v1816, %v2159
  %v2183 = vmax.f32 %v1817, %v2161
  %v2184 = vmax.f32 %v1818, %v2163
  %v2185 = vmax.f32 %v1819, %v2165
  %v2186 = vmax.f32 %v1820, %v2167
  %v2187 = vmax.f32 %v1821, %v2169
  %v2188 = vmax.f32 %v1822, %v2171
  %v2189 = vmax.f32 %v1823, %v2173
  %v2190 = vsub.f32 %v1808, %v2174
  %v2191 = vsub.f32 %v1809, %v2175
  %v2192 = vsub.f32 %v1810, %v2176
  %v2193 = vsub.f32 %v1811, %v2177
  %v2194 = vsub.f32 %v1812, %v2178
  %v2195 = vsub.f32 %v1813, %v2179
  %v2196 = vsub.f32 %v1814, %v2180
  %v2197 = vsub.f32 %v1815, %v2181
  %v2198 = vsub.f32 %v1816, %v2182
  %v2199 = vsub.f32 %v1817, %v2183
  %v2200 = vsub.f32 %v1818, %v2184
  %v2201 = vsub.f32 %v1819, %v2185
  %v2202 = vsub.f32 %v1820, %v2186
  %v2203 = vsub.f32 %v1821, %v2187
  %v2204 = vsub.f32 %v1822, %v2188
  %v2205 = vsub.f32 %v1823, %v2189
  %v2206 = vmul.f32 %v2190, 1.442695
  %v2207 = vpow.pop %v2206
  %v2208 = vmul.f32 %v2191, 1.442695
  %v2209 = vpow.pop %v2208
  %v2210 = vmul.f32 %v2192, 1.442695
  %v2211 = vpow.pop %v2210
  %v2212 = vmul.f32 %v2193, 1.442695
  %v2213 = vpow.pop %v2212
  %v2214 = vmul.f32 %v2194, 1.442695
  %v2215 = vpow.pop %v2214
  %v2216 = vmul.f32 %v2195, 1.442695
  %v2217 = vpow.pop %v2216
  %v2218 = vmul.f32 %v2196, 1.442695
  %v2219 = vpow.pop %v2218
  %v2220 = vmul.f32 %v2197, 1.442695
  %v2221 = vpow.pop %v2220
  %v2222 = vmul.f32 %v2198, 1.442695
  %v2223 = vpow.pop %v2222
  %v2224 = vmul.f32 %v2199, 1.442695
  %v2225 = vpow.pop %v2224
  %v2226 = vmul.f32 %v2200, 1.442695
  %v2227 = vpow.pop %v2226
  %v2228 = vmul.f32 %v2201, 1.442695
  %v2229 = vpow.pop %v2228
  %v2230 = vmul.f32 %v2202, 1.442695
  %v2231 = vpow.pop %v2230
  %v2232 = vmul.f32 %v2203, 1.442695
  %v2233 = vpow.pop %v2232
  %v2234 = vmul.f32 %v2204, 1.442695
  %v2235 = vpow.pop %v2234
  %v2236 = vmul.f32 %v2205, 1.442695
  %v2237 = vpow.pop %v2236
  %2239 = vset.pattern.permute.xlu0 2
  %2240 = vperm.xlu0 %2239, %v2174
  %v2241 = vpop.permute.xlu0 %2240
  %2244 = vset.pattern.permute.xlu0 2
  %2245 = vperm.xlu0 %2244, %v2175
  %v2246 = vpop.permute.xlu0 %2245
  %2249 = vset.pattern.permute.xlu0 2
  %2250 = vperm.xlu0 %2249, %v2176
  %v2251 = vpop.permute.xlu0 %2250
  %2254 = vset.pattern.permute.xlu0 2
  %2255 = vperm.xlu0 %2254, %v2177
  %v2256 = vpop.permute.xlu0 %2255
  %2259 = vset.pattern.permute.xlu0 2
  %2260 = vperm.xlu0 %2259, %v2178
  %v2261 = vpop.permute.xlu0 %2260
  %2264 = vset.pattern.permute.xlu0 2
  %2265 = vperm.xlu0 %2264, %v2179
  %v2266 = vpop.permute.xlu0 %2265
  %2269 = vset.pattern.permute.xlu0 2
  %2270 = vperm.xlu0 %2269, %v2180
  %v2271 = vpop.permute.xlu0 %2270
  %2274 = vset.pattern.permute.xlu0 2
  %2275 = vperm.xlu0 %2274, %v2181
  %v2276 = vpop.permute.xlu0 %2275
  %2279 = vset.pattern.permute.xlu0 2
  %2280 = vperm.xlu0 %2279, %v2182
  %v2281 = vpop.permute.xlu0 %2280
  %2284 = vset.pattern.permute.xlu0 2
  %2285 = vperm.xlu0 %2284, %v2183
  %v2286 = vpop.permute.xlu0 %2285
  %2289 = vset.pattern.permute.xlu0 2
  %2290 = vperm.xlu0 %2289, %v2184
  %v2291 = vpop.permute.xlu0 %2290
  %2294 = vset.pattern.permute.xlu0 2
  %2295 = vperm.xlu0 %2294, %v2185
  %v2296 = vpop.permute.xlu0 %2295
  %2299 = vset.pattern.permute.xlu0 2
  %2300 = vperm.xlu0 %2299, %v2186
  %v2301 = vpop.permute.xlu0 %2300
  %2304 = vset.pattern.permute.xlu0 2
  %2305 = vperm.xlu0 %2304, %v2187
  %v2306 = vpop.permute.xlu0 %2305
  %2309 = vset.pattern.permute.xlu0 2
  %2310 = vperm.xlu0 %2309, %v2188
  %v2311 = vpop.permute.xlu0 %2310
  %2314 = vset.pattern.permute.xlu0 2
  %2315 = vperm.xlu0 %2314, %v2189
  %v2316 = vpop.permute.xlu0 %2315
  %v2318 = vsub.f32 %v2126, %v2241
  %v2319 = vsub.f32 %v2127, %v2246
  %v2320 = vsub.f32 %v2128, %v2251
  %v2321 = vsub.f32 %v2129, %v2256
  %v2322 = vsub.f32 %v2130, %v2261
  %v2323 = vsub.f32 %v2131, %v2266
  %v2324 = vsub.f32 %v2132, %v2271
  %v2325 = vsub.f32 %v2133, %v2276
  %v2326 = vsub.f32 %v2134, %v2281
  %v2327 = vsub.f32 %v2135, %v2286
  %v2328 = vsub.f32 %v2136, %v2291
  %v2329 = vsub.f32 %v2137, %v2296
  %v2330 = vsub.f32 %v2138, %v2301
  %v2331 = vsub.f32 %v2139, %v2306
  %v2332 = vsub.f32 %v2140, %v2311
  %v2333 = vsub.f32 %v2141, %v2316
  %v2334 = vmul.f32 %v2318, 1.442695
  %v2335 = vpow.pop %v2334
  %v2336 = vmul.f32 %v2319, 1.442695
  %v2337 = vpow.pop %v2336
  %v2338 = vmul.f32 %v2320, 1.442695
  %v2339 = vpow.pop %v2338
  %v2340 = vmul.f32 %v2321, 1.442695
  %v2341 = vpow.pop %v2340
  %v2342 = vmul.f32 %v2322, 1.442695
  %v2343 = vpow.pop %v2342
  %v2344 = vmul.f32 %v2323, 1.442695
  %v2345 = vpow.pop %v2344
  %v2346 = vmul.f32 %v2324, 1.442695
  %v2347 = vpow.pop %v2346
  %v2348 = vmul.f32 %v2325, 1.442695
  %v2349 = vpow.pop %v2348
  %v2350 = vmul.f32 %v2326, 1.442695
  %v2351 = vpow.pop %v2350
  %v2352 = vmul.f32 %v2327, 1.442695
  %v2353 = vpow.pop %v2352
  %v2354 = vmul.f32 %v2328, 1.442695
  %v2355 = vpow.pop %v2354
  %v2356 = vmul.f32 %v2329, 1.442695
  %v2357 = vpow.pop %v2356
  %v2358 = vmul.f32 %v2330, 1.442695
  %v2359 = vpow.pop %v2358
  %v2360 = vmul.f32 %v2331, 1.442695
  %v2361 = vpow.pop %v2360
  %v2362 = vmul.f32 %v2332, 1.442695
  %v2363 = vpow.pop %v2362
  %v2364 = vmul.f32 %v2333, 1.442695
  %v2365 = vpow.pop %v2364
  %2367 = vset.pattern.permute.xlu0 2
  %2368 = vperm.xlu0 %2367, %v2207
  %v2369 = vpop.permute.xlu0 %2368
  %2372 = vset.pattern.permute.xlu0 2
  %2373 = vperm.xlu0 %2372, %v2209
  %v2374 = vpop.permute.xlu0 %2373
  %2377 = vset.pattern.permute.xlu0 2
  %2378 = vperm.xlu0 %2377, %v2211
  %v2379 = vpop.permute.xlu0 %2378
  %2382 = vset.pattern.permute.xlu0 2
  %2383 = vperm.xlu0 %2382, %v2213
  %v2384 = vpop.permute.xlu0 %2383
  %2387 = vset.pattern.permute.xlu0 2
  %2388 = vperm.xlu0 %2387, %v2215
  %v2389 = vpop.permute.xlu0 %2388
  %2392 = vset.pattern.permute.xlu0 2
  %2393 = vperm.xlu0 %2392, %v2217
  %v2394 = vpop.permute.xlu0 %2393
  %2397 = vset.pattern.permute.xlu0 2
  %2398 = vperm.xlu0 %2397, %v2219
  %v2399 = vpop.permute.xlu0 %2398
  %2402 = vset.pattern.permute.xlu0 2
  %2403 = vperm.xlu0 %2402, %v2221
  %v2404 = vpop.permute.xlu0 %2403
  %2407 = vset.pattern.permute.xlu0 2
  %2408 = vperm.xlu0 %2407, %v2223
  %v2409 = vpop.permute.xlu0 %2408
  %2412 = vset.pattern.permute.xlu0 2
  %2413 = vperm.xlu0 %2412, %v2225
  %v2414 = vpop.permute.xlu0 %2413
  %2417 = vset.pattern.permute.xlu0 2
  %2418 = vperm.xlu0 %2417, %v2227
  %v2419 = vpop.permute.xlu0 %2418
  %2422 = vset.pattern.permute.xlu0 2
  %2423 = vperm.xlu0 %2422, %v2229
  %v2424 = vpop.permute.xlu0 %2423
  %2427 = vset.pattern.permute.xlu0 2
  %2428 = vperm.xlu0 %2427, %v2231
  %v2429 = vpop.permute.xlu0 %2428
  %2432 = vset.pattern.permute.xlu0 2
  %2433 = vperm.xlu0 %2432, %v2233
  %v2434 = vpop.permute.xlu0 %2433
  %2437 = vset.pattern.permute.xlu0 2
  %2438 = vperm.xlu0 %2437, %v2235
  %v2439 = vpop.permute.xlu0 %2438
  %2442 = vset.pattern.permute.xlu0 2
  %2443 = vperm.xlu0 %2442, %v2237
  %v2444 = vpop.permute.xlu0 %2443
  %v2446 = vmul.f32 %v2369, %v1824
  %v2447 = vmul.f32 %v2374, %v1825
  %v2448 = vmul.f32 %v2379, %v1826
  %v2449 = vmul.f32 %v2384, %v1827
  %v2450 = vmul.f32 %v2389, %v1828
  %v2451 = vmul.f32 %v2394, %v1829
  %v2452 = vmul.f32 %v2399, %v1830
  %v2453 = vmul.f32 %v2404, %v1831
  %v2454 = vmul.f32 %v2409, %v1832
  %v2455 = vmul.f32 %v2414, %v1833
  %v2456 = vmul.f32 %v2419, %v1834
  %v2457 = vmul.f32 %v2424, %v1835
  %v2458 = vmul.f32 %v2429, %v1836
  %v2459 = vmul.f32 %v2434, %v1837
  %v2460 = vmul.f32 %v2439, %v1838
  %v2461 = vmul.f32 %v2444, %v1839
  %v2462 = vpack.c.bf16 %v2337, %v2335
  %v2463 = vpack.c.bf16 %v2341, %v2339
  %v2464 = vpack.c.bf16 %v2345, %v2343
  %v2465 = vpack.c.bf16 %v2349, %v2347
  %v2466 = vpack.c.bf16 %v2353, %v2351
  %v2467 = vpack.c.bf16 %v2357, %v2355
  %v2468 = vpack.c.bf16 %v2361, %v2359
  %v2469 = vpack.c.bf16 %v2365, %v2363
  %v2486 = vunpack.c.l.b16 %v1840
  %v2487 = vunpack.c.l.b16 %v1841
  %v2488 = vunpack.c.l.b16 %v1842
  %v2489 = vunpack.c.l.b16 %v1843
  %v2490 = vunpack.c.l.b16 %v1844
  %v2491 = vunpack.c.l.b16 %v1845
  %v2492 = vunpack.c.l.b16 %v1846
  %v2493 = vunpack.c.l.b16 %v1847
  %v2494 = vunpack.c.l.b16 %v1848
  %v2495 = vunpack.c.l.b16 %v1849
  %v2496 = vunpack.c.l.b16 %v1850
  %v2497 = vunpack.c.l.b16 %v1851
  %v2498 = vunpack.c.l.b16 %v1852
  %v2499 = vunpack.c.l.b16 %v1853
  %v2500 = vunpack.c.l.b16 %v1854
  %v2501 = vunpack.c.l.b16 %v1855
  %v2502 = vpack.c.b16 %v2487, %v2486
  %v2503 = vpack.c.b16 %v2489, %v2488
  %v2504 = vpack.c.b16 %v2491, %v2490
  %v2505 = vpack.c.b16 %v2493, %v2492
  %v2506 = vpack.c.b16 %v2495, %v2494
  %v2507 = vpack.c.b16 %v2497, %v2496
  %v2508 = vpack.c.b16 %v2499, %v2498
  %v2509 = vpack.c.b16 %v2501, %v2500
  %2510 = vrot.lane.b32.xlu0 %v2502, 94
  %v2511 = vpop.permute.xlu0 %2510
  %2512 = vrot.lane.b32.xlu0 %v2503, 94
  %v2513 = vpop.permute.xlu0 %2512
  %2514 = vrot.lane.b32.xlu0 %v2504, 94
  %v2515 = vpop.permute.xlu0 %2514
  %2516 = vrot.lane.b32.xlu0 %v2505, 94
  %v2517 = vpop.permute.xlu0 %2516
  %2518 = vrot.lane.b32.xlu0 %v2506, 94
  %v2519 = vpop.permute.xlu0 %2518
  %2520 = vrot.lane.b32.xlu0 %v2507, 94
  %v2521 = vpop.permute.xlu0 %2520
  %2522 = vrot.lane.b32.xlu0 %v2508, 94
  %v2523 = vpop.permute.xlu0 %2522
  %2524 = vrot.lane.b32.xlu0 %v2509, 94
  %v2525 = vpop.permute.xlu0 %2524
  %2534 = vmatpush.bf16.msra.mxu0 %v2525
  %2535 = vmatpush.bf16.msra.mxu0 %v2523
  %2536 = vmatpush.bf16.msra.mxu0 %v2521
  %2537 = vmatpush.bf16.msra.mxu0 %v2519
  %2538 = vmatpush.bf16.msra.mxu0 %v2517
  %2539 = vmatpush.bf16.msra.mxu0 %v2515
  %2540 = vmatpush.bf16.msra.mxu0 %v2513
  %2541 = vmatpush.bf16.msra.mxu0 %v2511
  %2542 = vmatmul.bf16.gmra.mxu0 %v2462
  %v2543 = vpop.f32.mrf.mxu0
  %v2544 = vadd.f32 0.0, %v2543
  %v2545 = vpop.f32.mrf.mxu0
  %v2546 = vadd.f32 0.0, %v2545
  %2547 = vmatmul.bf16.gmra.mxu0 %v2463
  %v2548 = vpop.f32.mrf.mxu0
  %v2549 = vadd.f32 0.0, %v2548
  %v2550 = vpop.f32.mrf.mxu0
  %v2551 = vadd.f32 0.0, %v2550
  %2552 = vmatmul.bf16.gmra.mxu0 %v2464
  %v2553 = vpop.f32.mrf.mxu0
  %v2554 = vadd.f32 0.0, %v2553
  %v2555 = vpop.f32.mrf.mxu0
  %v2556 = vadd.f32 0.0, %v2555
  %2557 = vmatmul.bf16.gmra.mxu0 %v2465
  %v2558 = vpop.f32.mrf.mxu0
  %v2559 = vadd.f32 0.0, %v2558
  %v2560 = vpop.f32.mrf.mxu0
  %v2561 = vadd.f32 0.0, %v2560
  %2562 = vmatmul.bf16.gmra.mxu0 %v2466
  %v2563 = vpop.f32.mrf.mxu0
  %v2564 = vadd.f32 0.0, %v2563
  %v2565 = vpop.f32.mrf.mxu0
  %v2566 = vadd.f32 0.0, %v2565
  %2567 = vmatmul.bf16.gmra.mxu0 %v2467
  %v2568 = vpop.f32.mrf.mxu0
  %v2569 = vadd.f32 0.0, %v2568
  %v2570 = vpop.f32.mrf.mxu0
  %v2571 = vadd.f32 0.0, %v2570
  %2572 = vmatmul.bf16.gmra.mxu0 %v2468
  %v2573 = vpop.f32.mrf.mxu0
  %v2574 = vadd.f32 0.0, %v2573
  %v2575 = vpop.f32.mrf.mxu0
  %v2576 = vadd.f32 0.0, %v2575
  %2577 = vmatmul.bf16.gmra.mxu0 %v2469
  %v2578 = vpop.f32.mrf.mxu0
  %v2579 = vadd.f32 0.0, %v2578
  %v2580 = vpop.f32.mrf.mxu0
  %v2581 = vadd.f32 0.0, %v2580
  %2582 = vdwg.mxu0
  %2599 = vrot.lane.b32.xlu0 %v2544, 34
  %v2600 = vpop.permute.xlu0 %2599
  %2601 = vrot.lane.b32.xlu0 %v2546, 34
  %v2602 = vpop.permute.xlu0 %2601
  %2603 = vrot.lane.b32.xlu0 %v2549, 34
  %v2604 = vpop.permute.xlu0 %2603
  %2605 = vrot.lane.b32.xlu0 %v2551, 34
  %v2606 = vpop.permute.xlu0 %2605
  %2607 = vrot.lane.b32.xlu0 %v2554, 34
  %v2608 = vpop.permute.xlu0 %2607
  %2609 = vrot.lane.b32.xlu0 %v2556, 34
  %v2610 = vpop.permute.xlu0 %2609
  %2611 = vrot.lane.b32.xlu0 %v2559, 34
  %v2612 = vpop.permute.xlu0 %2611
  %2613 = vrot.lane.b32.xlu0 %v2561, 34
  %v2614 = vpop.permute.xlu0 %2613
  %2615 = vrot.lane.b32.xlu0 %v2564, 34
  %v2616 = vpop.permute.xlu0 %2615
  %2617 = vrot.lane.b32.xlu0 %v2566, 34
  %v2618 = vpop.permute.xlu0 %2617
  %2619 = vrot.lane.b32.xlu0 %v2569, 34
  %v2620 = vpop.permute.xlu0 %2619
  %2621 = vrot.lane.b32.xlu0 %v2571, 34
  %v2622 = vpop.permute.xlu0 %2621
  %2623 = vrot.lane.b32.xlu0 %v2574, 34
  %v2624 = vpop.permute.xlu0 %2623
  %2625 = vrot.lane.b32.xlu0 %v2576, 34
  %v2626 = vpop.permute.xlu0 %2625
  %2627 = vrot.lane.b32.xlu0 %v2579, 34
  %v2628 = vpop.permute.xlu0 %2627
  %2629 = vrot.lane.b32.xlu0 %v2581, 34
  %v2630 = vpop.permute.xlu0 %2629
  %v2647 = vadd.f32 %v2446, %v2600
  %v2648 = vadd.f32 %v2447, %v2602
  %v2649 = vadd.f32 %v2448, %v2604
  %v2650 = vadd.f32 %v2449, %v2606
  %v2651 = vadd.f32 %v2450, %v2608
  %v2652 = vadd.f32 %v2451, %v2610
  %v2653 = vadd.f32 %v2452, %v2612
  %v2654 = vadd.f32 %v2453, %v2614
  %v2655 = vadd.f32 %v2454, %v2616
  %v2656 = vadd.f32 %v2455, %v2618
  %v2657 = vadd.f32 %v2456, %v2620
  %v2658 = vadd.f32 %v2457, %v2622
  %v2659 = vadd.f32 %v2458, %v2624
  %v2660 = vadd.f32 %v2459, %v2626
  %v2661 = vadd.f32 %v2460, %v2628
  %v2662 = vadd.f32 %v2461, %v2630
  %vm2663 = vcmask 23568
  %2664 = vst.msk [vmem:[#allocation2] sm:$0xff] %vm2663, %v2174
  %2665 = vst.msk [vmem:[#allocation2 + $0x8] sm:$0xff] %vm2663, %v2175
  %2666 = vst.msk [vmem:[#allocation2 + $0x10] sm:$0xff] %vm2663, %v2176
  %2667 = vst.msk [vmem:[#allocation2 + $0x18] sm:$0xff] %vm2663, %v2177
  %2668 = vst.msk [vmem:[#allocation2 + $0x20] sm:$0xff] %vm2663, %v2178
  %2669 = vst.msk [vmem:[#allocation2 + $0x28] sm:$0xff] %vm2663, %v2179
  %2670 = vst.msk [vmem:[#allocation2 + $0x30] sm:$0xff] %vm2663, %v2180
  %2671 = vst.msk [vmem:[#allocation2 + $0x38] sm:$0xff] %vm2663, %v2181
  %2672 = vst.msk [vmem:[#allocation2 + $0x40] sm:$0xff] %vm2663, %v2182
  %2673 = vst.msk [vmem:[#allocation2 + $0x48] sm:$0xff] %vm2663, %v2183
  %2674 = vst.msk [vmem:[#allocation2 + $0x50] sm:$0xff] %vm2663, %v2184
  %2675 = vst.msk [vmem:[#allocation2 + $0x58] sm:$0xff] %vm2663, %v2185
  %2676 = vst.msk [vmem:[#allocation2 + $0x60] sm:$0xff] %vm2663, %v2186
  %2677 = vst.msk [vmem:[#allocation2 + $0x68] sm:$0xff] %vm2663, %v2187
  %2678 = vst.msk [vmem:[#allocation2 + $0x70] sm:$0xff] %vm2663, %v2188
  %2679 = vst.msk [vmem:[#allocation2 + $0x78] sm:$0xff] %vm2663, %v2189
  %vm2680 = vcmask 417040
  %2681 = vst.msk [vmem:[#allocation3] sm:$0xff] %vm2680, %v2647
  %2682 = vst.msk [vmem:[#allocation3 + $0x8] sm:$0xff] %vm2680, %v2648
  %2683 = vst.msk [vmem:[#allocation3 + $0x10] sm:$0xff] %vm2680, %v2649
  %2684 = vst.msk [vmem:[#allocation3 + $0x18] sm:$0xff] %vm2680, %v2650
  %2685 = vst.msk [vmem:[#allocation3 + $0x20] sm:$0xff] %vm2680, %v2651
  %2686 = vst.msk [vmem:[#allocation3 + $0x28] sm:$0xff] %vm2680, %v2652
  %2687 = vst.msk [vmem:[#allocation3 + $0x30] sm:$0xff] %vm2680, %v2653
  %2688 = vst.msk [vmem:[#allocation3 + $0x38] sm:$0xff] %vm2680, %v2654
  %2689 = vst.msk [vmem:[#allocation3 + $0x40] sm:$0xff] %vm2680, %v2655
  %2690 = vst.msk [vmem:[#allocation3 + $0x48] sm:$0xff] %vm2680, %v2656
  %2691 = vst.msk [vmem:[#allocation3 + $0x50] sm:$0xff] %vm2680, %v2657
  %2692 = vst.msk [vmem:[#allocation3 + $0x58] sm:$0xff] %vm2680, %v2658
  %2693 = vst.msk [vmem:[#allocation3 + $0x60] sm:$0xff] %vm2680, %v2659
  %2694 = vst.msk [vmem:[#allocation3 + $0x68] sm:$0xff] %vm2680, %v2660
  %2695 = vst.msk [vmem:[#allocation3 + $0x70] sm:$0xff] %vm2680, %v2661
  %2696 = vst.msk [vmem:[#allocation3 + $0x78] sm:$0xff] %vm2680, %v2662
  %v2697 = vld [vmem:[%s0] sm:$0xff]
  %v2698 = vld [vmem:[%s0 + $0x8] sm:$0xff]
  %v2699 = vld [vmem:[%s0 + $0x10] sm:$0xff]
  %v2700 = vld [vmem:[%s0 + $0x18] sm:$0xff]
  %v2701 = vld [vmem:[%s0 + $0x20] sm:$0xff]
  %v2702 = vld [vmem:[%s0 + $0x28] sm:$0xff]
  %v2703 = vld [vmem:[%s0 + $0x30] sm:$0xff]
  %v2704 = vld [vmem:[%s0 + $0x38] sm:$0xff]
  %v2705 = vld [vmem:[%s0 + $0x40] sm:$0xff]
  %v2706 = vld [vmem:[%s0 + $0x48] sm:$0xff]
  %v2707 = vld [vmem:[%s0 + $0x50] sm:$0xff]
  %v2708 = vld [vmem:[%s0 + $0x58] sm:$0xff]
  %v2709 = vld [vmem:[%s0 + $0x60] sm:$0xff]
  %v2710 = vld [vmem:[%s0 + $0x68] sm:$0xff]
  %v2711 = vld [vmem:[%s0 + $0x70] sm:$0xff]
  %v2712 = vld [vmem:[%s0 + $0x78] sm:$0xff]
  %v2713 = vld [vmem:[#allocation2] sm:$0xff]
  %v2714 = vld [vmem:[#allocation2 + $0x8] sm:$0xff]
  %v2715 = vld [vmem:[#allocation2 + $0x10] sm:$0xff]
  %v2716 = vld [vmem:[#allocation2 + $0x18] sm:$0xff]
  %v2717 = vld [vmem:[#allocation2 + $0x20] sm:$0xff]
  %v2718 = vld [vmem:[#allocation2 + $0x28] sm:$0xff]
  %v2719 = vld [vmem:[#allocation2 + $0x30] sm:$0xff]
  %v2720 = vld [vmem:[#allocation2 + $0x38] sm:$0xff]
  %v2721 = vld [vmem:[#allocation2 + $0x40] sm:$0xff]
  %v2722 = vld [vmem:[#allocation2 + $0x48] sm:$0xff]
  %v2723 = vld [vmem:[#allocation2 + $0x50] sm:$0xff]
  %v2724 = vld [vmem:[#allocation2 + $0x58] sm:$0xff]
  %v2725 = vld [vmem:[#allocation2 + $0x60] sm:$0xff]
  %v2726 = vld [vmem:[#allocation2 + $0x68] sm:$0xff]
  %v2727 = vld [vmem:[#allocation2 + $0x70] sm:$0xff]
  %v2728 = vld [vmem:[#allocation2 + $0x78] sm:$0xff]
  %v2729 = vld [vmem:[#allocation3] sm:$0xff]
  %v2730 = vld [vmem:[#allocation3 + $0x8] sm:$0xff]
  %v2731 = vld [vmem:[#allocation3 + $0x10] sm:$0xff]
  %v2732 = vld [vmem:[#allocation3 + $0x18] sm:$0xff]
  %v2733 = vld [vmem:[#allocation3 + $0x20] sm:$0xff]
  %v2734 = vld [vmem:[#allocation3 + $0x28] sm:$0xff]
  %v2735 = vld [vmem:[#allocation3 + $0x30] sm:$0xff]
  %v2736 = vld [vmem:[#allocation3 + $0x38] sm:$0xff]
  %v2737 = vld [vmem:[#allocation3 + $0x40] sm:$0xff]
  %v2738 = vld [vmem:[#allocation3 + $0x48] sm:$0xff]
  %v2739 = vld [vmem:[#allocation3 + $0x50] sm:$0xff]
  %v2740 = vld [vmem:[#allocation3 + $0x58] sm:$0xff]
  %v2741 = vld [vmem:[#allocation3 + $0x60] sm:$0xff]
  %v2742 = vld [vmem:[#allocation3 + $0x68] sm:$0xff]
  %v2743 = vld [vmem:[#allocation3 + $0x70] sm:$0xff]
  %v2744 = vld [vmem:[#allocation3 + $0x78] sm:$0xff]
  %v2745 = vld [vmem:[%s109] sm:$0xf]
  %v2746 = vld [vmem:[%s109 + $0x4] sm:$0xf]
  %v2747 = vld [vmem:[%s109 + $0x8] sm:$0xf]
  %v2748 = vld [vmem:[%s109 + $0xc] sm:$0xf]
  %v2749 = vld [vmem:[%s109 + $0x10] sm:$0xf]
  %v2750 = vld [vmem:[%s109 + $0x14] sm:$0xf]
  %v2751 = vld [vmem:[%s109 + $0x18] sm:$0xf]
  %v2752 = vld [vmem:[%s109 + $0x1c] sm:$0xf]
  %v2753 = vld [vmem:[%s109 + $0x20] sm:$0xf]
  %v2754 = vld [vmem:[%s109 + $0x24] sm:$0xf]
  %v2755 = vld [vmem:[%s109 + $0x28] sm:$0xf]
  %v2756 = vld [vmem:[%s109 + $0x2c] sm:$0xf]
  %v2757 = vld [vmem:[%s109 + $0x30] sm:$0xf]
  %v2758 = vld [vmem:[%s109 + $0x34] sm:$0xf]
  %v2759 = vld [vmem:[%s109 + $0x38] sm:$0xf]
  %v2760 = vld [vmem:[%s109 + $0x3c] sm:$0xf]
  %v2761 = vld [vmem:[%s2 + $0x3] sm:$0x1]
  %v2762 = vld [vmem:[%s3] sm:$0xff]
  %v2763 = vld [vmem:[%s3 + $0x8] sm:$0xff]
  %v2764 = vld [vmem:[%s3 + $0x10] sm:$0xff]
  %v2765 = vld [vmem:[%s3 + $0x18] sm:$0xff]
  %vm2766 = vnez %v2762
  %vm2767 = vnez %v2763
  %vm2768 = vnez %v2764
  %vm2769 = vnez %v2765
  %2771 = vset.pattern.permute.xlu0 3
  %2772 = vperm.xlu0 %2771, %v2697
  %v2773 = vpop.permute.xlu0 %2772
  %2776 = vset.pattern.permute.xlu0 3
  %2777 = vperm.xlu0 %2776, %v2698
  %v2778 = vpop.permute.xlu0 %2777
  %2781 = vset.pattern.permute.xlu0 3
  %2782 = vperm.xlu0 %2781, %v2699
  %v2783 = vpop.permute.xlu0 %2782
  %2786 = vset.pattern.permute.xlu0 3
  %2787 = vperm.xlu0 %2786, %v2700
  %v2788 = vpop.permute.xlu0 %2787
  %2791 = vset.pattern.permute.xlu0 3
  %2792 = vperm.xlu0 %2791, %v2701
  %v2793 = vpop.permute.xlu0 %2792
  %2796 = vset.pattern.permute.xlu0 3
  %2797 = vperm.xlu0 %2796, %v2702
  %v2798 = vpop.permute.xlu0 %2797
  %2801 = vset.pattern.permute.xlu0 3
  %2802 = vperm.xlu0 %2801, %v2703
  %v2803 = vpop.permute.xlu0 %2802
  %2806 = vset.pattern.permute.xlu0 3
  %2807 = vperm.xlu0 %2806, %v2704
  %v2808 = vpop.permute.xlu0 %2807
  %2811 = vset.pattern.permute.xlu0 3
  %2812 = vperm.xlu0 %2811, %v2705
  %v2813 = vpop.permute.xlu0 %2812
  %2816 = vset.pattern.permute.xlu0 3
  %2817 = vperm.xlu0 %2816, %v2706
  %v2818 = vpop.permute.xlu0 %2817
  %2821 = vset.pattern.permute.xlu0 3
  %2822 = vperm.xlu0 %2821, %v2707
  %v2823 = vpop.permute.xlu0 %2822
  %2826 = vset.pattern.permute.xlu0 3
  %2827 = vperm.xlu0 %2826, %v2708
  %v2828 = vpop.permute.xlu0 %2827
  %2831 = vset.pattern.permute.xlu0 3
  %2832 = vperm.xlu0 %2831, %v2709
  %v2833 = vpop.permute.xlu0 %2832
  %2836 = vset.pattern.permute.xlu0 3
  %2837 = vperm.xlu0 %2836, %v2710
  %v2838 = vpop.permute.xlu0 %2837
  %2841 = vset.pattern.permute.xlu0 3
  %2842 = vperm.xlu0 %2841, %v2711
  %v2843 = vpop.permute.xlu0 %2842
  %2846 = vset.pattern.permute.xlu0 3
  %2847 = vperm.xlu0 %2846, %v2712
  %v2848 = vpop.permute.xlu0 %2847
  %v2850 = vperm.slane %v2761, 0
  %v2851 = vadd.f32 %v2773, %v2850
  %v2852 = vadd.f32 %v2778, %v2850
  %v2853 = vadd.f32 %v2783, %v2850
  %v2854 = vadd.f32 %v2788, %v2850
  %v2855 = vadd.f32 %v2793, %v2850
  %v2856 = vadd.f32 %v2798, %v2850
  %v2857 = vadd.f32 %v2803, %v2850
  %v2858 = vadd.f32 %v2808, %v2850
  %v2859 = vadd.f32 %v2813, %v2850
  %v2860 = vadd.f32 %v2818, %v2850
  %v2861 = vadd.f32 %v2823, %v2850
  %v2862 = vadd.f32 %v2828, %v2850
  %v2863 = vadd.f32 %v2833, %v2850
  %v2864 = vadd.f32 %v2838, %v2850
  %v2865 = vadd.f32 %v2843, %v2850
  %v2866 = vadd.f32 %v2848, %v2850
  %v2867 = vsel %vm2766, 16843009, 0
  %v2868 = vsel %vm2767, 16843009, 0
  %v2869 = vsel %vm2768, 16843009, 0
  %v2870 = vsel %vm2769, 16843009, 0
  %v2871 = vunpack.c.0.s8 %v2867
  %v2872 = vunpack.c.1.s8 %v2867
  %v2873 = vunpack.c.2.s8 %v2867
  %v2874 = vunpack.c.3.s8 %v2867
  %v2875 = vunpack.c.0.s8 %v2868
  %v2876 = vunpack.c.1.s8 %v2868
  %v2877 = vunpack.c.2.s8 %v2868
  %v2878 = vunpack.c.3.s8 %v2868
  %v2879 = vunpack.c.0.s8 %v2869
  %v2880 = vunpack.c.1.s8 %v2869
  %v2881 = vunpack.c.2.s8 %v2869
  %v2882 = vunpack.c.3.s8 %v2869
  %v2883 = vunpack.c.0.s8 %v2870
  %v2884 = vunpack.c.1.s8 %v2870
  %v2885 = vunpack.c.2.s8 %v2870
  %v2886 = vunpack.c.3.s8 %v2870
  %v2887 = vpack.c.b16 %v2871, %v2871
  %v2888 = vpack.c.b8 %v2887, %v2887
  %v2889 = vpack.c.b16 %v2872, %v2872
  %v2890 = vpack.c.b8 %v2889, %v2889
  %v2891 = vpack.c.b16 %v2873, %v2873
  %v2892 = vpack.c.b8 %v2891, %v2891
  %v2893 = vpack.c.b16 %v2874, %v2874
  %v2894 = vpack.c.b8 %v2893, %v2893
  %v2895 = vpack.c.b16 %v2875, %v2875
  %v2896 = vpack.c.b8 %v2895, %v2895
  %v2897 = vpack.c.b16 %v2876, %v2876
  %v2898 = vpack.c.b8 %v2897, %v2897
  %v2899 = vpack.c.b16 %v2877, %v2877
  %v2900 = vpack.c.b8 %v2899, %v2899
  %v2901 = vpack.c.b16 %v2878, %v2878
  %v2902 = vpack.c.b8 %v2901, %v2901
  %v2903 = vpack.c.b16 %v2879, %v2879
  %v2904 = vpack.c.b8 %v2903, %v2903
  %v2905 = vpack.c.b16 %v2880, %v2880
  %v2906 = vpack.c.b8 %v2905, %v2905
  %v2907 = vpack.c.b16 %v2881, %v2881
  %v2908 = vpack.c.b8 %v2907, %v2907
  %v2909 = vpack.c.b16 %v2882, %v2882
  %v2910 = vpack.c.b8 %v2909, %v2909
  %v2911 = vpack.c.b16 %v2883, %v2883
  %v2912 = vpack.c.b8 %v2911, %v2911
  %v2913 = vpack.c.b16 %v2884, %v2884
  %v2914 = vpack.c.b8 %v2913, %v2913
  %v2915 = vpack.c.b16 %v2885, %v2885
  %v2916 = vpack.c.b8 %v2915, %v2915
  %v2917 = vpack.c.b16 %v2886, %v2886
  %v2918 = vpack.c.b8 %v2917, %v2917
  %vm2919 = vnez %v2888
  %vm2920 = vnez %v2890
  %vm2921 = vnez %v2892
  %vm2922 = vnez %v2894
  %vm2923 = vnez %v2896
  %vm2924 = vnez %v2898
  %vm2925 = vnez %v2900
  %vm2926 = vnez %v2902
  %vm2927 = vnez %v2904
  %vm2928 = vnez %v2906
  %vm2929 = vnez %v2908
  %vm2930 = vnez %v2910
  %vm2931 = vnez %v2912
  %vm2932 = vnez %v2914
  %vm2933 = vnez %v2916
  %vm2934 = vnez %v2918
  %v2935 = vsel %vm2919, 16843009, 0
  %v2936 = vsel %vm2920, 16843009, 0
  %v2937 = vsel %vm2921, 16843009, 0
  %v2938 = vsel %vm2922, 16843009, 0
  %v2939 = vsel %vm2923, 16843009, 0
  %v2940 = vsel %vm2924, 16843009, 0
  %v2941 = vsel %vm2925, 16843009, 0
  %v2942 = vsel %vm2926, 16843009, 0
  %v2943 = vsel %vm2927, 16843009, 0
  %v2944 = vsel %vm2928, 16843009, 0
  %v2945 = vsel %vm2929, 16843009, 0
  %v2946 = vsel %vm2930, 16843009, 0
  %v2947 = vsel %vm2931, 16843009, 0
  %v2948 = vsel %vm2932, 16843009, 0
  %v2949 = vsel %vm2933, 16843009, 0
  %v2950 = vsel %vm2934, 16843009, 0
  %v2951 = vunpack.c.0.s8 %v2935
  %v2952 = vunpack.c.0.s8 %v2936
  %v2953 = vunpack.c.0.s8 %v2937
  %v2954 = vunpack.c.0.s8 %v2938
  %v2955 = vunpack.c.0.s8 %v2939
  %v2956 = vunpack.c.0.s8 %v2940
  %v2957 = vunpack.c.0.s8 %v2941
  %v2958 = vunpack.c.0.s8 %v2942
  %v2959 = vunpack.c.0.s8 %v2943
  %v2960 = vunpack.c.0.s8 %v2944
  %v2961 = vunpack.c.0.s8 %v2945
  %v2962 = vunpack.c.0.s8 %v2946
  %v2963 = vunpack.c.0.s8 %v2947
  %v2964 = vunpack.c.0.s8 %v2948
  %v2965 = vunpack.c.0.s8 %v2949
  %v2966 = vunpack.c.0.s8 %v2950
  %vm2967 = vcmp.ne.s32.totalorder %v2951, 0
  %vm2968 = vcmp.ne.s32.totalorder %v2952, 0
  %vm2969 = vcmp.ne.s32.totalorder %v2953, 0
  %vm2970 = vcmp.ne.s32.totalorder %v2954, 0
  %vm2971 = vcmp.ne.s32.totalorder %v2955, 0
  %vm2972 = vcmp.ne.s32.totalorder %v2956, 0
  %vm2973 = vcmp.ne.s32.totalorder %v2957, 0
  %vm2974 = vcmp.ne.s32.totalorder %v2958, 0
  %vm2975 = vcmp.ne.s32.totalorder %v2959, 0
  %vm2976 = vcmp.ne.s32.totalorder %v2960, 0
  %vm2977 = vcmp.ne.s32.totalorder %v2961, 0
  %vm2978 = vcmp.ne.s32.totalorder %v2962, 0
  %vm2979 = vcmp.ne.s32.totalorder %v2963, 0
  %vm2980 = vcmp.ne.s32.totalorder %v2964, 0
  %vm2981 = vcmp.ne.s32.totalorder %v2965, 0
  %vm2982 = vcmp.ne.s32.totalorder %v2966, 0
  %v2983 = vsel %vm2967, %v2851, -9e+15
  %v2984 = vsel %vm2968, %v2852, -9e+15
  %v2985 = vsel %vm2969, %v2853, -9e+15
  %v2986 = vsel %vm2970, %v2854, -9e+15
  %v2987 = vsel %vm2971, %v2855, -9e+15
  %v2988 = vsel %vm2972, %v2856, -9e+15
  %v2989 = vsel %vm2973, %v2857, -9e+15
  %v2990 = vsel %vm2974, %v2858, -9e+15
  %v2991 = vsel %vm2975, %v2859, -9e+15
  %v2992 = vsel %vm2976, %v2860, -9e+15
  %v2993 = vsel %vm2977, %v2861, -9e+15
  %v2994 = vsel %vm2978, %v2862, -9e+15
  %v2995 = vsel %vm2979, %v2863, -9e+15
  %v2996 = vsel %vm2980, %v2864, -9e+15
  %v2997 = vsel %vm2981, %v2865, -9e+15
  %v2998 = vsel %vm2982, %v2866, -9e+15
  %vm2999 = vcmp.gt.f32.partialorder %v2983, 0.0
  %vm3000 = vcmp.gt.f32.partialorder %v2984, 0.0
  %vm3001 = vcmp.gt.f32.partialorder %v2985, 0.0
  %vm3002 = vcmp.gt.f32.partialorder %v2986, 0.0
  %vm3003 = vcmp.gt.f32.partialorder %v2987, 0.0
  %vm3004 = vcmp.gt.f32.partialorder %v2988, 0.0
  %vm3005 = vcmp.gt.f32.partialorder %v2989, 0.0
  %vm3006 = vcmp.gt.f32.partialorder %v2990, 0.0
  %vm3007 = vcmp.gt.f32.partialorder %v2991, 0.0
  %vm3008 = vcmp.gt.f32.partialorder %v2992, 0.0
  %vm3009 = vcmp.gt.f32.partialorder %v2993, 0.0
  %vm3010 = vcmp.gt.f32.partialorder %v2994, 0.0
  %vm3011 = vcmp.gt.f32.partialorder %v2995, 0.0
  %vm3012 = vcmp.gt.f32.partialorder %v2996, 0.0
  %vm3013 = vcmp.gt.f32.partialorder %v2997, 0.0
  %vm3014 = vcmp.gt.f32.partialorder %v2998, 0.0
  %v3015 = vmul.f32 %v2983, 0.2
  %v3016 = vmul.f32 %v2984, 0.2
  %v3017 = vmul.f32 %v2985, 0.2
  %v3018 = vmul.f32 %v2986, 0.2
  %v3019 = vmul.f32 %v2987, 0.2
  %v3020 = vmul.f32 %v2988, 0.2
  %v3021 = vmul.f32 %v2989, 0.2
  %v3022 = vmul.f32 %v2990, 0.2
  %v3023 = vmul.f32 %v2991, 0.2
  %v3024 = vmul.f32 %v2992, 0.2
  %v3025 = vmul.f32 %v2993, 0.2
  %v3026 = vmul.f32 %v2994, 0.2
  %v3027 = vmul.f32 %v2995, 0.2
  %v3028 = vmul.f32 %v2996, 0.2
  %v3029 = vmul.f32 %v2997, 0.2
  %v3030 = vmul.f32 %v2998, 0.2
  %v3031 = vsel %vm2999, %v2983, %v3015
  %v3032 = vsel %vm3000, %v2984, %v3016
  %v3033 = vsel %vm3001, %v2985, %v3017
  %v3034 = vsel %vm3002, %v2986, %v3018
  %v3035 = vsel %vm3003, %v2987, %v3019
  %v3036 = vsel %vm3004, %v2988, %v3020
  %v3037 = vsel %vm3005, %v2989, %v3021
  %v3038 = vsel %vm3006, %v2990, %v3022
  %v3039 = vsel %vm3007, %v2991, %v3023
  %v3040 = vsel %vm3008, %v2992, %v3024
  %v3041 = vsel %vm3009, %v2993, %v3025
  %v3042 = vsel %vm3010, %v2994, %v3026
  %v3043 = vsel %vm3011, %v2995, %v3027
  %v3044 = vsel %vm3012, %v2996, %v3028
  %v3045 = vsel %vm3013, %v2997, %v3029
  %v3046 = vsel %vm3014, %v2998, %v3030
  %3047 = vmax.xlane.f32.xlu0 %v3031
  %v3048 = vpop.xlane.xlu0 %3047
  %3049 = vmax.xlane.f32.xlu0 %v3032
  %v3050 = vpop.xlane.xlu0 %3049
  %3051 = vmax.xlane.f32.xlu0 %v3033
  %v3052 = vpop.xlane.xlu0 %3051
  %3053 = vmax.xlane.f32.xlu0 %v3034
  %v3054 = vpop.xlane.xlu0 %3053
  %3055 = vmax.xlane.f32.xlu0 %v3035
  %v3056 = vpop.xlane.xlu0 %3055
  %3057 = vmax.xlane.f32.xlu0 %v3036
  %v3058 = vpop.xlane.xlu0 %3057
  %3059 = vmax.xlane.f32.xlu0 %v3037
  %v3060 = vpop.xlane.xlu0 %3059
  %3061 = vmax.xlane.f32.xlu0 %v3038
  %v3062 = vpop.xlane.xlu0 %3061
  %3063 = vmax.xlane.f32.xlu0 %v3039
  %v3064 = vpop.xlane.xlu0 %3063
  %3065 = vmax.xlane.f32.xlu0 %v3040
  %v3066 = vpop.xlane.xlu0 %3065
  %3067 = vmax.xlane.f32.xlu0 %v3041
  %v3068 = vpop.xlane.xlu0 %3067
  %3069 = vmax.xlane.f32.xlu0 %v3042
  %v3070 = vpop.xlane.xlu0 %3069
  %3071 = vmax.xlane.f32.xlu0 %v3043
  %v3072 = vpop.xlane.xlu0 %3071
  %3073 = vmax.xlane.f32.xlu0 %v3044
  %v3074 = vpop.xlane.xlu0 %3073
  %3075 = vmax.xlane.f32.xlu0 %v3045
  %v3076 = vpop.xlane.xlu0 %3075
  %3077 = vmax.xlane.f32.xlu0 %v3046
  %v3078 = vpop.xlane.xlu0 %3077
  %v3079 = vmax.f32 %v2713, %v3048
  %v3080 = vmax.f32 %v2714, %v3050
  %v3081 = vmax.f32 %v2715, %v3052
  %v3082 = vmax.f32 %v2716, %v3054
  %v3083 = vmax.f32 %v2717, %v3056
  %v3084 = vmax.f32 %v2718, %v3058
  %v3085 = vmax.f32 %v2719, %v3060
  %v3086 = vmax.f32 %v2720, %v3062
  %v3087 = vmax.f32 %v2721, %v3064
  %v3088 = vmax.f32 %v2722, %v3066
  %v3089 = vmax.f32 %v2723, %v3068
  %v3090 = vmax.f32 %v2724, %v3070
  %v3091 = vmax.f32 %v2725, %v3072
  %v3092 = vmax.f32 %v2726, %v3074
  %v3093 = vmax.f32 %v2727, %v3076
  %v3094 = vmax.f32 %v2728, %v3078
  %v3095 = vsub.f32 %v2713, %v3079
  %v3096 = vsub.f32 %v2714, %v3080
  %v3097 = vsub.f32 %v2715, %v3081
  %v3098 = vsub.f32 %v2716, %v3082
  %v3099 = vsub.f32 %v2717, %v3083
  %v3100 = vsub.f32 %v2718, %v3084
  %v3101 = vsub.f32 %v2719, %v3085
  %v3102 = vsub.f32 %v2720, %v3086
  %v3103 = vsub.f32 %v2721, %v3087
  %v3104 = vsub.f32 %v2722, %v3088
  %v3105 = vsub.f32 %v2723, %v3089
  %v3106 = vsub.f32 %v2724, %v3090
  %v3107 = vsub.f32 %v2725, %v3091
  %v3108 = vsub.f32 %v2726, %v3092
  %v3109 = vsub.f32 %v2727, %v3093
  %v3110 = vsub.f32 %v2728, %v3094
  %v3111 = vmul.f32 %v3095, 1.442695
  %v3112 = vpow.pop %v3111
  %v3113 = vmul.f32 %v3096, 1.442695
  %v3114 = vpow.pop %v3113
  %v3115 = vmul.f32 %v3097, 1.442695
  %v3116 = vpow.pop %v3115
  %v3117 = vmul.f32 %v3098, 1.442695
  %v3118 = vpow.pop %v3117
  %v3119 = vmul.f32 %v3099, 1.442695
  %v3120 = vpow.pop %v3119
  %v3121 = vmul.f32 %v3100, 1.442695
  %v3122 = vpow.pop %v3121
  %v3123 = vmul.f32 %v3101, 1.442695
  %v3124 = vpow.pop %v3123
  %v3125 = vmul.f32 %v3102, 1.442695
  %v3126 = vpow.pop %v3125
  %v3127 = vmul.f32 %v3103, 1.442695
  %v3128 = vpow.pop %v3127
  %v3129 = vmul.f32 %v3104, 1.442695
  %v3130 = vpow.pop %v3129
  %v3131 = vmul.f32 %v3105, 1.442695
  %v3132 = vpow.pop %v3131
  %v3133 = vmul.f32 %v3106, 1.442695
  %v3134 = vpow.pop %v3133
  %v3135 = vmul.f32 %v3107, 1.442695
  %v3136 = vpow.pop %v3135
  %v3137 = vmul.f32 %v3108, 1.442695
  %v3138 = vpow.pop %v3137
  %v3139 = vmul.f32 %v3109, 1.442695
  %v3140 = vpow.pop %v3139
  %v3141 = vmul.f32 %v3110, 1.442695
  %v3142 = vpow.pop %v3141
  %3144 = vset.pattern.permute.xlu0 3
  %3145 = vperm.xlu0 %3144, %v3079
  %v3146 = vpop.permute.xlu0 %3145
  %3149 = vset.pattern.permute.xlu0 3
  %3150 = vperm.xlu0 %3149, %v3080
  %v3151 = vpop.permute.xlu0 %3150
  %3154 = vset.pattern.permute.xlu0 3
  %3155 = vperm.xlu0 %3154, %v3081
  %v3156 = vpop.permute.xlu0 %3155
  %3159 = vset.pattern.permute.xlu0 3
  %3160 = vperm.xlu0 %3159, %v3082
  %v3161 = vpop.permute.xlu0 %3160
  %3164 = vset.pattern.permute.xlu0 3
  %3165 = vperm.xlu0 %3164, %v3083
  %v3166 = vpop.permute.xlu0 %3165
  %3169 = vset.pattern.permute.xlu0 3
  %3170 = vperm.xlu0 %3169, %v3084
  %v3171 = vpop.permute.xlu0 %3170
  %3174 = vset.pattern.permute.xlu0 3
  %3175 = vperm.xlu0 %3174, %v3085
  %v3176 = vpop.permute.xlu0 %3175
  %3179 = vset.pattern.permute.xlu0 3
  %3180 = vperm.xlu0 %3179, %v3086
  %v3181 = vpop.permute.xlu0 %3180
  %3184 = vset.pattern.permute.xlu0 3
  %3185 = vperm.xlu0 %3184, %v3087
  %v3186 = vpop.permute.xlu0 %3185
  %3189 = vset.pattern.permute.xlu0 3
  %3190 = vperm.xlu0 %3189, %v3088
  %v3191 = vpop.permute.xlu0 %3190
  %3194 = vset.pattern.permute.xlu0 3
  %3195 = vperm.xlu0 %3194, %v3089
  %v3196 = vpop.permute.xlu0 %3195
  %3199 = vset.pattern.permute.xlu0 3
  %3200 = vperm.xlu0 %3199, %v3090
  %v3201 = vpop.permute.xlu0 %3200
  %3204 = vset.pattern.permute.xlu0 3
  %3205 = vperm.xlu0 %3204, %v3091
  %v3206 = vpop.permute.xlu0 %3205
  %3209 = vset.pattern.permute.xlu0 3
  %3210 = vperm.xlu0 %3209, %v3092
  %v3211 = vpop.permute.xlu0 %3210
  %3214 = vset.pattern.permute.xlu0 3
  %3215 = vperm.xlu0 %3214, %v3093
  %v3216 = vpop.permute.xlu0 %3215
  %3219 = vset.pattern.permute.xlu0 3
  %3220 = vperm.xlu0 %3219, %v3094
  %v3221 = vpop.permute.xlu0 %3220
  %v3223 = vsub.f32 %v3031, %v3146
  %v3224 = vsub.f32 %v3032, %v3151
  %v3225 = vsub.f32 %v3033, %v3156
  %v3226 = vsub.f32 %v3034, %v3161
  %v3227 = vsub.f32 %v3035, %v3166
  %v3228 = vsub.f32 %v3036, %v3171
  %v3229 = vsub.f32 %v3037, %v3176
  %v3230 = vsub.f32 %v3038, %v3181
  %v3231 = vsub.f32 %v3039, %v3186
  %v3232 = vsub.f32 %v3040, %v3191
  %v3233 = vsub.f32 %v3041, %v3196
  %v3234 = vsub.f32 %v3042, %v3201
  %v3235 = vsub.f32 %v3043, %v3206
  %v3236 = vsub.f32 %v3044, %v3211
  %v3237 = vsub.f32 %v3045, %v3216
  %v3238 = vsub.f32 %v3046, %v3221
  %v3239 = vmul.f32 %v3223, 1.442695
  %v3240 = vpow.pop %v3239
  %v3241 = vmul.f32 %v3224, 1.442695
  %v3242 = vpow.pop %v3241
  %v3243 = vmul.f32 %v3225, 1.442695
  %v3244 = vpow.pop %v3243
  %v3245 = vmul.f32 %v3226, 1.442695
  %v3246 = vpow.pop %v3245
  %v3247 = vmul.f32 %v3227, 1.442695
  %v3248 = vpow.pop %v3247
  %v3249 = vmul.f32 %v3228, 1.442695
  %v3250 = vpow.pop %v3249
  %v3251 = vmul.f32 %v3229, 1.442695
  %v3252 = vpow.pop %v3251
  %v3253 = vmul.f32 %v3230, 1.442695
  %v3254 = vpow.pop %v3253
  %v3255 = vmul.f32 %v3231, 1.442695
  %v3256 = vpow.pop %v3255
  %v3257 = vmul.f32 %v3232, 1.442695
  %v3258 = vpow.pop %v3257
  %v3259 = vmul.f32 %v3233, 1.442695
  %v3260 = vpow.pop %v3259
  %v3261 = vmul.f32 %v3234, 1.442695
  %v3262 = vpow.pop %v3261
  %v3263 = vmul.f32 %v3235, 1.442695
  %v3264 = vpow.pop %v3263
  %v3265 = vmul.f32 %v3236, 1.442695
  %v3266 = vpow.pop %v3265
  %v3267 = vmul.f32 %v3237, 1.442695
  %v3268 = vpow.pop %v3267
  %v3269 = vmul.f32 %v3238, 1.442695
  %v3270 = vpow.pop %v3269
  %3272 = vset.pattern.permute.xlu0 3
  %3273 = vperm.xlu0 %3272, %v3112
  %v3274 = vpop.permute.xlu0 %3273
  %3277 = vset.pattern.permute.xlu0 3
  %3278 = vperm.xlu0 %3277, %v3114
  %v3279 = vpop.permute.xlu0 %3278
  %3282 = vset.pattern.permute.xlu0 3
  %3283 = vperm.xlu0 %3282, %v3116
  %v3284 = vpop.permute.xlu0 %3283
  %3287 = vset.pattern.permute.xlu0 3
  %3288 = vperm.xlu0 %3287, %v3118
  %v3289 = vpop.permute.xlu0 %3288
  %3292 = vset.pattern.permute.xlu0 3
  %3293 = vperm.xlu0 %3292, %v3120
  %v3294 = vpop.permute.xlu0 %3293
  %3297 = vset.pattern.permute.xlu0 3
  %3298 = vperm.xlu0 %3297, %v3122
  %v3299 = vpop.permute.xlu0 %3298
  %3302 = vset.pattern.permute.xlu0 3
  %3303 = vperm.xlu0 %3302, %v3124
  %v3304 = vpop.permute.xlu0 %3303
  %3307 = vset.pattern.permute.xlu0 3
  %3308 = vperm.xlu0 %3307, %v3126
  %v3309 = vpop.permute.xlu0 %3308
  %3312 = vset.pattern.permute.xlu0 3
  %3313 = vperm.xlu0 %3312, %v3128
  %v3314 = vpop.permute.xlu0 %3313
  %3317 = vset.pattern.permute.xlu0 3
  %3318 = vperm.xlu0 %3317, %v3130
  %v3319 = vpop.permute.xlu0 %3318
  %3322 = vset.pattern.permute.xlu0 3
  %3323 = vperm.xlu0 %3322, %v3132
  %v3324 = vpop.permute.xlu0 %3323
  %3327 = vset.pattern.permute.xlu0 3
  %3328 = vperm.xlu0 %3327, %v3134
  %v3329 = vpop.permute.xlu0 %3328
  %3332 = vset.pattern.permute.xlu0 3
  %3333 = vperm.xlu0 %3332, %v3136
  %v3334 = vpop.permute.xlu0 %3333
  %3337 = vset.pattern.permute.xlu0 3
  %3338 = vperm.xlu0 %3337, %v3138
  %v3339 = vpop.permute.xlu0 %3338
  %3342 = vset.pattern.permute.xlu0 3
  %3343 = vperm.xlu0 %3342, %v3140
  %v3344 = vpop.permute.xlu0 %3343
  %3347 = vset.pattern.permute.xlu0 3
  %3348 = vperm.xlu0 %3347, %v3142
  %v3349 = vpop.permute.xlu0 %3348
  %v3351 = vmul.f32 %v3274, %v2729
  %v3352 = vmul.f32 %v3279, %v2730
  %v3353 = vmul.f32 %v3284, %v2731
  %v3354 = vmul.f32 %v3289, %v2732
  %v3355 = vmul.f32 %v3294, %v2733
  %v3356 = vmul.f32 %v3299, %v2734
  %v3357 = vmul.f32 %v3304, %v2735
  %v3358 = vmul.f32 %v3309, %v2736
  %v3359 = vmul.f32 %v3314, %v2737
  %v3360 = vmul.f32 %v3319, %v2738
  %v3361 = vmul.f32 %v3324, %v2739
  %v3362 = vmul.f32 %v3329, %v2740
  %v3363 = vmul.f32 %v3334, %v2741
  %v3364 = vmul.f32 %v3339, %v2742
  %v3365 = vmul.f32 %v3344, %v2743
  %v3366 = vmul.f32 %v3349, %v2744
  %v3367 = vpack.c.bf16 %v3242, %v3240
  %v3368 = vpack.c.bf16 %v3246, %v3244
  %v3369 = vpack.c.bf16 %v3250, %v3248
  %v3370 = vpack.c.bf16 %v3254, %v3252
  %v3371 = vpack.c.bf16 %v3258, %v3256
  %v3372 = vpack.c.bf16 %v3262, %v3260
  %v3373 = vpack.c.bf16 %v3266, %v3264
  %v3374 = vpack.c.bf16 %v3270, %v3268
  %v3391 = vunpack.c.l.b16 %v2745
  %v3392 = vunpack.c.l.b16 %v2746
  %v3393 = vunpack.c.l.b16 %v2747
  %v3394 = vunpack.c.l.b16 %v2748
  %v3395 = vunpack.c.l.b16 %v2749
  %v3396 = vunpack.c.l.b16 %v2750
  %v3397 = vunpack.c.l.b16 %v2751
  %v3398 = vunpack.c.l.b16 %v2752
  %v3399 = vunpack.c.l.b16 %v2753
  %v3400 = vunpack.c.l.b16 %v2754
  %v3401 = vunpack.c.l.b16 %v2755
  %v3402 = vunpack.c.l.b16 %v2756
  %v3403 = vunpack.c.l.b16 %v2757
  %v3404 = vunpack.c.l.b16 %v2758
  %v3405 = vunpack.c.l.b16 %v2759
  %v3406 = vunpack.c.l.b16 %v2760
  %v3407 = vpack.c.b16 %v3392, %v3391
  %v3408 = vpack.c.b16 %v3394, %v3393
  %v3409 = vpack.c.b16 %v3396, %v3395
  %v3410 = vpack.c.b16 %v3398, %v3397
  %v3411 = vpack.c.b16 %v3400, %v3399
  %v3412 = vpack.c.b16 %v3402, %v3401
  %v3413 = vpack.c.b16 %v3404, %v3403
  %v3414 = vpack.c.b16 %v3406, %v3405
  %3415 = vrot.lane.b32.xlu0 %v3407, 77
  %v3416 = vpop.permute.xlu0 %3415
  %3417 = vrot.lane.b32.xlu0 %v3408, 77
  %v3418 = vpop.permute.xlu0 %3417
  %3419 = vrot.lane.b32.xlu0 %v3409, 77
  %v3420 = vpop.permute.xlu0 %3419
  %3421 = vrot.lane.b32.xlu0 %v3410, 77
  %v3422 = vpop.permute.xlu0 %3421
  %3423 = vrot.lane.b32.xlu0 %v3411, 77
  %v3424 = vpop.permute.xlu0 %3423
  %3425 = vrot.lane.b32.xlu0 %v3412, 77
  %v3426 = vpop.permute.xlu0 %3425
  %3427 = vrot.lane.b32.xlu0 %v3413, 77
  %v3428 = vpop.permute.xlu0 %3427
  %3429 = vrot.lane.b32.xlu0 %v3414, 77
  %v3430 = vpop.permute.xlu0 %3429
  %3439 = vmatpush.bf16.msra.mxu0 %v3430
  %3440 = vmatpush.bf16.msra.mxu0 %v3428
  %3441 = vmatpush.bf16.msra.mxu0 %v3426
  %3442 = vmatpush.bf16.msra.mxu0 %v3424
  %3443 = vmatpush.bf16.msra.mxu0 %v3422
  %3444 = vmatpush.bf16.msra.mxu0 %v3420
  %3445 = vmatpush.bf16.msra.mxu0 %v3418
  %3446 = vmatpush.bf16.msra.mxu0 %v3416
  %3447 = vmatmul.bf16.gmra.mxu0 %v3367
  %v3448 = vpop.f32.mrf.mxu0
  %v3449 = vadd.f32 0.0, %v3448
  %v3450 = vpop.f32.mrf.mxu0
  %v3451 = vadd.f32 0.0, %v3450
  %3452 = vmatmul.bf16.gmra.mxu0 %v3368
  %v3453 = vpop.f32.mrf.mxu0
  %v3454 = vadd.f32 0.0, %v3453
  %v3455 = vpop.f32.mrf.mxu0
  %v3456 = vadd.f32 0.0, %v3455
  %3457 = vmatmul.bf16.gmra.mxu0 %v3369
  %v3458 = vpop.f32.mrf.mxu0
  %v3459 = vadd.f32 0.0, %v3458
  %v3460 = vpop.f32.mrf.mxu0
  %v3461 = vadd.f32 0.0, %v3460
  %3462 = vmatmul.bf16.gmra.mxu0 %v3370
  %v3463 = vpop.f32.mrf.mxu0
  %v3464 = vadd.f32 0.0, %v3463
  %v3465 = vpop.f32.mrf.mxu0
  %v3466 = vadd.f32 0.0, %v3465
  %3467 = vmatmul.bf16.gmra.mxu0 %v3371
  %v3468 = vpop.f32.mrf.mxu0
  %v3469 = vadd.f32 0.0, %v3468
  %v3470 = vpop.f32.mrf.mxu0
  %v3471 = vadd.f32 0.0, %v3470
  %3472 = vmatmul.bf16.gmra.mxu0 %v3372
  %v3473 = vpop.f32.mrf.mxu0
  %v3474 = vadd.f32 0.0, %v3473
  %v3475 = vpop.f32.mrf.mxu0
  %v3476 = vadd.f32 0.0, %v3475
  %3477 = vmatmul.bf16.gmra.mxu0 %v3373
  %v3478 = vpop.f32.mrf.mxu0
  %v3479 = vadd.f32 0.0, %v3478
  %v3480 = vpop.f32.mrf.mxu0
  %v3481 = vadd.f32 0.0, %v3480
  %3482 = vmatmul.bf16.gmra.mxu0 %v3374
  %v3483 = vpop.f32.mrf.mxu0
  %v3484 = vadd.f32 0.0, %v3483
  %v3485 = vpop.f32.mrf.mxu0
  %v3486 = vadd.f32 0.0, %v3485
  %3487 = vdwg.mxu0
  %3504 = vrot.lane.b32.xlu0 %v3449, 51
  %v3505 = vpop.permute.xlu0 %3504
  %3506 = vrot.lane.b32.xlu0 %v3451, 51
  %v3507 = vpop.permute.xlu0 %3506
  %3508 = vrot.lane.b32.xlu0 %v3454, 51
  %v3509 = vpop.permute.xlu0 %3508
  %3510 = vrot.lane.b32.xlu0 %v3456, 51
  %v3511 = vpop.permute.xlu0 %3510
  %3512 = vrot.lane.b32.xlu0 %v3459, 51
  %v3513 = vpop.permute.xlu0 %3512
  %3514 = vrot.lane.b32.xlu0 %v3461, 51
  %v3515 = vpop.permute.xlu0 %3514
  %3516 = vrot.lane.b32.xlu0 %v3464, 51
  %v3517 = vpop.permute.xlu0 %3516
  %3518 = vrot.lane.b32.xlu0 %v3466, 51
  %v3519 = vpop.permute.xlu0 %3518
  %3520 = vrot.lane.b32.xlu0 %v3469, 51
  %v3521 = vpop.permute.xlu0 %3520
  %3522 = vrot.lane.b32.xlu0 %v3471, 51
  %v3523 = vpop.permute.xlu0 %3522
  %3524 = vrot.lane.b32.xlu0 %v3474, 51
  %v3525 = vpop.permute.xlu0 %3524
  %3526 = vrot.lane.b32.xlu0 %v3476, 51
  %v3527 = vpop.permute.xlu0 %3526
  %3528 = vrot.lane.b32.xlu0 %v3479, 51
  %v3529 = vpop.permute.xlu0 %3528
  %3530 = vrot.lane.b32.xlu0 %v3481, 51
  %v3531 = vpop.permute.xlu0 %3530
  %3532 = vrot.lane.b32.xlu0 %v3484, 51
  %v3533 = vpop.permute.xlu0 %3532
  %3534 = vrot.lane.b32.xlu0 %v3486, 51
  %v3535 = vpop.permute.xlu0 %3534
  %v3552 = vadd.f32 %v3351, %v3505
  %v3553 = vadd.f32 %v3352, %v3507
  %v3554 = vadd.f32 %v3353, %v3509
  %v3555 = vadd.f32 %v3354, %v3511
  %v3556 = vadd.f32 %v3355, %v3513
  %v3557 = vadd.f32 %v3356, %v3515
  %v3558 = vadd.f32 %v3357, %v3517
  %v3559 = vadd.f32 %v3358, %v3519
  %v3560 = vadd.f32 %v3359, %v3521
  %v3561 = vadd.f32 %v3360, %v3523
  %v3562 = vadd.f32 %v3361, %v3525
  %v3563 = vadd.f32 %v3362, %v3527
  %v3564 = vadd.f32 %v3363, %v3529
  %v3565 = vadd.f32 %v3364, %v3531
  %v3566 = vadd.f32 %v3365, %v3533
  %v3567 = vadd.f32 %v3366, %v3535
  %vm3568 = vcmask 31768
  %3569 = vst.msk [vmem:[#allocation2] sm:$0xff] %vm3568, %v3079
  %3570 = vst.msk [vmem:[#allocation2 + $0x8] sm:$0xff] %vm3568, %v3080
  %3571 = vst.msk [vmem:[#allocation2 + $0x10] sm:$0xff] %vm3568, %v3081
  %3572 = vst.msk [vmem:[#allocation2 + $0x18] sm:$0xff] %vm3568, %v3082
  %3573 = vst.msk [vmem:[#allocation2 + $0x20] sm:$0xff] %vm3568, %v3083
  %3574 = vst.msk [vmem:[#allocation2 + $0x28] sm:$0xff] %vm3568, %v3084
  %3575 = vst.msk [vmem:[#allocation2 + $0x30] sm:$0xff] %vm3568, %v3085
  %3576 = vst.msk [vmem:[#allocation2 + $0x38] sm:$0xff] %vm3568, %v3086
  %3577 = vst.msk [vmem:[#allocation2 + $0x40] sm:$0xff] %vm3568, %v3087
  %3578 = vst.msk [vmem:[#allocation2 + $0x48] sm:$0xff] %vm3568, %v3088
  %3579 = vst.msk [vmem:[#allocation2 + $0x50] sm:$0xff] %vm3568, %v3089
  %3580 = vst.msk [vmem:[#allocation2 + $0x58] sm:$0xff] %vm3568, %v3090
  %3581 = vst.msk [vmem:[#allocation2 + $0x60] sm:$0xff] %vm3568, %v3091
  %3582 = vst.msk [vmem:[#allocation2 + $0x68] sm:$0xff] %vm3568, %v3092
  %3583 = vst.msk [vmem:[#allocation2 + $0x70] sm:$0xff] %vm3568, %v3093
  %3584 = vst.msk [vmem:[#allocation2 + $0x78] sm:$0xff] %vm3568, %v3094
  %vm3585 = vcmask 556440
  %3586 = vst.msk [vmem:[#allocation3] sm:$0xff] %vm3585, %v3552
  %3587 = vst.msk [vmem:[#allocation3 + $0x8] sm:$0xff] %vm3585, %v3553
  %3588 = vst.msk [vmem:[#allocation3 + $0x10] sm:$0xff] %vm3585, %v3554
  %3589 = vst.msk [vmem:[#allocation3 + $0x18] sm:$0xff] %vm3585, %v3555
  %3590 = vst.msk [vmem:[#allocation3 + $0x20] sm:$0xff] %vm3585, %v3556
  %3591 = vst.msk [vmem:[#allocation3 + $0x28] sm:$0xff] %vm3585, %v3557
  %3592 = vst.msk [vmem:[#allocation3 + $0x30] sm:$0xff] %vm3585, %v3558
  %3593 = vst.msk [vmem:[#allocation3 + $0x38] sm:$0xff] %vm3585, %v3559
  %3594 = vst.msk [vmem:[#allocation3 + $0x40] sm:$0xff] %vm3585, %v3560
  %3595 = vst.msk [vmem:[#allocation3 + $0x48] sm:$0xff] %vm3585, %v3561
  %3596 = vst.msk [vmem:[#allocation3 + $0x50] sm:$0xff] %vm3585, %v3562
  %3597 = vst.msk [vmem:[#allocation3 + $0x58] sm:$0xff] %vm3585, %v3563
  %3598 = vst.msk [vmem:[#allocation3 + $0x60] sm:$0xff] %vm3585, %v3564
  %3599 = vst.msk [vmem:[#allocation3 + $0x68] sm:$0xff] %vm3585, %v3565
  %3600 = vst.msk [vmem:[#allocation3 + $0x70] sm:$0xff] %vm3585, %v3566
  %3601 = vst.msk [vmem:[#allocation3 + $0x78] sm:$0xff] %vm3585, %v3567
  // Predicated region
  $region22: #{gat_forward.5} parent=0 // pred_check
    %p3602 = pneg %p19
  $region23: #{gat_forward.5} parent=0 // pred_check_branch
    %3604 = sbr.rel (%p3602) target = $region25
  $region24: #{gat_forward.5} parent=0 // pred_region
    %v3605 = vld [vmem:[#allocation3] sm:$0xff]
    %v3606 = vld [vmem:[#allocation3 + $0x8] sm:$0xff]
    %v3607 = vld [vmem:[#allocation3 + $0x10] sm:$0xff]
    %v3608 = vld [vmem:[#allocation3 + $0x18] sm:$0xff]
    %v3609 = vld [vmem:[#allocation3 + $0x20] sm:$0xff]
    %v3610 = vld [vmem:[#allocation3 + $0x28] sm:$0xff]
    %v3611 = vld [vmem:[#allocation3 + $0x30] sm:$0xff]
    %v3612 = vld [vmem:[#allocation3 + $0x38] sm:$0xff]
    %v3613 = vld [vmem:[#allocation3 + $0x40] sm:$0xff]
    %v3614 = vld [vmem:[#allocation3 + $0x48] sm:$0xff]
    %v3615 = vld [vmem:[#allocation3 + $0x50] sm:$0xff]
    %v3616 = vld [vmem:[#allocation3 + $0x58] sm:$0xff]
    %v3617 = vld [vmem:[#allocation3 + $0x60] sm:$0xff]
    %v3618 = vld [vmem:[#allocation3 + $0x68] sm:$0xff]
    %v3619 = vld [vmem:[#allocation3 + $0x70] sm:$0xff]
    %v3620 = vld [vmem:[#allocation3 + $0x78] sm:$0xff]
    %3622 = vset.pattern.permute.xlu0 16
    %3623 = vperm.xlu0 %3622, %v3605
    %v3624 = vpop.permute.xlu0 %3623
    %3627 = vset.pattern.permute.xlu0 16
    %3628 = vperm.xlu0 %3627, %v3606
    %v3629 = vpop.permute.xlu0 %3628
    %3632 = vset.pattern.permute.xlu0 16
    %3633 = vperm.xlu0 %3632, %v3607
    %v3634 = vpop.permute.xlu0 %3633
    %3637 = vset.pattern.permute.xlu0 16
    %3638 = vperm.xlu0 %3637, %v3608
    %v3639 = vpop.permute.xlu0 %3638
    %3642 = vset.pattern.permute.xlu0 16
    %3643 = vperm.xlu0 %3642, %v3609
    %v3644 = vpop.permute.xlu0 %3643
    %3647 = vset.pattern.permute.xlu0 16
    %3648 = vperm.xlu0 %3647, %v3610
    %v3649 = vpop.permute.xlu0 %3648
    %3652 = vset.pattern.permute.xlu0 16
    %3653 = vperm.xlu0 %3652, %v3611
    %v3654 = vpop.permute.xlu0 %3653
    %3657 = vset.pattern.permute.xlu0 16
    %3658 = vperm.xlu0 %3657, %v3612
    %v3659 = vpop.permute.xlu0 %3658
    %3662 = vset.pattern.permute.xlu0 16
    %3663 = vperm.xlu0 %3662, %v3613
    %v3664 = vpop.permute.xlu0 %3663
    %3667 = vset.pattern.permute.xlu0 16
    %3668 = vperm.xlu0 %3667, %v3614
    %v3669 = vpop.permute.xlu0 %3668
    %3672 = vset.pattern.permute.xlu0 16
    %3673 = vperm.xlu0 %3672, %v3615
    %v3674 = vpop.permute.xlu0 %3673
    %3677 = vset.pattern.permute.xlu0 16
    %3678 = vperm.xlu0 %3677, %v3616
    %v3679 = vpop.permute.xlu0 %3678
    %3682 = vset.pattern.permute.xlu0 16
    %3683 = vperm.xlu0 %3682, %v3617
    %v3684 = vpop.permute.xlu0 %3683
    %3687 = vset.pattern.permute.xlu0 16
    %3688 = vperm.xlu0 %3687, %v3618
    %v3689 = vpop.permute.xlu0 %3688
    %3692 = vset.pattern.permute.xlu0 16
    %3693 = vperm.xlu0 %3692, %v3619
    %v3694 = vpop.permute.xlu0 %3693
    %3697 = vset.pattern.permute.xlu0 16
    %3698 = vperm.xlu0 %3697, %v3620
    %v3699 = vpop.permute.xlu0 %3698
    %v3701 = vrcp.pop %v3624
    %v3702 = vmul.f32 %v3624, %v3701
    %v3703 = vsub.f32 1.0, %v3702
    %v3704 = vmul.f32 %v3701, %v3703
    %v3705 = vadd.f32 %v3701, %v3704
    %vm3706 = vweird.f32 %v3624
    %vm3707 = vweird.f32 %v3701
    %vm3708 = vmor %vm3706, %vm3707
    %v3709 = vsel %vm3708, %v3701, %v3705
    %v3710 = vand.u32 2147483647, %v3624
    %vm3711 = vcmp.eq.f32.partialorder %v3710, 8.507059e+37
    %v3712 = vand.u32 %v3624, 2147483648
    %v3713 = vor.u32 1.1754944e-38, %v3712
    %v3714 = vsel %vm3711, %v3713, %v3709
    %v3715 = vmul.f32 %v3605, %v3714
    %v3716 = vrcp.pop %v3629
    %v3717 = vmul.f32 %v3629, %v3716
    %v3718 = vsub.f32 1.0, %v3717
    %v3719 = vmul.f32 %v3716, %v3718
    %v3720 = vadd.f32 %v3716, %v3719
    %vm3721 = vweird.f32 %v3629
    %vm3722 = vweird.f32 %v3716
    %vm3723 = vmor %vm3721, %vm3722
    %v3724 = vsel %vm3723, %v3716, %v3720
    %v3725 = vand.u32 2147483647, %v3629
    %vm3726 = vcmp.eq.f32.partialorder %v3725, 8.507059e+37
    %v3727 = vand.u32 %v3629, 2147483648
    %v3728 = vor.u32 1.1754944e-38, %v3727
    %v3729 = vsel %vm3726, %v3728, %v3724
    %v3730 = vmul.f32 %v3606, %v3729
    %v3731 = vrcp.pop %v3634
    %v3732 = vmul.f32 %v3634, %v3731
    %v3733 = vsub.f32 1.0, %v3732
    %v3734 = vmul.f32 %v3731, %v3733
    %v3735 = vadd.f32 %v3731, %v3734
    %vm3736 = vweird.f32 %v3634
    %vm3737 = vweird.f32 %v3731
    %vm3738 = vmor %vm3736, %vm3737
    %v3739 = vsel %vm3738, %v3731, %v3735
    %v3740 = vand.u32 2147483647, %v3634
    %vm3741 = vcmp.eq.f32.partialorder %v3740, 8.507059e+37
    %v3742 = vand.u32 %v3634, 2147483648
    %v3743 = vor.u32 1.1754944e-38, %v3742
    %v3744 = vsel %vm3741, %v3743, %v3739
    %v3745 = vmul.f32 %v3607, %v3744
    %v3746 = vrcp.pop %v3639
    %v3747 = vmul.f32 %v3639, %v3746
    %v3748 = vsub.f32 1.0, %v3747
    %v3749 = vmul.f32 %v3746, %v3748
    %v3750 = vadd.f32 %v3746, %v3749
    %vm3751 = vweird.f32 %v3639
    %vm3752 = vweird.f32 %v3746
    %vm3753 = vmor %vm3751, %vm3752
    %v3754 = vsel %vm3753, %v3746, %v3750
    %v3755 = vand.u32 2147483647, %v3639
    %vm3756 = vcmp.eq.f32.partialorder %v3755, 8.507059e+37
    %v3757 = vand.u32 %v3639, 2147483648
    %v3758 = vor.u32 1.1754944e-38, %v3757
    %v3759 = vsel %vm3756, %v3758, %v3754
    %v3760 = vmul.f32 %v3608, %v3759
    %v3761 = vrcp.pop %v3644
    %v3762 = vmul.f32 %v3644, %v3761
    %v3763 = vsub.f32 1.0, %v3762
    %v3764 = vmul.f32 %v3761, %v3763
    %v3765 = vadd.f32 %v3761, %v3764
    %vm3766 = vweird.f32 %v3644
    %vm3767 = vweird.f32 %v3761
    %vm3768 = vmor %vm3766, %vm3767
    %v3769 = vsel %vm3768, %v3761, %v3765
    %v3770 = vand.u32 2147483647, %v3644
    %vm3771 = vcmp.eq.f32.partialorder %v3770, 8.507059e+37
    %v3772 = vand.u32 %v3644, 2147483648
    %v3773 = vor.u32 1.1754944e-38, %v3772
    %v3774 = vsel %vm3771, %v3773, %v3769
    %v3775 = vmul.f32 %v3609, %v3774
    %v3776 = vrcp.pop %v3649
    %v3777 = vmul.f32 %v3649, %v3776
    %v3778 = vsub.f32 1.0, %v3777
    %v3779 = vmul.f32 %v3776, %v3778
    %v3780 = vadd.f32 %v3776, %v3779
    %vm3781 = vweird.f32 %v3649
    %vm3782 = vweird.f32 %v3776
    %vm3783 = vmor %vm3781, %vm3782
    %v3784 = vsel %vm3783, %v3776, %v3780
    %v3785 = vand.u32 2147483647, %v3649
    %vm3786 = vcmp.eq.f32.partialorder %v3785, 8.507059e+37
    %v3787 = vand.u32 %v3649, 2147483648
    %v3788 = vor.u32 1.1754944e-38, %v3787
    %v3789 = vsel %vm3786, %v3788, %v3784
    %v3790 = vmul.f32 %v3610, %v3789
    %v3791 = vrcp.pop %v3654
    %v3792 = vmul.f32 %v3654, %v3791
    %v3793 = vsub.f32 1.0, %v3792
    %v3794 = vmul.f32 %v3791, %v3793
    %v3795 = vadd.f32 %v3791, %v3794
    %vm3796 = vweird.f32 %v3654
    %vm3797 = vweird.f32 %v3791
    %vm3798 = vmor %vm3796, %vm3797
    %v3799 = vsel %vm3798, %v3791, %v3795
    %v3800 = vand.u32 2147483647, %v3654
    %vm3801 = vcmp.eq.f32.partialorder %v3800, 8.507059e+37
    %v3802 = vand.u32 %v3654, 2147483648
    %v3803 = vor.u32 1.1754944e-38, %v3802
    %v3804 = vsel %vm3801, %v3803, %v3799
    %v3805 = vmul.f32 %v3611, %v3804
    %v3806 = vrcp.pop %v3659
    %v3807 = vmul.f32 %v3659, %v3806
    %v3808 = vsub.f32 1.0, %v3807
    %v3809 = vmul.f32 %v3806, %v3808
    %v3810 = vadd.f32 %v3806, %v3809
    %vm3811 = vweird.f32 %v3659
    %vm3812 = vweird.f32 %v3806
    %vm3813 = vmor %vm3811, %vm3812
    %v3814 = vsel %vm3813, %v3806, %v3810
    %v3815 = vand.u32 2147483647, %v3659
    %vm3816 = vcmp.eq.f32.partialorder %v3815, 8.507059e+37
    %v3817 = vand.u32 %v3659, 2147483648
    %v3818 = vor.u32 1.1754944e-38, %v3817
    %v3819 = vsel %vm3816, %v3818, %v3814
    %v3820 = vmul.f32 %v3612, %v3819
    %v3821 = vrcp.pop %v3664
    %v3822 = vmul.f32 %v3664, %v3821
    %v3823 = vsub.f32 1.0, %v3822
    %v3824 = vmul.f32 %v3821, %v3823
    %v3825 = vadd.f32 %v3821, %v3824
    %vm3826 = vweird.f32 %v3664
    %vm3827 = vweird.f32 %v3821
    %vm3828 = vmor %vm3826, %vm3827
    %v3829 = vsel %vm3828, %v3821, %v3825
    %v3830 = vand.u32 2147483647, %v3664
    %vm3831 = vcmp.eq.f32.partialorder %v3830, 8.507059e+37
    %v3832 = vand.u32 %v3664, 2147483648
    %v3833 = vor.u32 1.1754944e-38, %v3832
    %v3834 = vsel %vm3831, %v3833, %v3829
    %v3835 = vmul.f32 %v3613, %v3834
    %v3836 = vrcp.pop %v3669
    %v3837 = vmul.f32 %v3669, %v3836
    %v3838 = vsub.f32 1.0, %v3837
    %v3839 = vmul.f32 %v3836, %v3838
    %v3840 = vadd.f32 %v3836, %v3839
    %vm3841 = vweird.f32 %v3669
    %vm3842 = vweird.f32 %v3836
    %vm3843 = vmor %vm3841, %vm3842
    %v3844 = vsel %vm3843, %v3836, %v3840
    %v3845 = vand.u32 2147483647, %v3669
    %vm3846 = vcmp.eq.f32.partialorder %v3845, 8.507059e+37
    %v3847 = vand.u32 %v3669, 2147483648
    %v3848 = vor.u32 1.1754944e-38, %v3847
    %v3849 = vsel %vm3846, %v3848, %v3844
    %v3850 = vmul.f32 %v3614, %v3849
    %v3851 = vrcp.pop %v3674
    %v3852 = vmul.f32 %v3674, %v3851
    %v3853 = vsub.f32 1.0, %v3852
    %v3854 = vmul.f32 %v3851, %v3853
    %v3855 = vadd.f32 %v3851, %v3854
    %vm3856 = vweird.f32 %v3674
    %vm3857 = vweird.f32 %v3851
    %vm3858 = vmor %vm3856, %vm3857
    %v3859 = vsel %vm3858, %v3851, %v3855
    %v3860 = vand.u32 2147483647, %v3674
    %vm3861 = vcmp.eq.f32.partialorder %v3860, 8.507059e+37
    %v3862 = vand.u32 %v3674, 2147483648
    %v3863 = vor.u32 1.1754944e-38, %v3862
    %v3864 = vsel %vm3861, %v3863, %v3859
    %v3865 = vmul.f32 %v3615, %v3864
    %v3866 = vrcp.pop %v3679
    %v3867 = vmul.f32 %v3679, %v3866
    %v3868 = vsub.f32 1.0, %v3867
    %v3869 = vmul.f32 %v3866, %v3868
    %v3870 = vadd.f32 %v3866, %v3869
    %vm3871 = vweird.f32 %v3679
    %vm3872 = vweird.f32 %v3866
    %vm3873 = vmor %vm3871, %vm3872
    %v3874 = vsel %vm3873, %v3866, %v3870
    %v3875 = vand.u32 2147483647, %v3679
    %vm3876 = vcmp.eq.f32.partialorder %v3875, 8.507059e+37
    %v3877 = vand.u32 %v3679, 2147483648
    %v3878 = vor.u32 1.1754944e-38, %v3877
    %v3879 = vsel %vm3876, %v3878, %v3874
    %v3880 = vmul.f32 %v3616, %v3879
    %v3881 = vrcp.pop %v3684
    %v3882 = vmul.f32 %v3684, %v3881
    %v3883 = vsub.f32 1.0, %v3882
    %v3884 = vmul.f32 %v3881, %v3883
    %v3885 = vadd.f32 %v3881, %v3884
    %vm3886 = vweird.f32 %v3684
    %vm3887 = vweird.f32 %v3881
    %vm3888 = vmor %vm3886, %vm3887
    %v3889 = vsel %vm3888, %v3881, %v3885
    %v3890 = vand.u32 2147483647, %v3684
    %vm3891 = vcmp.eq.f32.partialorder %v3890, 8.507059e+37
    %v3892 = vand.u32 %v3684, 2147483648
    %v3893 = vor.u32 1.1754944e-38, %v3892
    %v3894 = vsel %vm3891, %v3893, %v3889
    %v3895 = vmul.f32 %v3617, %v3894
    %v3896 = vrcp.pop %v3689
    %v3897 = vmul.f32 %v3689, %v3896
    %v3898 = vsub.f32 1.0, %v3897
    %v3899 = vmul.f32 %v3896, %v3898
    %v3900 = vadd.f32 %v3896, %v3899
    %vm3901 = vweird.f32 %v3689
    %vm3902 = vweird.f32 %v3896
    %vm3903 = vmor %vm3901, %vm3902
    %v3904 = vsel %vm3903, %v3896, %v3900
    %v3905 = vand.u32 2147483647, %v3689
    %vm3906 = vcmp.eq.f32.partialorder %v3905, 8.507059e+37
    %v3907 = vand.u32 %v3689, 2147483648
    %v3908 = vor.u32 1.1754944e-38, %v3907
    %v3909 = vsel %vm3906, %v3908, %v3904
    %v3910 = vmul.f32 %v3618, %v3909
    %v3911 = vrcp.pop %v3694
    %v3912 = vmul.f32 %v3694, %v3911
    %v3913 = vsub.f32 1.0, %v3912
    %v3914 = vmul.f32 %v3911, %v3913
    %v3915 = vadd.f32 %v3911, %v3914
    %vm3916 = vweird.f32 %v3694
    %vm3917 = vweird.f32 %v3911
    %vm3918 = vmor %vm3916, %vm3917
    %v3919 = vsel %vm3918, %v3911, %v3915
    %v3920 = vand.u32 2147483647, %v3694
    %vm3921 = vcmp.eq.f32.partialorder %v3920, 8.507059e+37
    %v3922 = vand.u32 %v3694, 2147483648
    %v3923 = vor.u32 1.1754944e-38, %v3922
    %v3924 = vsel %vm3921, %v3923, %v3919
    %v3925 = vmul.f32 %v3619, %v3924
    %v3926 = vrcp.pop %v3699
    %v3927 = vmul.f32 %v3699, %v3926
    %v3928 = vsub.f32 1.0, %v3927
    %v3929 = vmul.f32 %v3926, %v3928
    %v3930 = vadd.f32 %v3926, %v3929
    %vm3931 = vweird.f32 %v3699
    %vm3932 = vweird.f32 %v3926
    %vm3933 = vmor %vm3931, %vm3932
    %v3934 = vsel %vm3933, %v3926, %v3930
    %v3935 = vand.u32 2147483647, %v3699
    %vm3936 = vcmp.eq.f32.partialorder %v3935, 8.507059e+37
    %v3937 = vand.u32 %v3699, 2147483648
    %v3938 = vor.u32 1.1754944e-38, %v3937
    %v3939 = vsel %vm3936, %v3938, %v3934
    %v3940 = vmul.f32 %v3620, %v3939
    %3941 = vset.pattern.permute.xlu0 33
    %3942 = vperm.xlu0 %3941, %v3605
    %v3943 = vpop.permute.xlu0 %3942
    %3945 = vset.pattern.permute.xlu0 33
    %3946 = vperm.xlu0 %3945, %v3606
    %v3947 = vpop.permute.xlu0 %3946
    %3949 = vset.pattern.permute.xlu0 33
    %3950 = vperm.xlu0 %3949, %v3607
    %v3951 = vpop.permute.xlu0 %3950
    %3953 = vset.pattern.permute.xlu0 33
    %3954 = vperm.xlu0 %3953, %v3608
    %v3955 = vpop.permute.xlu0 %3954
    %3957 = vset.pattern.permute.xlu0 33
    %3958 = vperm.xlu0 %3957, %v3609
    %v3959 = vpop.permute.xlu0 %3958
    %3961 = vset.pattern.permute.xlu0 33
    %3962 = vperm.xlu0 %3961, %v3610
    %v3963 = vpop.permute.xlu0 %3962
    %3965 = vset.pattern.permute.xlu0 33
    %3966 = vperm.xlu0 %3965, %v3611
    %v3967 = vpop.permute.xlu0 %3966
    %3969 = vset.pattern.permute.xlu0 33
    %3970 = vperm.xlu0 %3969, %v3612
    %v3971 = vpop.permute.xlu0 %3970
    %3973 = vset.pattern.permute.xlu0 33
    %3974 = vperm.xlu0 %3973, %v3613
    %v3975 = vpop.permute.xlu0 %3974
    %3977 = vset.pattern.permute.xlu0 33
    %3978 = vperm.xlu0 %3977, %v3614
    %v3979 = vpop.permute.xlu0 %3978
    %3981 = vset.pattern.permute.xlu0 33
    %3982 = vperm.xlu0 %3981, %v3615
    %v3983 = vpop.permute.xlu0 %3982
    %3985 = vset.pattern.permute.xlu0 33
    %3986 = vperm.xlu0 %3985, %v3616
    %v3987 = vpop.permute.xlu0 %3986
    %3989 = vset.pattern.permute.xlu0 33
    %3990 = vperm.xlu0 %3989, %v3617
    %v3991 = vpop.permute.xlu0 %3990
    %3993 = vset.pattern.permute.xlu0 33
    %3994 = vperm.xlu0 %3993, %v3618
    %v3995 = vpop.permute.xlu0 %3994
    %3997 = vset.pattern.permute.xlu0 33
    %3998 = vperm.xlu0 %3997, %v3619
    %v3999 = vpop.permute.xlu0 %3998
    %4001 = vset.pattern.permute.xlu0 33
    %4002 = vperm.xlu0 %4001, %v3620
    %v4003 = vpop.permute.xlu0 %4002
    %v4005 = vrcp.pop %v3943
    %v4006 = vmul.f32 %v3943, %v4005
    %v4007 = vsub.f32 1.0, %v4006
    %v4008 = vmul.f32 %v4005, %v4007
    %v4009 = vadd.f32 %v4005, %v4008
    %vm4010 = vweird.f32 %v3943
    %vm4011 = vweird.f32 %v4005
    %vm4012 = vmor %vm4010, %vm4011
    %v4013 = vsel %vm4012, %v4005, %v4009
    %v4014 = vand.u32 2147483647, %v3943
    %vm4015 = vcmp.eq.f32.partialorder %v4014, 8.507059e+37
    %v4016 = vand.u32 %v3943, 2147483648
    %v4017 = vor.u32 1.1754944e-38, %v4016
    %v4018 = vsel %vm4015, %v4017, %v4013
    %v4019 = vmul.f32 %v3605, %v4018
    %v4020 = vrcp.pop %v3947
    %v4021 = vmul.f32 %v3947, %v4020
    %v4022 = vsub.f32 1.0, %v4021
    %v4023 = vmul.f32 %v4020, %v4022
    %v4024 = vadd.f32 %v4020, %v4023
    %vm4025 = vweird.f32 %v3947
    %vm4026 = vweird.f32 %v4020
    %vm4027 = vmor %vm4025, %vm4026
    %v4028 = vsel %vm4027, %v4020, %v4024
    %v4029 = vand.u32 2147483647, %v3947
    %vm4030 = vcmp.eq.f32.partialorder %v4029, 8.507059e+37
    %v4031 = vand.u32 %v3947, 2147483648
    %v4032 = vor.u32 1.1754944e-38, %v4031
    %v4033 = vsel %vm4030, %v4032, %v4028
    %v4034 = vmul.f32 %v3606, %v4033
    %v4035 = vrcp.pop %v3951
    %v4036 = vmul.f32 %v3951, %v4035
    %v4037 = vsub.f32 1.0, %v4036
    %v4038 = vmul.f32 %v4035, %v4037
    %v4039 = vadd.f32 %v4035, %v4038
    %vm4040 = vweird.f32 %v3951
    %vm4041 = vweird.f32 %v4035
    %vm4042 = vmor %vm4040, %vm4041
    %v4043 = vsel %vm4042, %v4035, %v4039
    %v4044 = vand.u32 2147483647, %v3951
    %vm4045 = vcmp.eq.f32.partialorder %v4044, 8.507059e+37
    %v4046 = vand.u32 %v3951, 2147483648
    %v4047 = vor.u32 1.1754944e-38, %v4046
    %v4048 = vsel %vm4045, %v4047, %v4043
    %v4049 = vmul.f32 %v3607, %v4048
    %v4050 = vrcp.pop %v3955
    %v4051 = vmul.f32 %v3955, %v4050
    %v4052 = vsub.f32 1.0, %v4051
    %v4053 = vmul.f32 %v4050, %v4052
    %v4054 = vadd.f32 %v4050, %v4053
    %vm4055 = vweird.f32 %v3955
    %vm4056 = vweird.f32 %v4050
    %vm4057 = vmor %vm4055, %vm4056
    %v4058 = vsel %vm4057, %v4050, %v4054
    %v4059 = vand.u32 2147483647, %v3955
    %vm4060 = vcmp.eq.f32.partialorder %v4059, 8.507059e+37
    %v4061 = vand.u32 %v3955, 2147483648
    %v4062 = vor.u32 1.1754944e-38, %v4061
    %v4063 = vsel %vm4060, %v4062, %v4058
    %v4064 = vmul.f32 %v3608, %v4063
    %v4065 = vrcp.pop %v3959
    %v4066 = vmul.f32 %v3959, %v4065
    %v4067 = vsub.f32 1.0, %v4066
    %v4068 = vmul.f32 %v4065, %v4067
    %v4069 = vadd.f32 %v4065, %v4068
    %vm4070 = vweird.f32 %v3959
    %vm4071 = vweird.f32 %v4065
    %vm4072 = vmor %vm4070, %vm4071
    %v4073 = vsel %vm4072, %v4065, %v4069
    %v4074 = vand.u32 2147483647, %v3959
    %vm4075 = vcmp.eq.f32.partialorder %v4074, 8.507059e+37
    %v4076 = vand.u32 %v3959, 2147483648
    %v4077 = vor.u32 1.1754944e-38, %v4076
    %v4078 = vsel %vm4075, %v4077, %v4073
    %v4079 = vmul.f32 %v3609, %v4078
    %v4080 = vrcp.pop %v3963
    %v4081 = vmul.f32 %v3963, %v4080
    %v4082 = vsub.f32 1.0, %v4081
    %v4083 = vmul.f32 %v4080, %v4082
    %v4084 = vadd.f32 %v4080, %v4083
    %vm4085 = vweird.f32 %v3963
    %vm4086 = vweird.f32 %v4080
    %vm4087 = vmor %vm4085, %vm4086
    %v4088 = vsel %vm4087, %v4080, %v4084
    %v4089 = vand.u32 2147483647, %v3963
    %vm4090 = vcmp.eq.f32.partialorder %v4089, 8.507059e+37
    %v4091 = vand.u32 %v3963, 2147483648
    %v4092 = vor.u32 1.1754944e-38, %v4091
    %v4093 = vsel %vm4090, %v4092, %v4088
    %v4094 = vmul.f32 %v3610, %v4093
    %v4095 = vrcp.pop %v3967
    %v4096 = vmul.f32 %v3967, %v4095
    %v4097 = vsub.f32 1.0, %v4096
    %v4098 = vmul.f32 %v4095, %v4097
    %v4099 = vadd.f32 %v4095, %v4098
    %vm4100 = vweird.f32 %v3967
    %vm4101 = vweird.f32 %v4095
    %vm4102 = vmor %vm4100, %vm4101
    %v4103 = vsel %vm4102, %v4095, %v4099
    %v4104 = vand.u32 2147483647, %v3967
    %vm4105 = vcmp.eq.f32.partialorder %v4104, 8.507059e+37
    %v4106 = vand.u32 %v3967, 2147483648
    %v4107 = vor.u32 1.1754944e-38, %v4106
    %v4108 = vsel %vm4105, %v4107, %v4103
    %v4109 = vmul.f32 %v3611, %v4108
    %v4110 = vrcp.pop %v3971
    %v4111 = vmul.f32 %v3971, %v4110
    %v4112 = vsub.f32 1.0, %v4111
    %v4113 = vmul.f32 %v4110, %v4112
    %v4114 = vadd.f32 %v4110, %v4113
    %vm4115 = vweird.f32 %v3971
    %vm4116 = vweird.f32 %v4110
    %vm4117 = vmor %vm4115, %vm4116
    %v4118 = vsel %vm4117, %v4110, %v4114
    %v4119 = vand.u32 2147483647, %v3971
    %vm4120 = vcmp.eq.f32.partialorder %v4119, 8.507059e+37
    %v4121 = vand.u32 %v3971, 2147483648
    %v4122 = vor.u32 1.1754944e-38, %v4121
    %v4123 = vsel %vm4120, %v4122, %v4118
    %v4124 = vmul.f32 %v3612, %v4123
    %v4125 = vrcp.pop %v3975
    %v4126 = vmul.f32 %v3975, %v4125
    %v4127 = vsub.f32 1.0, %v4126
    %v4128 = vmul.f32 %v4125, %v4127
    %v4129 = vadd.f32 %v4125, %v4128
    %vm4130 = vweird.f32 %v3975
    %vm4131 = vweird.f32 %v4125
    %vm4132 = vmor %vm4130, %vm4131
    %v4133 = vsel %vm4132, %v4125, %v4129
    %v4134 = vand.u32 2147483647, %v3975
    %vm4135 = vcmp.eq.f32.partialorder %v4134, 8.507059e+37
    %v4136 = vand.u32 %v3975, 2147483648
    %v4137 = vor.u32 1.1754944e-38, %v4136
    %v4138 = vsel %vm4135, %v4137, %v4133
    %v4139 = vmul.f32 %v3613, %v4138
    %v4140 = vrcp.pop %v3979
    %v4141 = vmul.f32 %v3979, %v4140
    %v4142 = vsub.f32 1.0, %v4141
    %v4143 = vmul.f32 %v4140, %v4142
    %v4144 = vadd.f32 %v4140, %v4143
    %vm4145 = vweird.f32 %v3979
    %vm4146 = vweird.f32 %v4140
    %vm4147 = vmor %vm4145, %vm4146
    %v4148 = vsel %vm4147, %v4140, %v4144
    %v4149 = vand.u32 2147483647, %v3979
    %vm4150 = vcmp.eq.f32.partialorder %v4149, 8.507059e+37
    %v4151 = vand.u32 %v3979, 2147483648
    %v4152 = vor.u32 1.1754944e-38, %v4151
    %v4153 = vsel %vm4150, %v4152, %v4148
    %v4154 = vmul.f32 %v3614, %v4153
    %v4155 = vrcp.pop %v3983
    %v4156 = vmul.f32 %v3983, %v4155
    %v4157 = vsub.f32 1.0, %v4156
    %v4158 = vmul.f32 %v4155, %v4157
    %v4159 = vadd.f32 %v4155, %v4158
    %vm4160 = vweird.f32 %v3983
    %vm4161 = vweird.f32 %v4155
    %vm4162 = vmor %vm4160, %vm4161
    %v4163 = vsel %vm4162, %v4155, %v4159
    %v4164 = vand.u32 2147483647, %v3983
    %vm4165 = vcmp.eq.f32.partialorder %v4164, 8.507059e+37
    %v4166 = vand.u32 %v3983, 2147483648
    %v4167 = vor.u32 1.1754944e-38, %v4166
    %v4168 = vsel %vm4165, %v4167, %v4163
    %v4169 = vmul.f32 %v3615, %v4168
    %v4170 = vrcp.pop %v3987
    %v4171 = vmul.f32 %v3987, %v4170
    %v4172 = vsub.f32 1.0, %v4171
    %v4173 = vmul.f32 %v4170, %v4172
    %v4174 = vadd.f32 %v4170, %v4173
    %vm4175 = vweird.f32 %v3987
    %vm4176 = vweird.f32 %v4170
    %vm4177 = vmor %vm4175, %vm4176
    %v4178 = vsel %vm4177, %v4170, %v4174
    %v4179 = vand.u32 2147483647, %v3987
    %vm4180 = vcmp.eq.f32.partialorder %v4179, 8.507059e+37
    %v4181 = vand.u32 %v3987, 2147483648
    %v4182 = vor.u32 1.1754944e-38, %v4181
    %v4183 = vsel %vm4180, %v4182, %v4178
    %v4184 = vmul.f32 %v3616, %v4183
    %v4185 = vrcp.pop %v3991
    %v4186 = vmul.f32 %v3991, %v4185
    %v4187 = vsub.f32 1.0, %v4186
    %v4188 = vmul.f32 %v4185, %v4187
    %v4189 = vadd.f32 %v4185, %v4188
    %vm4190 = vweird.f32 %v3991
    %vm4191 = vweird.f32 %v4185
    %vm4192 = vmor %vm4190, %vm4191
    %v4193 = vsel %vm4192, %v4185, %v4189
    %v4194 = vand.u32 2147483647, %v3991
    %vm4195 = vcmp.eq.f32.partialorder %v4194, 8.507059e+37
    %v4196 = vand.u32 %v3991, 2147483648
    %v4197 = vor.u32 1.1754944e-38, %v4196
    %v4198 = vsel %vm4195, %v4197, %v4193
    %v4199 = vmul.f32 %v3617, %v4198
    %v4200 = vrcp.pop %v3995
    %v4201 = vmul.f32 %v3995, %v4200
    %v4202 = vsub.f32 1.0, %v4201
    %v4203 = vmul.f32 %v4200, %v4202
    %v4204 = vadd.f32 %v4200, %v4203
    %vm4205 = vweird.f32 %v3995
    %vm4206 = vweird.f32 %v4200
    %vm4207 = vmor %vm4205, %vm4206
    %v4208 = vsel %vm4207, %v4200, %v4204
    %v4209 = vand.u32 2147483647, %v3995
    %vm4210 = vcmp.eq.f32.partialorder %v4209, 8.507059e+37
    %v4211 = vand.u32 %v3995, 2147483648
    %v4212 = vor.u32 1.1754944e-38, %v4211
    %v4213 = vsel %vm4210, %v4212, %v4208
    %v4214 = vmul.f32 %v3618, %v4213
    %v4215 = vrcp.pop %v3999
    %v4216 = vmul.f32 %v3999, %v4215
    %v4217 = vsub.f32 1.0, %v4216
    %v4218 = vmul.f32 %v4215, %v4217
    %v4219 = vadd.f32 %v4215, %v4218
    %vm4220 = vweird.f32 %v3999
    %vm4221 = vweird.f32 %v4215
    %vm4222 = vmor %vm4220, %vm4221
    %v4223 = vsel %vm4222, %v4215, %v4219
    %v4224 = vand.u32 2147483647, %v3999
    %vm4225 = vcmp.eq.f32.partialorder %v4224, 8.507059e+37
    %v4226 = vand.u32 %v3999, 2147483648
    %v4227 = vor.u32 1.1754944e-38, %v4226
    %v4228 = vsel %vm4225, %v4227, %v4223
    %v4229 = vmul.f32 %v3619, %v4228
    %v4230 = vrcp.pop %v4003
    %v4231 = vmul.f32 %v4003, %v4230
    %v4232 = vsub.f32 1.0, %v4231
    %v4233 = vmul.f32 %v4230, %v4232
    %v4234 = vadd.f32 %v4230, %v4233
    %vm4235 = vweird.f32 %v4003
    %vm4236 = vweird.f32 %v4230
    %vm4237 = vmor %vm4235, %vm4236
    %v4238 = vsel %vm4237, %v4230, %v4234
    %v4239 = vand.u32 2147483647, %v4003
    %vm4240 = vcmp.eq.f32.partialorder %v4239, 8.507059e+37
    %v4241 = vand.u32 %v4003, 2147483648
    %v4242 = vor.u32 1.1754944e-38, %v4241
    %v4243 = vsel %vm4240, %v4242, %v4238
    %v4244 = vmul.f32 %v3620, %v4243
    %4245 = vset.pattern.permute.xlu0 50
    %4246 = vperm.xlu0 %4245, %v3605
    %v4247 = vpop.permute.xlu0 %4246
    %4249 = vset.pattern.permute.xlu0 50
    %4250 = vperm.xlu0 %4249, %v3606
    %v4251 = vpop.permute.xlu0 %4250
    %4253 = vset.pattern.permute.xlu0 50
    %4254 = vperm.xlu0 %4253, %v3607
    %v4255 = vpop.permute.xlu0 %4254
    %4257 = vset.pattern.permute.xlu0 50
    %4258 = vperm.xlu0 %4257, %v3608
    %v4259 = vpop.permute.xlu0 %4258
    %4261 = vset.pattern.permute.xlu0 50
    %4262 = vperm.xlu0 %4261, %v3609
    %v4263 = vpop.permute.xlu0 %4262
    %4265 = vset.pattern.permute.xlu0 50
    %4266 = vperm.xlu0 %4265, %v3610
    %v4267 = vpop.permute.xlu0 %4266
    %4269 = vset.pattern.permute.xlu0 50
    %4270 = vperm.xlu0 %4269, %v3611
    %v4271 = vpop.permute.xlu0 %4270
    %4273 = vset.pattern.permute.xlu0 50
    %4274 = vperm.xlu0 %4273, %v3612
    %v4275 = vpop.permute.xlu0 %4274
    %4277 = vset.pattern.permute.xlu0 50
    %4278 = vperm.xlu0 %4277, %v3613
    %v4279 = vpop.permute.xlu0 %4278
    %4281 = vset.pattern.permute.xlu0 50
    %4282 = vperm.xlu0 %4281, %v3614
    %v4283 = vpop.permute.xlu0 %4282
    %4285 = vset.pattern.permute.xlu0 50
    %4286 = vperm.xlu0 %4285, %v3615
    %v4287 = vpop.permute.xlu0 %4286
    %4289 = vset.pattern.permute.xlu0 50
    %4290 = vperm.xlu0 %4289, %v3616
    %v4291 = vpop.permute.xlu0 %4290
    %4293 = vset.pattern.permute.xlu0 50
    %4294 = vperm.xlu0 %4293, %v3617
    %v4295 = vpop.permute.xlu0 %4294
    %4297 = vset.pattern.permute.xlu0 50
    %4298 = vperm.xlu0 %4297, %v3618
    %v4299 = vpop.permute.xlu0 %4298
    %4301 = vset.pattern.permute.xlu0 50
    %4302 = vperm.xlu0 %4301, %v3619
    %v4303 = vpop.permute.xlu0 %4302
    %4305 = vset.pattern.permute.xlu0 50
    %4306 = vperm.xlu0 %4305, %v3620
    %v4307 = vpop.permute.xlu0 %4306
    %v4309 = vrcp.pop %v4247
    %v4310 = vmul.f32 %v4247, %v4309
    %v4311 = vsub.f32 1.0, %v4310
    %v4312 = vmul.f32 %v4309, %v4311
    %v4313 = vadd.f32 %v4309, %v4312
    %vm4314 = vweird.f32 %v4247
    %vm4315 = vweird.f32 %v4309
    %vm4316 = vmor %vm4314, %vm4315
    %v4317 = vsel %vm4316, %v4309, %v4313
    %v4318 = vand.u32 2147483647, %v4247
    %vm4319 = vcmp.eq.f32.partialorder %v4318, 8.507059e+37
    %v4320 = vand.u32 %v4247, 2147483648
    %v4321 = vor.u32 1.1754944e-38, %v4320
    %v4322 = vsel %vm4319, %v4321, %v4317
    %v4323 = vmul.f32 %v3605, %v4322
    %v4324 = vrcp.pop %v4251
    %v4325 = vmul.f32 %v4251, %v4324
    %v4326 = vsub.f32 1.0, %v4325
    %v4327 = vmul.f32 %v4324, %v4326
    %v4328 = vadd.f32 %v4324, %v4327
    %vm4329 = vweird.f32 %v4251
    %vm4330 = vweird.f32 %v4324
    %vm4331 = vmor %vm4329, %vm4330
    %v4332 = vsel %vm4331, %v4324, %v4328
    %v4333 = vand.u32 2147483647, %v4251
    %vm4334 = vcmp.eq.f32.partialorder %v4333, 8.507059e+37
    %v4335 = vand.u32 %v4251, 2147483648
    %v4336 = vor.u32 1.1754944e-38, %v4335
    %v4337 = vsel %vm4334, %v4336, %v4332
    %v4338 = vmul.f32 %v3606, %v4337
    %v4339 = vrcp.pop %v4255
    %v4340 = vmul.f32 %v4255, %v4339
    %v4341 = vsub.f32 1.0, %v4340
    %v4342 = vmul.f32 %v4339, %v4341
    %v4343 = vadd.f32 %v4339, %v4342
    %vm4344 = vweird.f32 %v4255
    %vm4345 = vweird.f32 %v4339
    %vm4346 = vmor %vm4344, %vm4345
    %v4347 = vsel %vm4346, %v4339, %v4343
    %v4348 = vand.u32 2147483647, %v4255
    %vm4349 = vcmp.eq.f32.partialorder %v4348, 8.507059e+37
    %v4350 = vand.u32 %v4255, 2147483648
    %v4351 = vor.u32 1.1754944e-38, %v4350
    %v4352 = vsel %vm4349, %v4351, %v4347
    %v4353 = vmul.f32 %v3607, %v4352
    %v4354 = vrcp.pop %v4259
    %v4355 = vmul.f32 %v4259, %v4354
    %v4356 = vsub.f32 1.0, %v4355
    %v4357 = vmul.f32 %v4354, %v4356
    %v4358 = vadd.f32 %v4354, %v4357
    %vm4359 = vweird.f32 %v4259
    %vm4360 = vweird.f32 %v4354
    %vm4361 = vmor %vm4359, %vm4360
    %v4362 = vsel %vm4361, %v4354, %v4358
    %v4363 = vand.u32 2147483647, %v4259
    %vm4364 = vcmp.eq.f32.partialorder %v4363, 8.507059e+37
    %v4365 = vand.u32 %v4259, 2147483648
    %v4366 = vor.u32 1.1754944e-38, %v4365
    %v4367 = vsel %vm4364, %v4366, %v4362
    %v4368 = vmul.f32 %v3608, %v4367
    %v4369 = vrcp.pop %v4263
    %v4370 = vmul.f32 %v4263, %v4369
    %v4371 = vsub.f32 1.0, %v4370
    %v4372 = vmul.f32 %v4369, %v4371
    %v4373 = vadd.f32 %v4369, %v4372
    %vm4374 = vweird.f32 %v4263
    %vm4375 = vweird.f32 %v4369
    %vm4376 = vmor %vm4374, %vm4375
    %v4377 = vsel %vm4376, %v4369, %v4373
    %v4378 = vand.u32 2147483647, %v4263
    %vm4379 = vcmp.eq.f32.partialorder %v4378, 8.507059e+37
    %v4380 = vand.u32 %v4263, 2147483648
    %v4381 = vor.u32 1.1754944e-38, %v4380
    %v4382 = vsel %vm4379, %v4381, %v4377
    %v4383 = vmul.f32 %v3609, %v4382
    %v4384 = vrcp.pop %v4267
    %v4385 = vmul.f32 %v4267, %v4384
    %v4386 = vsub.f32 1.0, %v4385
    %v4387 = vmul.f32 %v4384, %v4386
    %v4388 = vadd.f32 %v4384, %v4387
    %vm4389 = vweird.f32 %v4267
    %vm4390 = vweird.f32 %v4384
    %vm4391 = vmor %vm4389, %vm4390
    %v4392 = vsel %vm4391, %v4384, %v4388
    %v4393 = vand.u32 2147483647, %v4267
    %vm4394 = vcmp.eq.f32.partialorder %v4393, 8.507059e+37
    %v4395 = vand.u32 %v4267, 2147483648
    %v4396 = vor.u32 1.1754944e-38, %v4395
    %v4397 = vsel %vm4394, %v4396, %v4392
    %v4398 = vmul.f32 %v3610, %v4397
    %v4399 = vrcp.pop %v4271
    %v4400 = vmul.f32 %v4271, %v4399
    %v4401 = vsub.f32 1.0, %v4400
    %v4402 = vmul.f32 %v4399, %v4401
    %v4403 = vadd.f32 %v4399, %v4402
    %vm4404 = vweird.f32 %v4271
    %vm4405 = vweird.f32 %v4399
    %vm4406 = vmor %vm4404, %vm4405
    %v4407 = vsel %vm4406, %v4399, %v4403
    %v4408 = vand.u32 2147483647, %v4271
    %vm4409 = vcmp.eq.f32.partialorder %v4408, 8.507059e+37
    %v4410 = vand.u32 %v4271, 2147483648
    %v4411 = vor.u32 1.1754944e-38, %v4410
    %v4412 = vsel %vm4409, %v4411, %v4407
    %v4413 = vmul.f32 %v3611, %v4412
    %v4414 = vrcp.pop %v4275
    %v4415 = vmul.f32 %v4275, %v4414
    %v4416 = vsub.f32 1.0, %v4415
    %v4417 = vmul.f32 %v4414, %v4416
    %v4418 = vadd.f32 %v4414, %v4417
    %vm4419 = vweird.f32 %v4275
    %vm4420 = vweird.f32 %v4414
    %vm4421 = vmor %vm4419, %vm4420
    %v4422 = vsel %vm4421, %v4414, %v4418
    %v4423 = vand.u32 2147483647, %v4275
    %vm4424 = vcmp.eq.f32.partialorder %v4423, 8.507059e+37
    %v4425 = vand.u32 %v4275, 2147483648
    %v4426 = vor.u32 1.1754944e-38, %v4425
    %v4427 = vsel %vm4424, %v4426, %v4422
    %v4428 = vmul.f32 %v3612, %v4427
    %v4429 = vrcp.pop %v4279
    %v4430 = vmul.f32 %v4279, %v4429
    %v4431 = vsub.f32 1.0, %v4430
    %v4432 = vmul.f32 %v4429, %v4431
    %v4433 = vadd.f32 %v4429, %v4432
    %vm4434 = vweird.f32 %v4279
    %vm4435 = vweird.f32 %v4429
    %vm4436 = vmor %vm4434, %vm4435
    %v4437 = vsel %vm4436, %v4429, %v4433
    %v4438 = vand.u32 2147483647, %v4279
    %vm4439 = vcmp.eq.f32.partialorder %v4438, 8.507059e+37
    %v4440 = vand.u32 %v4279, 2147483648
    %v4441 = vor.u32 1.1754944e-38, %v4440
    %v4442 = vsel %vm4439, %v4441, %v4437
    %v4443 = vmul.f32 %v3613, %v4442
    %v4444 = vrcp.pop %v4283
    %v4445 = vmul.f32 %v4283, %v4444
    %v4446 = vsub.f32 1.0, %v4445
    %v4447 = vmul.f32 %v4444, %v4446
    %v4448 = vadd.f32 %v4444, %v4447
    %vm4449 = vweird.f32 %v4283
    %vm4450 = vweird.f32 %v4444
    %vm4451 = vmor %vm4449, %vm4450
    %v4452 = vsel %vm4451, %v4444, %v4448
    %v4453 = vand.u32 2147483647, %v4283
    %vm4454 = vcmp.eq.f32.partialorder %v4453, 8.507059e+37
    %v4455 = vand.u32 %v4283, 2147483648
    %v4456 = vor.u32 1.1754944e-38, %v4455
    %v4457 = vsel %vm4454, %v4456, %v4452
    %v4458 = vmul.f32 %v3614, %v4457
    %v4459 = vrcp.pop %v4287
    %v4460 = vmul.f32 %v4287, %v4459
    %v4461 = vsub.f32 1.0, %v4460
    %v4462 = vmul.f32 %v4459, %v4461
    %v4463 = vadd.f32 %v4459, %v4462
    %vm4464 = vweird.f32 %v4287
    %vm4465 = vweird.f32 %v4459
    %vm4466 = vmor %vm4464, %vm4465
    %v4467 = vsel %vm4466, %v4459, %v4463
    %v4468 = vand.u32 2147483647, %v4287
    %vm4469 = vcmp.eq.f32.partialorder %v4468, 8.507059e+37
    %v4470 = vand.u32 %v4287, 2147483648
    %v4471 = vor.u32 1.1754944e-38, %v4470
    %v4472 = vsel %vm4469, %v4471, %v4467
    %v4473 = vmul.f32 %v3615, %v4472
    %v4474 = vrcp.pop %v4291
    %v4475 = vmul.f32 %v4291, %v4474
    %v4476 = vsub.f32 1.0, %v4475
    %v4477 = vmul.f32 %v4474, %v4476
    %v4478 = vadd.f32 %v4474, %v4477
    %vm4479 = vweird.f32 %v4291
    %vm4480 = vweird.f32 %v4474
    %vm4481 = vmor %vm4479, %vm4480
    %v4482 = vsel %vm4481, %v4474, %v4478
    %v4483 = vand.u32 2147483647, %v4291
    %vm4484 = vcmp.eq.f32.partialorder %v4483, 8.507059e+37
    %v4485 = vand.u32 %v4291, 2147483648
    %v4486 = vor.u32 1.1754944e-38, %v4485
    %v4487 = vsel %vm4484, %v4486, %v4482
    %v4488 = vmul.f32 %v3616, %v4487
    %v4489 = vrcp.pop %v4295
    %v4490 = vmul.f32 %v4295, %v4489
    %v4491 = vsub.f32 1.0, %v4490
    %v4492 = vmul.f32 %v4489, %v4491
    %v4493 = vadd.f32 %v4489, %v4492
    %vm4494 = vweird.f32 %v4295
    %vm4495 = vweird.f32 %v4489
    %vm4496 = vmor %vm4494, %vm4495
    %v4497 = vsel %vm4496, %v4489, %v4493
    %v4498 = vand.u32 2147483647, %v4295
    %vm4499 = vcmp.eq.f32.partialorder %v4498, 8.507059e+37
    %v4500 = vand.u32 %v4295, 2147483648
    %v4501 = vor.u32 1.1754944e-38, %v4500
    %v4502 = vsel %vm4499, %v4501, %v4497
    %v4503 = vmul.f32 %v3617, %v4502
    %v4504 = vrcp.pop %v4299
    %v4505 = vmul.f32 %v4299, %v4504
    %v4506 = vsub.f32 1.0, %v4505
    %v4507 = vmul.f32 %v4504, %v4506
    %v4508 = vadd.f32 %v4504, %v4507
    %vm4509 = vweird.f32 %v4299
    %vm4510 = vweird.f32 %v4504
    %vm4511 = vmor %vm4509, %vm4510
    %v4512 = vsel %vm4511, %v4504, %v4508
    %v4513 = vand.u32 2147483647, %v4299
    %vm4514 = vcmp.eq.f32.partialorder %v4513, 8.507059e+37
    %v4515 = vand.u32 %v4299, 2147483648
    %v4516 = vor.u32 1.1754944e-38, %v4515
    %v4517 = vsel %vm4514, %v4516, %v4512
    %v4518 = vmul.f32 %v3618, %v4517
    %v4519 = vrcp.pop %v4303
    %v4520 = vmul.f32 %v4303, %v4519
    %v4521 = vsub.f32 1.0, %v4520
    %v4522 = vmul.f32 %v4519, %v4521
    %v4523 = vadd.f32 %v4519, %v4522
    %vm4524 = vweird.f32 %v4303
    %vm4525 = vweird.f32 %v4519
    %vm4526 = vmor %vm4524, %vm4525
    %v4527 = vsel %vm4526, %v4519, %v4523
    %v4528 = vand.u32 2147483647, %v4303
    %vm4529 = vcmp.eq.f32.partialorder %v4528, 8.507059e+37
    %v4530 = vand.u32 %v4303, 2147483648
    %v4531 = vor.u32 1.1754944e-38, %v4530
    %v4532 = vsel %vm4529, %v4531, %v4527
    %v4533 = vmul.f32 %v3619, %v4532
    %v4534 = vrcp.pop %v4307
    %v4535 = vmul.f32 %v4307, %v4534
    %v4536 = vsub.f32 1.0, %v4535
    %v4537 = vmul.f32 %v4534, %v4536
    %v4538 = vadd.f32 %v4534, %v4537
    %vm4539 = vweird.f32 %v4307
    %vm4540 = vweird.f32 %v4534
    %vm4541 = vmor %vm4539, %vm4540
    %v4542 = vsel %vm4541, %v4534, %v4538
    %v4543 = vand.u32 2147483647, %v4307
    %vm4544 = vcmp.eq.f32.partialorder %v4543, 8.507059e+37
    %v4545 = vand.u32 %v4307, 2147483648
    %v4546 = vor.u32 1.1754944e-38, %v4545
    %v4547 = vsel %vm4544, %v4546, %v4542
    %v4548 = vmul.f32 %v3620, %v4547
    %4549 = vset.pattern.permute.xlu0 67
    %4550 = vperm.xlu0 %4549, %v3605
    %v4551 = vpop.permute.xlu0 %4550
    %4553 = vset.pattern.permute.xlu0 67
    %4554 = vperm.xlu0 %4553, %v3606
    %v4555 = vpop.permute.xlu0 %4554
    %4557 = vset.pattern.permute.xlu0 67
    %4558 = vperm.xlu0 %4557, %v3607
    %v4559 = vpop.permute.xlu0 %4558
    %4561 = vset.pattern.permute.xlu0 67
    %4562 = vperm.xlu0 %4561, %v3608
    %v4563 = vpop.permute.xlu0 %4562
    %4565 = vset.pattern.permute.xlu0 67
    %4566 = vperm.xlu0 %4565, %v3609
    %v4567 = vpop.permute.xlu0 %4566
    %4569 = vset.pattern.permute.xlu0 67
    %4570 = vperm.xlu0 %4569, %v3610
    %v4571 = vpop.permute.xlu0 %4570
    %4573 = vset.pattern.permute.xlu0 67
    %4574 = vperm.xlu0 %4573, %v3611
    %v4575 = vpop.permute.xlu0 %4574
    %4577 = vset.pattern.permute.xlu0 67
    %4578 = vperm.xlu0 %4577, %v3612
    %v4579 = vpop.permute.xlu0 %4578
    %4581 = vset.pattern.permute.xlu0 67
    %4582 = vperm.xlu0 %4581, %v3613
    %v4583 = vpop.permute.xlu0 %4582
    %4585 = vset.pattern.permute.xlu0 67
    %4586 = vperm.xlu0 %4585, %v3614
    %v4587 = vpop.permute.xlu0 %4586
    %4589 = vset.pattern.permute.xlu0 67
    %4590 = vperm.xlu0 %4589, %v3615
    %v4591 = vpop.permute.xlu0 %4590
    %4593 = vset.pattern.permute.xlu0 67
    %4594 = vperm.xlu0 %4593, %v3616
    %v4595 = vpop.permute.xlu0 %4594
    %4597 = vset.pattern.permute.xlu0 67
    %4598 = vperm.xlu0 %4597, %v3617
    %v4599 = vpop.permute.xlu0 %4598
    %4601 = vset.pattern.permute.xlu0 67
    %4602 = vperm.xlu0 %4601, %v3618
    %v4603 = vpop.permute.xlu0 %4602
    %4605 = vset.pattern.permute.xlu0 67
    %4606 = vperm.xlu0 %4605, %v3619
    %v4607 = vpop.permute.xlu0 %4606
    %4609 = vset.pattern.permute.xlu0 67
    %4610 = vperm.xlu0 %4609, %v3620
    %v4611 = vpop.permute.xlu0 %4610
    %v4613 = vrcp.pop %v4551
    %v4614 = vmul.f32 %v4551, %v4613
    %v4615 = vsub.f32 1.0, %v4614
    %v4616 = vmul.f32 %v4613, %v4615
    %v4617 = vadd.f32 %v4613, %v4616
    %vm4618 = vweird.f32 %v4551
    %vm4619 = vweird.f32 %v4613
    %vm4620 = vmor %vm4618, %vm4619
    %v4621 = vsel %vm4620, %v4613, %v4617
    %v4622 = vand.u32 2147483647, %v4551
    %vm4623 = vcmp.eq.f32.partialorder %v4622, 8.507059e+37
    %v4624 = vand.u32 %v4551, 2147483648
    %v4625 = vor.u32 1.1754944e-38, %v4624
    %v4626 = vsel %vm4623, %v4625, %v4621
    %v4627 = vmul.f32 %v3605, %v4626
    %v4628 = vrcp.pop %v4555
    %v4629 = vmul.f32 %v4555, %v4628
    %v4630 = vsub.f32 1.0, %v4629
    %v4631 = vmul.f32 %v4628, %v4630
    %v4632 = vadd.f32 %v4628, %v4631
    %vm4633 = vweird.f32 %v4555
    %vm4634 = vweird.f32 %v4628
    %vm4635 = vmor %vm4633, %vm4634
    %v4636 = vsel %vm4635, %v4628, %v4632
    %v4637 = vand.u32 2147483647, %v4555
    %vm4638 = vcmp.eq.f32.partialorder %v4637, 8.507059e+37
    %v4639 = vand.u32 %v4555, 2147483648
    %v4640 = vor.u32 1.1754944e-38, %v4639
    %v4641 = vsel %vm4638, %v4640, %v4636
    %v4642 = vmul.f32 %v3606, %v4641
    %v4643 = vrcp.pop %v4559
    %v4644 = vmul.f32 %v4559, %v4643
    %v4645 = vsub.f32 1.0, %v4644
    %v4646 = vmul.f32 %v4643, %v4645
    %v4647 = vadd.f32 %v4643, %v4646
    %vm4648 = vweird.f32 %v4559
    %vm4649 = vweird.f32 %v4643
    %vm4650 = vmor %vm4648, %vm4649
    %v4651 = vsel %vm4650, %v4643, %v4647
    %v4652 = vand.u32 2147483647, %v4559
    %vm4653 = vcmp.eq.f32.partialorder %v4652, 8.507059e+37
    %v4654 = vand.u32 %v4559, 2147483648
    %v4655 = vor.u32 1.1754944e-38, %v4654
    %v4656 = vsel %vm4653, %v4655, %v4651
    %v4657 = vmul.f32 %v3607, %v4656
    %v4658 = vrcp.pop %v4563
    %v4659 = vmul.f32 %v4563, %v4658
    %v4660 = vsub.f32 1.0, %v4659
    %v4661 = vmul.f32 %v4658, %v4660
    %v4662 = vadd.f32 %v4658, %v4661
    %vm4663 = vweird.f32 %v4563
    %vm4664 = vweird.f32 %v4658
    %vm4665 = vmor %vm4663, %vm4664
    %v4666 = vsel %vm4665, %v4658, %v4662
    %v4667 = vand.u32 2147483647, %v4563
    %vm4668 = vcmp.eq.f32.partialorder %v4667, 8.507059e+37
    %v4669 = vand.u32 %v4563, 2147483648
    %v4670 = vor.u32 1.1754944e-38, %v4669
    %v4671 = vsel %vm4668, %v4670, %v4666
    %v4672 = vmul.f32 %v3608, %v4671
    %v4673 = vrcp.pop %v4567
    %v4674 = vmul.f32 %v4567, %v4673
    %v4675 = vsub.f32 1.0, %v4674
    %v4676 = vmul.f32 %v4673, %v4675
    %v4677 = vadd.f32 %v4673, %v4676
    %vm4678 = vweird.f32 %v4567
    %vm4679 = vweird.f32 %v4673
    %vm4680 = vmor %vm4678, %vm4679
    %v4681 = vsel %vm4680, %v4673, %v4677
    %v4682 = vand.u32 2147483647, %v4567
    %vm4683 = vcmp.eq.f32.partialorder %v4682, 8.507059e+37
    %v4684 = vand.u32 %v4567, 2147483648
    %v4685 = vor.u32 1.1754944e-38, %v4684
    %v4686 = vsel %vm4683, %v4685, %v4681
    %v4687 = vmul.f32 %v3609, %v4686
    %v4688 = vrcp.pop %v4571
    %v4689 = vmul.f32 %v4571, %v4688
    %v4690 = vsub.f32 1.0, %v4689
    %v4691 = vmul.f32 %v4688, %v4690
    %v4692 = vadd.f32 %v4688, %v4691
    %vm4693 = vweird.f32 %v4571
    %vm4694 = vweird.f32 %v4688
    %vm4695 = vmor %vm4693, %vm4694
    %v4696 = vsel %vm4695, %v4688, %v4692
    %v4697 = vand.u32 2147483647, %v4571
    %vm4698 = vcmp.eq.f32.partialorder %v4697, 8.507059e+37
    %v4699 = vand.u32 %v4571, 2147483648
    %v4700 = vor.u32 1.1754944e-38, %v4699
    %v4701 = vsel %vm4698, %v4700, %v4696
    %v4702 = vmul.f32 %v3610, %v4701
    %v4703 = vrcp.pop %v4575
    %v4704 = vmul.f32 %v4575, %v4703
    %v4705 = vsub.f32 1.0, %v4704
    %v4706 = vmul.f32 %v4703, %v4705
    %v4707 = vadd.f32 %v4703, %v4706
    %vm4708 = vweird.f32 %v4575
    %vm4709 = vweird.f32 %v4703
    %vm4710 = vmor %vm4708, %vm4709
    %v4711 = vsel %vm4710, %v4703, %v4707
    %v4712 = vand.u32 2147483647, %v4575
    %vm4713 = vcmp.eq.f32.partialorder %v4712, 8.507059e+37
    %v4714 = vand.u32 %v4575, 2147483648
    %v4715 = vor.u32 1.1754944e-38, %v4714
    %v4716 = vsel %vm4713, %v4715, %v4711
    %v4717 = vmul.f32 %v3611, %v4716
    %v4718 = vrcp.pop %v4579
    %v4719 = vmul.f32 %v4579, %v4718
    %v4720 = vsub.f32 1.0, %v4719
    %v4721 = vmul.f32 %v4718, %v4720
    %v4722 = vadd.f32 %v4718, %v4721
    %vm4723 = vweird.f32 %v4579
    %vm4724 = vweird.f32 %v4718
    %vm4725 = vmor %vm4723, %vm4724
    %v4726 = vsel %vm4725, %v4718, %v4722
    %v4727 = vand.u32 2147483647, %v4579
    %vm4728 = vcmp.eq.f32.partialorder %v4727, 8.507059e+37
    %v4729 = vand.u32 %v4579, 2147483648
    %v4730 = vor.u32 1.1754944e-38, %v4729
    %v4731 = vsel %vm4728, %v4730, %v4726
    %v4732 = vmul.f32 %v3612, %v4731
    %v4733 = vrcp.pop %v4583
    %v4734 = vmul.f32 %v4583, %v4733
    %v4735 = vsub.f32 1.0, %v4734
    %v4736 = vmul.f32 %v4733, %v4735
    %v4737 = vadd.f32 %v4733, %v4736
    %vm4738 = vweird.f32 %v4583
    %vm4739 = vweird.f32 %v4733
    %vm4740 = vmor %vm4738, %vm4739
    %v4741 = vsel %vm4740, %v4733, %v4737
    %v4742 = vand.u32 2147483647, %v4583
    %vm4743 = vcmp.eq.f32.partialorder %v4742, 8.507059e+37
    %v4744 = vand.u32 %v4583, 2147483648
    %v4745 = vor.u32 1.1754944e-38, %v4744
    %v4746 = vsel %vm4743, %v4745, %v4741
    %v4747 = vmul.f32 %v3613, %v4746
    %v4748 = vrcp.pop %v4587
    %v4749 = vmul.f32 %v4587, %v4748
    %v4750 = vsub.f32 1.0, %v4749
    %v4751 = vmul.f32 %v4748, %v4750
    %v4752 = vadd.f32 %v4748, %v4751
    %vm4753 = vweird.f32 %v4587
    %vm4754 = vweird.f32 %v4748
    %vm4755 = vmor %vm4753, %vm4754
    %v4756 = vsel %vm4755, %v4748, %v4752
    %v4757 = vand.u32 2147483647, %v4587
    %vm4758 = vcmp.eq.f32.partialorder %v4757, 8.507059e+37
    %v4759 = vand.u32 %v4587, 2147483648
    %v4760 = vor.u32 1.1754944e-38, %v4759
    %v4761 = vsel %vm4758, %v4760, %v4756
    %v4762 = vmul.f32 %v3614, %v4761
    %v4763 = vrcp.pop %v4591
    %v4764 = vmul.f32 %v4591, %v4763
    %v4765 = vsub.f32 1.0, %v4764
    %v4766 = vmul.f32 %v4763, %v4765
    %v4767 = vadd.f32 %v4763, %v4766
    %vm4768 = vweird.f32 %v4591
    %vm4769 = vweird.f32 %v4763
    %vm4770 = vmor %vm4768, %vm4769
    %v4771 = vsel %vm4770, %v4763, %v4767
    %v4772 = vand.u32 2147483647, %v4591
    %vm4773 = vcmp.eq.f32.partialorder %v4772, 8.507059e+37
    %v4774 = vand.u32 %v4591, 2147483648
    %v4775 = vor.u32 1.1754944e-38, %v4774
    %v4776 = vsel %vm4773, %v4775, %v4771
    %v4777 = vmul.f32 %v3615, %v4776
    %v4778 = vrcp.pop %v4595
    %v4779 = vmul.f32 %v4595, %v4778
    %v4780 = vsub.f32 1.0, %v4779
    %v4781 = vmul.f32 %v4778, %v4780
    %v4782 = vadd.f32 %v4778, %v4781
    %vm4783 = vweird.f32 %v4595
    %vm4784 = vweird.f32 %v4778
    %vm4785 = vmor %vm4783, %vm4784
    %v4786 = vsel %vm4785, %v4778, %v4782
    %v4787 = vand.u32 2147483647, %v4595
    %vm4788 = vcmp.eq.f32.partialorder %v4787, 8.507059e+37
    %v4789 = vand.u32 %v4595, 2147483648
    %v4790 = vor.u32 1.1754944e-38, %v4789
    %v4791 = vsel %vm4788, %v4790, %v4786
    %v4792 = vmul.f32 %v3616, %v4791
    %v4793 = vrcp.pop %v4599
    %v4794 = vmul.f32 %v4599, %v4793
    %v4795 = vsub.f32 1.0, %v4794
    %v4796 = vmul.f32 %v4793, %v4795
    %v4797 = vadd.f32 %v4793, %v4796
    %vm4798 = vweird.f32 %v4599
    %vm4799 = vweird.f32 %v4793
    %vm4800 = vmor %vm4798, %vm4799
    %v4801 = vsel %vm4800, %v4793, %v4797
    %v4802 = vand.u32 2147483647, %v4599
    %vm4803 = vcmp.eq.f32.partialorder %v4802, 8.507059e+37
    %v4804 = vand.u32 %v4599, 2147483648
    %v4805 = vor.u32 1.1754944e-38, %v4804
    %v4806 = vsel %vm4803, %v4805, %v4801
    %v4807 = vmul.f32 %v3617, %v4806
    %v4808 = vrcp.pop %v4603
    %v4809 = vmul.f32 %v4603, %v4808
    %v4810 = vsub.f32 1.0, %v4809
    %v4811 = vmul.f32 %v4808, %v4810
    %v4812 = vadd.f32 %v4808, %v4811
    %vm4813 = vweird.f32 %v4603
    %vm4814 = vweird.f32 %v4808
    %vm4815 = vmor %vm4813, %vm4814
    %v4816 = vsel %vm4815, %v4808, %v4812
    %v4817 = vand.u32 2147483647, %v4603
    %vm4818 = vcmp.eq.f32.partialorder %v4817, 8.507059e+37
    %v4819 = vand.u32 %v4603, 2147483648
    %v4820 = vor.u32 1.1754944e-38, %v4819
    %v4821 = vsel %vm4818, %v4820, %v4816
    %v4822 = vmul.f32 %v3618, %v4821
    %v4823 = vrcp.pop %v4607
    %v4824 = vmul.f32 %v4607, %v4823
    %v4825 = vsub.f32 1.0, %v4824
    %v4826 = vmul.f32 %v4823, %v4825
    %v4827 = vadd.f32 %v4823, %v4826
    %vm4828 = vweird.f32 %v4607
    %vm4829 = vweird.f32 %v4823
    %vm4830 = vmor %vm4828, %vm4829
    %v4831 = vsel %vm4830, %v4823, %v4827
    %v4832 = vand.u32 2147483647, %v4607
    %vm4833 = vcmp.eq.f32.partialorder %v4832, 8.507059e+37
    %v4834 = vand.u32 %v4607, 2147483648
    %v4835 = vor.u32 1.1754944e-38, %v4834
    %v4836 = vsel %vm4833, %v4835, %v4831
    %v4837 = vmul.f32 %v3619, %v4836
    %v4838 = vrcp.pop %v4611
    %v4839 = vmul.f32 %v4611, %v4838
    %v4840 = vsub.f32 1.0, %v4839
    %v4841 = vmul.f32 %v4838, %v4840
    %v4842 = vadd.f32 %v4838, %v4841
    %vm4843 = vweird.f32 %v4611
    %vm4844 = vweird.f32 %v4838
    %vm4845 = vmor %vm4843, %vm4844
    %v4846 = vsel %vm4845, %v4838, %v4842
    %v4847 = vand.u32 2147483647, %v4611
    %vm4848 = vcmp.eq.f32.partialorder %v4847, 8.507059e+37
    %v4849 = vand.u32 %v4611, 2147483648
    %v4850 = vor.u32 1.1754944e-38, %v4849
    %v4851 = vsel %vm4848, %v4850, %v4846
    %v4852 = vmul.f32 %v3620, %v4851
    %4869 = vrot.lane.b32.xlu0 %v4019, 127
    %v4870 = vpop.permute.xlu0 %4869
    %4871 = vrot.lane.b32.xlu0 %v4034, 127
    %v4872 = vpop.permute.xlu0 %4871
    %4873 = vrot.lane.b32.xlu0 %v4049, 127
    %v4874 = vpop.permute.xlu0 %4873
    %4875 = vrot.lane.b32.xlu0 %v4064, 127
    %v4876 = vpop.permute.xlu0 %4875
    %4877 = vrot.lane.b32.xlu0 %v4079, 127
    %v4878 = vpop.permute.xlu0 %4877
    %4879 = vrot.lane.b32.xlu0 %v4094, 127
    %v4880 = vpop.permute.xlu0 %4879
    %4881 = vrot.lane.b32.xlu0 %v4109, 127
    %v4882 = vpop.permute.xlu0 %4881
    %4883 = vrot.lane.b32.xlu0 %v4124, 127
    %v4884 = vpop.permute.xlu0 %4883
    %4885 = vrot.lane.b32.xlu0 %v4139, 127
    %v4886 = vpop.permute.xlu0 %4885
    %4887 = vrot.lane.b32.xlu0 %v4154, 127
    %v4888 = vpop.permute.xlu0 %4887
    %4889 = vrot.lane.b32.xlu0 %v4169, 127
    %v4890 = vpop.permute.xlu0 %4889
    %4891 = vrot.lane.b32.xlu0 %v4184, 127
    %v4892 = vpop.permute.xlu0 %4891
    %4893 = vrot.lane.b32.xlu0 %v4199, 127
    %v4894 = vpop.permute.xlu0 %4893
    %4895 = vrot.lane.b32.xlu0 %v4214, 127
    %v4896 = vpop.permute.xlu0 %4895
    %4897 = vrot.lane.b32.xlu0 %v4229, 127
    %v4898 = vpop.permute.xlu0 %4897
    %4899 = vrot.lane.b32.xlu0 %v4244, 127
    %v4900 = vpop.permute.xlu0 %4899
    %4933 = vrot.lane.b32.xlu0 %v4323, 126
    %v4934 = vpop.permute.xlu0 %4933
    %4935 = vrot.lane.b32.xlu0 %v4338, 126
    %v4936 = vpop.permute.xlu0 %4935
    %4937 = vrot.lane.b32.xlu0 %v4353, 126
    %v4938 = vpop.permute.xlu0 %4937
    %4939 = vrot.lane.b32.xlu0 %v4368, 126
    %v4940 = vpop.permute.xlu0 %4939
    %4941 = vrot.lane.b32.xlu0 %v4383, 126
    %v4942 = vpop.permute.xlu0 %4941
    %4943 = vrot.lane.b32.xlu0 %v4398, 126
    %v4944 = vpop.permute.xlu0 %4943
    %4945 = vrot.lane.b32.xlu0 %v4413, 126
    %v4946 = vpop.permute.xlu0 %4945
    %4947 = vrot.lane.b32.xlu0 %v4428, 126
    %v4948 = vpop.permute.xlu0 %4947
    %4949 = vrot.lane.b32.xlu0 %v4443, 126
    %v4950 = vpop.permute.xlu0 %4949
    %4951 = vrot.lane.b32.xlu0 %v4458, 126
    %v4952 = vpop.permute.xlu0 %4951
    %4953 = vrot.lane.b32.xlu0 %v4473, 126
    %v4954 = vpop.permute.xlu0 %4953
    %4955 = vrot.lane.b32.xlu0 %v4488, 126
    %v4956 = vpop.permute.xlu0 %4955
    %4957 = vrot.lane.b32.xlu0 %v4503, 126
    %v4958 = vpop.permute.xlu0 %4957
    %4959 = vrot.lane.b32.xlu0 %v4518, 126
    %v4960 = vpop.permute.xlu0 %4959
    %4961 = vrot.lane.b32.xlu0 %v4533, 126
    %v4962 = vpop.permute.xlu0 %4961
    %4963 = vrot.lane.b32.xlu0 %v4548, 126
    %v4964 = vpop.permute.xlu0 %4963
    %4997 = vrot.lane.b32.xlu0 %v4627, 125
    %v4998 = vpop.permute.xlu0 %4997
    %4999 = vrot.lane.b32.xlu0 %v4642, 125
    %v5000 = vpop.permute.xlu0 %4999
    %5001 = vrot.lane.b32.xlu0 %v4657, 125
    %v5002 = vpop.permute.xlu0 %5001
    %5003 = vrot.lane.b32.xlu0 %v4672, 125
    %v5004 = vpop.permute.xlu0 %5003
    %5005 = vrot.lane.b32.xlu0 %v4687, 125
    %v5006 = vpop.permute.xlu0 %5005
    %5007 = vrot.lane.b32.xlu0 %v4702, 125
    %v5008 = vpop.permute.xlu0 %5007
    %5009 = vrot.lane.b32.xlu0 %v4717, 125
    %v5010 = vpop.permute.xlu0 %5009
    %5011 = vrot.lane.b32.xlu0 %v4732, 125
    %v5012 = vpop.permute.xlu0 %5011
    %5013 = vrot.lane.b32.xlu0 %v4747, 125
    %v5014 = vpop.permute.xlu0 %5013
    %5015 = vrot.lane.b32.xlu0 %v4762, 125
    %v5016 = vpop.permute.xlu0 %5015
    %5017 = vrot.lane.b32.xlu0 %v4777, 125
    %v5018 = vpop.permute.xlu0 %5017
    %5019 = vrot.lane.b32.xlu0 %v4792, 125
    %v5020 = vpop.permute.xlu0 %5019
    %5021 = vrot.lane.b32.xlu0 %v4807, 125
    %v5022 = vpop.permute.xlu0 %5021
    %5023 = vrot.lane.b32.xlu0 %v4822, 125
    %v5024 = vpop.permute.xlu0 %5023
    %5025 = vrot.lane.b32.xlu0 %v4837, 125
    %v5026 = vpop.permute.xlu0 %5025
    %5027 = vrot.lane.b32.xlu0 %v4852, 125
    %v5028 = vpop.permute.xlu0 %5027
    %vm5045 = vcmask 130048
    %v5046 = vsel %vm5045, %v3715, %v4870
    %v5047 = vsel %vm5045, %v3730, %v4872
    %v5048 = vsel %vm5045, %v3745, %v4874
    %v5049 = vsel %vm5045, %v3760, %v4876
    %v5050 = vsel %vm5045, %v3775, %v4878
    %v5051 = vsel %vm5045, %v3790, %v4880
    %v5052 = vsel %vm5045, %v3805, %v4882
    %v5053 = vsel %vm5045, %v3820, %v4884
    %v5054 = vsel %vm5045, %v3835, %v4886
    %v5055 = vsel %vm5045, %v3850, %v4888
    %v5056 = vsel %vm5045, %v3865, %v4890
    %v5057 = vsel %vm5045, %v3880, %v4892
    %v5058 = vsel %vm5045, %v3895, %v4894
    %v5059 = vsel %vm5045, %v3910, %v4896
    %v5060 = vsel %vm5045, %v3925, %v4898
    %v5061 = vsel %vm5045, %v3940, %v4900
    %vm5062 = vcmask 261120
    %v5063 = vsel %vm5062, %v5046, %v4934
    %v5064 = vsel %vm5062, %v5047, %v4936
    %v5065 = vsel %vm5062, %v5048, %v4938
    %v5066 = vsel %vm5062, %v5049, %v4940
    %v5067 = vsel %vm5062, %v5050, %v4942
    %v5068 = vsel %vm5062, %v5051, %v4944
    %v5069 = vsel %vm5062, %v5052, %v4946
    %v5070 = vsel %vm5062, %v5053, %v4948
    %v5071 = vsel %vm5062, %v5054, %v4950
    %v5072 = vsel %vm5062, %v5055, %v4952
    %v5073 = vsel %vm5062, %v5056, %v4954
    %v5074 = vsel %vm5062, %v5057, %v4956
    %v5075 = vsel %vm5062, %v5058, %v4958
    %v5076 = vsel %vm5062, %v5059, %v4960
    %v5077 = vsel %vm5062, %v5060, %v4962
    %v5078 = vsel %vm5062, %v5061, %v4964
    %vm5079 = vcmask 392192
    %v5080 = vsel %vm5079, %v5063, %v4998
    %v5081 = vsel %vm5079, %v5064, %v5000
    %v5082 = vsel %vm5079, %v5065, %v5002
    %v5083 = vsel %vm5079, %v5066, %v5004
    %v5084 = vsel %vm5079, %v5067, %v5006
    %v5085 = vsel %vm5079, %v5068, %v5008
    %v5086 = vsel %vm5079, %v5069, %v5010
    %v5087 = vsel %vm5079, %v5070, %v5012
    %v5088 = vsel %vm5079, %v5071, %v5014
    %v5089 = vsel %vm5079, %v5072, %v5016
    %v5090 = vsel %vm5079, %v5073, %v5018
    %v5091 = vsel %vm5079, %v5074, %v5020
    %v5092 = vsel %vm5079, %v5075, %v5022
    %v5093 = vsel %vm5079, %v5076, %v5024
    %v5094 = vsel %vm5079, %v5077, %v5026
    %v5095 = vsel %vm5079, %v5078, %v5028
    %vm5096 = vcmp.gt.f32.partialorder %v5080, 0.0
    %vm5097 = vcmp.gt.f32.partialorder %v5081, 0.0
    %vm5098 = vcmp.gt.f32.partialorder %v5082, 0.0
    %vm5099 = vcmp.gt.f32.partialorder %v5083, 0.0
    %vm5100 = vcmp.gt.f32.partialorder %v5084, 0.0
    %vm5101 = vcmp.gt.f32.partialorder %v5085, 0.0
    %vm5102 = vcmp.gt.f32.partialorder %v5086, 0.0
    %vm5103 = vcmp.gt.f32.partialorder %v5087, 0.0
    %vm5104 = vcmp.gt.f32.partialorder %v5088, 0.0
    %vm5105 = vcmp.gt.f32.partialorder %v5089, 0.0
    %vm5106 = vcmp.gt.f32.partialorder %v5090, 0.0
    %vm5107 = vcmp.gt.f32.partialorder %v5091, 0.0
    %vm5108 = vcmp.gt.f32.partialorder %v5092, 0.0
    %vm5109 = vcmp.gt.f32.partialorder %v5093, 0.0
    %vm5110 = vcmp.gt.f32.partialorder %v5094, 0.0
    %vm5111 = vcmp.gt.f32.partialorder %v5095, 0.0
    %v5112 = vmin.f32 %v5080, 0.0
    %v5113 = vmin.f32 %v5081, 0.0
    %v5114 = vmin.f32 %v5082, 0.0
    %v5115 = vmin.f32 %v5083, 0.0
    %v5116 = vmin.f32 %v5084, 0.0
    %v5117 = vmin.f32 %v5085, 0.0
    %v5118 = vmin.f32 %v5086, 0.0
    %v5119 = vmin.f32 %v5087, 0.0
    %v5120 = vmin.f32 %v5088, 0.0
    %v5121 = vmin.f32 %v5089, 0.0
    %v5122 = vmin.f32 %v5090, 0.0
    %v5123 = vmin.f32 %v5091, 0.0
    %v5124 = vmin.f32 %v5092, 0.0
    %v5125 = vmin.f32 %v5093, 0.0
    %v5126 = vmin.f32 %v5094, 0.0
    %v5127 = vmin.f32 %v5095, 0.0
    %v5128 = vmul.f32 %v5112, 1.442695
    %v5129 = vpow.pop %v5128
    %v5130 = vmul.f32 %v5113, 1.442695
    %v5131 = vpow.pop %v5130
    %v5132 = vmul.f32 %v5114, 1.442695
    %v5133 = vpow.pop %v5132
    %v5134 = vmul.f32 %v5115, 1.442695
    %v5135 = vpow.pop %v5134
    %v5136 = vmul.f32 %v5116, 1.442695
    %v5137 = vpow.pop %v5136
    %v5138 = vmul.f32 %v5117, 1.442695
    %v5139 = vpow.pop %v5138
    %v5140 = vmul.f32 %v5118, 1.442695
    %v5141 = vpow.pop %v5140
    %v5142 = vmul.f32 %v5119, 1.442695
    %v5143 = vpow.pop %v5142
    %v5144 = vmul.f32 %v5120, 1.442695
    %v5145 = vpow.pop %v5144
    %v5146 = vmul.f32 %v5121, 1.442695
    %v5147 = vpow.pop %v5146
    %v5148 = vmul.f32 %v5122, 1.442695
    %v5149 = vpow.pop %v5148
    %v5150 = vmul.f32 %v5123, 1.442695
    %v5151 = vpow.pop %v5150
    %v5152 = vmul.f32 %v5124, 1.442695
    %v5153 = vpow.pop %v5152
    %v5154 = vmul.f32 %v5125, 1.442695
    %v5155 = vpow.pop %v5154
    %v5156 = vmul.f32 %v5126, 1.442695
    %v5157 = vpow.pop %v5156
    %v5158 = vmul.f32 %v5127, 1.442695
    %v5159 = vpow.pop %v5158
    %v5160 = vsub.f32 %v5129, 1.0
    %v5161 = vsub.f32 %v5131, 1.0
    %v5162 = vsub.f32 %v5133, 1.0
    %v5163 = vsub.f32 %v5135, 1.0
    %v5164 = vsub.f32 %v5137, 1.0
    %v5165 = vsub.f32 %v5139, 1.0
    %v5166 = vsub.f32 %v5141, 1.0
    %v5167 = vsub.f32 %v5143, 1.0
    %v5168 = vsub.f32 %v5145, 1.0
    %v5169 = vsub.f32 %v5147, 1.0
    %v5170 = vsub.f32 %v5149, 1.0
    %v5171 = vsub.f32 %v5151, 1.0
    %v5172 = vsub.f32 %v5153, 1.0
    %v5173 = vsub.f32 %v5155, 1.0
    %v5174 = vsub.f32 %v5157, 1.0
    %v5175 = vsub.f32 %v5159, 1.0
    %v5176 = vsel %vm5096, %v5080, %v5160
    %v5177 = vsel %vm5097, %v5081, %v5161
    %v5178 = vsel %vm5098, %v5082, %v5162
    %v5179 = vsel %vm5099, %v5083, %v5163
    %v5180 = vsel %vm5100, %v5084, %v5164
    %v5181 = vsel %vm5101, %v5085, %v5165
    %v5182 = vsel %vm5102, %v5086, %v5166
    %v5183 = vsel %vm5103, %v5087, %v5167
    %v5184 = vsel %vm5104, %v5088, %v5168
    %v5185 = vsel %vm5105, %v5089, %v5169
    %v5186 = vsel %vm5106, %v5090, %v5170
    %v5187 = vsel %vm5107, %v5091, %v5171
    %v5188 = vsel %vm5108, %v5092, %v5172
    %v5189 = vsel %vm5109, %v5093, %v5173
    %v5190 = vsel %vm5110, %v5094, %v5174
    %v5191 = vsel %vm5111, %v5095, %v5175
    %v5192 = vpack.c.bf16 %v5176, %v5176
    %v5193 = vpack.c.bf16 %v5177, %v5177
    %v5194 = vpack.c.bf16 %v5178, %v5178
    %v5195 = vpack.c.bf16 %v5179, %v5179
    %v5196 = vpack.c.bf16 %v5180, %v5180
    %v5197 = vpack.c.bf16 %v5181, %v5181
    %v5198 = vpack.c.bf16 %v5182, %v5182
    %v5199 = vpack.c.bf16 %v5183, %v5183
    %v5200 = vpack.c.bf16 %v5184, %v5184
    %v5201 = vpack.c.bf16 %v5185, %v5185
    %v5202 = vpack.c.bf16 %v5186, %v5186
    %v5203 = vpack.c.bf16 %v5187, %v5187
    %v5204 = vpack.c.bf16 %v5188, %v5188
    %v5205 = vpack.c.bf16 %v5189, %v5189
    %v5206 = vpack.c.bf16 %v5190, %v5190
    %v5207 = vpack.c.bf16 %v5191, %v5191
    %vm5208 = vcmask 519168
    %5209 = vst.msk [vmem:[%s4] sm:$0xf] %vm5208, %v5192
    %5210 = vst.msk [vmem:[%s4 + $0x4] sm:$0xf] %vm5208, %v5193
    %5211 = vst.msk [vmem:[%s4 + $0x8] sm:$0xf] %vm5208, %v5194
    %5212 = vst.msk [vmem:[%s4 + $0xc] sm:$0xf] %vm5208, %v5195
    %5213 = vst.msk [vmem:[%s4 + $0x10] sm:$0xf] %vm5208, %v5196
    %5214 = vst.msk [vmem:[%s4 + $0x14] sm:$0xf] %vm5208, %v5197
    %5215 = vst.msk [vmem:[%s4 + $0x18] sm:$0xf] %vm5208, %v5198
    %5216 = vst.msk [vmem:[%s4 + $0x1c] sm:$0xf] %vm5208, %v5199
    %5217 = vst.msk [vmem:[%s4 + $0x20] sm:$0xf] %vm5208, %v5200
    %5218 = vst.msk [vmem:[%s4 + $0x24] sm:$0xf] %vm5208, %v5201
    %5219 = vst.msk [vmem:[%s4 + $0x28] sm:$0xf] %vm5208, %v5202
    %5220 = vst.msk [vmem:[%s4 + $0x2c] sm:$0xf] %vm5208, %v5203
    %5221 = vst.msk [vmem:[%s4 + $0x30] sm:$0xf] %vm5208, %v5204
    %5222 = vst.msk [vmem:[%s4 + $0x34] sm:$0xf] %vm5208, %v5205
    %5223 = vst.msk [vmem:[%s4 + $0x38] sm:$0xf] %vm5208, %v5206
    %5224 = vst.msk [vmem:[%s4 + $0x3c] sm:$0xf] %vm5208, %v5207
  $region25: #{gat_forward.5} parent=0 // pred_fallthru
    _
  // Predicated region
  $region26: #{gat_forward.5} parent=0 // pred_check
    _
  $region27: #{gat_forward.5} parent=0 // pred_check_branch
    %5226 = sbr.rel (0) target = $region29
  $region28: #{gat_forward.5} parent=0 // pred_region
    _
  $region29: #{gat_forward.5} parent=0 // pred_fallthru
    _
  // Predicated region
  $region30: #{gat_forward.5} parent=0 // pred_check
    _
  $region31: #{gat_forward.5} parent=0 // pred_check_branch
    %5228 = sbr.rel (0) target = $region33
  $region32: #{gat_forward.5} parent=0 // pred_region
    _
  $region33: #{gat_forward.5} parent=0 // pred_fallthru
    _

</llo_original>
